<compile_context>
chip_gen: v5e
topology: v5e:2x2
jax: 0.10.0
libtpu: 0.0.40
codegen_flags: <defaults>
</compile_context>

<pallas_src>
import functools
import math

import jax
import jax.numpy as jnp
from jax.experimental import pallas as pl
from jax.experimental.pallas import tpu as pltpu


def _round_up(x, m):
    return ((x + m - 1) // m) * m


def _make_fused_kernel(layer_cfgs, H, W):
    """Fused per-image kernel for a static tuple of ConcatConv2d layer configs."""
    HW = H * W
    n_layers = len(layer_cfgs)

    def kernel(*refs):
        t_ref = refs[0]                       # (1, 1) f32, SMEM
        y_ref = refs[1]                       # (1, C0, HW) f32, VMEM
        o_ref = refs[2 + 2 * n_layers]        # (1, C_last, HW), VMEM
        xbuf = refs[3 + 2 * n_layers]         # (C_buf, LBUF) f32, VMEM scratch

        t_val = t_ref[0, 0]
        # Lane-column index (0..W-1 repeating) for the left/right zero-pad masks.
        col = jax.lax.broadcasted_iota(jnp.int32, (1, HW), 1) % W

        act = y_ref[0]                        # (C0, HW) f32
        for l, cfg in enumerate(layer_cfgs):
            c_in, c_out = cfg["c_in"], cfg["c_out"]
            kh_sz, kw_sz = cfg["kh"], cfg["kw"]
            pad, guard = cfg["pad"], cfg["guard"]
            w_ref = refs[2 + 2 * l]           # (KH*KW, C_out, C_in+1)
            b_ref = refs[3 + 2 * l]           # (C_out, 1)

            # Rebuild the zero-padded slab for this layer's input (row padding and
            # the lane guards stay zero; only the real rows get written).
            xbuf[...] = jnp.zeros(xbuf.shape, xbuf.dtype)
            base = guard + pad * W            # 128-aligned start of the real rows
            xbuf[0:1, base:base + HW] = jnp.full((1, HW), t_val, xbuf.dtype)
            xbuf[1:1 + c_in, base:base + HW] = act

            acc = jnp.zeros((c_out, HW), jnp.float32)
            for kh in range(kh_sz):
                for kw in range(kw_sz):
                    start = guard + kh * W + kw - pad   # static in-bounds offset
                    win = xbuf[0:c_in + 1, start:start + HW]
                    # Column-validity mask (the conv's left/right zero padding).
                    lo, hi = pad - kw, W + pad - kw
                    cond = None
                    if lo > 0:
                        cond = col >= lo
                    if hi < W:
                        c2 = col < hi
                        cond = c2 if cond is None else jnp.logical_and(cond, c2)
                    if cond is not None:
                        win = jnp.where(jnp.broadcast_to(cond, win.shape), win, 0.0)
                    acc = acc + jnp.dot(
                        w_ref[kh * kw_sz + kw], win,
                        preferred_element_type=jnp.float32,
                        precision=jax.lax.Precision.HIGHEST)
            act = acc + b_ref[...]            # stays in VMEM/vregs for next layer

        o_ref[0] = act.astype(o_ref.dtype)

    return kernel


@functools.partial(jax.jit, static_argnames=("paddings",))
def diffeq_sequential(t, y, weights, biases, paddings):
    """DiffEqSequential.forward(t, y) where every layer is a ConcatConv2d.

    weights: tuple of OIHW arrays (C_out, C_in+1, KH, KW); biases: tuple of (C_out,);
    paddings: tuple of ints (static).
    # TODO(synk): the `params is not None` forward branch and make_initial_params are
    # host-side parameter plumbing; only the default forward data path is implemented.
    """
    N, C0, H, W = y.shape
    HW = H * W
    n_layers = len(weights)
    assert len(biases) == n_layers and len(paddings) == n_layers

    # Static per-layer config.  Fail loudly on unsupported ConcatConv2d configs
    # (implicitly stride=1, dilation=1, groups=1, non-transposed; require "same" conv).
    layer_cfgs = []
    c_prev, c_buf, lbuf = C0, 0, 0
    for w, b, p in zip(weights, biases, paddings):
        c_out, c_in_p1, kh, kw = w.shape
        c_in = c_in_p1 - 1
        assert c_in == c_prev, "ConcatConv2d channel chain mismatch"
        assert b.shape == (c_out,)
        assert kh == kw and 2 * p == kw - 1, (
            "only stride=1, dilation=1, groups=1 'same' ConcatConv2d "
            "(2*padding == ksize-1) is supported")
        # Guard so every tap window is an in-bounds static slice and the activation
        # fill lands on a 128-aligned lane offset (unmasked vector stores).
        guard = (-(p * W)) % 128
        if guard < p:
            guard += 128
        layer_cfgs.append(dict(c_in=c_in, c_out=c_out, kh=kh, kw=kw, pad=p,
                               guard=guard))
        lbuf = max(lbuf, _round_up(guard + (H + 2 * p) * W + p, 128))
        c_buf = max(c_buf, c_in + 1)
        c_prev = c_out
    c_last = c_prev
    layer_cfgs = tuple(layer_cfgs)

    t2d = jnp.asarray(t, jnp.float32).reshape(1, 1)
    y_flat = y.reshape(N, C0, HW).astype(jnp.float32)

    kernel_inputs = [t2d, y_flat]
    in_specs = [
        pl.BlockSpec(memory_space=pltpu.MemorySpace.SMEM),          # t scalar
        pl.BlockSpec((1, C0, HW), lambda n: (n, 0, 0)),             # one image/step
    ]
    for w, b, cfg in zip(weights, biases, layer_cfgs):
        kh, kw = cfg["kh"], cfg["kw"]
        # Tap-major weight layout (KH*KW, C_out, C_in+1): one (C_out, C_in+1) tile
        # per tap, selected in-kernel with a static leading index.
        w_taps = (w.astype(jnp.float32)
                   .transpose(2, 3, 0, 1)
                   .reshape(kh * kw, cfg["c_out"], cfg["c_in"] + 1))
        b2d = b.astype(jnp.float32).reshape(cfg["c_out"], 1)
        kernel_inputs += [w_taps, b2d]
        in_specs += [
            pl.BlockSpec(w_taps.shape, lambda n: (0, 0, 0)),        # VMEM-resident
            pl.BlockSpec(b2d.shape, lambda n: (0, 0)),
        ]

    kernel = _make_fused_kernel(layer_cfgs, H, W)

    out = pl.pallas_call(
        kernel,
        out_shape=jax.ShapeDtypeStruct((N, c_last, HW), y.dtype),
        grid=(N,),
        in_specs=in_specs,
        out_specs=pl.BlockSpec((1, c_last, HW), lambda n: (n, 0, 0)),
        scratch_shapes=[pltpu.VMEM((c_buf, lbuf), jnp.float32)],
        compiler_params=pltpu.CompilerParams(
            dimension_semantics=("parallel",),
            vmem_limit_bytes=32 * 1024 * 1024),
    )(*kernel_inputs)

    # (N, C_out, H*W) is already NCHW-flat -> free reshape, no transpose.
    return out.reshape(N, c_last, H, W)


if __name__ == "__main__":
    # DiffEqSequential(ConcatConv2d(4 -> 8), ConcatConv2d(8 -> 4)), 16x16 images.
    N, H, W = 2, 16, 16
    channels = (4, 8, 4)
    ksize, padding = 3, 1

    key = jax.random.PRNGKey(0)
    key, k_y = jax.random.split(key)
    y = jax.random.normal(k_y, (N, channels[0], H, W), jnp.float32)   # NCHW
    t = jnp.float32(0.7)                                              # ODE time scalar

    weights, biases, paddings = [], [], []
    for cin, cout in zip(channels[:-1], channels[1:]):
        key, k_w, k_b = jax.random.split(key, 3)
        fan_in = (cin + 1) * ksize * ksize
        bound = 1.0 / math.sqrt(fan_in)
        weights.append(jax.random.uniform(k_w, (cout, cin + 1, ksize, ksize),
                                          jnp.float32, -bound, bound))  # OIHW
        biases.append(jax.random.uniform(k_b, (cout,), jnp.float32, -bound, bound))
        paddings.append(padding)

    out = diffeq_sequential(t, y, tuple(weights), tuple(biases), tuple(paddings))
    out = jax.block_until_ready(out)

    # Reference: fp32 ConcatConv2d chain via XLA conv (high precision).
    def ref_layer(t_, y_, w_, b_, p_):
        n = y_.shape[0]
        t_chan = jnp.broadcast_to(jnp.asarray(t_, y_.dtype), (n, 1) + y_.shape[2:])
        ty = jnp.concatenate([t_chan, y_], axis=1)
        o = jax.lax.conv_general_dilated(
            ty, w_, (1, 1), ((p_, p_), (p_, p_)),
            dimension_numbers=("NCHW", "OIHW", "NCHW"),
            precision=jax.lax.Precision.HIGHEST)
        return o + b_[None, :, None, None]

    ref = y
    for w, b, p in zip(weights, biases, paddings):
        ref = ref_layer(t, ref, w, b, p)

    assert out.shape == ref.shape == (N, channels[-1], H, W)
    max_err = float(jnp.max(jnp.abs(out - ref)))
    assert jnp.allclose(out, ref, atol=5e-3, rtol=5e-3), max_err

    print("KERNEL_OK")
</pallas_src>

<mosaic_0001>
module attributes {stable_mosaic.version = 11 : i64} {
  func.func @kernel(%arg0: i32, %arg1: memref<1x1xf32, #tpu.memory_space<smem>>, %arg2: memref<1x4x256xf32, #tpu.memory_space<vmem>>, %arg3: memref<9x8x5xf32, #tpu.memory_space<vmem>>, %arg4: memref<8x1xf32, #tpu.memory_space<vmem>>, %arg5: memref<9x4x9xf32, #tpu.memory_space<vmem>>, %arg6: memref<4x1xf32, #tpu.memory_space<vmem>>, %arg7: memref<1x4x256xf32, #tpu.memory_space<vmem>>, %arg8: memref<9x512xf32, #tpu.memory_space<vmem>>) attributes {dimension_semantics = [#tpu.dimension_semantics<parallel>], iteration_bounds = array<i64: 2>, scalar_prefetch = 0 : i64, scratch_operands = 1 : i64, tpu.core_type = #tpu.core_type<tc>, window_params = [{transform_indices = @transform_0, window_bounds = array<i64: 1, 1>}, {transform_indices = @transform_1, window_bounds = array<i64: 1, 4, 256>}, {pipeline_mode = #tpu.pipeline_mode<synchronous>, transform_indices = @transform_2, window_bounds = array<i64: 9, 8, 5>}, {pipeline_mode = #tpu.pipeline_mode<synchronous>, transform_indices = @transform_3, window_bounds = array<i64: 8, 1>}, {pipeline_mode = #tpu.pipeline_mode<synchronous>, transform_indices = @transform_4, window_bounds = array<i64: 9, 4, 9>}, {pipeline_mode = #tpu.pipeline_mode<synchronous>, transform_indices = @transform_5, window_bounds = array<i64: 4, 1>}, {transform_indices = @transform_6, window_bounds = array<i64: 1, 4, 256>}]} {
    %c0 = arith.constant 0 : index
    %c0_0 = arith.constant 0 : index
    %0 = memref.load %arg1[%c0, %c0_0] : memref<1x1xf32, #tpu.memory_space<smem>>
    %1 = tpu.iota {dimensions = array<i32: 1>} : vector<1x256xi32>
    %c16_i32 = arith.constant 16 : i32
    %c0_i32 = arith.constant 0 : i32
    %2 = arith.cmpi eq, %c16_i32, %c0_i32 : i32
    %c1_i32 = arith.constant 1 : i32
    %3 = arith.select %2, %c1_i32, %c16_i32 : i32
    %4 = vector.broadcast %3 : i32 to vector<1x256xi32>
    %5 = arith.remsi %1, %4 : vector<1x256xi32>
    %c0_i32_1 = arith.constant 0 : i32
    %6 = vector.broadcast %c0_i32_1 : i32 to vector<1x256xi32>
    %7 = arith.cmpi ne, %5, %6 : vector<1x256xi32>
    %c0_i32_2 = arith.constant 0 : i32
    %8 = vector.broadcast %c0_i32_2 : i32 to vector<1x256xi32>
    %9 = arith.cmpi slt, %5, %8 : vector<1x256xi32>
    %c0_i32_3 = arith.constant 0 : i32
    %10 = arith.cmpi slt, %3, %c0_i32_3 : i32
    %11 = vector.broadcast %10 : i1 to vector<1x256xi1>
    %12 = vector.broadcast %11 : vector<1x256xi1> to vector<1x256xi1>
    %13 = arith.xori %9, %12 : vector<1x256xi1>
    %14 = arith.andi %13, %7 : vector<1x256xi1>
    %15 = vector.broadcast %3 : i32 to vector<1x256xi32>
    %16 = arith.addi %5, %15 : vector<1x256xi32>
    %17 = arith.select %14, %16, %5 : vector<1x256xi1>, vector<1x256xi32>
    %c0_4 = arith.constant 0 : index
    %c0_5 = arith.constant 0 : index
    %c0_6 = arith.constant 0 : index
    %18 = vector.load %arg2[%c0_4, %c0_5, %c0_6] : memref<1x4x256xf32, #tpu.memory_space<vmem>>, vector<1x4x256xf32>
    %19 = vector.shape_cast %18 : vector<1x4x256xf32> to vector<4x256xf32>
    %cst = arith.constant 0.000000e+00 : f32
    %20 = vector.broadcast %cst : f32 to vector<9x512xf32>
    %c0_7 = arith.constant 0 : index
    %c0_8 = arith.constant 0 : index
    %21 = vector.load %arg8[%c0_7, %c0_8] : memref<9x512xf32, #tpu.memory_space<vmem>>, vector<9x512xf32>
    tpu.vector_store %arg8[%c0_7, %c0_8], %20 {strides = array<i32>} : memref<9x512xf32, #tpu.memory_space<vmem>>, vector<9x512xf32>,
    %22 = vector.broadcast %0 : f32 to vector<1x256xf32>
    %c0_9 = arith.constant 0 : index
    %c128 = arith.constant 128 : index
    %23 = vector.load %arg8[%c0_9, %c128] : memref<9x512xf32, #tpu.memory_space<vmem>>, vector<1x256xf32>
    tpu.vector_store %arg8[%c0_9, %c128], %22 {strides = array<i32>} : memref<9x512xf32, #tpu.memory_space<vmem>>, vector<1x256xf32>,
    %c1 = arith.constant 1 : index
    %c128_10 = arith.constant 128 : index
    %24 = vector.load %arg8[%c1, %c128_10] : memref<9x512xf32, #tpu.memory_space<vmem>>, vector<4x256xf32>
    tpu.vector_store %arg8[%c1, %c128_10], %19 {strides = array<i32>} : memref<9x512xf32, #tpu.memory_space<vmem>>, vector<4x256xf32>,
    %cst_11 = arith.constant 0.000000e+00 : f32
    %25 = vector.broadcast %cst_11 : f32 to vector<8x256xf32>
    %c0_12 = arith.constant 0 : index
    %c111 = arith.constant 111 : index
    %26 = vector.load %arg8[%c0_12, %c111] : memref<9x512xf32, #tpu.memory_space<vmem>>, vector<5x256xf32>
    %c1_i32_13 = arith.constant 1 : i32
    %27 = vector.broadcast %c1_i32_13 : i32 to vector<1x256xi32>
    %28 = arith.cmpi sge, %17, %27 : vector<1x256xi32>
    %29 = vector.shape_cast %28 : vector<1x256xi1> to vector<1x256xi1>
    %30 = vector.broadcast %29 : vector<1x256xi1> to vector<5x256xi1>
    %cst_14 = arith.constant 0.000000e+00 : f32
    %31 = vector.broadcast %cst_14 : f32 to vector<5x256xf32>
    %32 = arith.select %30, %26, %31 : vector<5x256xi1>, vector<5x256xf32>
    %c0_15 = arith.constant 0 : index
    %c0_16 = arith.constant 0 : index
    %c0_17 = arith.constant 0 : index
    %33 = vector.load %arg3[%c0_15, %c0_16, %c0_17] : memref<9x8x5xf32, #tpu.memory_space<vmem>>, vector<1x8x5xf32>
    %34 = vector.shape_cast %33 : vector<1x8x5xf32> to vector<8x5xf32>
    %cst_18 = arith.constant dense<0.000000e+00> : vector<8x256xf32>
    %35 = tpu.matmul %34, %32, %cst_18 {dimension_numbers = #tpu.dot_dimension_numbers<[1], [0], [0], [1], [0, 0, 1, 1], [], []>, precision = #tpu.contract_precision<fp32>} : vector<8x5xf32>, vector<5x256xf32>, vector<8x256xf32> -> vector<8x256xf32>
    %36 = arith.addf %25, %35 : vector<8x256xf32>
    %c0_19 = arith.constant 0 : index
    %c112 = arith.constant 112 : index
    %37 = vector.load %arg8[%c0_19, %c112] : memref<9x512xf32, #tpu.memory_space<vmem>>, vector<5x256xf32>
    %c1_20 = arith.constant 1 : index
    %c0_21 = arith.constant 0 : index
    %c0_22 = arith.constant 0 : index
    %38 = vector.load %arg3[%c1_20, %c0_21, %c0_22] : memref<9x8x5xf32, #tpu.memory_space<vmem>>, vector<1x8x5xf32>
    %39 = vector.shape_cast %38 : vector<1x8x5xf32> to vector<8x5xf32>
    %cst_23 = arith.constant dense<0.000000e+00> : vector<8x256xf32>
    %40 = tpu.matmul %39, %37, %cst_23 {dimension_numbers = #tpu.dot_dimension_numbers<[1], [0], [0], [1], [0, 0, 1, 1], [], []>, precision = #tpu.contract_precision<fp32>} : vector<8x5xf32>, vector<5x256xf32>, vector<8x256xf32> -> vector<8x256xf32>
    %41 = arith.addf %36, %40 : vector<8x256xf32>
    %c0_24 = arith.constant 0 : index
    %c113 = arith.constant 113 : index
    %42 = vector.load %arg8[%c0_24, %c113] : memref<9x512xf32, #tpu.memory_space<vmem>>, vector<5x256xf32>
    %c15_i32 = arith.constant 15 : i32
    %43 = vector.broadcast %c15_i32 : i32 to vector<1x256xi32>
    %44 = arith.cmpi slt, %17, %43 : vector<1x256xi32>
    %45 = vector.shape_cast %44 : vector<1x256xi1> to vector<1x256xi1>
    %46 = vector.broadcast %45 : vector<1x256xi1> to vector<5x256xi1>
    %cst_25 = arith.constant 0.000000e+00 : f32
    %47 = vector.broadcast %cst_25 : f32 to vector<5x256xf32>
    %48 = arith.select %46, %42, %47 : vector<5x256xi1>, vector<5x256xf32>
    %c2 = arith.constant 2 : index
    %c0_26 = arith.constant 0 : index
    %c0_27 = arith.constant 0 : index
    %49 = vector.load %arg3[%c2, %c0_26, %c0_27] : memref<9x8x5xf32, #tpu.memory_space<vmem>>, vector<1x8x5xf32>
    %50 = vector.shape_cast %49 : vector<1x8x5xf32> to vector<8x5xf32>
    %cst_28 = arith.constant dense<0.000000e+00> : vector<8x256xf32>
    %51 = tpu.matmul %50, %48, %cst_28 {dimension_numbers = #tpu.dot_dimension_numbers<[1], [0], [0], [1], [0, 0, 1, 1], [], []>, precision = #tpu.contract_precision<fp32>} : vector<8x5xf32>, vector<5x256xf32>, vector<8x256xf32> -> vector<8x256xf32>
    %52 = arith.addf %41, %51 : vector<8x256xf32>
    %c0_29 = arith.constant 0 : index
    %c127 = arith.constant 127 : index
    %53 = vector.load %arg8[%c0_29, %c127] : memref<9x512xf32, #tpu.memory_space<vmem>>, vector<5x256xf32>
    %c1_i32_30 = arith.constant 1 : i32
    %54 = vector.broadcast %c1_i32_30 : i32 to vector<1x256xi32>
    %55 = arith.cmpi sge, %17, %54 : vector<1x256xi32>
    %56 = vector.shape_cast %55 : vector<1x256xi1> to vector<1x256xi1>
    %57 = vector.broadcast %56 : vector<1x256xi1> to vector<5x256xi1>
    %cst_31 = arith.constant 0.000000e+00 : f32
    %58 = vector.broadcast %cst_31 : f32 to vector<5x256xf32>
    %59 = arith.select %57, %53, %58 : vector<5x256xi1>, vector<5x256xf32>
    %c3 = arith.constant 3 : index
    %c0_32 = arith.constant 0 : index
    %c0_33 = arith.constant 0 : index
    %60 = vector.load %arg3[%c3, %c0_32, %c0_33] : memref<9x8x5xf32, #tpu.memory_space<vmem>>, vector<1x8x5xf32>
    %61 = vector.shape_cast %60 : vector<1x8x5xf32> to vector<8x5xf32>
    %cst_34 = arith.constant dense<0.000000e+00> : vector<8x256xf32>
    %62 = tpu.matmul %61, %59, %cst_34 {dimension_numbers = #tpu.dot_dimension_numbers<[1], [0], [0], [1], [0, 0, 1, 1], [], []>, precision = #tpu.contract_precision<fp32>} : vector<8x5xf32>, vector<5x256xf32>, vector<8x256xf32> -> vector<8x256xf32>
    %63 = arith.addf %52, %62 : vector<8x256xf32>
    %c0_35 = arith.constant 0 : index
    %c128_36 = arith.constant 128 : index
    %64 = vector.load %arg8[%c0_35, %c128_36] : memref<9x512xf32, #tpu.memory_space<vmem>>, vector<5x256xf32>
    %c4 = arith.constant 4 : index
    %c0_37 = arith.constant 0 : index
    %c0_38 = arith.constant 0 : index
    %65 = vector.load %arg3[%c4, %c0_37, %c0_38] : memref<9x8x5xf32, #tpu.memory_space<vmem>>, vector<1x8x5xf32>
    %66 = vector.shape_cast %65 : vector<1x8x5xf32> to vector<8x5xf32>
    %cst_39 = arith.constant dense<0.000000e+00> : vector<8x256xf32>
    %67 = tpu.matmul %66, %64, %cst_39 {dimension_numbers = #tpu.dot_dimension_numbers<[1], [0], [0], [1], [0, 0, 1, 1], [], []>, precision = #tpu.contract_precision<fp32>} : vector<8x5xf32>, vector<5x256xf32>, vector<8x256xf32> -> vector<8x256xf32>
    %68 = arith.addf %63, %67 : vector<8x256xf32>
    %c0_40 = arith.constant 0 : index
    %c129 = arith.constant 129 : index
    %69 = vector.load %arg8[%c0_40, %c129] : memref<9x512xf32, #tpu.memory_space<vmem>>, vector<5x256xf32>
    %c15_i32_41 = arith.constant 15 : i32
    %70 = vector.broadcast %c15_i32_41 : i32 to vector<1x256xi32>
    %71 = arith.cmpi slt, %17, %70 : vector<1x256xi32>
    %72 = vector.shape_cast %71 : vector<1x256xi1> to vector<1x256xi1>
    %73 = vector.broadcast %72 : vector<1x256xi1> to vector<5x256xi1>
    %cst_42 = arith.constant 0.000000e+00 : f32
    %74 = vector.broadcast %cst_42 : f32 to vector<5x256xf32>
    %75 = arith.select %73, %69, %74 : vector<5x256xi1>, vector<5x256xf32>
    %c5 = arith.constant 5 : index
    %c0_43 = arith.constant 0 : index
    %c0_44 = arith.constant 0 : index
    %76 = vector.load %arg3[%c5, %c0_43, %c0_44] : memref<9x8x5xf32, #tpu.memory_space<vmem>>, vector<1x8x5xf32>
    %77 = vector.shape_cast %76 : vector<1x8x5xf32> to vector<8x5xf32>
    %cst_45 = arith.constant dense<0.000000e+00> : vector<8x256xf32>
    %78 = tpu.matmul %77, %75, %cst_45 {dimension_numbers = #tpu.dot_dimension_numbers<[1], [0], [0], [1], [0, 0, 1, 1], [], []>, precision = #tpu.contract_precision<fp32>} : vector<8x5xf32>, vector<5x256xf32>, vector<8x256xf32> -> vector<8x256xf32>
    %79 = arith.addf %68, %78 : vector<8x256xf32>
    %c0_46 = arith.constant 0 : index
    %c143 = arith.constant 143 : index
    %80 = vector.load %arg8[%c0_46, %c143] : memref<9x512xf32, #tpu.memory_space<vmem>>, vector<5x256xf32>
    %c1_i32_47 = arith.constant 1 : i32
    %81 = vector.broadcast %c1_i32_47 : i32 to vector<1x256xi32>
    %82 = arith.cmpi sge, %17, %81 : vector<1x256xi32>
    %83 = vector.shape_cast %82 : vector<1x256xi1> to vector<1x256xi1>
    %84 = vector.broadcast %83 : vector<1x256xi1> to vector<5x256xi1>
    %cst_48 = arith.constant 0.000000e+00 : f32
    %85 = vector.broadcast %cst_48 : f32 to vector<5x256xf32>
    %86 = arith.select %84, %80, %85 : vector<5x256xi1>, vector<5x256xf32>
    %c6 = arith.constant 6 : index
    %c0_49 = arith.constant 0 : index
    %c0_50 = arith.constant 0 : index
    %87 = vector.load %arg3[%c6, %c0_49, %c0_50] : memref<9x8x5xf32, #tpu.memory_space<vmem>>, vector<1x8x5xf32>
    %88 = vector.shape_cast %87 : vector<1x8x5xf32> to vector<8x5xf32>
    %cst_51 = arith.constant dense<0.000000e+00> : vector<8x256xf32>
    %89 = tpu.matmul %88, %86, %cst_51 {dimension_numbers = #tpu.dot_dimension_numbers<[1], [0], [0], [1], [0, 0, 1, 1], [], []>, precision = #tpu.contract_precision<fp32>} : vector<8x5xf32>, vector<5x256xf32>, vector<8x256xf32> -> vector<8x256xf32>
    %90 = arith.addf %79, %89 : vector<8x256xf32>
    %c0_52 = arith.constant 0 : index
    %c144 = arith.constant 144 : index
    %91 = vector.load %arg8[%c0_52, %c144] : memref<9x512xf32, #tpu.memory_space<vmem>>, vector<5x256xf32>
    %c7 = arith.constant 7 : index
    %c0_53 = arith.constant 0 : index
    %c0_54 = arith.constant 0 : index
    %92 = vector.load %arg3[%c7, %c0_53, %c0_54] : memref<9x8x5xf32, #tpu.memory_space<vmem>>, vector<1x8x5xf32>
    %93 = vector.shape_cast %92 : vector<1x8x5xf32> to vector<8x5xf32>
    %cst_55 = arith.constant dense<0.000000e+00> : vector<8x256xf32>
    %94 = tpu.matmul %93, %91, %cst_55 {dimension_numbers = #tpu.dot_dimension_numbers<[1], [0], [0], [1], [0, 0, 1, 1], [], []>, precision = #tpu.contract_precision<fp32>} : vector<8x5xf32>, vector<5x256xf32>, vector<8x256xf32> -> vector<8x256xf32>
    %95 = arith.addf %90, %94 : vector<8x256xf32>
    %c0_56 = arith.constant 0 : index
    %c145 = arith.constant 145 : index
    %96 = vector.load %arg8[%c0_56, %c145] : memref<9x512xf32, #tpu.memory_space<vmem>>, vector<5x256xf32>
    %c15_i32_57 = arith.constant 15 : i32
    %97 = vector.broadcast %c15_i32_57 : i32 to vector<1x256xi32>
    %98 = arith.cmpi slt, %17, %97 : vector<1x256xi32>
    %99 = vector.shape_cast %98 : vector<1x256xi1> to vector<1x256xi1>
    %100 = vector.broadcast %99 : vector<1x256xi1> to vector<5x256xi1>
    %cst_58 = arith.constant 0.000000e+00 : f32
    %101 = vector.broadcast %cst_58 : f32 to vector<5x256xf32>
    %102 = arith.select %100, %96, %101 : vector<5x256xi1>, vector<5x256xf32>
    %c8 = arith.constant 8 : index
    %c0_59 = arith.constant 0 : index
    %c0_60 = arith.constant 0 : index
    %103 = vector.load %arg3[%c8, %c0_59, %c0_60] : memref<9x8x5xf32, #tpu.memory_space<vmem>>, vector<1x8x5xf32>
    %104 = vector.shape_cast %103 : vector<1x8x5xf32> to vector<8x5xf32>
    %cst_61 = arith.constant dense<0.000000e+00> : vector<8x256xf32>
    %105 = tpu.matmul %104, %102, %cst_61 {dimension_numbers = #tpu.dot_dimension_numbers<[1], [0], [0], [1], [0, 0, 1, 1], [], []>, precision = #tpu.contract_precision<fp32>} : vector<8x5xf32>, vector<5x256xf32>, vector<8x256xf32> -> vector<8x256xf32>
    %106 = arith.addf %95, %105 : vector<8x256xf32>
    %c0_62 = arith.constant 0 : index
    %c0_63 = arith.constant 0 : index
    %107 = vector.load %arg4[%c0_62, %c0_63] : memref<8x1xf32, #tpu.memory_space<vmem>>, vector<8x1xf32>
    %108 = vector.broadcast %107 : vector<8x1xf32> to vector<8x256xf32>
    %109 = arith.addf %106, %108 : vector<8x256xf32>
    %cst_64 = arith.constant 0.000000e+00 : f32
    %110 = vector.broadcast %cst_64 : f32 to vector<9x512xf32>
    %c0_65 = arith.constant 0 : index
    %c0_66 = arith.constant 0 : index
    %111 = vector.load %arg8[%c0_65, %c0_66] : memref<9x512xf32, #tpu.memory_space<vmem>>, vector<9x512xf32>
    tpu.vector_store %arg8[%c0_65, %c0_66], %110 {strides = array<i32>} : memref<9x512xf32, #tpu.memory_space<vmem>>, vector<9x512xf32>,
    %112 = vector.broadcast %0 : f32 to vector<1x256xf32>
    %c0_67 = arith.constant 0 : index
    %c128_68 = arith.constant 128 : index
    %113 = vector.load %arg8[%c0_67, %c128_68] : memref<9x512xf32, #tpu.memory_space<vmem>>, vector<1x256xf32>
    tpu.vector_store %arg8[%c0_67, %c128_68], %112 {strides = array<i32>} : memref<9x512xf32, #tpu.memory_space<vmem>>, vector<1x256xf32>,
    %c1_69 = arith.constant 1 : index
    %c128_70 = arith.constant 128 : index
    %114 = vector.load %arg8[%c1_69, %c128_70] : memref<9x512xf32, #tpu.memory_space<vmem>>, vector<8x256xf32>
    tpu.vector_store %arg8[%c1_69, %c128_70], %109 {strides = array<i32>} : memref<9x512xf32, #tpu.memory_space<vmem>>, vector<8x256xf32>,
    %cst_71 = arith.constant 0.000000e+00 : f32
    %115 = vector.broadcast %cst_71 : f32 to vector<4x256xf32>
    %c0_72 = arith.constant 0 : index
    %c111_73 = arith.constant 111 : index
    %116 = vector.load %arg8[%c0_72, %c111_73] : memref<9x512xf32, #tpu.memory_space<vmem>>, vector<9x256xf32>
    %c1_i32_74 = arith.constant 1 : i32
    %117 = vector.broadcast %c1_i32_74 : i32 to vector<1x256xi32>
    %118 = arith.cmpi sge, %17, %117 : vector<1x256xi32>
    %119 = vector.shape_cast %118 : vector<1x256xi1> to vector<1x256xi1>
    %120 = vector.broadcast %119 : vector<1x256xi1> to vector<9x256xi1>
    %cst_75 = arith.constant 0.000000e+00 : f32
    %121 = vector.broadcast %cst_75 : f32 to vector<9x256xf32>
    %122 = arith.select %120, %116, %121 : vector<9x256xi1>, vector<9x256xf32>
    %c0_76 = arith.constant 0 : index
    %c0_77 = arith.constant 0 : index
    %c0_78 = arith.constant 0 : index
    %123 = vector.load %arg5[%c0_76, %c0_77, %c0_78] : memref<9x4x9xf32, #tpu.memory_space<vmem>>, vector<1x4x9xf32>
    %124 = vector.shape_cast %123 : vector<1x4x9xf32> to vector<4x9xf32>
    %cst_79 = arith.constant dense<0.000000e+00> : vector<4x256xf32>
    %125 = tpu.matmul %124, %122, %cst_79 {dimension_numbers = #tpu.dot_dimension_numbers<[1], [0], [0], [1], [0, 0, 1, 1], [], []>, precision = #tpu.contract_precision<fp32>} : vector<4x9xf32>, vector<9x256xf32>, vector<4x256xf32> -> vector<4x256xf32>
    %126 = arith.addf %115, %125 : vector<4x256xf32>
    %c0_80 = arith.constant 0 : index
    %c112_81 = arith.constant 112 : index
    %127 = vector.load %arg8[%c0_80, %c112_81] : memref<9x512xf32, #tpu.memory_space<vmem>>, vector<9x256xf32>
    %c1_82 = arith.constant 1 : index
    %c0_83 = arith.constant 0 : index
    %c0_84 = arith.constant 0 : index
    %128 = vector.load %arg5[%c1_82, %c0_83, %c0_84] : memref<9x4x9xf32, #tpu.memory_space<vmem>>, vector<1x4x9xf32>
    %129 = vector.shape_cast %128 : vector<1x4x9xf32> to vector<4x9xf32>
    %cst_85 = arith.constant dense<0.000000e+00> : vector<4x256xf32>
    %130 = tpu.matmul %129, %127, %cst_85 {dimension_numbers = #tpu.dot_dimension_numbers<[1], [0], [0], [1], [0, 0, 1, 1], [], []>, precision = #tpu.contract_precision<fp32>} : vector<4x9xf32>, vector<9x256xf32>, vector<4x256xf32> -> vector<4x256xf32>
    %131 = arith.addf %126, %130 : vector<4x256xf32>
    %c0_86 = arith.constant 0 : index
    %c113_87 = arith.constant 113 : index
    %132 = vector.load %arg8[%c0_86, %c113_87] : memref<9x512xf32, #tpu.memory_space<vmem>>, vector<9x256xf32>
    %c15_i32_88 = arith.constant 15 : i32
    %133 = vector.broadcast %c15_i32_88 : i32 to vector<1x256xi32>
    %134 = arith.cmpi slt, %17, %133 : vector<1x256xi32>
    %135 = vector.shape_cast %134 : vector<1x256xi1> to vector<1x256xi1>
    %136 = vector.broadcast %135 : vector<1x256xi1> to vector<9x256xi1>
    %cst_89 = arith.constant 0.000000e+00 : f32
    %137 = vector.broadcast %cst_89 : f32 to vector<9x256xf32>
    %138 = arith.select %136, %132, %137 : vector<9x256xi1>, vector<9x256xf32>
    %c2_90 = arith.constant 2 : index
    %c0_91 = arith.constant 0 : index
    %c0_92 = arith.constant 0 : index
    %139 = vector.load %arg5[%c2_90, %c0_91, %c0_92] : memref<9x4x9xf32, #tpu.memory_space<vmem>>, vector<1x4x9xf32>
    %140 = vector.shape_cast %139 : vector<1x4x9xf32> to vector<4x9xf32>
    %cst_93 = arith.constant dense<0.000000e+00> : vector<4x256xf32>
    %141 = tpu.matmul %140, %138, %cst_93 {dimension_numbers = #tpu.dot_dimension_numbers<[1], [0], [0], [1], [0, 0, 1, 1], [], []>, precision = #tpu.contract_precision<fp32>} : vector<4x9xf32>, vector<9x256xf32>, vector<4x256xf32> -> vector<4x256xf32>
    %142 = arith.addf %131, %141 : vector<4x256xf32>
    %c0_94 = arith.constant 0 : index
    %c127_95 = arith.constant 127 : index
    %143 = vector.load %arg8[%c0_94, %c127_95] : memref<9x512xf32, #tpu.memory_space<vmem>>, vector<9x256xf32>
    %c1_i32_96 = arith.constant 1 : i32
    %144 = vector.broadcast %c1_i32_96 : i32 to vector<1x256xi32>
    %145 = arith.cmpi sge, %17, %144 : vector<1x256xi32>
    %146 = vector.shape_cast %145 : vector<1x256xi1> to vector<1x256xi1>
    %147 = vector.broadcast %146 : vector<1x256xi1> to vector<9x256xi1>
    %cst_97 = arith.constant 0.000000e+00 : f32
    %148 = vector.broadcast %cst_97 : f32 to vector<9x256xf32>
    %149 = arith.select %147, %143, %148 : vector<9x256xi1>, vector<9x256xf32>
    %c3_98 = arith.constant 3 : index
    %c0_99 = arith.constant 0 : index
    %c0_100 = arith.constant 0 : index
    %150 = vector.load %arg5[%c3_98, %c0_99, %c0_100] : memref<9x4x9xf32, #tpu.memory_space<vmem>>, vector<1x4x9xf32>
    %151 = vector.shape_cast %150 : vector<1x4x9xf32> to vector<4x9xf32>
    %cst_101 = arith.constant dense<0.000000e+00> : vector<4x256xf32>
    %152 = tpu.matmul %151, %149, %cst_101 {dimension_numbers = #tpu.dot_dimension_numbers<[1], [0], [0], [1], [0, 0, 1, 1], [], []>, precision = #tpu.contract_precision<fp32>} : vector<4x9xf32>, vector<9x256xf32>, vector<4x256xf32> -> vector<4x256xf32>
    %153 = arith.addf %142, %152 : vector<4x256xf32>
    %c0_102 = arith.constant 0 : index
    %c128_103 = arith.constant 128 : index
    %154 = vector.load %arg8[%c0_102, %c128_103] : memref<9x512xf32, #tpu.memory_space<vmem>>, vector<9x256xf32>
    %c4_104 = arith.constant 4 : index
    %c0_105 = arith.constant 0 : index
    %c0_106 = arith.constant 0 : index
    %155 = vector.load %arg5[%c4_104, %c0_105, %c0_106] : memref<9x4x9xf32, #tpu.memory_space<vmem>>, vector<1x4x9xf32>
    %156 = vector.shape_cast %155 : vector<1x4x9xf32> to vector<4x9xf32>
    %cst_107 = arith.constant dense<0.000000e+00> : vector<4x256xf32>
    %157 = tpu.matmul %156, %154, %cst_107 {dimension_numbers = #tpu.dot_dimension_numbers<[1], [0], [0], [1], [0, 0, 1, 1], [], []>, precision = #tpu.contract_precision<fp32>} : vector<4x9xf32>, vector<9x256xf32>, vector<4x256xf32> -> vector<4x256xf32>
    %158 = arith.addf %153, %157 : vector<4x256xf32>
    %c0_108 = arith.constant 0 : index
    %c129_109 = arith.constant 129 : index
    %159 = vector.load %arg8[%c0_108, %c129_109] : memref<9x512xf32, #tpu.memory_space<vmem>>, vector<9x256xf32>
    %c15_i32_110 = arith.constant 15 : i32
    %160 = vector.broadcast %c15_i32_110 : i32 to vector<1x256xi32>
    %161 = arith.cmpi slt, %17, %160 : vector<1x256xi32>
    %162 = vector.shape_cast %161 : vector<1x256xi1> to vector<1x256xi1>
    %163 = vector.broadcast %162 : vector<1x256xi1> to vector<9x256xi1>
    %cst_111 = arith.constant 0.000000e+00 : f32
    %164 = vector.broadcast %cst_111 : f32 to vector<9x256xf32>
    %165 = arith.select %163, %159, %164 : vector<9x256xi1>, vector<9x256xf32>
    %c5_112 = arith.constant 5 : index
    %c0_113 = arith.constant 0 : index
    %c0_114 = arith.constant 0 : index
    %166 = vector.load %arg5[%c5_112, %c0_113, %c0_114] : memref<9x4x9xf32, #tpu.memory_space<vmem>>, vector<1x4x9xf32>
    %167 = vector.shape_cast %166 : vector<1x4x9xf32> to vector<4x9xf32>
    %cst_115 = arith.constant dense<0.000000e+00> : vector<4x256xf32>
    %168 = tpu.matmul %167, %165, %cst_115 {dimension_numbers = #tpu.dot_dimension_numbers<[1], [0], [0], [1], [0, 0, 1, 1], [], []>, precision = #tpu.contract_precision<fp32>} : vector<4x9xf32>, vector<9x256xf32>, vector<4x256xf32> -> vector<4x256xf32>
    %169 = arith.addf %158, %168 : vector<4x256xf32>
    %c0_116 = arith.constant 0 : index
    %c143_117 = arith.constant 143 : index
    %170 = vector.load %arg8[%c0_116, %c143_117] : memref<9x512xf32, #tpu.memory_space<vmem>>, vector<9x256xf32>
    %c1_i32_118 = arith.constant 1 : i32
    %171 = vector.broadcast %c1_i32_118 : i32 to vector<1x256xi32>
    %172 = arith.cmpi sge, %17, %171 : vector<1x256xi32>
    %173 = vector.shape_cast %172 : vector<1x256xi1> to vector<1x256xi1>
    %174 = vector.broadcast %173 : vector<1x256xi1> to vector<9x256xi1>
    %cst_119 = arith.constant 0.000000e+00 : f32
    %175 = vector.broadcast %cst_119 : f32 to vector<9x256xf32>
    %176 = arith.select %174, %170, %175 : vector<9x256xi1>, vector<9x256xf32>
    %c6_120 = arith.constant 6 : index
    %c0_121 = arith.constant 0 : index
    %c0_122 = arith.constant 0 : index
    %177 = vector.load %arg5[%c6_120, %c0_121, %c0_122] : memref<9x4x9xf32, #tpu.memory_space<vmem>>, vector<1x4x9xf32>
    %178 = vector.shape_cast %177 : vector<1x4x9xf32> to vector<4x9xf32>
    %cst_123 = arith.constant dense<0.000000e+00> : vector<4x256xf32>
    %179 = tpu.matmul %178, %176, %cst_123 {dimension_numbers = #tpu.dot_dimension_numbers<[1], [0], [0], [1], [0, 0, 1, 1], [], []>, precision = #tpu.contract_precision<fp32>} : vector<4x9xf32>, vector<9x256xf32>, vector<4x256xf32> -> vector<4x256xf32>
    %180 = arith.addf %169, %179 : vector<4x256xf32>
    %c0_124 = arith.constant 0 : index
    %c144_125 = arith.constant 144 : index
    %181 = vector.load %arg8[%c0_124, %c144_125] : memref<9x512xf32, #tpu.memory_space<vmem>>, vector<9x256xf32>
    %c7_126 = arith.constant 7 : index
    %c0_127 = arith.constant 0 : index
    %c0_128 = arith.constant 0 : index
    %182 = vector.load %arg5[%c7_126, %c0_127, %c0_128] : memref<9x4x9xf32, #tpu.memory_space<vmem>>, vector<1x4x9xf32>
    %183 = vector.shape_cast %182 : vector<1x4x9xf32> to vector<4x9xf32>
    %cst_129 = arith.constant dense<0.000000e+00> : vector<4x256xf32>
    %184 = tpu.matmul %183, %181, %cst_129 {dimension_numbers = #tpu.dot_dimension_numbers<[1], [0], [0], [1], [0, 0, 1, 1], [], []>, precision = #tpu.contract_precision<fp32>} : vector<4x9xf32>, vector<9x256xf32>, vector<4x256xf32> -> vector<4x256xf32>
    %185 = arith.addf %180, %184 : vector<4x256xf32>
    %c0_130 = arith.constant 0 : index
    %c145_131 = arith.constant 145 : index
    %186 = vector.load %arg8[%c0_130, %c145_131] : memref<9x512xf32, #tpu.memory_space<vmem>>, vector<9x256xf32>
    %c15_i32_132 = arith.constant 15 : i32
    %187 = vector.broadcast %c15_i32_132 : i32 to vector<1x256xi32>
    %188 = arith.cmpi slt, %17, %187 : vector<1x256xi32>
    %189 = vector.shape_cast %188 : vector<1x256xi1> to vector<1x256xi1>
    %190 = vector.broadcast %189 : vector<1x256xi1> to vector<9x256xi1>
    %cst_133 = arith.constant 0.000000e+00 : f32
    %191 = vector.broadcast %cst_133 : f32 to vector<9x256xf32>
    %192 = arith.select %190, %186, %191 : vector<9x256xi1>, vector<9x256xf32>
    %c8_134 = arith.constant 8 : index
    %c0_135 = arith.constant 0 : index
    %c0_136 = arith.constant 0 : index
    %193 = vector.load %arg5[%c8_134, %c0_135, %c0_136] : memref<9x4x9xf32, #tpu.memory_space<vmem>>, vector<1x4x9xf32>
    %194 = vector.shape_cast %193 : vector<1x4x9xf32> to vector<4x9xf32>
    %cst_137 = arith.constant dense<0.000000e+00> : vector<4x256xf32>
    %195 = tpu.matmul %194, %192, %cst_137 {dimension_numbers = #tpu.dot_dimension_numbers<[1], [0], [0], [1], [0, 0, 1, 1], [], []>, precision = #tpu.contract_precision<fp32>} : vector<4x9xf32>, vector<9x256xf32>, vector<4x256xf32> -> vector<4x256xf32>
    %196 = arith.addf %185, %195 : vector<4x256xf32>
    %c0_138 = arith.constant 0 : index
    %c0_139 = arith.constant 0 : index
    %197 = vector.load %arg6[%c0_138, %c0_139] : memref<4x1xf32, #tpu.memory_space<vmem>>, vector<4x1xf32>
    %198 = vector.broadcast %197 : vector<4x1xf32> to vector<4x256xf32>
    %199 = arith.addf %196, %198 : vector<4x256xf32>
    %c0_140 = arith.constant 0 : index
    %c0_141 = arith.constant 0 : index
    %c0_142 = arith.constant 0 : index
    %200 = vector.load %arg7[%c0_140, %c0_141, %c0_142] : memref<1x4x256xf32, #tpu.memory_space<vmem>>, vector<1x4x256xf32>
    %201 = vector.shape_cast %200 : vector<1x4x256xf32> to vector<4x256xf32>
    %202 = vector.shape_cast %199 : vector<4x256xf32> to vector<1x4x256xf32>
    tpu.vector_store %arg7[%c0_140, %c0_141, %c0_142], %202 {strides = array<i32>} : memref<1x4x256xf32, #tpu.memory_space<vmem>>, vector<1x4x256xf32>,
    return
  }
  func.func @transform_0(%arg0: i32) -> (i32, i32) {
    %c0_i32 = arith.constant 0 : i32
    %c0_i32_0 = arith.constant 0 : i32
    %c0_i32_1 = arith.constant 0 : i32
    return %c0_i32, %c0_i32_0 : i32, i32
  }
  func.func @transform_1(%arg0: i32) -> (i32, i32, i32) {
    %c0_i32 = arith.constant 0 : i32
    %c0_i32_0 = arith.constant 0 : i32
    %c0_i32_1 = arith.constant 0 : i32
    return %arg0, %c0_i32, %c0_i32_0 : i32, i32, i32
  }
  func.func @transform_2(%arg0: i32) -> (i32, i32, i32) {
    %c0_i32 = arith.constant 0 : i32
    %c0_i32_0 = arith.constant 0 : i32
    %c0_i32_1 = arith.constant 0 : i32
    %c0_i32_2 = arith.constant 0 : i32
    return %c0_i32, %c0_i32_0, %c0_i32_1 : i32, i32, i32
  }
  func.func @transform_3(%arg0: i32) -> (i32, i32) {
    %c0_i32 = arith.constant 0 : i32
    %c0_i32_0 = arith.constant 0 : i32
    %c0_i32_1 = arith.constant 0 : i32
    return %c0_i32, %c0_i32_0 : i32, i32
  }
  func.func @transform_4(%arg0: i32) -> (i32, i32, i32) {
    %c0_i32 = arith.constant 0 : i32
    %c0_i32_0 = arith.constant 0 : i32
    %c0_i32_1 = arith.constant 0 : i32
    %c0_i32_2 = arith.constant 0 : i32
    return %c0_i32, %c0_i32_0, %c0_i32_1 : i32, i32, i32
  }
  func.func @transform_5(%arg0: i32) -> (i32, i32) {
    %c0_i32 = arith.constant 0 : i32
    %c0_i32_0 = arith.constant 0 : i32
    %c0_i32_1 = arith.constant 0 : i32
    return %c0_i32, %c0_i32_0 : i32, i32
  }
  func.func @transform_6(%arg0: i32) -> (i32, i32, i32) {
    %c0_i32 = arith.constant 0 : i32
    %c0_i32_0 = arith.constant 0 : i32
    %c0_i32_1 = arith.constant 0 : i32
    return %arg0, %c0_i32, %c0_i32_0 : i32, i32, i32
  }
}

</mosaic_0001>

<llo_original>
// kernel: diffeq_sequential.1
$region0: #{diffeq_sequential.1}
  #allocation0 [shape = 'u32[]', space=smem, size = 0x4, offset = 0x4, fixed_abs, tag = 'smem constant byte address 0x4 - core index']
  #allocation1 [shape = 'u32[72,128]{1,0:T(1,128)}', space=vmem, size = 0x9000, scoped, tag = 'internal scratch']
  #allocation2 [shape = 'f32[9,512]{1,0:T(8,128)}', space=vmem, size = 0x8000, scoped, tag = 'scratch operand']
  #allocation3 [shape = 'f32[1,1]{1,0:T(1,128)S(6)}', space=smem, size = 0x200, scoped, tag = 'scoped memory for diffeq_sequential.1']
  %s0 = inlined_call_operand.<no memory space> [shape: f32[1,1], index: 0, kind: input, shape index: {}]
  %s1 = inlined_call_operand.vmem [shape: f32[2,4,256], index: 1, kind: input, shape index: {}]
  %s2 = inlined_call_operand.vmem [shape: f32[9,8,5], index: 2, kind: input, shape index: {}]
  %s3 = inlined_call_operand.vmem [shape: f32[8,1], index: 3, kind: input, shape index: {}]
  %s4 = inlined_call_operand.vmem [shape: f32[9,4,9], index: 4, kind: input, shape index: {}]
  %s5 = inlined_call_operand.vmem [shape: f32[4,1], index: 5, kind: input, shape index: {}]
  %s6 = inlined_call_operand.vmem [shape: f32[2,4,256], index: 6, kind: output, shape index: {}]
  %s7 = sld [smem:[#allocation0]]
  $region57: #{diffeq_sequential.1} parent=0
    _
  %s9 = ssub.s32 1, %s7
  %s10 = scalar_select 0, %s9, %s7
  %11 = sst [smem:[#allocation3]] %s0
  loop: start=0, step=1, limit=4
  $region2: #{diffeq_sequential.1} parent=0 // loop_pre_header
    _
  $region3: #{diffeq_sequential.1} parent=0 // loop_header
    %s13 = sphi 0, %s17
    %p14 = scmp.ge.s32.totalorder %s13, 4
    %s21 = sphi 0, %s21
    %s23 = sphi 0, %s21
    %s24 = sphi 0, %s23
    %s38 = sphi 0, %s24
    %s44 = sphi 0, %s46
    %s47 = sphi 0, %s44
    %s48 = sphi 0, %s47
    %s64 = sphi 0, %s48
    %s68 = sphi 0, %s68
    %s70 = sphi 0, %s68
    %s71 = sphi 0, %s70
    %s85 = sphi 0, %s71
    %s89 = sphi 0, %s89
    %s91 = sphi 0, %s89
    %s92 = sphi 0, %s91
    %s106 = sphi 0, %s92
    %s110 = sphi 0, %s110
    %s112 = sphi 0, %s110
    %s113 = sphi 0, %s112
    %s127 = sphi 0, %s113
    %s131 = sphi 0, %s131
    %s133 = sphi 0, %s131
    %s134 = sphi 0, %s133
    %s148 = sphi 0, %s134
    %s154 = sphi 0, %s156
    %s157 = sphi 0, %s154
    %s158 = sphi 0, %s157
    %s174 = sphi 0, %s158
  $region4: #{diffeq_sequential.1} parent=0 // loop_header_branch
    %16 = sbr.rel (%p14) target = $region8
  $region5: #{diffeq_sequential.1} parent=0 // loop_body
    %s18 = ssub.s32 %s13, 1
    %s19 = ssub.s32 %s13, 2
    %s20 = sadd.s32 %s13, 1
    %s22 = sadd.s32 %s21, 1
    %p25 = scmp.eq.s32.totalorder %s13, 1
    %p26 = scmp.ne.s32.totalorder %s21, %s23
    %p27 = scmp.eq.s32.totalorder %s13, 0
    %p28 = por %p26, %p27
    %p29 = scmp.ne.s32.totalorder %s21, %s23
    %p30 = scmp.eq.s32.totalorder %s18, 1
    %p31 = por %p29, %p30
    %p32 = scmp.ne.s32.totalorder %s23, %s24
    %p33 = scmp.eq.s32.totalorder %s18, 0
    %p34 = por %p32, %p33
    %p35 = scmp.ne.s32.totalorder %s23, %s24
    %p36 = scmp.eq.s32.totalorder %s19, 1
    %p37 = por %p35, %p36
    %p39 = scmp.ne.s32.totalorder %s24, %s38
    %p40 = scmp.eq.s32.totalorder %s19, 0
    %p41 = por %p39, %p40
    %s42 = ssub.s32 %s13, %s20
    %p43 = scmp.eq.s32.totalorder %s42, 0
    %s45 = sadd.s32 %s44, 1
    %s46 = scalar_select %p43, %s44, %s45
    %p49 = pneg %p43
    %p50 = scmp.eq.s32.totalorder %s13, 1
    %p51 = por %p49, %p50
    %p52 = scmp.ne.s32.totalorder %s44, %s47
    %p53 = scmp.eq.s32.totalorder %s13, 0
    %p54 = por %p52, %p53
    %p55 = scmp.ne.s32.totalorder %s44, %s47
    %p56 = scmp.eq.s32.totalorder %s18, 1
    %p57 = por %p55, %p56
    %p58 = scmp.ne.s32.totalorder %s47, %s48
    %p59 = scmp.eq.s32.totalorder %s18, 0
    %p60 = por %p58, %p59
    %p61 = scmp.ne.s32.totalorder %s47, %s48
    %p62 = scmp.eq.s32.totalorder %s19, 1
    %p63 = por %p61, %p62
    %p65 = scmp.ne.s32.totalorder %s48, %s64
    %p66 = scmp.eq.s32.totalorder %s19, 0
    %p67 = por %p65, %p66
    %s69 = sadd.s32 %s68, 1
    %p72 = scmp.eq.s32.totalorder %s13, 1
    %p73 = scmp.ne.s32.totalorder %s68, %s70
    %p74 = scmp.eq.s32.totalorder %s13, 0
    %p75 = por %p73, %p74
    %p76 = scmp.ne.s32.totalorder %s68, %s70
    %p77 = scmp.eq.s32.totalorder %s18, 1
    %p78 = por %p76, %p77
    %p79 = scmp.ne.s32.totalorder %s70, %s71
    %p80 = scmp.eq.s32.totalorder %s18, 0
    %p81 = por %p79, %p80
    %p82 = scmp.ne.s32.totalorder %s70, %s71
    %p83 = scmp.eq.s32.totalorder %s19, 1
    %p84 = por %p82, %p83
    %p86 = scmp.ne.s32.totalorder %s71, %s85
    %p87 = scmp.eq.s32.totalorder %s19, 0
    %p88 = por %p86, %p87
    %s90 = sadd.s32 %s89, 1
    %p93 = scmp.eq.s32.totalorder %s13, 1
    %p94 = scmp.ne.s32.totalorder %s89, %s91
    %p95 = scmp.eq.s32.totalorder %s13, 0
    %p96 = por %p94, %p95
    %p97 = scmp.ne.s32.totalorder %s89, %s91
    %p98 = scmp.eq.s32.totalorder %s18, 1
    %p99 = por %p97, %p98
    %p100 = scmp.ne.s32.totalorder %s91, %s92
    %p101 = scmp.eq.s32.totalorder %s18, 0
    %p102 = por %p100, %p101
    %p103 = scmp.ne.s32.totalorder %s91, %s92
    %p104 = scmp.eq.s32.totalorder %s19, 1
    %p105 = por %p103, %p104
    %p107 = scmp.ne.s32.totalorder %s92, %s106
    %p108 = scmp.eq.s32.totalorder %s19, 0
    %p109 = por %p107, %p108
    %s111 = sadd.s32 %s110, 1
    %p114 = scmp.eq.s32.totalorder %s13, 1
    %p115 = scmp.ne.s32.totalorder %s110, %s112
    %p116 = scmp.eq.s32.totalorder %s13, 0
    %p117 = por %p115, %p116
    %p118 = scmp.ne.s32.totalorder %s110, %s112
    %p119 = scmp.eq.s32.totalorder %s18, 1
    %p120 = por %p118, %p119
    %p121 = scmp.ne.s32.totalorder %s112, %s113
    %p122 = scmp.eq.s32.totalorder %s18, 0
    %p123 = por %p121, %p122
    %p124 = scmp.ne.s32.totalorder %s112, %s113
    %p125 = scmp.eq.s32.totalorder %s19, 1
    %p126 = por %p124, %p125
    %p128 = scmp.ne.s32.totalorder %s113, %s127
    %p129 = scmp.eq.s32.totalorder %s19, 0
    %p130 = por %p128, %p129
    %s132 = sadd.s32 %s131, 1
    %p135 = scmp.eq.s32.totalorder %s13, 1
    %p136 = scmp.ne.s32.totalorder %s131, %s133
    %p137 = scmp.eq.s32.totalorder %s13, 0
    %p138 = por %p136, %p137
    %p139 = scmp.ne.s32.totalorder %s131, %s133
    %p140 = scmp.eq.s32.totalorder %s18, 1
    %p141 = por %p139, %p140
    %p142 = scmp.ne.s32.totalorder %s133, %s134
    %p143 = scmp.eq.s32.totalorder %s18, 0
    %p144 = por %p142, %p143
    %p145 = scmp.ne.s32.totalorder %s133, %s134
    %p146 = scmp.eq.s32.totalorder %s19, 1
    %p147 = por %p145, %p146
    %p149 = scmp.ne.s32.totalorder %s134, %s148
    %p150 = scmp.eq.s32.totalorder %s19, 0
    %p151 = por %p149, %p150
    %s152 = ssub.s32 %s13, %s20
    %p153 = scmp.eq.s32.totalorder %s152, 0
    %s155 = sadd.s32 %s154, 1
    %s156 = scalar_select %p153, %s154, %s155
    %p159 = pneg %p153
    %p160 = scmp.eq.s32.totalorder %s13, 1
    %p161 = por %p159, %p160
    %p162 = scmp.ne.s32.totalorder %s154, %s157
    %p163 = scmp.eq.s32.totalorder %s13, 0
    %p164 = por %p162, %p163
    %p165 = scmp.ne.s32.totalorder %s154, %s157
    %p166 = scmp.eq.s32.totalorder %s18, 1
    %p167 = por %p165, %p166
    %p168 = scmp.ne.s32.totalorder %s157, %s158
    %p169 = scmp.eq.s32.totalorder %s18, 0
    %p170 = por %p168, %p169
    %p171 = scmp.ne.s32.totalorder %s157, %s158
    %p172 = scmp.eq.s32.totalorder %s19, 1
    %p173 = por %p171, %p172
    %p175 = scmp.ne.s32.totalorder %s158, %s174
    %p176 = scmp.eq.s32.totalorder %s19, 0
    %p177 = por %p175, %p176
    %p178 = scmp.le.s32.totalorder 1, %s13
    %p179 = scmp.lt.s32.totalorder %s13, 3
    %p180 = pnand %p178, %p179
    %p181 = pneg %p180
    // Predicated region
    $region9: #{diffeq_sequential.1} parent=5 // pred_check
      _
    $region10: #{diffeq_sequential.1} parent=5 // pred_check_branch
      %183 = sbr.rel (%p180) target = $region12
    $region11: #{diffeq_sequential.1} parent=5 // pred_region
      %s184 = ssub.s32 %s13, 1
      // Predicated region
      $region13: #{diffeq_sequential.1} parent=11 // pred_check
        %p185 = pneg %p34
      $region14: #{diffeq_sequential.1} parent=11 // pred_check_branch
        %187 = sbr.rel (%p185) target = $region16
      $region15: #{diffeq_sequential.1} parent=11 // pred_region
        _
      $region16: #{diffeq_sequential.1} parent=11 // pred_fallthru
        _
      // Predicated region
      $region17: #{diffeq_sequential.1} parent=11 // pred_check
        %p188 = pneg %p81
      $region18: #{diffeq_sequential.1} parent=11 // pred_check_branch
        %190 = sbr.rel (%p188) target = $region20
      $region19: #{diffeq_sequential.1} parent=11 // pred_region
        _
      $region20: #{diffeq_sequential.1} parent=11 // pred_fallthru
        _
      // Predicated region
      $region21: #{diffeq_sequential.1} parent=11 // pred_check
        %p191 = pneg %p102
      $region22: #{diffeq_sequential.1} parent=11 // pred_check_branch
        %193 = sbr.rel (%p191) target = $region24
      $region23: #{diffeq_sequential.1} parent=11 // pred_region
        _
      $region24: #{diffeq_sequential.1} parent=11 // pred_fallthru
        _
      // Predicated region
      $region25: #{diffeq_sequential.1} parent=11 // pred_check
        %p194 = pneg %p123
      $region26: #{diffeq_sequential.1} parent=11 // pred_check_branch
        %196 = sbr.rel (%p194) target = $region28
      $region27: #{diffeq_sequential.1} parent=11 // pred_region
        _
      $region28: #{diffeq_sequential.1} parent=11 // pred_fallthru
        _
      // Predicated region
      $region29: #{diffeq_sequential.1} parent=11 // pred_check
        %p197 = pneg %p144
      $region30: #{diffeq_sequential.1} parent=11 // pred_check_branch
        %199 = sbr.rel (%p197) target = $region32
      $region31: #{diffeq_sequential.1} parent=11 // pred_region
        _
      $region32: #{diffeq_sequential.1} parent=11 // pred_fallthru
        _
    $region12: #{diffeq_sequential.1} parent=5 // pred_fallthru
      _
    %p200 = scmp.lt.s32.totalorder %s13, 2
    // Predicated region
    $region33: #{diffeq_sequential.1} parent=5 // pred_check
      %p201 = pneg %p200
    $region34: #{diffeq_sequential.1} parent=5 // pred_check_branch
      %203 = sbr.rel (%p201) target = $region36
    $region35: #{diffeq_sequential.1} parent=5 // pred_region
      // Predicated region
      $region37: #{diffeq_sequential.1} parent=35 // pred_check
        %p204 = pneg %p54
      $region38: #{diffeq_sequential.1} parent=35 // pred_check_branch
        %206 = sbr.rel (%p204) target = $region40
      $region39: #{diffeq_sequential.1} parent=35 // pred_region
        %p207 = scmp.lt.s32.totalorder %s13, 1
        %s208 = scalar_select %p207, %s13, 1
        %s209 = smul.addr %s208, 2
        %s210 = smul.addr %s209, 4
        %s211 = scalar_lea.vmem %s1, %s210
      $region40: #{diffeq_sequential.1} parent=35 // pred_fallthru
        _
    $region36: #{diffeq_sequential.1} parent=5 // pred_fallthru
      _
    %p212 = scmp.le.s32.totalorder 1, %s13
    %p213 = scmp.lt.s32.totalorder %s13, 3
    %p214 = pnand %p212, %p213
    %p215 = pneg %p214
    // Predicated region
    $region41: #{diffeq_sequential.1} parent=5 // pred_check
      _
    $region42: #{diffeq_sequential.1} parent=5 // pred_check_branch
      %217 = sbr.rel (%p214) target = $region44
    $region43: #{diffeq_sequential.1} parent=5 // pred_region
      %s218 = ssub.s32 %s13, 1
      %p219 = pneg %p34
      %p220 = pneg %p31
      %p221 = scmp.lt.s32.totalorder %s18, 1
      %s222 = scalar_select %p221, %s18, 1
      %s223 = smul.addr %s222, 2
      %s224 = smul.addr %s223, 4
      %s225 = scalar_lea.vmem %s1, %s224
      %p226 = pneg %p60
      %p227 = pneg %p57
      %p228 = pneg %p81
      %p229 = pneg %p78
      %p230 = pneg %p102
      %p231 = pneg %p99
      %p232 = pneg %p123
      %p233 = pneg %p120
      %p234 = pneg %p144
      %p235 = pneg %p141
      %p236 = pneg %p170
      %p237 = pneg %p167
      %p238 = scmp.lt.s32.totalorder %s18, 1
      %s239 = scalar_select %p238, %s18, 1
      %s240 = smul.addr %s239, 2
      %s241 = smul.addr %s240, 4
      %s242 = scalar_lea.vmem %s6, %s241
      %p243 = scmp.lt.s32.totalorder %s18, 1
      %s244 = scalar_select %p243, %s18, 1
      %s245 = smul.addr %s244, 2
      %s246 = smul.addr %s245, 4
      %s247 = scalar_lea.vmem %s1, %s246
      %p248 = scmp.lt.s32.totalorder %s18, 1
      %s249 = scalar_select %p248, %s18, 1
      %s250 = smul.addr %s249, 2
      %s251 = smul.addr %s250, 4
      %s252 = scalar_lea.vmem %s6, %s251
      %s253 = sld [smem:[#allocation3]]
      %v254 = vlaneseq
      %v255 = vand.u32 %v254, 127
      %v256 = vadd.s32 %v255, 128
      %vm257 = vcmp.lt.s32.totalorder %v255, 0
      %v258 = vsub.s32 0, %v255
      %v259 = vsel %vm257, %v258, %v255
      %v260 = vshrl.u32 %v259, 4
      %v261 = vand.u32 %v259, 15
      %v262 = vsub.s32 0, %v261
      %v263 = vsel %vm257, %v262, %v261
      %vm264 = vcmp.lt.s32.totalorder %v256, 0
      %v265 = vsub.s32 0, %v256
      %v266 = vsel %vm264, %v265, %v256
      %v267 = vshrl.u32 %v266, 4
      %v268 = vand.u32 %v266, 15
      %v269 = vsub.s32 0, %v268
      %v270 = vsel %vm264, %v269, %v268
      %vm271 = vcmp.ne.s32.totalorder %v263, 0
      %vm272 = vcmp.ne.s32.totalorder %v270, 0
      %vm273 = vcmp.lt.s32.totalorder %v263, 0
      %vm274 = vcmp.lt.s32.totalorder %v270, 0
      %vm275 = vmand %vm273, %vm271
      %vm276 = vmand %vm274, %vm272
      %v277 = vadd.s32 %v263, 16
      %v278 = vadd.s32 %v270, 16
      %v279 = vsel %vm275, %v277, %v263
      %v280 = vsel %vm276, %v278, %v270
      %v281 = vld [vmem:[%s247] sm:$0xff]
      %282 = vst [vmem:[#allocation2] sm:$0xff] 0.0
      %283 = vst [vmem:[#allocation2 + $0x8] sm:$0xff] 0.0
      %284 = vst [vmem:[#allocation2 + $0x10] sm:$0xff] 0.0
      %285 = vst [vmem:[#allocation2 + $0x18] sm:$0xff] 0.0
      %286 = vst [vmem:[#allocation2 + $0x20] sm:$0x1] 0.0
      %287 = vst [vmem:[#allocation2 + $0x28] sm:$0x1] 0.0
      %288 = vst [vmem:[#allocation2 + $0x30] sm:$0x1] 0.0
      %289 = vst [vmem:[#allocation2 + $0x38] sm:$0x1] 0.0
      %v290 = vstv %s253
      %v291 = vlaneseq
      %vm292 = vcmp.ge.s32.totalorder %v291, 0
      %vm293 = vcmp.lt.s32.totalorder %v291, 256
      %vm294 = vmand %vm292, %vm293
      %s295 = scalar_lea.vmem [#allocation2], 8
      %296 = vst.msk [vmem:[%s295] ss:$8 sm:$0x3] %vm294, %v290
      %297 = vst.msk [vmem:[%s295] ss:$8 sm:$0x0] %vm294, %v290
      %299 = vst [vmem:[#allocation1] ss:$2 sm:$0xff] %v281
      %v300 = vld.sshfl [vmem:[#allocation1] sm:$0xff pattern:$0x75316420]
      %v301 = vld.sshfl [vmem:[#allocation1 + $0x8] sm:$0xff pattern:$0x75316420]
      %v302 = vrot.slane %v300, 7
      %v303 = vrot.slane %v301, 7
      %306 = vst [vmem:[#allocation2 + $0x8] sm:$0x1e] %v302
      %307 = vst [vmem:[#allocation2 + $0x10] sm:$0x1e] %v303
      %v308 = vld [vmem:[#allocation2] sm:$0x1f]
      %v309 = vld [vmem:[#allocation2 + $0x8] sm:$0x1f]
      %v310 = vld [vmem:[#allocation2 + $0x10] sm:$0x1f]
      %vm311 = vcmp.ge.s32.totalorder %v279, 1
      %vm312 = vcmp.ge.s32.totalorder %v280, 1
      %v313 = vsel %vm311, 1, 0
      %v314 = vsel %vm312, 1, 0
      %vm315 = vcmp.eq.s32.totalorder %v313, 1
      %vm316 = vcmp.eq.s32.totalorder %v314, 1
      %320 = vrot.lane.b32.xlu0 %v308, 17
      %v321 = vpop.permute.xlu0 %320
      %322 = vrot.lane.b32.xlu0 %v309, 17
      %v323 = vpop.permute.xlu0 %322
      %324 = vrot.lane.b32.xlu0 %v310, 17
      %v325 = vpop.permute.xlu0 %324
      %vm326 = vcmask 138240
      %v327 = vsel %vm326, %v321, %v323
      %v328 = vsel %vm326, %v323, %v325
      %v331 = vsel %vm315, %v327, 0.0
      %v332 = vsel %vm316, %v328, 0.0
      %v333 = vld [vmem:[%s2] sm:$0xff]
      %s334 = scalar_lea.vmem %s2, 8
      %v335 = vld [vmem:[%s334] sm:$0xff]
      %336 = vrot.lane.b32.xlu0 %v308, 16
      %v337 = vpop.permute.xlu0 %336
      %338 = vrot.lane.b32.xlu0 %v309, 16
      %v339 = vpop.permute.xlu0 %338
      %340 = vrot.lane.b32.xlu0 %v310, 16
      %v341 = vpop.permute.xlu0 %340
      %vm342 = vcmask 130048
      %v343 = vsel %vm342, %v337, %v339
      %v344 = vsel %vm342, %v339, %v341
      %vm345 = vcmask 39936
      %v347 = vsel %vm345, %v335, 0
      %vm349 = vcmask 1044480
      %v350 = vsel %vm349, %v343, 0
      %v352 = vsel %vm349, %v344, 0
      %354 = vmatpush.msra.mxu0 0.0
      %355 = vmatpush.msra.mxu0 0.0
      %356 = vmatpush.msra.mxu0 0.0
      %357 = vmatpush.msra.mxu0 0.0
      %358 = vmatpush.msra.mxu0 0.0
      %359 = vmatpush.msra.mxu0 0.0
      %360 = vmatpush.msra.mxu0 0.0
      %361 = vmatpush.msra.mxu0 0.0
      %362 = vmatpush.msra.mxu0 0.0
      %363 = vmatpush.msra.mxu0 0.0
      %364 = vmatpush.msra.mxu0 0.0
      %365 = vmatpush.msra.mxu0 0.0
      %366 = vmatpush.msra.mxu0 0.0
      %367 = vmatpush.msra.mxu0 0.0
      %368 = vmatpush.msra.mxu0 0.0
      %v369 = vand.u32 %v350, 4294901760
      %370 = vmatpush.msra.mxu0 %v369
      %v371 = vand.u32 %v347, 4294901760
      %v372 = vsub.f32 %v347, %v371
      %v373 = vand.u32 %v372, 4294901760
      %v374 = vsub.f32 %v372, %v373
      %v375 = vand.u32 %v374, 4294901760
      %376 = vmatmul.f32.gmra.mxu0 %v375
      %v377 = vpop.f32.mrf.mxu0
      %v378 = vadd.f32 0.0, %v377
      %379 = vdwg.mxu0
      %380 = vmatpush.msra.mxu0 0.0
      %381 = vmatpush.msra.mxu0 0.0
      %382 = vmatpush.msra.mxu0 0.0
      %383 = vmatpush.msra.mxu0 0.0
      %384 = vmatpush.msra.mxu0 0.0
      %385 = vmatpush.msra.mxu0 0.0
      %386 = vmatpush.msra.mxu0 0.0
      %387 = vmatpush.msra.mxu0 0.0
      %388 = vmatpush.msra.mxu0 0.0
      %389 = vmatpush.msra.mxu0 0.0
      %390 = vmatpush.msra.mxu0 0.0
      %391 = vmatpush.msra.mxu0 0.0
      %392 = vmatpush.msra.mxu0 0.0
      %393 = vmatpush.msra.mxu0 0.0
      %394 = vmatpush.msra.mxu0 0.0
      %v395 = vand.u32 %v350, 4294901760
      %v396 = vsub.f32 %v350, %v395
      %v397 = vand.u32 %v396, 4294901760
      %v398 = vsub.f32 %v396, %v397
      %v399 = vand.u32 %v398, 4294901760
      %400 = vmatpush.msra.mxu0 %v399
      %v401 = vand.u32 %v347, 4294901760
      %402 = vmatmul.f32.gmra.mxu0 %v401
      %v403 = vpop.f32.mrf.mxu0
      %v404 = vadd.f32 %v378, %v403
      %405 = vdwg.mxu0
      %406 = vmatpush.msra.mxu0 0.0
      %407 = vmatpush.msra.mxu0 0.0
      %408 = vmatpush.msra.mxu0 0.0
      %409 = vmatpush.msra.mxu0 0.0
      %410 = vmatpush.msra.mxu0 0.0
      %411 = vmatpush.msra.mxu0 0.0
      %412 = vmatpush.msra.mxu0 0.0
      %413 = vmatpush.msra.mxu0 0.0
      %414 = vmatpush.msra.mxu0 0.0
      %415 = vmatpush.msra.mxu0 0.0
      %416 = vmatpush.msra.mxu0 0.0
      %417 = vmatpush.msra.mxu0 0.0
      %418 = vmatpush.msra.mxu0 0.0
      %419 = vmatpush.msra.mxu0 0.0
      %420 = vmatpush.msra.mxu0 0.0
      %v421 = vand.u32 %v350, 4294901760
      %v422 = vsub.f32 %v350, %v421
      %423 = vmatpush.msra.mxu0 %v422
      %v424 = vand.u32 %v347, 4294901760
      %v425 = vsub.f32 %v347, %v424
      %426 = vmatmul.f32.gmra.mxu0 %v425
      %v427 = vpop.f32.mrf.mxu0
      %v428 = vadd.f32 %v404, %v427
      %429 = vdwg.mxu0
      %430 = vmatpush.msra.mxu0 0.0
      %431 = vmatpush.msra.mxu0 0.0
      %432 = vmatpush.msra.mxu0 0.0
      %433 = vmatpush.msra.mxu0 0.0
      %434 = vmatpush.msra.mxu0 0.0
      %435 = vmatpush.msra.mxu0 0.0
      %436 = vmatpush.msra.mxu0 0.0
      %437 = vmatpush.msra.mxu0 0.0
      %438 = vmatpush.msra.mxu0 0.0
      %439 = vmatpush.msra.mxu0 0.0
      %440 = vmatpush.msra.mxu0 0.0
      %441 = vmatpush.msra.mxu0 0.0
      %442 = vmatpush.msra.mxu0 0.0
      %443 = vmatpush.msra.mxu0 0.0
      %444 = vmatpush.msra.mxu0 0.0
      %v445 = vand.u32 %v350, 4294901760
      %446 = vmatpush.msra.mxu0 %v445
      %v447 = vand.u32 %v347, 4294901760
      %v448 = vsub.f32 %v347, %v447
      %v449 = vand.u32 %v448, 4294901760
      %450 = vmatmul.f32.gmra.mxu0 %v449
      %v451 = vpop.f32.mrf.mxu0
      %v452 = vadd.f32 %v428, %v451
      %453 = vdwg.mxu0
      %454 = vmatpush.msra.mxu0 0.0
      %455 = vmatpush.msra.mxu0 0.0
      %456 = vmatpush.msra.mxu0 0.0
      %457 = vmatpush.msra.mxu0 0.0
      %458 = vmatpush.msra.mxu0 0.0
      %459 = vmatpush.msra.mxu0 0.0
      %460 = vmatpush.msra.mxu0 0.0
      %461 = vmatpush.msra.mxu0 0.0
      %462 = vmatpush.msra.mxu0 0.0
      %463 = vmatpush.msra.mxu0 0.0
      %464 = vmatpush.msra.mxu0 0.0
      %465 = vmatpush.msra.mxu0 0.0
      %466 = vmatpush.msra.mxu0 0.0
      %467 = vmatpush.msra.mxu0 0.0
      %468 = vmatpush.msra.mxu0 0.0
      %v469 = vand.u32 %v350, 4294901760
      %v470 = vsub.f32 %v350, %v469
      %v471 = vand.u32 %v470, 4294901760
      %472 = vmatpush.msra.mxu0 %v471
      %v473 = vand.u32 %v347, 4294901760
      %474 = vmatmul.f32.gmra.mxu0 %v473
      %v475 = vpop.f32.mrf.mxu0
      %v476 = vadd.f32 %v452, %v475
      %477 = vdwg.mxu0
      %478 = vmatpush.msra.mxu0 0.0
      %479 = vmatpush.msra.mxu0 0.0
      %480 = vmatpush.msra.mxu0 0.0
      %481 = vmatpush.msra.mxu0 0.0
      %482 = vmatpush.msra.mxu0 0.0
      %483 = vmatpush.msra.mxu0 0.0
      %484 = vmatpush.msra.mxu0 0.0
      %485 = vmatpush.msra.mxu0 0.0
      %486 = vmatpush.msra.mxu0 0.0
      %487 = vmatpush.msra.mxu0 0.0
      %488 = vmatpush.msra.mxu0 0.0
      %489 = vmatpush.msra.mxu0 0.0
      %490 = vmatpush.msra.mxu0 0.0
      %491 = vmatpush.msra.mxu0 0.0
      %492 = vmatpush.msra.mxu0 0.0
      %v493 = vand.u32 %v350, 4294901760
      %494 = vmatpush.msra.mxu0 %v493
      %v495 = vand.u32 %v347, 4294901760
      %496 = vmatmul.f32.gmra.mxu0 %v495
      %v497 = vpop.f32.mrf.mxu0
      %v498 = vadd.f32 %v476, %v497
      %499 = vdwg.mxu0
      %500 = vmatpush.msra.mxu0 0.0
      %501 = vmatpush.msra.mxu0 0.0
      %502 = vmatpush.msra.mxu0 0.0
      %503 = vmatpush.msra.mxu0 0.0
      %504 = vmatpush.msra.mxu0 0.0
      %505 = vmatpush.msra.mxu0 0.0
      %506 = vmatpush.msra.mxu0 0.0
      %507 = vmatpush.msra.mxu0 0.0
      %508 = vmatpush.msra.mxu0 0.0
      %509 = vmatpush.msra.mxu0 0.0
      %510 = vmatpush.msra.mxu0 0.0
      %511 = vmatpush.msra.mxu0 0.0
      %512 = vmatpush.msra.mxu0 0.0
      %513 = vmatpush.msra.mxu0 0.0
      %514 = vmatpush.msra.mxu0 0.0
      %v515 = vand.u32 %v352, 4294901760
      %516 = vmatpush.msra.mxu0 %v515
      %v517 = vand.u32 %v347, 4294901760
      %v518 = vsub.f32 %v347, %v517
      %v519 = vand.u32 %v518, 4294901760
      %v520 = vsub.f32 %v518, %v519
      %v521 = vand.u32 %v520, 4294901760
      %522 = vmatmul.f32.gmra.mxu0 %v521
      %v523 = vpop.f32.mrf.mxu0
      %v524 = vadd.f32 0.0, %v523
      %525 = vdwg.mxu0
      %526 = vmatpush.msra.mxu0 0.0
      %527 = vmatpush.msra.mxu0 0.0
      %528 = vmatpush.msra.mxu0 0.0
      %529 = vmatpush.msra.mxu0 0.0
      %530 = vmatpush.msra.mxu0 0.0
      %531 = vmatpush.msra.mxu0 0.0
      %532 = vmatpush.msra.mxu0 0.0
      %533 = vmatpush.msra.mxu0 0.0
      %534 = vmatpush.msra.mxu0 0.0
      %535 = vmatpush.msra.mxu0 0.0
      %536 = vmatpush.msra.mxu0 0.0
      %537 = vmatpush.msra.mxu0 0.0
      %538 = vmatpush.msra.mxu0 0.0
      %539 = vmatpush.msra.mxu0 0.0
      %540 = vmatpush.msra.mxu0 0.0
      %v541 = vand.u32 %v352, 4294901760
      %v542 = vsub.f32 %v352, %v541
      %v543 = vand.u32 %v542, 4294901760
      %v544 = vsub.f32 %v542, %v543
      %v545 = vand.u32 %v544, 4294901760
      %546 = vmatpush.msra.mxu0 %v545
      %v547 = vand.u32 %v347, 4294901760
      %548 = vmatmul.f32.gmra.mxu0 %v547
      %v549 = vpop.f32.mrf.mxu0
      %v550 = vadd.f32 %v524, %v549
      %551 = vdwg.mxu0
      %552 = vmatpush.msra.mxu0 0.0
      %553 = vmatpush.msra.mxu0 0.0
      %554 = vmatpush.msra.mxu0 0.0
      %555 = vmatpush.msra.mxu0 0.0
      %556 = vmatpush.msra.mxu0 0.0
      %557 = vmatpush.msra.mxu0 0.0
      %558 = vmatpush.msra.mxu0 0.0
      %559 = vmatpush.msra.mxu0 0.0
      %560 = vmatpush.msra.mxu0 0.0
      %561 = vmatpush.msra.mxu0 0.0
      %562 = vmatpush.msra.mxu0 0.0
      %563 = vmatpush.msra.mxu0 0.0
      %564 = vmatpush.msra.mxu0 0.0
      %565 = vmatpush.msra.mxu0 0.0
      %566 = vmatpush.msra.mxu0 0.0
      %v567 = vand.u32 %v352, 4294901760
      %v568 = vsub.f32 %v352, %v567
      %569 = vmatpush.msra.mxu0 %v568
      %v570 = vand.u32 %v347, 4294901760
      %v571 = vsub.f32 %v347, %v570
      %572 = vmatmul.f32.gmra.mxu0 %v571
      %v573 = vpop.f32.mrf.mxu0
      %v574 = vadd.f32 %v550, %v573
      %575 = vdwg.mxu0
      %576 = vmatpush.msra.mxu0 0.0
      %577 = vmatpush.msra.mxu0 0.0
      %578 = vmatpush.msra.mxu0 0.0
      %579 = vmatpush.msra.mxu0 0.0
      %580 = vmatpush.msra.mxu0 0.0
      %581 = vmatpush.msra.mxu0 0.0
      %582 = vmatpush.msra.mxu0 0.0
      %583 = vmatpush.msra.mxu0 0.0
      %584 = vmatpush.msra.mxu0 0.0
      %585 = vmatpush.msra.mxu0 0.0
      %586 = vmatpush.msra.mxu0 0.0
      %587 = vmatpush.msra.mxu0 0.0
      %588 = vmatpush.msra.mxu0 0.0
      %589 = vmatpush.msra.mxu0 0.0
      %590 = vmatpush.msra.mxu0 0.0
      %v591 = vand.u32 %v352, 4294901760
      %592 = vmatpush.msra.mxu0 %v591
      %v593 = vand.u32 %v347, 4294901760
      %v594 = vsub.f32 %v347, %v593
      %v595 = vand.u32 %v594, 4294901760
      %596 = vmatmul.f32.gmra.mxu0 %v595
      %v597 = vpop.f32.mrf.mxu0
      %v598 = vadd.f32 %v574, %v597
      %599 = vdwg.mxu0
      %600 = vmatpush.msra.mxu0 0.0
      %601 = vmatpush.msra.mxu0 0.0
      %602 = vmatpush.msra.mxu0 0.0
      %603 = vmatpush.msra.mxu0 0.0
      %604 = vmatpush.msra.mxu0 0.0
      %605 = vmatpush.msra.mxu0 0.0
      %606 = vmatpush.msra.mxu0 0.0
      %607 = vmatpush.msra.mxu0 0.0
      %608 = vmatpush.msra.mxu0 0.0
      %609 = vmatpush.msra.mxu0 0.0
      %610 = vmatpush.msra.mxu0 0.0
      %611 = vmatpush.msra.mxu0 0.0
      %612 = vmatpush.msra.mxu0 0.0
      %613 = vmatpush.msra.mxu0 0.0
      %614 = vmatpush.msra.mxu0 0.0
      %v615 = vand.u32 %v352, 4294901760
      %v616 = vsub.f32 %v352, %v615
      %v617 = vand.u32 %v616, 4294901760
      %618 = vmatpush.msra.mxu0 %v617
      %v619 = vand.u32 %v347, 4294901760
      %620 = vmatmul.f32.gmra.mxu0 %v619
      %v621 = vpop.f32.mrf.mxu0
      %v622 = vadd.f32 %v598, %v621
      %623 = vdwg.mxu0
      %624 = vmatpush.msra.mxu0 0.0
      %625 = vmatpush.msra.mxu0 0.0
      %626 = vmatpush.msra.mxu0 0.0
      %627 = vmatpush.msra.mxu0 0.0
      %628 = vmatpush.msra.mxu0 0.0
      %629 = vmatpush.msra.mxu0 0.0
      %630 = vmatpush.msra.mxu0 0.0
      %631 = vmatpush.msra.mxu0 0.0
      %632 = vmatpush.msra.mxu0 0.0
      %633 = vmatpush.msra.mxu0 0.0
      %634 = vmatpush.msra.mxu0 0.0
      %635 = vmatpush.msra.mxu0 0.0
      %636 = vmatpush.msra.mxu0 0.0
      %637 = vmatpush.msra.mxu0 0.0
      %638 = vmatpush.msra.mxu0 0.0
      %v639 = vand.u32 %v352, 4294901760
      %640 = vmatpush.msra.mxu0 %v639
      %v641 = vand.u32 %v347, 4294901760
      %642 = vmatmul.f32.gmra.mxu0 %v641
      %v643 = vpop.f32.mrf.mxu0
      %v644 = vadd.f32 %v622, %v643
      %645 = vdwg.mxu0
      %v647 = vsel %vm345, %v333, 0
      %v650 = vsel %vm349, %v331, 0
      %v653 = vsel %vm349, %v332, 0
      %655 = vmatpush.msra.mxu0 0.0
      %656 = vmatpush.msra.mxu0 0.0
      %657 = vmatpush.msra.mxu0 0.0
      %658 = vmatpush.msra.mxu0 0.0
      %659 = vmatpush.msra.mxu0 0.0
      %660 = vmatpush.msra.mxu0 0.0
      %661 = vmatpush.msra.mxu0 0.0
      %662 = vmatpush.msra.mxu0 0.0
      %663 = vmatpush.msra.mxu0 0.0
      %664 = vmatpush.msra.mxu0 0.0
      %665 = vmatpush.msra.mxu0 0.0
      %666 = vmatpush.msra.mxu0 0.0
      %667 = vmatpush.msra.mxu0 0.0
      %668 = vmatpush.msra.mxu0 0.0
      %669 = vmatpush.msra.mxu0 0.0
      %v670 = vand.u32 %v650, 4294901760
      %671 = vmatpush.msra.mxu0 %v670
      %v672 = vand.u32 %v647, 4294901760
      %v673 = vsub.f32 %v647, %v672
      %v674 = vand.u32 %v673, 4294901760
      %v675 = vsub.f32 %v673, %v674
      %v676 = vand.u32 %v675, 4294901760
      %677 = vmatmul.f32.gmra.mxu0 %v676
      %v678 = vpop.f32.mrf.mxu0
      %v679 = vadd.f32 %v498, %v678
      %680 = vdwg.mxu0
      %681 = vmatpush.msra.mxu0 0.0
      %682 = vmatpush.msra.mxu0 0.0
      %683 = vmatpush.msra.mxu0 0.0
      %684 = vmatpush.msra.mxu0 0.0
      %685 = vmatpush.msra.mxu0 0.0
      %686 = vmatpush.msra.mxu0 0.0
      %687 = vmatpush.msra.mxu0 0.0
      %688 = vmatpush.msra.mxu0 0.0
      %689 = vmatpush.msra.mxu0 0.0
      %690 = vmatpush.msra.mxu0 0.0
      %691 = vmatpush.msra.mxu0 0.0
      %692 = vmatpush.msra.mxu0 0.0
      %693 = vmatpush.msra.mxu0 0.0
      %694 = vmatpush.msra.mxu0 0.0
      %695 = vmatpush.msra.mxu0 0.0
      %v696 = vand.u32 %v650, 4294901760
      %v697 = vsub.f32 %v650, %v696
      %v698 = vand.u32 %v697, 4294901760
      %v699 = vsub.f32 %v697, %v698
      %v700 = vand.u32 %v699, 4294901760
      %701 = vmatpush.msra.mxu0 %v700
      %v702 = vand.u32 %v647, 4294901760
      %703 = vmatmul.f32.gmra.mxu0 %v702
      %v704 = vpop.f32.mrf.mxu0
      %v705 = vadd.f32 %v679, %v704
      %706 = vdwg.mxu0
      %707 = vmatpush.msra.mxu0 0.0
      %708 = vmatpush.msra.mxu0 0.0
      %709 = vmatpush.msra.mxu0 0.0
      %710 = vmatpush.msra.mxu0 0.0
      %711 = vmatpush.msra.mxu0 0.0
      %712 = vmatpush.msra.mxu0 0.0
      %713 = vmatpush.msra.mxu0 0.0
      %714 = vmatpush.msra.mxu0 0.0
      %715 = vmatpush.msra.mxu0 0.0
      %716 = vmatpush.msra.mxu0 0.0
      %717 = vmatpush.msra.mxu0 0.0
      %718 = vmatpush.msra.mxu0 0.0
      %719 = vmatpush.msra.mxu0 0.0
      %720 = vmatpush.msra.mxu0 0.0
      %721 = vmatpush.msra.mxu0 0.0
      %v722 = vand.u32 %v650, 4294901760
      %v723 = vsub.f32 %v650, %v722
      %724 = vmatpush.msra.mxu0 %v723
      %v725 = vand.u32 %v647, 4294901760
      %v726 = vsub.f32 %v647, %v725
      %727 = vmatmul.f32.gmra.mxu0 %v726
      %v728 = vpop.f32.mrf.mxu0
      %v729 = vadd.f32 %v705, %v728
      %730 = vdwg.mxu0
      %731 = vmatpush.msra.mxu0 0.0
      %732 = vmatpush.msra.mxu0 0.0
      %733 = vmatpush.msra.mxu0 0.0
      %734 = vmatpush.msra.mxu0 0.0
      %735 = vmatpush.msra.mxu0 0.0
      %736 = vmatpush.msra.mxu0 0.0
      %737 = vmatpush.msra.mxu0 0.0
      %738 = vmatpush.msra.mxu0 0.0
      %739 = vmatpush.msra.mxu0 0.0
      %740 = vmatpush.msra.mxu0 0.0
      %741 = vmatpush.msra.mxu0 0.0
      %742 = vmatpush.msra.mxu0 0.0
      %743 = vmatpush.msra.mxu0 0.0
      %744 = vmatpush.msra.mxu0 0.0
      %745 = vmatpush.msra.mxu0 0.0
      %v746 = vand.u32 %v650, 4294901760
      %747 = vmatpush.msra.mxu0 %v746
      %v748 = vand.u32 %v647, 4294901760
      %v749 = vsub.f32 %v647, %v748
      %v750 = vand.u32 %v749, 4294901760
      %751 = vmatmul.f32.gmra.mxu0 %v750
      %v752 = vpop.f32.mrf.mxu0
      %v753 = vadd.f32 %v729, %v752
      %754 = vdwg.mxu0
      %755 = vmatpush.msra.mxu0 0.0
      %756 = vmatpush.msra.mxu0 0.0
      %757 = vmatpush.msra.mxu0 0.0
      %758 = vmatpush.msra.mxu0 0.0
      %759 = vmatpush.msra.mxu0 0.0
      %760 = vmatpush.msra.mxu0 0.0
      %761 = vmatpush.msra.mxu0 0.0
      %762 = vmatpush.msra.mxu0 0.0
      %763 = vmatpush.msra.mxu0 0.0
      %764 = vmatpush.msra.mxu0 0.0
      %765 = vmatpush.msra.mxu0 0.0
      %766 = vmatpush.msra.mxu0 0.0
      %767 = vmatpush.msra.mxu0 0.0
      %768 = vmatpush.msra.mxu0 0.0
      %769 = vmatpush.msra.mxu0 0.0
      %v770 = vand.u32 %v650, 4294901760
      %v771 = vsub.f32 %v650, %v770
      %v772 = vand.u32 %v771, 4294901760
      %773 = vmatpush.msra.mxu0 %v772
      %v774 = vand.u32 %v647, 4294901760
      %775 = vmatmul.f32.gmra.mxu0 %v774
      %v776 = vpop.f32.mrf.mxu0
      %v777 = vadd.f32 %v753, %v776
      %778 = vdwg.mxu0
      %779 = vmatpush.msra.mxu0 0.0
      %780 = vmatpush.msra.mxu0 0.0
      %781 = vmatpush.msra.mxu0 0.0
      %782 = vmatpush.msra.mxu0 0.0
      %783 = vmatpush.msra.mxu0 0.0
      %784 = vmatpush.msra.mxu0 0.0
      %785 = vmatpush.msra.mxu0 0.0
      %786 = vmatpush.msra.mxu0 0.0
      %787 = vmatpush.msra.mxu0 0.0
      %788 = vmatpush.msra.mxu0 0.0
      %789 = vmatpush.msra.mxu0 0.0
      %790 = vmatpush.msra.mxu0 0.0
      %791 = vmatpush.msra.mxu0 0.0
      %792 = vmatpush.msra.mxu0 0.0
      %793 = vmatpush.msra.mxu0 0.0
      %v794 = vand.u32 %v650, 4294901760
      %795 = vmatpush.msra.mxu0 %v794
      %v796 = vand.u32 %v647, 4294901760
      %797 = vmatmul.f32.gmra.mxu0 %v796
      %v798 = vpop.f32.mrf.mxu0
      %v799 = vadd.f32 %v777, %v798
      %800 = vdwg.mxu0
      %801 = vmatpush.msra.mxu0 0.0
      %802 = vmatpush.msra.mxu0 0.0
      %803 = vmatpush.msra.mxu0 0.0
      %804 = vmatpush.msra.mxu0 0.0
      %805 = vmatpush.msra.mxu0 0.0
      %806 = vmatpush.msra.mxu0 0.0
      %807 = vmatpush.msra.mxu0 0.0
      %808 = vmatpush.msra.mxu0 0.0
      %809 = vmatpush.msra.mxu0 0.0
      %810 = vmatpush.msra.mxu0 0.0
      %811 = vmatpush.msra.mxu0 0.0
      %812 = vmatpush.msra.mxu0 0.0
      %813 = vmatpush.msra.mxu0 0.0
      %814 = vmatpush.msra.mxu0 0.0
      %815 = vmatpush.msra.mxu0 0.0
      %v816 = vand.u32 %v653, 4294901760
      %817 = vmatpush.msra.mxu0 %v816
      %v818 = vand.u32 %v647, 4294901760
      %v819 = vsub.f32 %v647, %v818
      %v820 = vand.u32 %v819, 4294901760
      %v821 = vsub.f32 %v819, %v820
      %v822 = vand.u32 %v821, 4294901760
      %823 = vmatmul.f32.gmra.mxu0 %v822
      %v824 = vpop.f32.mrf.mxu0
      %v825 = vadd.f32 %v644, %v824
      %826 = vdwg.mxu0
      %827 = vmatpush.msra.mxu0 0.0
      %828 = vmatpush.msra.mxu0 0.0
      %829 = vmatpush.msra.mxu0 0.0
      %830 = vmatpush.msra.mxu0 0.0
      %831 = vmatpush.msra.mxu0 0.0
      %832 = vmatpush.msra.mxu0 0.0
      %833 = vmatpush.msra.mxu0 0.0
      %834 = vmatpush.msra.mxu0 0.0
      %835 = vmatpush.msra.mxu0 0.0
      %836 = vmatpush.msra.mxu0 0.0
      %837 = vmatpush.msra.mxu0 0.0
      %838 = vmatpush.msra.mxu0 0.0
      %839 = vmatpush.msra.mxu0 0.0
      %840 = vmatpush.msra.mxu0 0.0
      %841 = vmatpush.msra.mxu0 0.0
      %v842 = vand.u32 %v653, 4294901760
      %v843 = vsub.f32 %v653, %v842
      %v844 = vand.u32 %v843, 4294901760
      %v845 = vsub.f32 %v843, %v844
      %v846 = vand.u32 %v845, 4294901760
      %847 = vmatpush.msra.mxu0 %v846
      %v848 = vand.u32 %v647, 4294901760
      %849 = vmatmul.f32.gmra.mxu0 %v848
      %v850 = vpop.f32.mrf.mxu0
      %v851 = vadd.f32 %v825, %v850
      %852 = vdwg.mxu0
      %853 = vmatpush.msra.mxu0 0.0
      %854 = vmatpush.msra.mxu0 0.0
      %855 = vmatpush.msra.mxu0 0.0
      %856 = vmatpush.msra.mxu0 0.0
      %857 = vmatpush.msra.mxu0 0.0
      %858 = vmatpush.msra.mxu0 0.0
      %859 = vmatpush.msra.mxu0 0.0
      %860 = vmatpush.msra.mxu0 0.0
      %861 = vmatpush.msra.mxu0 0.0
      %862 = vmatpush.msra.mxu0 0.0
      %863 = vmatpush.msra.mxu0 0.0
      %864 = vmatpush.msra.mxu0 0.0
      %865 = vmatpush.msra.mxu0 0.0
      %866 = vmatpush.msra.mxu0 0.0
      %867 = vmatpush.msra.mxu0 0.0
      %v868 = vand.u32 %v653, 4294901760
      %v869 = vsub.f32 %v653, %v868
      %870 = vmatpush.msra.mxu0 %v869
      %v871 = vand.u32 %v647, 4294901760
      %v872 = vsub.f32 %v647, %v871
      %873 = vmatmul.f32.gmra.mxu0 %v872
      %v874 = vpop.f32.mrf.mxu0
      %v875 = vadd.f32 %v851, %v874
      %876 = vdwg.mxu0
      %877 = vmatpush.msra.mxu0 0.0
      %878 = vmatpush.msra.mxu0 0.0
      %879 = vmatpush.msra.mxu0 0.0
      %880 = vmatpush.msra.mxu0 0.0
      %881 = vmatpush.msra.mxu0 0.0
      %882 = vmatpush.msra.mxu0 0.0
      %883 = vmatpush.msra.mxu0 0.0
      %884 = vmatpush.msra.mxu0 0.0
      %885 = vmatpush.msra.mxu0 0.0
      %886 = vmatpush.msra.mxu0 0.0
      %887 = vmatpush.msra.mxu0 0.0
      %888 = vmatpush.msra.mxu0 0.0
      %889 = vmatpush.msra.mxu0 0.0
      %890 = vmatpush.msra.mxu0 0.0
      %891 = vmatpush.msra.mxu0 0.0
      %v892 = vand.u32 %v653, 4294901760
      %893 = vmatpush.msra.mxu0 %v892
      %v894 = vand.u32 %v647, 4294901760
      %v895 = vsub.f32 %v647, %v894
      %v896 = vand.u32 %v895, 4294901760
      %897 = vmatmul.f32.gmra.mxu0 %v896
      %v898 = vpop.f32.mrf.mxu0
      %v899 = vadd.f32 %v875, %v898
      %900 = vdwg.mxu0
      %901 = vmatpush.msra.mxu0 0.0
      %902 = vmatpush.msra.mxu0 0.0
      %903 = vmatpush.msra.mxu0 0.0
      %904 = vmatpush.msra.mxu0 0.0
      %905 = vmatpush.msra.mxu0 0.0
      %906 = vmatpush.msra.mxu0 0.0
      %907 = vmatpush.msra.mxu0 0.0
      %908 = vmatpush.msra.mxu0 0.0
      %909 = vmatpush.msra.mxu0 0.0
      %910 = vmatpush.msra.mxu0 0.0
      %911 = vmatpush.msra.mxu0 0.0
      %912 = vmatpush.msra.mxu0 0.0
      %913 = vmatpush.msra.mxu0 0.0
      %914 = vmatpush.msra.mxu0 0.0
      %915 = vmatpush.msra.mxu0 0.0
      %v916 = vand.u32 %v653, 4294901760
      %v917 = vsub.f32 %v653, %v916
      %v918 = vand.u32 %v917, 4294901760
      %919 = vmatpush.msra.mxu0 %v918
      %v920 = vand.u32 %v647, 4294901760
      %921 = vmatmul.f32.gmra.mxu0 %v920
      %v922 = vpop.f32.mrf.mxu0
      %v923 = vadd.f32 %v899, %v922
      %924 = vdwg.mxu0
      %925 = vmatpush.msra.mxu0 0.0
      %926 = vmatpush.msra.mxu0 0.0
      %927 = vmatpush.msra.mxu0 0.0
      %928 = vmatpush.msra.mxu0 0.0
      %929 = vmatpush.msra.mxu0 0.0
      %930 = vmatpush.msra.mxu0 0.0
      %931 = vmatpush.msra.mxu0 0.0
      %932 = vmatpush.msra.mxu0 0.0
      %933 = vmatpush.msra.mxu0 0.0
      %934 = vmatpush.msra.mxu0 0.0
      %935 = vmatpush.msra.mxu0 0.0
      %936 = vmatpush.msra.mxu0 0.0
      %937 = vmatpush.msra.mxu0 0.0
      %938 = vmatpush.msra.mxu0 0.0
      %939 = vmatpush.msra.mxu0 0.0
      %v940 = vand.u32 %v653, 4294901760
      %941 = vmatpush.msra.mxu0 %v940
      %v942 = vand.u32 %v647, 4294901760
      %943 = vmatmul.f32.gmra.mxu0 %v942
      %v944 = vpop.f32.mrf.mxu0
      %v945 = vadd.f32 %v923, %v944
      %946 = vdwg.mxu0
      %vm947 = vcmp.lt.s32.totalorder %v279, 15
      %vm948 = vcmp.lt.s32.totalorder %v280, 15
      %v949 = vsel %vm947, 1, 0
      %v950 = vsel %vm948, 1, 0
      %vm951 = vcmp.eq.s32.totalorder %v949, 1
      %vm952 = vcmp.eq.s32.totalorder %v950, 1
      %953 = vrot.lane.b32.xlu0 %v308, 15
      %v954 = vpop.permute.xlu0 %953
      %955 = vrot.lane.b32.xlu0 %v309, 15
      %v956 = vpop.permute.xlu0 %955
      %957 = vrot.lane.b32.xlu0 %v310, 15
      %v958 = vpop.permute.xlu0 %957
      %vm959 = vcmask 121856
      %v960 = vsel %vm959, %v954, %v956
      %v961 = vsel %vm959, %v956, %v958
      %v964 = vsel %vm951, %v960, 0.0
      %v965 = vsel %vm952, %v961, 0.0
      %s966 = scalar_lea.vmem %s2, 16
      %v967 = vld [vmem:[%s966] sm:$0xff]
      %v969 = vsel %vm345, %v967, 0
      %v972 = vsel %vm349, %v964, 0
      %v975 = vsel %vm349, %v965, 0
      %977 = vmatpush.msra.mxu0 0.0
      %978 = vmatpush.msra.mxu0 0.0
      %979 = vmatpush.msra.mxu0 0.0
      %980 = vmatpush.msra.mxu0 0.0
      %981 = vmatpush.msra.mxu0 0.0
      %982 = vmatpush.msra.mxu0 0.0
      %983 = vmatpush.msra.mxu0 0.0
      %984 = vmatpush.msra.mxu0 0.0
      %985 = vmatpush.msra.mxu0 0.0
      %986 = vmatpush.msra.mxu0 0.0
      %987 = vmatpush.msra.mxu0 0.0
      %988 = vmatpush.msra.mxu0 0.0
      %989 = vmatpush.msra.mxu0 0.0
      %990 = vmatpush.msra.mxu0 0.0
      %991 = vmatpush.msra.mxu0 0.0
      %v992 = vand.u32 %v972, 4294901760
      %993 = vmatpush.msra.mxu0 %v992
      %v994 = vand.u32 %v969, 4294901760
      %v995 = vsub.f32 %v969, %v994
      %v996 = vand.u32 %v995, 4294901760
      %v997 = vsub.f32 %v995, %v996
      %v998 = vand.u32 %v997, 4294901760
      %999 = vmatmul.f32.gmra.mxu0 %v998
      %v1000 = vpop.f32.mrf.mxu0
      %v1001 = vadd.f32 0.0, %v1000
      %1002 = vdwg.mxu0
      %1003 = vmatpush.msra.mxu0 0.0
      %1004 = vmatpush.msra.mxu0 0.0
      %1005 = vmatpush.msra.mxu0 0.0
      %1006 = vmatpush.msra.mxu0 0.0
      %1007 = vmatpush.msra.mxu0 0.0
      %1008 = vmatpush.msra.mxu0 0.0
      %1009 = vmatpush.msra.mxu0 0.0
      %1010 = vmatpush.msra.mxu0 0.0
      %1011 = vmatpush.msra.mxu0 0.0
      %1012 = vmatpush.msra.mxu0 0.0
      %1013 = vmatpush.msra.mxu0 0.0
      %1014 = vmatpush.msra.mxu0 0.0
      %1015 = vmatpush.msra.mxu0 0.0
      %1016 = vmatpush.msra.mxu0 0.0
      %1017 = vmatpush.msra.mxu0 0.0
      %v1018 = vand.u32 %v972, 4294901760
      %v1019 = vsub.f32 %v972, %v1018
      %v1020 = vand.u32 %v1019, 4294901760
      %v1021 = vsub.f32 %v1019, %v1020
      %v1022 = vand.u32 %v1021, 4294901760
      %1023 = vmatpush.msra.mxu0 %v1022
      %v1024 = vand.u32 %v969, 4294901760
      %1025 = vmatmul.f32.gmra.mxu0 %v1024
      %v1026 = vpop.f32.mrf.mxu0
      %v1027 = vadd.f32 %v1001, %v1026
      %1028 = vdwg.mxu0
      %1029 = vmatpush.msra.mxu0 0.0
      %1030 = vmatpush.msra.mxu0 0.0
      %1031 = vmatpush.msra.mxu0 0.0
      %1032 = vmatpush.msra.mxu0 0.0
      %1033 = vmatpush.msra.mxu0 0.0
      %1034 = vmatpush.msra.mxu0 0.0
      %1035 = vmatpush.msra.mxu0 0.0
      %1036 = vmatpush.msra.mxu0 0.0
      %1037 = vmatpush.msra.mxu0 0.0
      %1038 = vmatpush.msra.mxu0 0.0
      %1039 = vmatpush.msra.mxu0 0.0
      %1040 = vmatpush.msra.mxu0 0.0
      %1041 = vmatpush.msra.mxu0 0.0
      %1042 = vmatpush.msra.mxu0 0.0
      %1043 = vmatpush.msra.mxu0 0.0
      %v1044 = vand.u32 %v972, 4294901760
      %v1045 = vsub.f32 %v972, %v1044
      %1046 = vmatpush.msra.mxu0 %v1045
      %v1047 = vand.u32 %v969, 4294901760
      %v1048 = vsub.f32 %v969, %v1047
      %1049 = vmatmul.f32.gmra.mxu0 %v1048
      %v1050 = vpop.f32.mrf.mxu0
      %v1051 = vadd.f32 %v1027, %v1050
      %1052 = vdwg.mxu0
      %1053 = vmatpush.msra.mxu0 0.0
      %1054 = vmatpush.msra.mxu0 0.0
      %1055 = vmatpush.msra.mxu0 0.0
      %1056 = vmatpush.msra.mxu0 0.0
      %1057 = vmatpush.msra.mxu0 0.0
      %1058 = vmatpush.msra.mxu0 0.0
      %1059 = vmatpush.msra.mxu0 0.0
      %1060 = vmatpush.msra.mxu0 0.0
      %1061 = vmatpush.msra.mxu0 0.0
      %1062 = vmatpush.msra.mxu0 0.0
      %1063 = vmatpush.msra.mxu0 0.0
      %1064 = vmatpush.msra.mxu0 0.0
      %1065 = vmatpush.msra.mxu0 0.0
      %1066 = vmatpush.msra.mxu0 0.0
      %1067 = vmatpush.msra.mxu0 0.0
      %v1068 = vand.u32 %v972, 4294901760
      %1069 = vmatpush.msra.mxu0 %v1068
      %v1070 = vand.u32 %v969, 4294901760
      %v1071 = vsub.f32 %v969, %v1070
      %v1072 = vand.u32 %v1071, 4294901760
      %1073 = vmatmul.f32.gmra.mxu0 %v1072
      %v1074 = vpop.f32.mrf.mxu0
      %v1075 = vadd.f32 %v1051, %v1074
      %1076 = vdwg.mxu0
      %1077 = vmatpush.msra.mxu0 0.0
      %1078 = vmatpush.msra.mxu0 0.0
      %1079 = vmatpush.msra.mxu0 0.0
      %1080 = vmatpush.msra.mxu0 0.0
      %1081 = vmatpush.msra.mxu0 0.0
      %1082 = vmatpush.msra.mxu0 0.0
      %1083 = vmatpush.msra.mxu0 0.0
      %1084 = vmatpush.msra.mxu0 0.0
      %1085 = vmatpush.msra.mxu0 0.0
      %1086 = vmatpush.msra.mxu0 0.0
      %1087 = vmatpush.msra.mxu0 0.0
      %1088 = vmatpush.msra.mxu0 0.0
      %1089 = vmatpush.msra.mxu0 0.0
      %1090 = vmatpush.msra.mxu0 0.0
      %1091 = vmatpush.msra.mxu0 0.0
      %v1092 = vand.u32 %v972, 4294901760
      %v1093 = vsub.f32 %v972, %v1092
      %v1094 = vand.u32 %v1093, 4294901760
      %1095 = vmatpush.msra.mxu0 %v1094
      %v1096 = vand.u32 %v969, 4294901760
      %1097 = vmatmul.f32.gmra.mxu0 %v1096
      %v1098 = vpop.f32.mrf.mxu0
      %v1099 = vadd.f32 %v1075, %v1098
      %1100 = vdwg.mxu0
      %1101 = vmatpush.msra.mxu0 0.0
      %1102 = vmatpush.msra.mxu0 0.0
      %1103 = vmatpush.msra.mxu0 0.0
      %1104 = vmatpush.msra.mxu0 0.0
      %1105 = vmatpush.msra.mxu0 0.0
      %1106 = vmatpush.msra.mxu0 0.0
      %1107 = vmatpush.msra.mxu0 0.0
      %1108 = vmatpush.msra.mxu0 0.0
      %1109 = vmatpush.msra.mxu0 0.0
      %1110 = vmatpush.msra.mxu0 0.0
      %1111 = vmatpush.msra.mxu0 0.0
      %1112 = vmatpush.msra.mxu0 0.0
      %1113 = vmatpush.msra.mxu0 0.0
      %1114 = vmatpush.msra.mxu0 0.0
      %1115 = vmatpush.msra.mxu0 0.0
      %v1116 = vand.u32 %v972, 4294901760
      %1117 = vmatpush.msra.mxu0 %v1116
      %v1118 = vand.u32 %v969, 4294901760
      %1119 = vmatmul.f32.gmra.mxu0 %v1118
      %v1120 = vpop.f32.mrf.mxu0
      %v1121 = vadd.f32 %v1099, %v1120
      %1122 = vdwg.mxu0
      %1123 = vmatpush.msra.mxu0 0.0
      %1124 = vmatpush.msra.mxu0 0.0
      %1125 = vmatpush.msra.mxu0 0.0
      %1126 = vmatpush.msra.mxu0 0.0
      %1127 = vmatpush.msra.mxu0 0.0
      %1128 = vmatpush.msra.mxu0 0.0
      %1129 = vmatpush.msra.mxu0 0.0
      %1130 = vmatpush.msra.mxu0 0.0
      %1131 = vmatpush.msra.mxu0 0.0
      %1132 = vmatpush.msra.mxu0 0.0
      %1133 = vmatpush.msra.mxu0 0.0
      %1134 = vmatpush.msra.mxu0 0.0
      %1135 = vmatpush.msra.mxu0 0.0
      %1136 = vmatpush.msra.mxu0 0.0
      %1137 = vmatpush.msra.mxu0 0.0
      %v1138 = vand.u32 %v975, 4294901760
      %1139 = vmatpush.msra.mxu0 %v1138
      %v1140 = vand.u32 %v969, 4294901760
      %v1141 = vsub.f32 %v969, %v1140
      %v1142 = vand.u32 %v1141, 4294901760
      %v1143 = vsub.f32 %v1141, %v1142
      %v1144 = vand.u32 %v1143, 4294901760
      %1145 = vmatmul.f32.gmra.mxu0 %v1144
      %v1146 = vpop.f32.mrf.mxu0
      %v1147 = vadd.f32 0.0, %v1146
      %1148 = vdwg.mxu0
      %1149 = vmatpush.msra.mxu0 0.0
      %1150 = vmatpush.msra.mxu0 0.0
      %1151 = vmatpush.msra.mxu0 0.0
      %1152 = vmatpush.msra.mxu0 0.0
      %1153 = vmatpush.msra.mxu0 0.0
      %1154 = vmatpush.msra.mxu0 0.0
      %1155 = vmatpush.msra.mxu0 0.0
      %1156 = vmatpush.msra.mxu0 0.0
      %1157 = vmatpush.msra.mxu0 0.0
      %1158 = vmatpush.msra.mxu0 0.0
      %1159 = vmatpush.msra.mxu0 0.0
      %1160 = vmatpush.msra.mxu0 0.0
      %1161 = vmatpush.msra.mxu0 0.0
      %1162 = vmatpush.msra.mxu0 0.0
      %1163 = vmatpush.msra.mxu0 0.0
      %v1164 = vand.u32 %v975, 4294901760
      %v1165 = vsub.f32 %v975, %v1164
      %v1166 = vand.u32 %v1165, 4294901760
      %v1167 = vsub.f32 %v1165, %v1166
      %v1168 = vand.u32 %v1167, 4294901760
      %1169 = vmatpush.msra.mxu0 %v1168
      %v1170 = vand.u32 %v969, 4294901760
      %1171 = vmatmul.f32.gmra.mxu0 %v1170
      %v1172 = vpop.f32.mrf.mxu0
      %v1173 = vadd.f32 %v1147, %v1172
      %1174 = vdwg.mxu0
      %1175 = vmatpush.msra.mxu0 0.0
      %1176 = vmatpush.msra.mxu0 0.0
      %1177 = vmatpush.msra.mxu0 0.0
      %1178 = vmatpush.msra.mxu0 0.0
      %1179 = vmatpush.msra.mxu0 0.0
      %1180 = vmatpush.msra.mxu0 0.0
      %1181 = vmatpush.msra.mxu0 0.0
      %1182 = vmatpush.msra.mxu0 0.0
      %1183 = vmatpush.msra.mxu0 0.0
      %1184 = vmatpush.msra.mxu0 0.0
      %1185 = vmatpush.msra.mxu0 0.0
      %1186 = vmatpush.msra.mxu0 0.0
      %1187 = vmatpush.msra.mxu0 0.0
      %1188 = vmatpush.msra.mxu0 0.0
      %1189 = vmatpush.msra.mxu0 0.0
      %v1190 = vand.u32 %v975, 4294901760
      %v1191 = vsub.f32 %v975, %v1190
      %1192 = vmatpush.msra.mxu0 %v1191
      %v1193 = vand.u32 %v969, 4294901760
      %v1194 = vsub.f32 %v969, %v1193
      %1195 = vmatmul.f32.gmra.mxu0 %v1194
      %v1196 = vpop.f32.mrf.mxu0
      %v1197 = vadd.f32 %v1173, %v1196
      %1198 = vdwg.mxu0
      %1199 = vmatpush.msra.mxu0 0.0
      %1200 = vmatpush.msra.mxu0 0.0
      %1201 = vmatpush.msra.mxu0 0.0
      %1202 = vmatpush.msra.mxu0 0.0
      %1203 = vmatpush.msra.mxu0 0.0
      %1204 = vmatpush.msra.mxu0 0.0
      %1205 = vmatpush.msra.mxu0 0.0
      %1206 = vmatpush.msra.mxu0 0.0
      %1207 = vmatpush.msra.mxu0 0.0
      %1208 = vmatpush.msra.mxu0 0.0
      %1209 = vmatpush.msra.mxu0 0.0
      %1210 = vmatpush.msra.mxu0 0.0
      %1211 = vmatpush.msra.mxu0 0.0
      %1212 = vmatpush.msra.mxu0 0.0
      %1213 = vmatpush.msra.mxu0 0.0
      %v1214 = vand.u32 %v975, 4294901760
      %1215 = vmatpush.msra.mxu0 %v1214
      %v1216 = vand.u32 %v969, 4294901760
      %v1217 = vsub.f32 %v969, %v1216
      %v1218 = vand.u32 %v1217, 4294901760
      %1219 = vmatmul.f32.gmra.mxu0 %v1218
      %v1220 = vpop.f32.mrf.mxu0
      %v1221 = vadd.f32 %v1197, %v1220
      %1222 = vdwg.mxu0
      %1223 = vmatpush.msra.mxu0 0.0
      %1224 = vmatpush.msra.mxu0 0.0
      %1225 = vmatpush.msra.mxu0 0.0
      %1226 = vmatpush.msra.mxu0 0.0
      %1227 = vmatpush.msra.mxu0 0.0
      %1228 = vmatpush.msra.mxu0 0.0
      %1229 = vmatpush.msra.mxu0 0.0
      %1230 = vmatpush.msra.mxu0 0.0
      %1231 = vmatpush.msra.mxu0 0.0
      %1232 = vmatpush.msra.mxu0 0.0
      %1233 = vmatpush.msra.mxu0 0.0
      %1234 = vmatpush.msra.mxu0 0.0
      %1235 = vmatpush.msra.mxu0 0.0
      %1236 = vmatpush.msra.mxu0 0.0
      %1237 = vmatpush.msra.mxu0 0.0
      %v1238 = vand.u32 %v975, 4294901760
      %v1239 = vsub.f32 %v975, %v1238
      %v1240 = vand.u32 %v1239, 4294901760
      %1241 = vmatpush.msra.mxu0 %v1240
      %v1242 = vand.u32 %v969, 4294901760
      %1243 = vmatmul.f32.gmra.mxu0 %v1242
      %v1244 = vpop.f32.mrf.mxu0
      %v1245 = vadd.f32 %v1221, %v1244
      %1246 = vdwg.mxu0
      %1247 = vmatpush.msra.mxu0 0.0
      %1248 = vmatpush.msra.mxu0 0.0
      %1249 = vmatpush.msra.mxu0 0.0
      %1250 = vmatpush.msra.mxu0 0.0
      %1251 = vmatpush.msra.mxu0 0.0
      %1252 = vmatpush.msra.mxu0 0.0
      %1253 = vmatpush.msra.mxu0 0.0
      %1254 = vmatpush.msra.mxu0 0.0
      %1255 = vmatpush.msra.mxu0 0.0
      %1256 = vmatpush.msra.mxu0 0.0
      %1257 = vmatpush.msra.mxu0 0.0
      %1258 = vmatpush.msra.mxu0 0.0
      %1259 = vmatpush.msra.mxu0 0.0
      %1260 = vmatpush.msra.mxu0 0.0
      %1261 = vmatpush.msra.mxu0 0.0
      %v1262 = vand.u32 %v975, 4294901760
      %1263 = vmatpush.msra.mxu0 %v1262
      %v1264 = vand.u32 %v969, 4294901760
      %1265 = vmatmul.f32.gmra.mxu0 %v1264
      %v1266 = vpop.f32.mrf.mxu0
      %v1267 = vadd.f32 %v1245, %v1266
      %1268 = vdwg.mxu0
      %v1269 = vadd.f32 %v799, %v1121
      %v1270 = vadd.f32 %v945, %v1267
      %1271 = vrot.lane.b32.xlu0 %v308, 1
      %v1272 = vpop.permute.xlu0 %1271
      %1273 = vrot.lane.b32.xlu0 %v309, 1
      %v1274 = vpop.permute.xlu0 %1273
      %1275 = vrot.lane.b32.xlu0 %v310, 1
      %v1276 = vpop.permute.xlu0 %1275
      %vm1277 = vcmask 7168
      %v1278 = vsel %vm1277, %v1272, %v1274
      %v1279 = vsel %vm1277, %v1274, %v1276
      %v1282 = vsel %vm315, %v1278, 0.0
      %v1283 = vsel %vm316, %v1279, 0.0
      %s1284 = scalar_lea.vmem %s2, 24
      %v1285 = vld [vmem:[%s1284] sm:$0xff]
      %v1287 = vsel %vm345, %v1285, 0
      %v1290 = vsel %vm349, %v1282, 0
      %v1293 = vsel %vm349, %v1283, 0
      %1295 = vmatpush.msra.mxu0 0.0
      %1296 = vmatpush.msra.mxu0 0.0
      %1297 = vmatpush.msra.mxu0 0.0
      %1298 = vmatpush.msra.mxu0 0.0
      %1299 = vmatpush.msra.mxu0 0.0
      %1300 = vmatpush.msra.mxu0 0.0
      %1301 = vmatpush.msra.mxu0 0.0
      %1302 = vmatpush.msra.mxu0 0.0
      %1303 = vmatpush.msra.mxu0 0.0
      %1304 = vmatpush.msra.mxu0 0.0
      %1305 = vmatpush.msra.mxu0 0.0
      %1306 = vmatpush.msra.mxu0 0.0
      %1307 = vmatpush.msra.mxu0 0.0
      %1308 = vmatpush.msra.mxu0 0.0
      %1309 = vmatpush.msra.mxu0 0.0
      %v1310 = vand.u32 %v1290, 4294901760
      %1311 = vmatpush.msra.mxu0 %v1310
      %v1312 = vand.u32 %v1287, 4294901760
      %v1313 = vsub.f32 %v1287, %v1312
      %v1314 = vand.u32 %v1313, 4294901760
      %v1315 = vsub.f32 %v1313, %v1314
      %v1316 = vand.u32 %v1315, 4294901760
      %1317 = vmatmul.f32.gmra.mxu0 %v1316
      %v1318 = vpop.f32.mrf.mxu0
      %v1319 = vadd.f32 0.0, %v1318
      %1320 = vdwg.mxu0
      %1321 = vmatpush.msra.mxu0 0.0
      %1322 = vmatpush.msra.mxu0 0.0
      %1323 = vmatpush.msra.mxu0 0.0
      %1324 = vmatpush.msra.mxu0 0.0
      %1325 = vmatpush.msra.mxu0 0.0
      %1326 = vmatpush.msra.mxu0 0.0
      %1327 = vmatpush.msra.mxu0 0.0
      %1328 = vmatpush.msra.mxu0 0.0
      %1329 = vmatpush.msra.mxu0 0.0
      %1330 = vmatpush.msra.mxu0 0.0
      %1331 = vmatpush.msra.mxu0 0.0
      %1332 = vmatpush.msra.mxu0 0.0
      %1333 = vmatpush.msra.mxu0 0.0
      %1334 = vmatpush.msra.mxu0 0.0
      %1335 = vmatpush.msra.mxu0 0.0
      %v1336 = vand.u32 %v1290, 4294901760
      %v1337 = vsub.f32 %v1290, %v1336
      %v1338 = vand.u32 %v1337, 4294901760
      %v1339 = vsub.f32 %v1337, %v1338
      %v1340 = vand.u32 %v1339, 4294901760
      %1341 = vmatpush.msra.mxu0 %v1340
      %v1342 = vand.u32 %v1287, 4294901760
      %1343 = vmatmul.f32.gmra.mxu0 %v1342
      %v1344 = vpop.f32.mrf.mxu0
      %v1345 = vadd.f32 %v1319, %v1344
      %1346 = vdwg.mxu0
      %1347 = vmatpush.msra.mxu0 0.0
      %1348 = vmatpush.msra.mxu0 0.0
      %1349 = vmatpush.msra.mxu0 0.0
      %1350 = vmatpush.msra.mxu0 0.0
      %1351 = vmatpush.msra.mxu0 0.0
      %1352 = vmatpush.msra.mxu0 0.0
      %1353 = vmatpush.msra.mxu0 0.0
      %1354 = vmatpush.msra.mxu0 0.0
      %1355 = vmatpush.msra.mxu0 0.0
      %1356 = vmatpush.msra.mxu0 0.0
      %1357 = vmatpush.msra.mxu0 0.0
      %1358 = vmatpush.msra.mxu0 0.0
      %1359 = vmatpush.msra.mxu0 0.0
      %1360 = vmatpush.msra.mxu0 0.0
      %1361 = vmatpush.msra.mxu0 0.0
      %v1362 = vand.u32 %v1290, 4294901760
      %v1363 = vsub.f32 %v1290, %v1362
      %1364 = vmatpush.msra.mxu0 %v1363
      %v1365 = vand.u32 %v1287, 4294901760
      %v1366 = vsub.f32 %v1287, %v1365
      %1367 = vmatmul.f32.gmra.mxu0 %v1366
      %v1368 = vpop.f32.mrf.mxu0
      %v1369 = vadd.f32 %v1345, %v1368
      %1370 = vdwg.mxu0
      %1371 = vmatpush.msra.mxu0 0.0
      %1372 = vmatpush.msra.mxu0 0.0
      %1373 = vmatpush.msra.mxu0 0.0
      %1374 = vmatpush.msra.mxu0 0.0
      %1375 = vmatpush.msra.mxu0 0.0
      %1376 = vmatpush.msra.mxu0 0.0
      %1377 = vmatpush.msra.mxu0 0.0
      %1378 = vmatpush.msra.mxu0 0.0
      %1379 = vmatpush.msra.mxu0 0.0
      %1380 = vmatpush.msra.mxu0 0.0
      %1381 = vmatpush.msra.mxu0 0.0
      %1382 = vmatpush.msra.mxu0 0.0
      %1383 = vmatpush.msra.mxu0 0.0
      %1384 = vmatpush.msra.mxu0 0.0
      %1385 = vmatpush.msra.mxu0 0.0
      %v1386 = vand.u32 %v1290, 4294901760
      %1387 = vmatpush.msra.mxu0 %v1386
      %v1388 = vand.u32 %v1287, 4294901760
      %v1389 = vsub.f32 %v1287, %v1388
      %v1390 = vand.u32 %v1389, 4294901760
      %1391 = vmatmul.f32.gmra.mxu0 %v1390
      %v1392 = vpop.f32.mrf.mxu0
      %v1393 = vadd.f32 %v1369, %v1392
      %1394 = vdwg.mxu0
      %1395 = vmatpush.msra.mxu0 0.0
      %1396 = vmatpush.msra.mxu0 0.0
      %1397 = vmatpush.msra.mxu0 0.0
      %1398 = vmatpush.msra.mxu0 0.0
      %1399 = vmatpush.msra.mxu0 0.0
      %1400 = vmatpush.msra.mxu0 0.0
      %1401 = vmatpush.msra.mxu0 0.0
      %1402 = vmatpush.msra.mxu0 0.0
      %1403 = vmatpush.msra.mxu0 0.0
      %1404 = vmatpush.msra.mxu0 0.0
      %1405 = vmatpush.msra.mxu0 0.0
      %1406 = vmatpush.msra.mxu0 0.0
      %1407 = vmatpush.msra.mxu0 0.0
      %1408 = vmatpush.msra.mxu0 0.0
      %1409 = vmatpush.msra.mxu0 0.0
      %v1410 = vand.u32 %v1290, 4294901760
      %v1411 = vsub.f32 %v1290, %v1410
      %v1412 = vand.u32 %v1411, 4294901760
      %1413 = vmatpush.msra.mxu0 %v1412
      %v1414 = vand.u32 %v1287, 4294901760
      %1415 = vmatmul.f32.gmra.mxu0 %v1414
      %v1416 = vpop.f32.mrf.mxu0
      %v1417 = vadd.f32 %v1393, %v1416
      %1418 = vdwg.mxu0
      %1419 = vmatpush.msra.mxu0 0.0
      %1420 = vmatpush.msra.mxu0 0.0
      %1421 = vmatpush.msra.mxu0 0.0
      %1422 = vmatpush.msra.mxu0 0.0
      %1423 = vmatpush.msra.mxu0 0.0
      %1424 = vmatpush.msra.mxu0 0.0
      %1425 = vmatpush.msra.mxu0 0.0
      %1426 = vmatpush.msra.mxu0 0.0
      %1427 = vmatpush.msra.mxu0 0.0
      %1428 = vmatpush.msra.mxu0 0.0
      %1429 = vmatpush.msra.mxu0 0.0
      %1430 = vmatpush.msra.mxu0 0.0
      %1431 = vmatpush.msra.mxu0 0.0
      %1432 = vmatpush.msra.mxu0 0.0
      %1433 = vmatpush.msra.mxu0 0.0
      %v1434 = vand.u32 %v1290, 4294901760
      %1435 = vmatpush.msra.mxu0 %v1434
      %v1436 = vand.u32 %v1287, 4294901760
      %1437 = vmatmul.f32.gmra.mxu0 %v1436
      %v1438 = vpop.f32.mrf.mxu0
      %v1439 = vadd.f32 %v1417, %v1438
      %1440 = vdwg.mxu0
      %1441 = vmatpush.msra.mxu0 0.0
      %1442 = vmatpush.msra.mxu0 0.0
      %1443 = vmatpush.msra.mxu0 0.0
      %1444 = vmatpush.msra.mxu0 0.0
      %1445 = vmatpush.msra.mxu0 0.0
      %1446 = vmatpush.msra.mxu0 0.0
      %1447 = vmatpush.msra.mxu0 0.0
      %1448 = vmatpush.msra.mxu0 0.0
      %1449 = vmatpush.msra.mxu0 0.0
      %1450 = vmatpush.msra.mxu0 0.0
      %1451 = vmatpush.msra.mxu0 0.0
      %1452 = vmatpush.msra.mxu0 0.0
      %1453 = vmatpush.msra.mxu0 0.0
      %1454 = vmatpush.msra.mxu0 0.0
      %1455 = vmatpush.msra.mxu0 0.0
      %v1456 = vand.u32 %v1293, 4294901760
      %1457 = vmatpush.msra.mxu0 %v1456
      %v1458 = vand.u32 %v1287, 4294901760
      %v1459 = vsub.f32 %v1287, %v1458
      %v1460 = vand.u32 %v1459, 4294901760
      %v1461 = vsub.f32 %v1459, %v1460
      %v1462 = vand.u32 %v1461, 4294901760
      %1463 = vmatmul.f32.gmra.mxu0 %v1462
      %v1464 = vpop.f32.mrf.mxu0
      %v1465 = vadd.f32 0.0, %v1464
      %1466 = vdwg.mxu0
      %1467 = vmatpush.msra.mxu0 0.0
      %1468 = vmatpush.msra.mxu0 0.0
      %1469 = vmatpush.msra.mxu0 0.0
      %1470 = vmatpush.msra.mxu0 0.0
      %1471 = vmatpush.msra.mxu0 0.0
      %1472 = vmatpush.msra.mxu0 0.0
      %1473 = vmatpush.msra.mxu0 0.0
      %1474 = vmatpush.msra.mxu0 0.0
      %1475 = vmatpush.msra.mxu0 0.0
      %1476 = vmatpush.msra.mxu0 0.0
      %1477 = vmatpush.msra.mxu0 0.0
      %1478 = vmatpush.msra.mxu0 0.0
      %1479 = vmatpush.msra.mxu0 0.0
      %1480 = vmatpush.msra.mxu0 0.0
      %1481 = vmatpush.msra.mxu0 0.0
      %v1482 = vand.u32 %v1293, 4294901760
      %v1483 = vsub.f32 %v1293, %v1482
      %v1484 = vand.u32 %v1483, 4294901760
      %v1485 = vsub.f32 %v1483, %v1484
      %v1486 = vand.u32 %v1485, 4294901760
      %1487 = vmatpush.msra.mxu0 %v1486
      %v1488 = vand.u32 %v1287, 4294901760
      %1489 = vmatmul.f32.gmra.mxu0 %v1488
      %v1490 = vpop.f32.mrf.mxu0
      %v1491 = vadd.f32 %v1465, %v1490
      %1492 = vdwg.mxu0
      %1493 = vmatpush.msra.mxu0 0.0
      %1494 = vmatpush.msra.mxu0 0.0
      %1495 = vmatpush.msra.mxu0 0.0
      %1496 = vmatpush.msra.mxu0 0.0
      %1497 = vmatpush.msra.mxu0 0.0
      %1498 = vmatpush.msra.mxu0 0.0
      %1499 = vmatpush.msra.mxu0 0.0
      %1500 = vmatpush.msra.mxu0 0.0
      %1501 = vmatpush.msra.mxu0 0.0
      %1502 = vmatpush.msra.mxu0 0.0
      %1503 = vmatpush.msra.mxu0 0.0
      %1504 = vmatpush.msra.mxu0 0.0
      %1505 = vmatpush.msra.mxu0 0.0
      %1506 = vmatpush.msra.mxu0 0.0
      %1507 = vmatpush.msra.mxu0 0.0
      %v1508 = vand.u32 %v1293, 4294901760
      %v1509 = vsub.f32 %v1293, %v1508
      %1510 = vmatpush.msra.mxu0 %v1509
      %v1511 = vand.u32 %v1287, 4294901760
      %v1512 = vsub.f32 %v1287, %v1511
      %1513 = vmatmul.f32.gmra.mxu0 %v1512
      %v1514 = vpop.f32.mrf.mxu0
      %v1515 = vadd.f32 %v1491, %v1514
      %1516 = vdwg.mxu0
      %1517 = vmatpush.msra.mxu0 0.0
      %1518 = vmatpush.msra.mxu0 0.0
      %1519 = vmatpush.msra.mxu0 0.0
      %1520 = vmatpush.msra.mxu0 0.0
      %1521 = vmatpush.msra.mxu0 0.0
      %1522 = vmatpush.msra.mxu0 0.0
      %1523 = vmatpush.msra.mxu0 0.0
      %1524 = vmatpush.msra.mxu0 0.0
      %1525 = vmatpush.msra.mxu0 0.0
      %1526 = vmatpush.msra.mxu0 0.0
      %1527 = vmatpush.msra.mxu0 0.0
      %1528 = vmatpush.msra.mxu0 0.0
      %1529 = vmatpush.msra.mxu0 0.0
      %1530 = vmatpush.msra.mxu0 0.0
      %1531 = vmatpush.msra.mxu0 0.0
      %v1532 = vand.u32 %v1293, 4294901760
      %1533 = vmatpush.msra.mxu0 %v1532
      %v1534 = vand.u32 %v1287, 4294901760
      %v1535 = vsub.f32 %v1287, %v1534
      %v1536 = vand.u32 %v1535, 4294901760
      %1537 = vmatmul.f32.gmra.mxu0 %v1536
      %v1538 = vpop.f32.mrf.mxu0
      %v1539 = vadd.f32 %v1515, %v1538
      %1540 = vdwg.mxu0
      %1541 = vmatpush.msra.mxu0 0.0
      %1542 = vmatpush.msra.mxu0 0.0
      %1543 = vmatpush.msra.mxu0 0.0
      %1544 = vmatpush.msra.mxu0 0.0
      %1545 = vmatpush.msra.mxu0 0.0
      %1546 = vmatpush.msra.mxu0 0.0
      %1547 = vmatpush.msra.mxu0 0.0
      %1548 = vmatpush.msra.mxu0 0.0
      %1549 = vmatpush.msra.mxu0 0.0
      %1550 = vmatpush.msra.mxu0 0.0
      %1551 = vmatpush.msra.mxu0 0.0
      %1552 = vmatpush.msra.mxu0 0.0
      %1553 = vmatpush.msra.mxu0 0.0
      %1554 = vmatpush.msra.mxu0 0.0
      %1555 = vmatpush.msra.mxu0 0.0
      %v1556 = vand.u32 %v1293, 4294901760
      %v1557 = vsub.f32 %v1293, %v1556
      %v1558 = vand.u32 %v1557, 4294901760
      %1559 = vmatpush.msra.mxu0 %v1558
      %v1560 = vand.u32 %v1287, 4294901760
      %1561 = vmatmul.f32.gmra.mxu0 %v1560
      %v1562 = vpop.f32.mrf.mxu0
      %v1563 = vadd.f32 %v1539, %v1562
      %1564 = vdwg.mxu0
      %1565 = vmatpush.msra.mxu0 0.0
      %1566 = vmatpush.msra.mxu0 0.0
      %1567 = vmatpush.msra.mxu0 0.0
      %1568 = vmatpush.msra.mxu0 0.0
      %1569 = vmatpush.msra.mxu0 0.0
      %1570 = vmatpush.msra.mxu0 0.0
      %1571 = vmatpush.msra.mxu0 0.0
      %1572 = vmatpush.msra.mxu0 0.0
      %1573 = vmatpush.msra.mxu0 0.0
      %1574 = vmatpush.msra.mxu0 0.0
      %1575 = vmatpush.msra.mxu0 0.0
      %1576 = vmatpush.msra.mxu0 0.0
      %1577 = vmatpush.msra.mxu0 0.0
      %1578 = vmatpush.msra.mxu0 0.0
      %1579 = vmatpush.msra.mxu0 0.0
      %v1580 = vand.u32 %v1293, 4294901760
      %1581 = vmatpush.msra.mxu0 %v1580
      %v1582 = vand.u32 %v1287, 4294901760
      %1583 = vmatmul.f32.gmra.mxu0 %v1582
      %v1584 = vpop.f32.mrf.mxu0
      %v1585 = vadd.f32 %v1563, %v1584
      %1586 = vdwg.mxu0
      %v1587 = vadd.f32 %v1269, %v1439
      %v1588 = vadd.f32 %v1270, %v1585
      %s1589 = scalar_lea.vmem %s2, 32
      %v1590 = vld [vmem:[%s1589] sm:$0xff]
      %v1592 = vsel %vm345, %v1590, 0
      %v1594 = vsel %vm349, %v309, 0
      %v1596 = vsel %vm349, %v310, 0
      %1598 = vmatpush.msra.mxu0 0.0
      %1599 = vmatpush.msra.mxu0 0.0
      %1600 = vmatpush.msra.mxu0 0.0
      %1601 = vmatpush.msra.mxu0 0.0
      %1602 = vmatpush.msra.mxu0 0.0
      %1603 = vmatpush.msra.mxu0 0.0
      %1604 = vmatpush.msra.mxu0 0.0
      %1605 = vmatpush.msra.mxu0 0.0
      %1606 = vmatpush.msra.mxu0 0.0
      %1607 = vmatpush.msra.mxu0 0.0
      %1608 = vmatpush.msra.mxu0 0.0
      %1609 = vmatpush.msra.mxu0 0.0
      %1610 = vmatpush.msra.mxu0 0.0
      %1611 = vmatpush.msra.mxu0 0.0
      %1612 = vmatpush.msra.mxu0 0.0
      %v1613 = vand.u32 %v1594, 4294901760
      %1614 = vmatpush.msra.mxu0 %v1613
      %v1615 = vand.u32 %v1592, 4294901760
      %v1616 = vsub.f32 %v1592, %v1615
      %v1617 = vand.u32 %v1616, 4294901760
      %v1618 = vsub.f32 %v1616, %v1617
      %v1619 = vand.u32 %v1618, 4294901760
      %1620 = vmatmul.f32.gmra.mxu0 %v1619
      %v1621 = vpop.f32.mrf.mxu0
      %v1622 = vadd.f32 0.0, %v1621
      %1623 = vdwg.mxu0
      %1624 = vmatpush.msra.mxu0 0.0
      %1625 = vmatpush.msra.mxu0 0.0
      %1626 = vmatpush.msra.mxu0 0.0
      %1627 = vmatpush.msra.mxu0 0.0
      %1628 = vmatpush.msra.mxu0 0.0
      %1629 = vmatpush.msra.mxu0 0.0
      %1630 = vmatpush.msra.mxu0 0.0
      %1631 = vmatpush.msra.mxu0 0.0
      %1632 = vmatpush.msra.mxu0 0.0
      %1633 = vmatpush.msra.mxu0 0.0
      %1634 = vmatpush.msra.mxu0 0.0
      %1635 = vmatpush.msra.mxu0 0.0
      %1636 = vmatpush.msra.mxu0 0.0
      %1637 = vmatpush.msra.mxu0 0.0
      %1638 = vmatpush.msra.mxu0 0.0
      %v1639 = vand.u32 %v1594, 4294901760
      %v1640 = vsub.f32 %v1594, %v1639
      %v1641 = vand.u32 %v1640, 4294901760
      %v1642 = vsub.f32 %v1640, %v1641
      %v1643 = vand.u32 %v1642, 4294901760
      %1644 = vmatpush.msra.mxu0 %v1643
      %v1645 = vand.u32 %v1592, 4294901760
      %1646 = vmatmul.f32.gmra.mxu0 %v1645
      %v1647 = vpop.f32.mrf.mxu0
      %v1648 = vadd.f32 %v1622, %v1647
      %1649 = vdwg.mxu0
      %1650 = vmatpush.msra.mxu0 0.0
      %1651 = vmatpush.msra.mxu0 0.0
      %1652 = vmatpush.msra.mxu0 0.0
      %1653 = vmatpush.msra.mxu0 0.0
      %1654 = vmatpush.msra.mxu0 0.0
      %1655 = vmatpush.msra.mxu0 0.0
      %1656 = vmatpush.msra.mxu0 0.0
      %1657 = vmatpush.msra.mxu0 0.0
      %1658 = vmatpush.msra.mxu0 0.0
      %1659 = vmatpush.msra.mxu0 0.0
      %1660 = vmatpush.msra.mxu0 0.0
      %1661 = vmatpush.msra.mxu0 0.0
      %1662 = vmatpush.msra.mxu0 0.0
      %1663 = vmatpush.msra.mxu0 0.0
      %1664 = vmatpush.msra.mxu0 0.0
      %v1665 = vand.u32 %v1594, 4294901760
      %v1666 = vsub.f32 %v1594, %v1665
      %1667 = vmatpush.msra.mxu0 %v1666
      %v1668 = vand.u32 %v1592, 4294901760
      %v1669 = vsub.f32 %v1592, %v1668
      %1670 = vmatmul.f32.gmra.mxu0 %v1669
      %v1671 = vpop.f32.mrf.mxu0
      %v1672 = vadd.f32 %v1648, %v1671
      %1673 = vdwg.mxu0
      %1674 = vmatpush.msra.mxu0 0.0
      %1675 = vmatpush.msra.mxu0 0.0
      %1676 = vmatpush.msra.mxu0 0.0
      %1677 = vmatpush.msra.mxu0 0.0
      %1678 = vmatpush.msra.mxu0 0.0
      %1679 = vmatpush.msra.mxu0 0.0
      %1680 = vmatpush.msra.mxu0 0.0
      %1681 = vmatpush.msra.mxu0 0.0
      %1682 = vmatpush.msra.mxu0 0.0
      %1683 = vmatpush.msra.mxu0 0.0
      %1684 = vmatpush.msra.mxu0 0.0
      %1685 = vmatpush.msra.mxu0 0.0
      %1686 = vmatpush.msra.mxu0 0.0
      %1687 = vmatpush.msra.mxu0 0.0
      %1688 = vmatpush.msra.mxu0 0.0
      %v1689 = vand.u32 %v1594, 4294901760
      %1690 = vmatpush.msra.mxu0 %v1689
      %v1691 = vand.u32 %v1592, 4294901760
      %v1692 = vsub.f32 %v1592, %v1691
      %v1693 = vand.u32 %v1692, 4294901760
      %1694 = vmatmul.f32.gmra.mxu0 %v1693
      %v1695 = vpop.f32.mrf.mxu0
      %v1696 = vadd.f32 %v1672, %v1695
      %1697 = vdwg.mxu0
      %1698 = vmatpush.msra.mxu0 0.0
      %1699 = vmatpush.msra.mxu0 0.0
      %1700 = vmatpush.msra.mxu0 0.0
      %1701 = vmatpush.msra.mxu0 0.0
      %1702 = vmatpush.msra.mxu0 0.0
      %1703 = vmatpush.msra.mxu0 0.0
      %1704 = vmatpush.msra.mxu0 0.0
      %1705 = vmatpush.msra.mxu0 0.0
      %1706 = vmatpush.msra.mxu0 0.0
      %1707 = vmatpush.msra.mxu0 0.0
      %1708 = vmatpush.msra.mxu0 0.0
      %1709 = vmatpush.msra.mxu0 0.0
      %1710 = vmatpush.msra.mxu0 0.0
      %1711 = vmatpush.msra.mxu0 0.0
      %1712 = vmatpush.msra.mxu0 0.0
      %v1713 = vand.u32 %v1594, 4294901760
      %v1714 = vsub.f32 %v1594, %v1713
      %v1715 = vand.u32 %v1714, 4294901760
      %1716 = vmatpush.msra.mxu0 %v1715
      %v1717 = vand.u32 %v1592, 4294901760
      %1718 = vmatmul.f32.gmra.mxu0 %v1717
      %v1719 = vpop.f32.mrf.mxu0
      %v1720 = vadd.f32 %v1696, %v1719
      %1721 = vdwg.mxu0
      %1722 = vmatpush.msra.mxu0 0.0
      %1723 = vmatpush.msra.mxu0 0.0
      %1724 = vmatpush.msra.mxu0 0.0
      %1725 = vmatpush.msra.mxu0 0.0
      %1726 = vmatpush.msra.mxu0 0.0
      %1727 = vmatpush.msra.mxu0 0.0
      %1728 = vmatpush.msra.mxu0 0.0
      %1729 = vmatpush.msra.mxu0 0.0
      %1730 = vmatpush.msra.mxu0 0.0
      %1731 = vmatpush.msra.mxu0 0.0
      %1732 = vmatpush.msra.mxu0 0.0
      %1733 = vmatpush.msra.mxu0 0.0
      %1734 = vmatpush.msra.mxu0 0.0
      %1735 = vmatpush.msra.mxu0 0.0
      %1736 = vmatpush.msra.mxu0 0.0
      %v1737 = vand.u32 %v1594, 4294901760
      %1738 = vmatpush.msra.mxu0 %v1737
      %v1739 = vand.u32 %v1592, 4294901760
      %1740 = vmatmul.f32.gmra.mxu0 %v1739
      %v1741 = vpop.f32.mrf.mxu0
      %v1742 = vadd.f32 %v1720, %v1741
      %1743 = vdwg.mxu0
      %1744 = vmatpush.msra.mxu0 0.0
      %1745 = vmatpush.msra.mxu0 0.0
      %1746 = vmatpush.msra.mxu0 0.0
      %1747 = vmatpush.msra.mxu0 0.0
      %1748 = vmatpush.msra.mxu0 0.0
      %1749 = vmatpush.msra.mxu0 0.0
      %1750 = vmatpush.msra.mxu0 0.0
      %1751 = vmatpush.msra.mxu0 0.0
      %1752 = vmatpush.msra.mxu0 0.0
      %1753 = vmatpush.msra.mxu0 0.0
      %1754 = vmatpush.msra.mxu0 0.0
      %1755 = vmatpush.msra.mxu0 0.0
      %1756 = vmatpush.msra.mxu0 0.0
      %1757 = vmatpush.msra.mxu0 0.0
      %1758 = vmatpush.msra.mxu0 0.0
      %v1759 = vand.u32 %v1596, 4294901760
      %1760 = vmatpush.msra.mxu0 %v1759
      %v1761 = vand.u32 %v1592, 4294901760
      %v1762 = vsub.f32 %v1592, %v1761
      %v1763 = vand.u32 %v1762, 4294901760
      %v1764 = vsub.f32 %v1762, %v1763
      %v1765 = vand.u32 %v1764, 4294901760
      %1766 = vmatmul.f32.gmra.mxu0 %v1765
      %v1767 = vpop.f32.mrf.mxu0
      %v1768 = vadd.f32 0.0, %v1767
      %1769 = vdwg.mxu0
      %1770 = vmatpush.msra.mxu0 0.0
      %1771 = vmatpush.msra.mxu0 0.0
      %1772 = vmatpush.msra.mxu0 0.0
      %1773 = vmatpush.msra.mxu0 0.0
      %1774 = vmatpush.msra.mxu0 0.0
      %1775 = vmatpush.msra.mxu0 0.0
      %1776 = vmatpush.msra.mxu0 0.0
      %1777 = vmatpush.msra.mxu0 0.0
      %1778 = vmatpush.msra.mxu0 0.0
      %1779 = vmatpush.msra.mxu0 0.0
      %1780 = vmatpush.msra.mxu0 0.0
      %1781 = vmatpush.msra.mxu0 0.0
      %1782 = vmatpush.msra.mxu0 0.0
      %1783 = vmatpush.msra.mxu0 0.0
      %1784 = vmatpush.msra.mxu0 0.0
      %v1785 = vand.u32 %v1596, 4294901760
      %v1786 = vsub.f32 %v1596, %v1785
      %v1787 = vand.u32 %v1786, 4294901760
      %v1788 = vsub.f32 %v1786, %v1787
      %v1789 = vand.u32 %v1788, 4294901760
      %1790 = vmatpush.msra.mxu0 %v1789
      %v1791 = vand.u32 %v1592, 4294901760
      %1792 = vmatmul.f32.gmra.mxu0 %v1791
      %v1793 = vpop.f32.mrf.mxu0
      %v1794 = vadd.f32 %v1768, %v1793
      %1795 = vdwg.mxu0
      %1796 = vmatpush.msra.mxu0 0.0
      %1797 = vmatpush.msra.mxu0 0.0
      %1798 = vmatpush.msra.mxu0 0.0
      %1799 = vmatpush.msra.mxu0 0.0
      %1800 = vmatpush.msra.mxu0 0.0
      %1801 = vmatpush.msra.mxu0 0.0
      %1802 = vmatpush.msra.mxu0 0.0
      %1803 = vmatpush.msra.mxu0 0.0
      %1804 = vmatpush.msra.mxu0 0.0
      %1805 = vmatpush.msra.mxu0 0.0
      %1806 = vmatpush.msra.mxu0 0.0
      %1807 = vmatpush.msra.mxu0 0.0
      %1808 = vmatpush.msra.mxu0 0.0
      %1809 = vmatpush.msra.mxu0 0.0
      %1810 = vmatpush.msra.mxu0 0.0
      %v1811 = vand.u32 %v1596, 4294901760
      %v1812 = vsub.f32 %v1596, %v1811
      %1813 = vmatpush.msra.mxu0 %v1812
      %v1814 = vand.u32 %v1592, 4294901760
      %v1815 = vsub.f32 %v1592, %v1814
      %1816 = vmatmul.f32.gmra.mxu0 %v1815
      %v1817 = vpop.f32.mrf.mxu0
      %v1818 = vadd.f32 %v1794, %v1817
      %1819 = vdwg.mxu0
      %1820 = vmatpush.msra.mxu0 0.0
      %1821 = vmatpush.msra.mxu0 0.0
      %1822 = vmatpush.msra.mxu0 0.0
      %1823 = vmatpush.msra.mxu0 0.0
      %1824 = vmatpush.msra.mxu0 0.0
      %1825 = vmatpush.msra.mxu0 0.0
      %1826 = vmatpush.msra.mxu0 0.0
      %1827 = vmatpush.msra.mxu0 0.0
      %1828 = vmatpush.msra.mxu0 0.0
      %1829 = vmatpush.msra.mxu0 0.0
      %1830 = vmatpush.msra.mxu0 0.0
      %1831 = vmatpush.msra.mxu0 0.0
      %1832 = vmatpush.msra.mxu0 0.0
      %1833 = vmatpush.msra.mxu0 0.0
      %1834 = vmatpush.msra.mxu0 0.0
      %v1835 = vand.u32 %v1596, 4294901760
      %1836 = vmatpush.msra.mxu0 %v1835
      %v1837 = vand.u32 %v1592, 4294901760
      %v1838 = vsub.f32 %v1592, %v1837
      %v1839 = vand.u32 %v1838, 4294901760
      %1840 = vmatmul.f32.gmra.mxu0 %v1839
      %v1841 = vpop.f32.mrf.mxu0
      %v1842 = vadd.f32 %v1818, %v1841
      %1843 = vdwg.mxu0
      %1844 = vmatpush.msra.mxu0 0.0
      %1845 = vmatpush.msra.mxu0 0.0
      %1846 = vmatpush.msra.mxu0 0.0
      %1847 = vmatpush.msra.mxu0 0.0
      %1848 = vmatpush.msra.mxu0 0.0
      %1849 = vmatpush.msra.mxu0 0.0
      %1850 = vmatpush.msra.mxu0 0.0
      %1851 = vmatpush.msra.mxu0 0.0
      %1852 = vmatpush.msra.mxu0 0.0
      %1853 = vmatpush.msra.mxu0 0.0
      %1854 = vmatpush.msra.mxu0 0.0
      %1855 = vmatpush.msra.mxu0 0.0
      %1856 = vmatpush.msra.mxu0 0.0
      %1857 = vmatpush.msra.mxu0 0.0
      %1858 = vmatpush.msra.mxu0 0.0
      %v1859 = vand.u32 %v1596, 4294901760
      %v1860 = vsub.f32 %v1596, %v1859
      %v1861 = vand.u32 %v1860, 4294901760
      %1862 = vmatpush.msra.mxu0 %v1861
      %v1863 = vand.u32 %v1592, 4294901760
      %1864 = vmatmul.f32.gmra.mxu0 %v1863
      %v1865 = vpop.f32.mrf.mxu0
      %v1866 = vadd.f32 %v1842, %v1865
      %1867 = vdwg.mxu0
      %1868 = vmatpush.msra.mxu0 0.0
      %1869 = vmatpush.msra.mxu0 0.0
      %1870 = vmatpush.msra.mxu0 0.0
      %1871 = vmatpush.msra.mxu0 0.0
      %1872 = vmatpush.msra.mxu0 0.0
      %1873 = vmatpush.msra.mxu0 0.0
      %1874 = vmatpush.msra.mxu0 0.0
      %1875 = vmatpush.msra.mxu0 0.0
      %1876 = vmatpush.msra.mxu0 0.0
      %1877 = vmatpush.msra.mxu0 0.0
      %1878 = vmatpush.msra.mxu0 0.0
      %1879 = vmatpush.msra.mxu0 0.0
      %1880 = vmatpush.msra.mxu0 0.0
      %1881 = vmatpush.msra.mxu0 0.0
      %1882 = vmatpush.msra.mxu0 0.0
      %v1883 = vand.u32 %v1596, 4294901760
      %1884 = vmatpush.msra.mxu0 %v1883
      %v1885 = vand.u32 %v1592, 4294901760
      %1886 = vmatmul.f32.gmra.mxu0 %v1885
      %v1887 = vpop.f32.mrf.mxu0
      %v1888 = vadd.f32 %v1866, %v1887
      %1889 = vdwg.mxu0
      %v1890 = vadd.f32 %v1587, %v1742
      %v1891 = vadd.f32 %v1588, %v1888
      %v1892 = vld [vmem:[#allocation2 + $0x8] sm:$0x1f]
      %v1893 = vld [vmem:[#allocation2 + $0x10] sm:$0x1f]
      %v1894 = vld [vmem:[#allocation2 + $0x18] sm:$0x1f]
      %1898 = vrot.lane.b32.xlu0 %v1892, 127
      %v1899 = vpop.permute.xlu0 %1898
      %1900 = vrot.lane.b32.xlu0 %v1893, 127
      %v1901 = vpop.permute.xlu0 %1900
      %1902 = vrot.lane.b32.xlu0 %v1894, 127
      %v1903 = vpop.permute.xlu0 %1902
      %vm1904 = vcmask 1039360
      %v1905 = vsel %vm1904, %v1899, %v1901
      %v1906 = vsel %vm1904, %v1901, %v1903
      %v1909 = vsel %vm951, %v1905, 0.0
      %v1910 = vsel %vm952, %v1906, 0.0
      %s1911 = scalar_lea.vmem %s2, 40
      %v1912 = vld [vmem:[%s1911] sm:$0xff]
      %v1914 = vsel %vm345, %v1912, 0
      %v1917 = vsel %vm349, %v1909, 0
      %v1920 = vsel %vm349, %v1910, 0
      %1922 = vmatpush.msra.mxu0 0.0
      %1923 = vmatpush.msra.mxu0 0.0
      %1924 = vmatpush.msra.mxu0 0.0
      %1925 = vmatpush.msra.mxu0 0.0
      %1926 = vmatpush.msra.mxu0 0.0
      %1927 = vmatpush.msra.mxu0 0.0
      %1928 = vmatpush.msra.mxu0 0.0
      %1929 = vmatpush.msra.mxu0 0.0
      %1930 = vmatpush.msra.mxu0 0.0
      %1931 = vmatpush.msra.mxu0 0.0
      %1932 = vmatpush.msra.mxu0 0.0
      %1933 = vmatpush.msra.mxu0 0.0
      %1934 = vmatpush.msra.mxu0 0.0
      %1935 = vmatpush.msra.mxu0 0.0
      %1936 = vmatpush.msra.mxu0 0.0
      %v1937 = vand.u32 %v1917, 4294901760
      %1938 = vmatpush.msra.mxu0 %v1937
      %v1939 = vand.u32 %v1914, 4294901760
      %v1940 = vsub.f32 %v1914, %v1939
      %v1941 = vand.u32 %v1940, 4294901760
      %v1942 = vsub.f32 %v1940, %v1941
      %v1943 = vand.u32 %v1942, 4294901760
      %1944 = vmatmul.f32.gmra.mxu0 %v1943
      %v1945 = vpop.f32.mrf.mxu0
      %v1946 = vadd.f32 0.0, %v1945
      %1947 = vdwg.mxu0
      %1948 = vmatpush.msra.mxu0 0.0
      %1949 = vmatpush.msra.mxu0 0.0
      %1950 = vmatpush.msra.mxu0 0.0
      %1951 = vmatpush.msra.mxu0 0.0
      %1952 = vmatpush.msra.mxu0 0.0
      %1953 = vmatpush.msra.mxu0 0.0
      %1954 = vmatpush.msra.mxu0 0.0
      %1955 = vmatpush.msra.mxu0 0.0
      %1956 = vmatpush.msra.mxu0 0.0
      %1957 = vmatpush.msra.mxu0 0.0
      %1958 = vmatpush.msra.mxu0 0.0
      %1959 = vmatpush.msra.mxu0 0.0
      %1960 = vmatpush.msra.mxu0 0.0
      %1961 = vmatpush.msra.mxu0 0.0
      %1962 = vmatpush.msra.mxu0 0.0
      %v1963 = vand.u32 %v1917, 4294901760
      %v1964 = vsub.f32 %v1917, %v1963
      %v1965 = vand.u32 %v1964, 4294901760
      %v1966 = vsub.f32 %v1964, %v1965
      %v1967 = vand.u32 %v1966, 4294901760
      %1968 = vmatpush.msra.mxu0 %v1967
      %v1969 = vand.u32 %v1914, 4294901760
      %1970 = vmatmul.f32.gmra.mxu0 %v1969
      %v1971 = vpop.f32.mrf.mxu0
      %v1972 = vadd.f32 %v1946, %v1971
      %1973 = vdwg.mxu0
      %1974 = vmatpush.msra.mxu0 0.0
      %1975 = vmatpush.msra.mxu0 0.0
      %1976 = vmatpush.msra.mxu0 0.0
      %1977 = vmatpush.msra.mxu0 0.0
      %1978 = vmatpush.msra.mxu0 0.0
      %1979 = vmatpush.msra.mxu0 0.0
      %1980 = vmatpush.msra.mxu0 0.0
      %1981 = vmatpush.msra.mxu0 0.0
      %1982 = vmatpush.msra.mxu0 0.0
      %1983 = vmatpush.msra.mxu0 0.0
      %1984 = vmatpush.msra.mxu0 0.0
      %1985 = vmatpush.msra.mxu0 0.0
      %1986 = vmatpush.msra.mxu0 0.0
      %1987 = vmatpush.msra.mxu0 0.0
      %1988 = vmatpush.msra.mxu0 0.0
      %v1989 = vand.u32 %v1917, 4294901760
      %v1990 = vsub.f32 %v1917, %v1989
      %1991 = vmatpush.msra.mxu0 %v1990
      %v1992 = vand.u32 %v1914, 4294901760
      %v1993 = vsub.f32 %v1914, %v1992
      %1994 = vmatmul.f32.gmra.mxu0 %v1993
      %v1995 = vpop.f32.mrf.mxu0
      %v1996 = vadd.f32 %v1972, %v1995
      %1997 = vdwg.mxu0
      %1998 = vmatpush.msra.mxu0 0.0
      %1999 = vmatpush.msra.mxu0 0.0
      %2000 = vmatpush.msra.mxu0 0.0
      %2001 = vmatpush.msra.mxu0 0.0
      %2002 = vmatpush.msra.mxu0 0.0
      %2003 = vmatpush.msra.mxu0 0.0
      %2004 = vmatpush.msra.mxu0 0.0
      %2005 = vmatpush.msra.mxu0 0.0
      %2006 = vmatpush.msra.mxu0 0.0
      %2007 = vmatpush.msra.mxu0 0.0
      %2008 = vmatpush.msra.mxu0 0.0
      %2009 = vmatpush.msra.mxu0 0.0
      %2010 = vmatpush.msra.mxu0 0.0
      %2011 = vmatpush.msra.mxu0 0.0
      %2012 = vmatpush.msra.mxu0 0.0
      %v2013 = vand.u32 %v1917, 4294901760
      %2014 = vmatpush.msra.mxu0 %v2013
      %v2015 = vand.u32 %v1914, 4294901760
      %v2016 = vsub.f32 %v1914, %v2015
      %v2017 = vand.u32 %v2016, 4294901760
      %2018 = vmatmul.f32.gmra.mxu0 %v2017
      %v2019 = vpop.f32.mrf.mxu0
      %v2020 = vadd.f32 %v1996, %v2019
      %2021 = vdwg.mxu0
      %2022 = vmatpush.msra.mxu0 0.0
      %2023 = vmatpush.msra.mxu0 0.0
      %2024 = vmatpush.msra.mxu0 0.0
      %2025 = vmatpush.msra.mxu0 0.0
      %2026 = vmatpush.msra.mxu0 0.0
      %2027 = vmatpush.msra.mxu0 0.0
      %2028 = vmatpush.msra.mxu0 0.0
      %2029 = vmatpush.msra.mxu0 0.0
      %2030 = vmatpush.msra.mxu0 0.0
      %2031 = vmatpush.msra.mxu0 0.0
      %2032 = vmatpush.msra.mxu0 0.0
      %2033 = vmatpush.msra.mxu0 0.0
      %2034 = vmatpush.msra.mxu0 0.0
      %2035 = vmatpush.msra.mxu0 0.0
      %2036 = vmatpush.msra.mxu0 0.0
      %v2037 = vand.u32 %v1917, 4294901760
      %v2038 = vsub.f32 %v1917, %v2037
      %v2039 = vand.u32 %v2038, 4294901760
      %2040 = vmatpush.msra.mxu0 %v2039
      %v2041 = vand.u32 %v1914, 4294901760
      %2042 = vmatmul.f32.gmra.mxu0 %v2041
      %v2043 = vpop.f32.mrf.mxu0
      %v2044 = vadd.f32 %v2020, %v2043
      %2045 = vdwg.mxu0
      %2046 = vmatpush.msra.mxu0 0.0
      %2047 = vmatpush.msra.mxu0 0.0
      %2048 = vmatpush.msra.mxu0 0.0
      %2049 = vmatpush.msra.mxu0 0.0
      %2050 = vmatpush.msra.mxu0 0.0
      %2051 = vmatpush.msra.mxu0 0.0
      %2052 = vmatpush.msra.mxu0 0.0
      %2053 = vmatpush.msra.mxu0 0.0
      %2054 = vmatpush.msra.mxu0 0.0
      %2055 = vmatpush.msra.mxu0 0.0
      %2056 = vmatpush.msra.mxu0 0.0
      %2057 = vmatpush.msra.mxu0 0.0
      %2058 = vmatpush.msra.mxu0 0.0
      %2059 = vmatpush.msra.mxu0 0.0
      %2060 = vmatpush.msra.mxu0 0.0
      %v2061 = vand.u32 %v1917, 4294901760
      %2062 = vmatpush.msra.mxu0 %v2061
      %v2063 = vand.u32 %v1914, 4294901760
      %2064 = vmatmul.f32.gmra.mxu0 %v2063
      %v2065 = vpop.f32.mrf.mxu0
      %v2066 = vadd.f32 %v2044, %v2065
      %2067 = vdwg.mxu0
      %2068 = vmatpush.msra.mxu0 0.0
      %2069 = vmatpush.msra.mxu0 0.0
      %2070 = vmatpush.msra.mxu0 0.0
      %2071 = vmatpush.msra.mxu0 0.0
      %2072 = vmatpush.msra.mxu0 0.0
      %2073 = vmatpush.msra.mxu0 0.0
      %2074 = vmatpush.msra.mxu0 0.0
      %2075 = vmatpush.msra.mxu0 0.0
      %2076 = vmatpush.msra.mxu0 0.0
      %2077 = vmatpush.msra.mxu0 0.0
      %2078 = vmatpush.msra.mxu0 0.0
      %2079 = vmatpush.msra.mxu0 0.0
      %2080 = vmatpush.msra.mxu0 0.0
      %2081 = vmatpush.msra.mxu0 0.0
      %2082 = vmatpush.msra.mxu0 0.0
      %v2083 = vand.u32 %v1920, 4294901760
      %2084 = vmatpush.msra.mxu0 %v2083
      %v2085 = vand.u32 %v1914, 4294901760
      %v2086 = vsub.f32 %v1914, %v2085
      %v2087 = vand.u32 %v2086, 4294901760
      %v2088 = vsub.f32 %v2086, %v2087
      %v2089 = vand.u32 %v2088, 4294901760
      %2090 = vmatmul.f32.gmra.mxu0 %v2089
      %v2091 = vpop.f32.mrf.mxu0
      %v2092 = vadd.f32 0.0, %v2091
      %2093 = vdwg.mxu0
      %2094 = vmatpush.msra.mxu0 0.0
      %2095 = vmatpush.msra.mxu0 0.0
      %2096 = vmatpush.msra.mxu0 0.0
      %2097 = vmatpush.msra.mxu0 0.0
      %2098 = vmatpush.msra.mxu0 0.0
      %2099 = vmatpush.msra.mxu0 0.0
      %2100 = vmatpush.msra.mxu0 0.0
      %2101 = vmatpush.msra.mxu0 0.0
      %2102 = vmatpush.msra.mxu0 0.0
      %2103 = vmatpush.msra.mxu0 0.0
      %2104 = vmatpush.msra.mxu0 0.0
      %2105 = vmatpush.msra.mxu0 0.0
      %2106 = vmatpush.msra.mxu0 0.0
      %2107 = vmatpush.msra.mxu0 0.0
      %2108 = vmatpush.msra.mxu0 0.0
      %v2109 = vand.u32 %v1920, 4294901760
      %v2110 = vsub.f32 %v1920, %v2109
      %v2111 = vand.u32 %v2110, 4294901760
      %v2112 = vsub.f32 %v2110, %v2111
      %v2113 = vand.u32 %v2112, 4294901760
      %2114 = vmatpush.msra.mxu0 %v2113
      %v2115 = vand.u32 %v1914, 4294901760
      %2116 = vmatmul.f32.gmra.mxu0 %v2115
      %v2117 = vpop.f32.mrf.mxu0
      %v2118 = vadd.f32 %v2092, %v2117
      %2119 = vdwg.mxu0
      %2120 = vmatpush.msra.mxu0 0.0
      %2121 = vmatpush.msra.mxu0 0.0
      %2122 = vmatpush.msra.mxu0 0.0
      %2123 = vmatpush.msra.mxu0 0.0
      %2124 = vmatpush.msra.mxu0 0.0
      %2125 = vmatpush.msra.mxu0 0.0
      %2126 = vmatpush.msra.mxu0 0.0
      %2127 = vmatpush.msra.mxu0 0.0
      %2128 = vmatpush.msra.mxu0 0.0
      %2129 = vmatpush.msra.mxu0 0.0
      %2130 = vmatpush.msra.mxu0 0.0
      %2131 = vmatpush.msra.mxu0 0.0
      %2132 = vmatpush.msra.mxu0 0.0
      %2133 = vmatpush.msra.mxu0 0.0
      %2134 = vmatpush.msra.mxu0 0.0
      %v2135 = vand.u32 %v1920, 4294901760
      %v2136 = vsub.f32 %v1920, %v2135
      %2137 = vmatpush.msra.mxu0 %v2136
      %v2138 = vand.u32 %v1914, 4294901760
      %v2139 = vsub.f32 %v1914, %v2138
      %2140 = vmatmul.f32.gmra.mxu0 %v2139
      %v2141 = vpop.f32.mrf.mxu0
      %v2142 = vadd.f32 %v2118, %v2141
      %2143 = vdwg.mxu0
      %2144 = vmatpush.msra.mxu0 0.0
      %2145 = vmatpush.msra.mxu0 0.0
      %2146 = vmatpush.msra.mxu0 0.0
      %2147 = vmatpush.msra.mxu0 0.0
      %2148 = vmatpush.msra.mxu0 0.0
      %2149 = vmatpush.msra.mxu0 0.0
      %2150 = vmatpush.msra.mxu0 0.0
      %2151 = vmatpush.msra.mxu0 0.0
      %2152 = vmatpush.msra.mxu0 0.0
      %2153 = vmatpush.msra.mxu0 0.0
      %2154 = vmatpush.msra.mxu0 0.0
      %2155 = vmatpush.msra.mxu0 0.0
      %2156 = vmatpush.msra.mxu0 0.0
      %2157 = vmatpush.msra.mxu0 0.0
      %2158 = vmatpush.msra.mxu0 0.0
      %v2159 = vand.u32 %v1920, 4294901760
      %2160 = vmatpush.msra.mxu0 %v2159
      %v2161 = vand.u32 %v1914, 4294901760
      %v2162 = vsub.f32 %v1914, %v2161
      %v2163 = vand.u32 %v2162, 4294901760
      %2164 = vmatmul.f32.gmra.mxu0 %v2163
      %v2165 = vpop.f32.mrf.mxu0
      %v2166 = vadd.f32 %v2142, %v2165
      %2167 = vdwg.mxu0
      %2168 = vmatpush.msra.mxu0 0.0
      %2169 = vmatpush.msra.mxu0 0.0
      %2170 = vmatpush.msra.mxu0 0.0
      %2171 = vmatpush.msra.mxu0 0.0
      %2172 = vmatpush.msra.mxu0 0.0
      %2173 = vmatpush.msra.mxu0 0.0
      %2174 = vmatpush.msra.mxu0 0.0
      %2175 = vmatpush.msra.mxu0 0.0
      %2176 = vmatpush.msra.mxu0 0.0
      %2177 = vmatpush.msra.mxu0 0.0
      %2178 = vmatpush.msra.mxu0 0.0
      %2179 = vmatpush.msra.mxu0 0.0
      %2180 = vmatpush.msra.mxu0 0.0
      %2181 = vmatpush.msra.mxu0 0.0
      %2182 = vmatpush.msra.mxu0 0.0
      %v2183 = vand.u32 %v1920, 4294901760
      %v2184 = vsub.f32 %v1920, %v2183
      %v2185 = vand.u32 %v2184, 4294901760
      %2186 = vmatpush.msra.mxu0 %v2185
      %v2187 = vand.u32 %v1914, 4294901760
      %2188 = vmatmul.f32.gmra.mxu0 %v2187
      %v2189 = vpop.f32.mrf.mxu0
      %v2190 = vadd.f32 %v2166, %v2189
      %2191 = vdwg.mxu0
      %2192 = vmatpush.msra.mxu0 0.0
      %2193 = vmatpush.msra.mxu0 0.0
      %2194 = vmatpush.msra.mxu0 0.0
      %2195 = vmatpush.msra.mxu0 0.0
      %2196 = vmatpush.msra.mxu0 0.0
      %2197 = vmatpush.msra.mxu0 0.0
      %2198 = vmatpush.msra.mxu0 0.0
      %2199 = vmatpush.msra.mxu0 0.0
      %2200 = vmatpush.msra.mxu0 0.0
      %2201 = vmatpush.msra.mxu0 0.0
      %2202 = vmatpush.msra.mxu0 0.0
      %2203 = vmatpush.msra.mxu0 0.0
      %2204 = vmatpush.msra.mxu0 0.0
      %2205 = vmatpush.msra.mxu0 0.0
      %2206 = vmatpush.msra.mxu0 0.0
      %v2207 = vand.u32 %v1920, 4294901760
      %2208 = vmatpush.msra.mxu0 %v2207
      %v2209 = vand.u32 %v1914, 4294901760
      %2210 = vmatmul.f32.gmra.mxu0 %v2209
      %v2211 = vpop.f32.mrf.mxu0
      %v2212 = vadd.f32 %v2190, %v2211
      %2213 = vdwg.mxu0
      %v2214 = vadd.f32 %v1890, %v2066
      %v2215 = vadd.f32 %v1891, %v2212
      %2216 = vrot.lane.b32.xlu0 %v1892, 113
      %v2217 = vpop.permute.xlu0 %2216
      %2218 = vrot.lane.b32.xlu0 %v1893, 113
      %v2219 = vpop.permute.xlu0 %2218
      %2220 = vrot.lane.b32.xlu0 %v1894, 113
      %v2221 = vpop.permute.xlu0 %2220
      %vm2222 = vcmask 924672
      %v2223 = vsel %vm2222, %v2217, %v2219
      %v2224 = vsel %vm2222, %v2219, %v2221
      %v2227 = vsel %vm315, %v2223, 0.0
      %v2228 = vsel %vm316, %v2224, 0.0
      %s2229 = scalar_lea.vmem %s2, 48
      %v2230 = vld [vmem:[%s2229] sm:$0xff]
      %v2232 = vsel %vm345, %v2230, 0
      %v2235 = vsel %vm349, %v2227, 0
      %v2238 = vsel %vm349, %v2228, 0
      %2240 = vmatpush.msra.mxu0 0.0
      %2241 = vmatpush.msra.mxu0 0.0
      %2242 = vmatpush.msra.mxu0 0.0
      %2243 = vmatpush.msra.mxu0 0.0
      %2244 = vmatpush.msra.mxu0 0.0
      %2245 = vmatpush.msra.mxu0 0.0
      %2246 = vmatpush.msra.mxu0 0.0
      %2247 = vmatpush.msra.mxu0 0.0
      %2248 = vmatpush.msra.mxu0 0.0
      %2249 = vmatpush.msra.mxu0 0.0
      %2250 = vmatpush.msra.mxu0 0.0
      %2251 = vmatpush.msra.mxu0 0.0
      %2252 = vmatpush.msra.mxu0 0.0
      %2253 = vmatpush.msra.mxu0 0.0
      %2254 = vmatpush.msra.mxu0 0.0
      %v2255 = vand.u32 %v2235, 4294901760
      %2256 = vmatpush.msra.mxu0 %v2255
      %v2257 = vand.u32 %v2232, 4294901760
      %v2258 = vsub.f32 %v2232, %v2257
      %v2259 = vand.u32 %v2258, 4294901760
      %v2260 = vsub.f32 %v2258, %v2259
      %v2261 = vand.u32 %v2260, 4294901760
      %2262 = vmatmul.f32.gmra.mxu0 %v2261
      %v2263 = vpop.f32.mrf.mxu0
      %v2264 = vadd.f32 0.0, %v2263
      %2265 = vdwg.mxu0
      %2266 = vmatpush.msra.mxu0 0.0
      %2267 = vmatpush.msra.mxu0 0.0
      %2268 = vmatpush.msra.mxu0 0.0
      %2269 = vmatpush.msra.mxu0 0.0
      %2270 = vmatpush.msra.mxu0 0.0
      %2271 = vmatpush.msra.mxu0 0.0
      %2272 = vmatpush.msra.mxu0 0.0
      %2273 = vmatpush.msra.mxu0 0.0
      %2274 = vmatpush.msra.mxu0 0.0
      %2275 = vmatpush.msra.mxu0 0.0
      %2276 = vmatpush.msra.mxu0 0.0
      %2277 = vmatpush.msra.mxu0 0.0
      %2278 = vmatpush.msra.mxu0 0.0
      %2279 = vmatpush.msra.mxu0 0.0
      %2280 = vmatpush.msra.mxu0 0.0
      %v2281 = vand.u32 %v2235, 4294901760
      %v2282 = vsub.f32 %v2235, %v2281
      %v2283 = vand.u32 %v2282, 4294901760
      %v2284 = vsub.f32 %v2282, %v2283
      %v2285 = vand.u32 %v2284, 4294901760
      %2286 = vmatpush.msra.mxu0 %v2285
      %v2287 = vand.u32 %v2232, 4294901760
      %2288 = vmatmul.f32.gmra.mxu0 %v2287
      %v2289 = vpop.f32.mrf.mxu0
      %v2290 = vadd.f32 %v2264, %v2289
      %2291 = vdwg.mxu0
      %2292 = vmatpush.msra.mxu0 0.0
      %2293 = vmatpush.msra.mxu0 0.0
      %2294 = vmatpush.msra.mxu0 0.0
      %2295 = vmatpush.msra.mxu0 0.0
      %2296 = vmatpush.msra.mxu0 0.0
      %2297 = vmatpush.msra.mxu0 0.0
      %2298 = vmatpush.msra.mxu0 0.0
      %2299 = vmatpush.msra.mxu0 0.0
      %2300 = vmatpush.msra.mxu0 0.0
      %2301 = vmatpush.msra.mxu0 0.0
      %2302 = vmatpush.msra.mxu0 0.0
      %2303 = vmatpush.msra.mxu0 0.0
      %2304 = vmatpush.msra.mxu0 0.0
      %2305 = vmatpush.msra.mxu0 0.0
      %2306 = vmatpush.msra.mxu0 0.0
      %v2307 = vand.u32 %v2235, 4294901760
      %v2308 = vsub.f32 %v2235, %v2307
      %2309 = vmatpush.msra.mxu0 %v2308
      %v2310 = vand.u32 %v2232, 4294901760
      %v2311 = vsub.f32 %v2232, %v2310
      %2312 = vmatmul.f32.gmra.mxu0 %v2311
      %v2313 = vpop.f32.mrf.mxu0
      %v2314 = vadd.f32 %v2290, %v2313
      %2315 = vdwg.mxu0
      %2316 = vmatpush.msra.mxu0 0.0
      %2317 = vmatpush.msra.mxu0 0.0
      %2318 = vmatpush.msra.mxu0 0.0
      %2319 = vmatpush.msra.mxu0 0.0
      %2320 = vmatpush.msra.mxu0 0.0
      %2321 = vmatpush.msra.mxu0 0.0
      %2322 = vmatpush.msra.mxu0 0.0
      %2323 = vmatpush.msra.mxu0 0.0
      %2324 = vmatpush.msra.mxu0 0.0
      %2325 = vmatpush.msra.mxu0 0.0
      %2326 = vmatpush.msra.mxu0 0.0
      %2327 = vmatpush.msra.mxu0 0.0
      %2328 = vmatpush.msra.mxu0 0.0
      %2329 = vmatpush.msra.mxu0 0.0
      %2330 = vmatpush.msra.mxu0 0.0
      %v2331 = vand.u32 %v2235, 4294901760
      %2332 = vmatpush.msra.mxu0 %v2331
      %v2333 = vand.u32 %v2232, 4294901760
      %v2334 = vsub.f32 %v2232, %v2333
      %v2335 = vand.u32 %v2334, 4294901760
      %2336 = vmatmul.f32.gmra.mxu0 %v2335
      %v2337 = vpop.f32.mrf.mxu0
      %v2338 = vadd.f32 %v2314, %v2337
      %2339 = vdwg.mxu0
      %2340 = vmatpush.msra.mxu0 0.0
      %2341 = vmatpush.msra.mxu0 0.0
      %2342 = vmatpush.msra.mxu0 0.0
      %2343 = vmatpush.msra.mxu0 0.0
      %2344 = vmatpush.msra.mxu0 0.0
      %2345 = vmatpush.msra.mxu0 0.0
      %2346 = vmatpush.msra.mxu0 0.0
      %2347 = vmatpush.msra.mxu0 0.0
      %2348 = vmatpush.msra.mxu0 0.0
      %2349 = vmatpush.msra.mxu0 0.0
      %2350 = vmatpush.msra.mxu0 0.0
      %2351 = vmatpush.msra.mxu0 0.0
      %2352 = vmatpush.msra.mxu0 0.0
      %2353 = vmatpush.msra.mxu0 0.0
      %2354 = vmatpush.msra.mxu0 0.0
      %v2355 = vand.u32 %v2235, 4294901760
      %v2356 = vsub.f32 %v2235, %v2355
      %v2357 = vand.u32 %v2356, 4294901760
      %2358 = vmatpush.msra.mxu0 %v2357
      %v2359 = vand.u32 %v2232, 4294901760
      %2360 = vmatmul.f32.gmra.mxu0 %v2359
      %v2361 = vpop.f32.mrf.mxu0
      %v2362 = vadd.f32 %v2338, %v2361
      %2363 = vdwg.mxu0
      %2364 = vmatpush.msra.mxu0 0.0
      %2365 = vmatpush.msra.mxu0 0.0
      %2366 = vmatpush.msra.mxu0 0.0
      %2367 = vmatpush.msra.mxu0 0.0
      %2368 = vmatpush.msra.mxu0 0.0
      %2369 = vmatpush.msra.mxu0 0.0
      %2370 = vmatpush.msra.mxu0 0.0
      %2371 = vmatpush.msra.mxu0 0.0
      %2372 = vmatpush.msra.mxu0 0.0
      %2373 = vmatpush.msra.mxu0 0.0
      %2374 = vmatpush.msra.mxu0 0.0
      %2375 = vmatpush.msra.mxu0 0.0
      %2376 = vmatpush.msra.mxu0 0.0
      %2377 = vmatpush.msra.mxu0 0.0
      %2378 = vmatpush.msra.mxu0 0.0
      %v2379 = vand.u32 %v2235, 4294901760
      %2380 = vmatpush.msra.mxu0 %v2379
      %v2381 = vand.u32 %v2232, 4294901760
      %2382 = vmatmul.f32.gmra.mxu0 %v2381
      %v2383 = vpop.f32.mrf.mxu0
      %v2384 = vadd.f32 %v2362, %v2383
      %2385 = vdwg.mxu0
      %2386 = vmatpush.msra.mxu0 0.0
      %2387 = vmatpush.msra.mxu0 0.0
      %2388 = vmatpush.msra.mxu0 0.0
      %2389 = vmatpush.msra.mxu0 0.0
      %2390 = vmatpush.msra.mxu0 0.0
      %2391 = vmatpush.msra.mxu0 0.0
      %2392 = vmatpush.msra.mxu0 0.0
      %2393 = vmatpush.msra.mxu0 0.0
      %2394 = vmatpush.msra.mxu0 0.0
      %2395 = vmatpush.msra.mxu0 0.0
      %2396 = vmatpush.msra.mxu0 0.0
      %2397 = vmatpush.msra.mxu0 0.0
      %2398 = vmatpush.msra.mxu0 0.0
      %2399 = vmatpush.msra.mxu0 0.0
      %2400 = vmatpush.msra.mxu0 0.0
      %v2401 = vand.u32 %v2238, 4294901760
      %2402 = vmatpush.msra.mxu0 %v2401
      %v2403 = vand.u32 %v2232, 4294901760
      %v2404 = vsub.f32 %v2232, %v2403
      %v2405 = vand.u32 %v2404, 4294901760
      %v2406 = vsub.f32 %v2404, %v2405
      %v2407 = vand.u32 %v2406, 4294901760
      %2408 = vmatmul.f32.gmra.mxu0 %v2407
      %v2409 = vpop.f32.mrf.mxu0
      %v2410 = vadd.f32 0.0, %v2409
      %2411 = vdwg.mxu0
      %2412 = vmatpush.msra.mxu0 0.0
      %2413 = vmatpush.msra.mxu0 0.0
      %2414 = vmatpush.msra.mxu0 0.0
      %2415 = vmatpush.msra.mxu0 0.0
      %2416 = vmatpush.msra.mxu0 0.0
      %2417 = vmatpush.msra.mxu0 0.0
      %2418 = vmatpush.msra.mxu0 0.0
      %2419 = vmatpush.msra.mxu0 0.0
      %2420 = vmatpush.msra.mxu0 0.0
      %2421 = vmatpush.msra.mxu0 0.0
      %2422 = vmatpush.msra.mxu0 0.0
      %2423 = vmatpush.msra.mxu0 0.0
      %2424 = vmatpush.msra.mxu0 0.0
      %2425 = vmatpush.msra.mxu0 0.0
      %2426 = vmatpush.msra.mxu0 0.0
      %v2427 = vand.u32 %v2238, 4294901760
      %v2428 = vsub.f32 %v2238, %v2427
      %v2429 = vand.u32 %v2428, 4294901760
      %v2430 = vsub.f32 %v2428, %v2429
      %v2431 = vand.u32 %v2430, 4294901760
      %2432 = vmatpush.msra.mxu0 %v2431
      %v2433 = vand.u32 %v2232, 4294901760
      %2434 = vmatmul.f32.gmra.mxu0 %v2433
      %v2435 = vpop.f32.mrf.mxu0
      %v2436 = vadd.f32 %v2410, %v2435
      %2437 = vdwg.mxu0
      %2438 = vmatpush.msra.mxu0 0.0
      %2439 = vmatpush.msra.mxu0 0.0
      %2440 = vmatpush.msra.mxu0 0.0
      %2441 = vmatpush.msra.mxu0 0.0
      %2442 = vmatpush.msra.mxu0 0.0
      %2443 = vmatpush.msra.mxu0 0.0
      %2444 = vmatpush.msra.mxu0 0.0
      %2445 = vmatpush.msra.mxu0 0.0
      %2446 = vmatpush.msra.mxu0 0.0
      %2447 = vmatpush.msra.mxu0 0.0
      %2448 = vmatpush.msra.mxu0 0.0
      %2449 = vmatpush.msra.mxu0 0.0
      %2450 = vmatpush.msra.mxu0 0.0
      %2451 = vmatpush.msra.mxu0 0.0
      %2452 = vmatpush.msra.mxu0 0.0
      %v2453 = vand.u32 %v2238, 4294901760
      %v2454 = vsub.f32 %v2238, %v2453
      %2455 = vmatpush.msra.mxu0 %v2454
      %v2456 = vand.u32 %v2232, 4294901760
      %v2457 = vsub.f32 %v2232, %v2456
      %2458 = vmatmul.f32.gmra.mxu0 %v2457
      %v2459 = vpop.f32.mrf.mxu0
      %v2460 = vadd.f32 %v2436, %v2459
      %2461 = vdwg.mxu0
      %2462 = vmatpush.msra.mxu0 0.0
      %2463 = vmatpush.msra.mxu0 0.0
      %2464 = vmatpush.msra.mxu0 0.0
      %2465 = vmatpush.msra.mxu0 0.0
      %2466 = vmatpush.msra.mxu0 0.0
      %2467 = vmatpush.msra.mxu0 0.0
      %2468 = vmatpush.msra.mxu0 0.0
      %2469 = vmatpush.msra.mxu0 0.0
      %2470 = vmatpush.msra.mxu0 0.0
      %2471 = vmatpush.msra.mxu0 0.0
      %2472 = vmatpush.msra.mxu0 0.0
      %2473 = vmatpush.msra.mxu0 0.0
      %2474 = vmatpush.msra.mxu0 0.0
      %2475 = vmatpush.msra.mxu0 0.0
      %2476 = vmatpush.msra.mxu0 0.0
      %v2477 = vand.u32 %v2238, 4294901760
      %2478 = vmatpush.msra.mxu0 %v2477
      %v2479 = vand.u32 %v2232, 4294901760
      %v2480 = vsub.f32 %v2232, %v2479
      %v2481 = vand.u32 %v2480, 4294901760
      %2482 = vmatmul.f32.gmra.mxu0 %v2481
      %v2483 = vpop.f32.mrf.mxu0
      %v2484 = vadd.f32 %v2460, %v2483
      %2485 = vdwg.mxu0
      %2486 = vmatpush.msra.mxu0 0.0
      %2487 = vmatpush.msra.mxu0 0.0
      %2488 = vmatpush.msra.mxu0 0.0
      %2489 = vmatpush.msra.mxu0 0.0
      %2490 = vmatpush.msra.mxu0 0.0
      %2491 = vmatpush.msra.mxu0 0.0
      %2492 = vmatpush.msra.mxu0 0.0
      %2493 = vmatpush.msra.mxu0 0.0
      %2494 = vmatpush.msra.mxu0 0.0
      %2495 = vmatpush.msra.mxu0 0.0
      %2496 = vmatpush.msra.mxu0 0.0
      %2497 = vmatpush.msra.mxu0 0.0
      %2498 = vmatpush.msra.mxu0 0.0
      %2499 = vmatpush.msra.mxu0 0.0
      %2500 = vmatpush.msra.mxu0 0.0
      %v2501 = vand.u32 %v2238, 4294901760
      %v2502 = vsub.f32 %v2238, %v2501
      %v2503 = vand.u32 %v2502, 4294901760
      %2504 = vmatpush.msra.mxu0 %v2503
      %v2505 = vand.u32 %v2232, 4294901760
      %2506 = vmatmul.f32.gmra.mxu0 %v2505
      %v2507 = vpop.f32.mrf.mxu0
      %v2508 = vadd.f32 %v2484, %v2507
      %2509 = vdwg.mxu0
      %2510 = vmatpush.msra.mxu0 0.0
      %2511 = vmatpush.msra.mxu0 0.0
      %2512 = vmatpush.msra.mxu0 0.0
      %2513 = vmatpush.msra.mxu0 0.0
      %2514 = vmatpush.msra.mxu0 0.0
      %2515 = vmatpush.msra.mxu0 0.0
      %2516 = vmatpush.msra.mxu0 0.0
      %2517 = vmatpush.msra.mxu0 0.0
      %2518 = vmatpush.msra.mxu0 0.0
      %2519 = vmatpush.msra.mxu0 0.0
      %2520 = vmatpush.msra.mxu0 0.0
      %2521 = vmatpush.msra.mxu0 0.0
      %2522 = vmatpush.msra.mxu0 0.0
      %2523 = vmatpush.msra.mxu0 0.0
      %2524 = vmatpush.msra.mxu0 0.0
      %v2525 = vand.u32 %v2238, 4294901760
      %2526 = vmatpush.msra.mxu0 %v2525
      %v2527 = vand.u32 %v2232, 4294901760
      %2528 = vmatmul.f32.gmra.mxu0 %v2527
      %v2529 = vpop.f32.mrf.mxu0
      %v2530 = vadd.f32 %v2508, %v2529
      %2531 = vdwg.mxu0
      %v2532 = vadd.f32 %v2214, %v2384
      %v2533 = vadd.f32 %v2215, %v2530
      %s2534 = scalar_lea.vmem %s2, 56
      %v2535 = vld [vmem:[%s2534] sm:$0xff]
      %2536 = vrot.lane.b32.xlu0 %v1892, 112
      %v2537 = vpop.permute.xlu0 %2536
      %2538 = vrot.lane.b32.xlu0 %v1893, 112
      %v2539 = vpop.permute.xlu0 %2538
      %2540 = vrot.lane.b32.xlu0 %v1894, 112
      %v2541 = vpop.permute.xlu0 %2540
      %vm2542 = vcmask 916480
      %v2543 = vsel %vm2542, %v2537, %v2539
      %v2544 = vsel %vm2542, %v2539, %v2541
      %v2546 = vsel %vm345, %v2535, 0
      %v2548 = vsel %vm349, %v2543, 0
      %v2550 = vsel %vm349, %v2544, 0
      %2552 = vmatpush.msra.mxu0 0.0
      %2553 = vmatpush.msra.mxu0 0.0
      %2554 = vmatpush.msra.mxu0 0.0
      %2555 = vmatpush.msra.mxu0 0.0
      %2556 = vmatpush.msra.mxu0 0.0
      %2557 = vmatpush.msra.mxu0 0.0
      %2558 = vmatpush.msra.mxu0 0.0
      %2559 = vmatpush.msra.mxu0 0.0
      %2560 = vmatpush.msra.mxu0 0.0
      %2561 = vmatpush.msra.mxu0 0.0
      %2562 = vmatpush.msra.mxu0 0.0
      %2563 = vmatpush.msra.mxu0 0.0
      %2564 = vmatpush.msra.mxu0 0.0
      %2565 = vmatpush.msra.mxu0 0.0
      %2566 = vmatpush.msra.mxu0 0.0
      %v2567 = vand.u32 %v2548, 4294901760
      %2568 = vmatpush.msra.mxu0 %v2567
      %v2569 = vand.u32 %v2546, 4294901760
      %v2570 = vsub.f32 %v2546, %v2569
      %v2571 = vand.u32 %v2570, 4294901760
      %v2572 = vsub.f32 %v2570, %v2571
      %v2573 = vand.u32 %v2572, 4294901760
      %2574 = vmatmul.f32.gmra.mxu0 %v2573
      %v2575 = vpop.f32.mrf.mxu0
      %v2576 = vadd.f32 0.0, %v2575
      %2577 = vdwg.mxu0
      %2578 = vmatpush.msra.mxu0 0.0
      %2579 = vmatpush.msra.mxu0 0.0
      %2580 = vmatpush.msra.mxu0 0.0
      %2581 = vmatpush.msra.mxu0 0.0
      %2582 = vmatpush.msra.mxu0 0.0
      %2583 = vmatpush.msra.mxu0 0.0
      %2584 = vmatpush.msra.mxu0 0.0
      %2585 = vmatpush.msra.mxu0 0.0
      %2586 = vmatpush.msra.mxu0 0.0
      %2587 = vmatpush.msra.mxu0 0.0
      %2588 = vmatpush.msra.mxu0 0.0
      %2589 = vmatpush.msra.mxu0 0.0
      %2590 = vmatpush.msra.mxu0 0.0
      %2591 = vmatpush.msra.mxu0 0.0
      %2592 = vmatpush.msra.mxu0 0.0
      %v2593 = vand.u32 %v2548, 4294901760
      %v2594 = vsub.f32 %v2548, %v2593
      %v2595 = vand.u32 %v2594, 4294901760
      %v2596 = vsub.f32 %v2594, %v2595
      %v2597 = vand.u32 %v2596, 4294901760
      %2598 = vmatpush.msra.mxu0 %v2597
      %v2599 = vand.u32 %v2546, 4294901760
      %2600 = vmatmul.f32.gmra.mxu0 %v2599
      %v2601 = vpop.f32.mrf.mxu0
      %v2602 = vadd.f32 %v2576, %v2601
      %2603 = vdwg.mxu0
      %2604 = vmatpush.msra.mxu0 0.0
      %2605 = vmatpush.msra.mxu0 0.0
      %2606 = vmatpush.msra.mxu0 0.0
      %2607 = vmatpush.msra.mxu0 0.0
      %2608 = vmatpush.msra.mxu0 0.0
      %2609 = vmatpush.msra.mxu0 0.0
      %2610 = vmatpush.msra.mxu0 0.0
      %2611 = vmatpush.msra.mxu0 0.0
      %2612 = vmatpush.msra.mxu0 0.0
      %2613 = vmatpush.msra.mxu0 0.0
      %2614 = vmatpush.msra.mxu0 0.0
      %2615 = vmatpush.msra.mxu0 0.0
      %2616 = vmatpush.msra.mxu0 0.0
      %2617 = vmatpush.msra.mxu0 0.0
      %2618 = vmatpush.msra.mxu0 0.0
      %v2619 = vand.u32 %v2548, 4294901760
      %v2620 = vsub.f32 %v2548, %v2619
      %2621 = vmatpush.msra.mxu0 %v2620
      %v2622 = vand.u32 %v2546, 4294901760
      %v2623 = vsub.f32 %v2546, %v2622
      %2624 = vmatmul.f32.gmra.mxu0 %v2623
      %v2625 = vpop.f32.mrf.mxu0
      %v2626 = vadd.f32 %v2602, %v2625
      %2627 = vdwg.mxu0
      %2628 = vmatpush.msra.mxu0 0.0
      %2629 = vmatpush.msra.mxu0 0.0
      %2630 = vmatpush.msra.mxu0 0.0
      %2631 = vmatpush.msra.mxu0 0.0
      %2632 = vmatpush.msra.mxu0 0.0
      %2633 = vmatpush.msra.mxu0 0.0
      %2634 = vmatpush.msra.mxu0 0.0
      %2635 = vmatpush.msra.mxu0 0.0
      %2636 = vmatpush.msra.mxu0 0.0
      %2637 = vmatpush.msra.mxu0 0.0
      %2638 = vmatpush.msra.mxu0 0.0
      %2639 = vmatpush.msra.mxu0 0.0
      %2640 = vmatpush.msra.mxu0 0.0
      %2641 = vmatpush.msra.mxu0 0.0
      %2642 = vmatpush.msra.mxu0 0.0
      %v2643 = vand.u32 %v2548, 4294901760
      %2644 = vmatpush.msra.mxu0 %v2643
      %v2645 = vand.u32 %v2546, 4294901760
      %v2646 = vsub.f32 %v2546, %v2645
      %v2647 = vand.u32 %v2646, 4294901760
      %2648 = vmatmul.f32.gmra.mxu0 %v2647
      %v2649 = vpop.f32.mrf.mxu0
      %v2650 = vadd.f32 %v2626, %v2649
      %2651 = vdwg.mxu0
      %2652 = vmatpush.msra.mxu0 0.0
      %2653 = vmatpush.msra.mxu0 0.0
      %2654 = vmatpush.msra.mxu0 0.0
      %2655 = vmatpush.msra.mxu0 0.0
      %2656 = vmatpush.msra.mxu0 0.0
      %2657 = vmatpush.msra.mxu0 0.0
      %2658 = vmatpush.msra.mxu0 0.0
      %2659 = vmatpush.msra.mxu0 0.0
      %2660 = vmatpush.msra.mxu0 0.0
      %2661 = vmatpush.msra.mxu0 0.0
      %2662 = vmatpush.msra.mxu0 0.0
      %2663 = vmatpush.msra.mxu0 0.0
      %2664 = vmatpush.msra.mxu0 0.0
      %2665 = vmatpush.msra.mxu0 0.0
      %2666 = vmatpush.msra.mxu0 0.0
      %v2667 = vand.u32 %v2548, 4294901760
      %v2668 = vsub.f32 %v2548, %v2667
      %v2669 = vand.u32 %v2668, 4294901760
      %2670 = vmatpush.msra.mxu0 %v2669
      %v2671 = vand.u32 %v2546, 4294901760
      %2672 = vmatmul.f32.gmra.mxu0 %v2671
      %v2673 = vpop.f32.mrf.mxu0
      %v2674 = vadd.f32 %v2650, %v2673
      %2675 = vdwg.mxu0
      %2676 = vmatpush.msra.mxu0 0.0
      %2677 = vmatpush.msra.mxu0 0.0
      %2678 = vmatpush.msra.mxu0 0.0
      %2679 = vmatpush.msra.mxu0 0.0
      %2680 = vmatpush.msra.mxu0 0.0
      %2681 = vmatpush.msra.mxu0 0.0
      %2682 = vmatpush.msra.mxu0 0.0
      %2683 = vmatpush.msra.mxu0 0.0
      %2684 = vmatpush.msra.mxu0 0.0
      %2685 = vmatpush.msra.mxu0 0.0
      %2686 = vmatpush.msra.mxu0 0.0
      %2687 = vmatpush.msra.mxu0 0.0
      %2688 = vmatpush.msra.mxu0 0.0
      %2689 = vmatpush.msra.mxu0 0.0
      %2690 = vmatpush.msra.mxu0 0.0
      %v2691 = vand.u32 %v2548, 4294901760
      %2692 = vmatpush.msra.mxu0 %v2691
      %v2693 = vand.u32 %v2546, 4294901760
      %2694 = vmatmul.f32.gmra.mxu0 %v2693
      %v2695 = vpop.f32.mrf.mxu0
      %v2696 = vadd.f32 %v2674, %v2695
      %2697 = vdwg.mxu0
      %2698 = vmatpush.msra.mxu0 0.0
      %2699 = vmatpush.msra.mxu0 0.0
      %2700 = vmatpush.msra.mxu0 0.0
      %2701 = vmatpush.msra.mxu0 0.0
      %2702 = vmatpush.msra.mxu0 0.0
      %2703 = vmatpush.msra.mxu0 0.0
      %2704 = vmatpush.msra.mxu0 0.0
      %2705 = vmatpush.msra.mxu0 0.0
      %2706 = vmatpush.msra.mxu0 0.0
      %2707 = vmatpush.msra.mxu0 0.0
      %2708 = vmatpush.msra.mxu0 0.0
      %2709 = vmatpush.msra.mxu0 0.0
      %2710 = vmatpush.msra.mxu0 0.0
      %2711 = vmatpush.msra.mxu0 0.0
      %2712 = vmatpush.msra.mxu0 0.0
      %v2713 = vand.u32 %v2550, 4294901760
      %2714 = vmatpush.msra.mxu0 %v2713
      %v2715 = vand.u32 %v2546, 4294901760
      %v2716 = vsub.f32 %v2546, %v2715
      %v2717 = vand.u32 %v2716, 4294901760
      %v2718 = vsub.f32 %v2716, %v2717
      %v2719 = vand.u32 %v2718, 4294901760
      %2720 = vmatmul.f32.gmra.mxu0 %v2719
      %v2721 = vpop.f32.mrf.mxu0
      %v2722 = vadd.f32 0.0, %v2721
      %2723 = vdwg.mxu0
      %2724 = vmatpush.msra.mxu0 0.0
      %2725 = vmatpush.msra.mxu0 0.0
      %2726 = vmatpush.msra.mxu0 0.0
      %2727 = vmatpush.msra.mxu0 0.0
      %2728 = vmatpush.msra.mxu0 0.0
      %2729 = vmatpush.msra.mxu0 0.0
      %2730 = vmatpush.msra.mxu0 0.0
      %2731 = vmatpush.msra.mxu0 0.0
      %2732 = vmatpush.msra.mxu0 0.0
      %2733 = vmatpush.msra.mxu0 0.0
      %2734 = vmatpush.msra.mxu0 0.0
      %2735 = vmatpush.msra.mxu0 0.0
      %2736 = vmatpush.msra.mxu0 0.0
      %2737 = vmatpush.msra.mxu0 0.0
      %2738 = vmatpush.msra.mxu0 0.0
      %v2739 = vand.u32 %v2550, 4294901760
      %v2740 = vsub.f32 %v2550, %v2739
      %v2741 = vand.u32 %v2740, 4294901760
      %v2742 = vsub.f32 %v2740, %v2741
      %v2743 = vand.u32 %v2742, 4294901760
      %2744 = vmatpush.msra.mxu0 %v2743
      %v2745 = vand.u32 %v2546, 4294901760
      %2746 = vmatmul.f32.gmra.mxu0 %v2745
      %v2747 = vpop.f32.mrf.mxu0
      %v2748 = vadd.f32 %v2722, %v2747
      %2749 = vdwg.mxu0
      %2750 = vmatpush.msra.mxu0 0.0
      %2751 = vmatpush.msra.mxu0 0.0
      %2752 = vmatpush.msra.mxu0 0.0
      %2753 = vmatpush.msra.mxu0 0.0
      %2754 = vmatpush.msra.mxu0 0.0
      %2755 = vmatpush.msra.mxu0 0.0
      %2756 = vmatpush.msra.mxu0 0.0
      %2757 = vmatpush.msra.mxu0 0.0
      %2758 = vmatpush.msra.mxu0 0.0
      %2759 = vmatpush.msra.mxu0 0.0
      %2760 = vmatpush.msra.mxu0 0.0
      %2761 = vmatpush.msra.mxu0 0.0
      %2762 = vmatpush.msra.mxu0 0.0
      %2763 = vmatpush.msra.mxu0 0.0
      %2764 = vmatpush.msra.mxu0 0.0
      %v2765 = vand.u32 %v2550, 4294901760
      %v2766 = vsub.f32 %v2550, %v2765
      %2767 = vmatpush.msra.mxu0 %v2766
      %v2768 = vand.u32 %v2546, 4294901760
      %v2769 = vsub.f32 %v2546, %v2768
      %2770 = vmatmul.f32.gmra.mxu0 %v2769
      %v2771 = vpop.f32.mrf.mxu0
      %v2772 = vadd.f32 %v2748, %v2771
      %2773 = vdwg.mxu0
      %2774 = vmatpush.msra.mxu0 0.0
      %2775 = vmatpush.msra.mxu0 0.0
      %2776 = vmatpush.msra.mxu0 0.0
      %2777 = vmatpush.msra.mxu0 0.0
      %2778 = vmatpush.msra.mxu0 0.0
      %2779 = vmatpush.msra.mxu0 0.0
      %2780 = vmatpush.msra.mxu0 0.0
      %2781 = vmatpush.msra.mxu0 0.0
      %2782 = vmatpush.msra.mxu0 0.0
      %2783 = vmatpush.msra.mxu0 0.0
      %2784 = vmatpush.msra.mxu0 0.0
      %2785 = vmatpush.msra.mxu0 0.0
      %2786 = vmatpush.msra.mxu0 0.0
      %2787 = vmatpush.msra.mxu0 0.0
      %2788 = vmatpush.msra.mxu0 0.0
      %v2789 = vand.u32 %v2550, 4294901760
      %2790 = vmatpush.msra.mxu0 %v2789
      %v2791 = vand.u32 %v2546, 4294901760
      %v2792 = vsub.f32 %v2546, %v2791
      %v2793 = vand.u32 %v2792, 4294901760
      %2794 = vmatmul.f32.gmra.mxu0 %v2793
      %v2795 = vpop.f32.mrf.mxu0
      %v2796 = vadd.f32 %v2772, %v2795
      %2797 = vdwg.mxu0
      %2798 = vmatpush.msra.mxu0 0.0
      %2799 = vmatpush.msra.mxu0 0.0
      %2800 = vmatpush.msra.mxu0 0.0
      %2801 = vmatpush.msra.mxu0 0.0
      %2802 = vmatpush.msra.mxu0 0.0
      %2803 = vmatpush.msra.mxu0 0.0
      %2804 = vmatpush.msra.mxu0 0.0
      %2805 = vmatpush.msra.mxu0 0.0
      %2806 = vmatpush.msra.mxu0 0.0
      %2807 = vmatpush.msra.mxu0 0.0
      %2808 = vmatpush.msra.mxu0 0.0
      %2809 = vmatpush.msra.mxu0 0.0
      %2810 = vmatpush.msra.mxu0 0.0
      %2811 = vmatpush.msra.mxu0 0.0
      %2812 = vmatpush.msra.mxu0 0.0
      %v2813 = vand.u32 %v2550, 4294901760
      %v2814 = vsub.f32 %v2550, %v2813
      %v2815 = vand.u32 %v2814, 4294901760
      %2816 = vmatpush.msra.mxu0 %v2815
      %v2817 = vand.u32 %v2546, 4294901760
      %2818 = vmatmul.f32.gmra.mxu0 %v2817
      %v2819 = vpop.f32.mrf.mxu0
      %v2820 = vadd.f32 %v2796, %v2819
      %2821 = vdwg.mxu0
      %2822 = vmatpush.msra.mxu0 0.0
      %2823 = vmatpush.msra.mxu0 0.0
      %2824 = vmatpush.msra.mxu0 0.0
      %2825 = vmatpush.msra.mxu0 0.0
      %2826 = vmatpush.msra.mxu0 0.0
      %2827 = vmatpush.msra.mxu0 0.0
      %2828 = vmatpush.msra.mxu0 0.0
      %2829 = vmatpush.msra.mxu0 0.0
      %2830 = vmatpush.msra.mxu0 0.0
      %2831 = vmatpush.msra.mxu0 0.0
      %2832 = vmatpush.msra.mxu0 0.0
      %2833 = vmatpush.msra.mxu0 0.0
      %2834 = vmatpush.msra.mxu0 0.0
      %2835 = vmatpush.msra.mxu0 0.0
      %2836 = vmatpush.msra.mxu0 0.0
      %v2837 = vand.u32 %v2550, 4294901760
      %2838 = vmatpush.msra.mxu0 %v2837
      %v2839 = vand.u32 %v2546, 4294901760
      %2840 = vmatmul.f32.gmra.mxu0 %v2839
      %v2841 = vpop.f32.mrf.mxu0
      %v2842 = vadd.f32 %v2820, %v2841
      %2843 = vdwg.mxu0
      %v2844 = vadd.f32 %v2532, %v2696
      %v2845 = vadd.f32 %v2533, %v2842
      %2846 = vrot.lane.b32.xlu0 %v1892, 111
      %v2847 = vpop.permute.xlu0 %2846
      %2848 = vrot.lane.b32.xlu0 %v1893, 111
      %v2849 = vpop.permute.xlu0 %2848
      %2850 = vrot.lane.b32.xlu0 %v1894, 111
      %v2851 = vpop.permute.xlu0 %2850
      %vm2852 = vcmask 908288
      %v2853 = vsel %vm2852, %v2847, %v2849
      %v2854 = vsel %vm2852, %v2849, %v2851
      %v2857 = vsel %vm951, %v2853, 0.0
      %v2858 = vsel %vm952, %v2854, 0.0
      %s2859 = scalar_lea.vmem %s2, 64
      %v2860 = vld [vmem:[%s2859] sm:$0xff]
      %v2862 = vsel %vm345, %v2860, 0
      %v2865 = vsel %vm349, %v2857, 0
      %v2868 = vsel %vm349, %v2858, 0
      %2870 = vmatpush.msra.mxu0 0.0
      %2871 = vmatpush.msra.mxu0 0.0
      %2872 = vmatpush.msra.mxu0 0.0
      %2873 = vmatpush.msra.mxu0 0.0
      %2874 = vmatpush.msra.mxu0 0.0
      %2875 = vmatpush.msra.mxu0 0.0
      %2876 = vmatpush.msra.mxu0 0.0
      %2877 = vmatpush.msra.mxu0 0.0
      %2878 = vmatpush.msra.mxu0 0.0
      %2879 = vmatpush.msra.mxu0 0.0
      %2880 = vmatpush.msra.mxu0 0.0
      %2881 = vmatpush.msra.mxu0 0.0
      %2882 = vmatpush.msra.mxu0 0.0
      %2883 = vmatpush.msra.mxu0 0.0
      %2884 = vmatpush.msra.mxu0 0.0
      %v2885 = vand.u32 %v2865, 4294901760
      %2886 = vmatpush.msra.mxu0 %v2885
      %v2887 = vand.u32 %v2862, 4294901760
      %v2888 = vsub.f32 %v2862, %v2887
      %v2889 = vand.u32 %v2888, 4294901760
      %v2890 = vsub.f32 %v2888, %v2889
      %v2891 = vand.u32 %v2890, 4294901760
      %2892 = vmatmul.f32.gmra.mxu0 %v2891
      %v2893 = vpop.f32.mrf.mxu0
      %v2894 = vadd.f32 0.0, %v2893
      %2895 = vdwg.mxu0
      %2896 = vmatpush.msra.mxu0 0.0
      %2897 = vmatpush.msra.mxu0 0.0
      %2898 = vmatpush.msra.mxu0 0.0
      %2899 = vmatpush.msra.mxu0 0.0
      %2900 = vmatpush.msra.mxu0 0.0
      %2901 = vmatpush.msra.mxu0 0.0
      %2902 = vmatpush.msra.mxu0 0.0
      %2903 = vmatpush.msra.mxu0 0.0
      %2904 = vmatpush.msra.mxu0 0.0
      %2905 = vmatpush.msra.mxu0 0.0
      %2906 = vmatpush.msra.mxu0 0.0
      %2907 = vmatpush.msra.mxu0 0.0
      %2908 = vmatpush.msra.mxu0 0.0
      %2909 = vmatpush.msra.mxu0 0.0
      %2910 = vmatpush.msra.mxu0 0.0
      %v2911 = vand.u32 %v2865, 4294901760
      %v2912 = vsub.f32 %v2865, %v2911
      %v2913 = vand.u32 %v2912, 4294901760
      %v2914 = vsub.f32 %v2912, %v2913
      %v2915 = vand.u32 %v2914, 4294901760
      %2916 = vmatpush.msra.mxu0 %v2915
      %v2917 = vand.u32 %v2862, 4294901760
      %2918 = vmatmul.f32.gmra.mxu0 %v2917
      %v2919 = vpop.f32.mrf.mxu0
      %v2920 = vadd.f32 %v2894, %v2919
      %2921 = vdwg.mxu0
      %2922 = vmatpush.msra.mxu0 0.0
      %2923 = vmatpush.msra.mxu0 0.0
      %2924 = vmatpush.msra.mxu0 0.0
      %2925 = vmatpush.msra.mxu0 0.0
      %2926 = vmatpush.msra.mxu0 0.0
      %2927 = vmatpush.msra.mxu0 0.0
      %2928 = vmatpush.msra.mxu0 0.0
      %2929 = vmatpush.msra.mxu0 0.0
      %2930 = vmatpush.msra.mxu0 0.0
      %2931 = vmatpush.msra.mxu0 0.0
      %2932 = vmatpush.msra.mxu0 0.0
      %2933 = vmatpush.msra.mxu0 0.0
      %2934 = vmatpush.msra.mxu0 0.0
      %2935 = vmatpush.msra.mxu0 0.0
      %2936 = vmatpush.msra.mxu0 0.0
      %v2937 = vand.u32 %v2865, 4294901760
      %v2938 = vsub.f32 %v2865, %v2937
      %2939 = vmatpush.msra.mxu0 %v2938
      %v2940 = vand.u32 %v2862, 4294901760
      %v2941 = vsub.f32 %v2862, %v2940
      %2942 = vmatmul.f32.gmra.mxu0 %v2941
      %v2943 = vpop.f32.mrf.mxu0
      %v2944 = vadd.f32 %v2920, %v2943
      %2945 = vdwg.mxu0
      %2946 = vmatpush.msra.mxu0 0.0
      %2947 = vmatpush.msra.mxu0 0.0
      %2948 = vmatpush.msra.mxu0 0.0
      %2949 = vmatpush.msra.mxu0 0.0
      %2950 = vmatpush.msra.mxu0 0.0
      %2951 = vmatpush.msra.mxu0 0.0
      %2952 = vmatpush.msra.mxu0 0.0
      %2953 = vmatpush.msra.mxu0 0.0
      %2954 = vmatpush.msra.mxu0 0.0
      %2955 = vmatpush.msra.mxu0 0.0
      %2956 = vmatpush.msra.mxu0 0.0
      %2957 = vmatpush.msra.mxu0 0.0
      %2958 = vmatpush.msra.mxu0 0.0
      %2959 = vmatpush.msra.mxu0 0.0
      %2960 = vmatpush.msra.mxu0 0.0
      %v2961 = vand.u32 %v2865, 4294901760
      %2962 = vmatpush.msra.mxu0 %v2961
      %v2963 = vand.u32 %v2862, 4294901760
      %v2964 = vsub.f32 %v2862, %v2963
      %v2965 = vand.u32 %v2964, 4294901760
      %2966 = vmatmul.f32.gmra.mxu0 %v2965
      %v2967 = vpop.f32.mrf.mxu0
      %v2968 = vadd.f32 %v2944, %v2967
      %2969 = vdwg.mxu0
      %2970 = vmatpush.msra.mxu0 0.0
      %2971 = vmatpush.msra.mxu0 0.0
      %2972 = vmatpush.msra.mxu0 0.0
      %2973 = vmatpush.msra.mxu0 0.0
      %2974 = vmatpush.msra.mxu0 0.0
      %2975 = vmatpush.msra.mxu0 0.0
      %2976 = vmatpush.msra.mxu0 0.0
      %2977 = vmatpush.msra.mxu0 0.0
      %2978 = vmatpush.msra.mxu0 0.0
      %2979 = vmatpush.msra.mxu0 0.0
      %2980 = vmatpush.msra.mxu0 0.0
      %2981 = vmatpush.msra.mxu0 0.0
      %2982 = vmatpush.msra.mxu0 0.0
      %2983 = vmatpush.msra.mxu0 0.0
      %2984 = vmatpush.msra.mxu0 0.0
      %v2985 = vand.u32 %v2865, 4294901760
      %v2986 = vsub.f32 %v2865, %v2985
      %v2987 = vand.u32 %v2986, 4294901760
      %2988 = vmatpush.msra.mxu0 %v2987
      %v2989 = vand.u32 %v2862, 4294901760
      %2990 = vmatmul.f32.gmra.mxu0 %v2989
      %v2991 = vpop.f32.mrf.mxu0
      %v2992 = vadd.f32 %v2968, %v2991
      %2993 = vdwg.mxu0
      %2994 = vmatpush.msra.mxu0 0.0
      %2995 = vmatpush.msra.mxu0 0.0
      %2996 = vmatpush.msra.mxu0 0.0
      %2997 = vmatpush.msra.mxu0 0.0
      %2998 = vmatpush.msra.mxu0 0.0
      %2999 = vmatpush.msra.mxu0 0.0
      %3000 = vmatpush.msra.mxu0 0.0
      %3001 = vmatpush.msra.mxu0 0.0
      %3002 = vmatpush.msra.mxu0 0.0
      %3003 = vmatpush.msra.mxu0 0.0
      %3004 = vmatpush.msra.mxu0 0.0
      %3005 = vmatpush.msra.mxu0 0.0
      %3006 = vmatpush.msra.mxu0 0.0
      %3007 = vmatpush.msra.mxu0 0.0
      %3008 = vmatpush.msra.mxu0 0.0
      %v3009 = vand.u32 %v2865, 4294901760
      %3010 = vmatpush.msra.mxu0 %v3009
      %v3011 = vand.u32 %v2862, 4294901760
      %3012 = vmatmul.f32.gmra.mxu0 %v3011
      %v3013 = vpop.f32.mrf.mxu0
      %v3014 = vadd.f32 %v2992, %v3013
      %3015 = vdwg.mxu0
      %3016 = vmatpush.msra.mxu0 0.0
      %3017 = vmatpush.msra.mxu0 0.0
      %3018 = vmatpush.msra.mxu0 0.0
      %3019 = vmatpush.msra.mxu0 0.0
      %3020 = vmatpush.msra.mxu0 0.0
      %3021 = vmatpush.msra.mxu0 0.0
      %3022 = vmatpush.msra.mxu0 0.0
      %3023 = vmatpush.msra.mxu0 0.0
      %3024 = vmatpush.msra.mxu0 0.0
      %3025 = vmatpush.msra.mxu0 0.0
      %3026 = vmatpush.msra.mxu0 0.0
      %3027 = vmatpush.msra.mxu0 0.0
      %3028 = vmatpush.msra.mxu0 0.0
      %3029 = vmatpush.msra.mxu0 0.0
      %3030 = vmatpush.msra.mxu0 0.0
      %v3031 = vand.u32 %v2868, 4294901760
      %3032 = vmatpush.msra.mxu0 %v3031
      %v3033 = vand.u32 %v2862, 4294901760
      %v3034 = vsub.f32 %v2862, %v3033
      %v3035 = vand.u32 %v3034, 4294901760
      %v3036 = vsub.f32 %v3034, %v3035
      %v3037 = vand.u32 %v3036, 4294901760
      %3038 = vmatmul.f32.gmra.mxu0 %v3037
      %v3039 = vpop.f32.mrf.mxu0
      %v3040 = vadd.f32 0.0, %v3039
      %3041 = vdwg.mxu0
      %3042 = vmatpush.msra.mxu0 0.0
      %3043 = vmatpush.msra.mxu0 0.0
      %3044 = vmatpush.msra.mxu0 0.0
      %3045 = vmatpush.msra.mxu0 0.0
      %3046 = vmatpush.msra.mxu0 0.0
      %3047 = vmatpush.msra.mxu0 0.0
      %3048 = vmatpush.msra.mxu0 0.0
      %3049 = vmatpush.msra.mxu0 0.0
      %3050 = vmatpush.msra.mxu0 0.0
      %3051 = vmatpush.msra.mxu0 0.0
      %3052 = vmatpush.msra.mxu0 0.0
      %3053 = vmatpush.msra.mxu0 0.0
      %3054 = vmatpush.msra.mxu0 0.0
      %3055 = vmatpush.msra.mxu0 0.0
      %3056 = vmatpush.msra.mxu0 0.0
      %v3057 = vand.u32 %v2868, 4294901760
      %v3058 = vsub.f32 %v2868, %v3057
      %v3059 = vand.u32 %v3058, 4294901760
      %v3060 = vsub.f32 %v3058, %v3059
      %v3061 = vand.u32 %v3060, 4294901760
      %3062 = vmatpush.msra.mxu0 %v3061
      %v3063 = vand.u32 %v2862, 4294901760
      %3064 = vmatmul.f32.gmra.mxu0 %v3063
      %v3065 = vpop.f32.mrf.mxu0
      %v3066 = vadd.f32 %v3040, %v3065
      %3067 = vdwg.mxu0
      %3068 = vmatpush.msra.mxu0 0.0
      %3069 = vmatpush.msra.mxu0 0.0
      %3070 = vmatpush.msra.mxu0 0.0
      %3071 = vmatpush.msra.mxu0 0.0
      %3072 = vmatpush.msra.mxu0 0.0
      %3073 = vmatpush.msra.mxu0 0.0
      %3074 = vmatpush.msra.mxu0 0.0
      %3075 = vmatpush.msra.mxu0 0.0
      %3076 = vmatpush.msra.mxu0 0.0
      %3077 = vmatpush.msra.mxu0 0.0
      %3078 = vmatpush.msra.mxu0 0.0
      %3079 = vmatpush.msra.mxu0 0.0
      %3080 = vmatpush.msra.mxu0 0.0
      %3081 = vmatpush.msra.mxu0 0.0
      %3082 = vmatpush.msra.mxu0 0.0
      %v3083 = vand.u32 %v2868, 4294901760
      %v3084 = vsub.f32 %v2868, %v3083
      %3085 = vmatpush.msra.mxu0 %v3084
      %v3086 = vand.u32 %v2862, 4294901760
      %v3087 = vsub.f32 %v2862, %v3086
      %3088 = vmatmul.f32.gmra.mxu0 %v3087
      %v3089 = vpop.f32.mrf.mxu0
      %v3090 = vadd.f32 %v3066, %v3089
      %3091 = vdwg.mxu0
      %3092 = vmatpush.msra.mxu0 0.0
      %3093 = vmatpush.msra.mxu0 0.0
      %3094 = vmatpush.msra.mxu0 0.0
      %3095 = vmatpush.msra.mxu0 0.0
      %3096 = vmatpush.msra.mxu0 0.0
      %3097 = vmatpush.msra.mxu0 0.0
      %3098 = vmatpush.msra.mxu0 0.0
      %3099 = vmatpush.msra.mxu0 0.0
      %3100 = vmatpush.msra.mxu0 0.0
      %3101 = vmatpush.msra.mxu0 0.0
      %3102 = vmatpush.msra.mxu0 0.0
      %3103 = vmatpush.msra.mxu0 0.0
      %3104 = vmatpush.msra.mxu0 0.0
      %3105 = vmatpush.msra.mxu0 0.0
      %3106 = vmatpush.msra.mxu0 0.0
      %v3107 = vand.u32 %v2868, 4294901760
      %3108 = vmatpush.msra.mxu0 %v3107
      %v3109 = vand.u32 %v2862, 4294901760
      %v3110 = vsub.f32 %v2862, %v3109
      %v3111 = vand.u32 %v3110, 4294901760
      %3112 = vmatmul.f32.gmra.mxu0 %v3111
      %v3113 = vpop.f32.mrf.mxu0
      %v3114 = vadd.f32 %v3090, %v3113
      %3115 = vdwg.mxu0
      %3116 = vmatpush.msra.mxu0 0.0
      %3117 = vmatpush.msra.mxu0 0.0
      %3118 = vmatpush.msra.mxu0 0.0
      %3119 = vmatpush.msra.mxu0 0.0
      %3120 = vmatpush.msra.mxu0 0.0
      %3121 = vmatpush.msra.mxu0 0.0
      %3122 = vmatpush.msra.mxu0 0.0
      %3123 = vmatpush.msra.mxu0 0.0
      %3124 = vmatpush.msra.mxu0 0.0
      %3125 = vmatpush.msra.mxu0 0.0
      %3126 = vmatpush.msra.mxu0 0.0
      %3127 = vmatpush.msra.mxu0 0.0
      %3128 = vmatpush.msra.mxu0 0.0
      %3129 = vmatpush.msra.mxu0 0.0
      %3130 = vmatpush.msra.mxu0 0.0
      %v3131 = vand.u32 %v2868, 4294901760
      %v3132 = vsub.f32 %v2868, %v3131
      %v3133 = vand.u32 %v3132, 4294901760
      %3134 = vmatpush.msra.mxu0 %v3133
      %v3135 = vand.u32 %v2862, 4294901760
      %3136 = vmatmul.f32.gmra.mxu0 %v3135
      %v3137 = vpop.f32.mrf.mxu0
      %v3138 = vadd.f32 %v3114, %v3137
      %3139 = vdwg.mxu0
      %3140 = vmatpush.msra.mxu0 0.0
      %3141 = vmatpush.msra.mxu0 0.0
      %3142 = vmatpush.msra.mxu0 0.0
      %3143 = vmatpush.msra.mxu0 0.0
      %3144 = vmatpush.msra.mxu0 0.0
      %3145 = vmatpush.msra.mxu0 0.0
      %3146 = vmatpush.msra.mxu0 0.0
      %3147 = vmatpush.msra.mxu0 0.0
      %3148 = vmatpush.msra.mxu0 0.0
      %3149 = vmatpush.msra.mxu0 0.0
      %3150 = vmatpush.msra.mxu0 0.0
      %3151 = vmatpush.msra.mxu0 0.0
      %3152 = vmatpush.msra.mxu0 0.0
      %3153 = vmatpush.msra.mxu0 0.0
      %3154 = vmatpush.msra.mxu0 0.0
      %v3155 = vand.u32 %v2868, 4294901760
      %3156 = vmatpush.msra.mxu0 %v3155
      %v3157 = vand.u32 %v2862, 4294901760
      %3158 = vmatmul.f32.gmra.mxu0 %v3157
      %v3159 = vpop.f32.mrf.mxu0
      %v3160 = vadd.f32 %v3138, %v3159
      %3161 = vdwg.mxu0
      %v3162 = vadd.f32 %v2844, %v3014
      %v3163 = vadd.f32 %v2845, %v3160
      %v3164 = vld [vmem:[%s3] sm:$0xff]
      %3166 = vset.pattern.permute.xlu0 0
      %3167 = vperm.xlu0 %3166, %v3164
      %v3168 = vpop.permute.xlu0 %3167
      %v3170 = vadd.f32 %v3162, %v3168
      %v3171 = vadd.f32 %v3163, %v3168
      %3172 = vst [vmem:[#allocation2] sm:$0xff] 0.0
      %3173 = vst [vmem:[#allocation2 + $0x8] sm:$0xff] 0.0
      %3174 = vst [vmem:[#allocation2 + $0x10] sm:$0xff] 0.0
      %3175 = vst [vmem:[#allocation2 + $0x18] sm:$0xff] 0.0
      %3176 = vst [vmem:[#allocation2 + $0x20] sm:$0x1] 0.0
      %3177 = vst [vmem:[#allocation2 + $0x28] sm:$0x1] 0.0
      %3178 = vst [vmem:[#allocation2 + $0x30] sm:$0x1] 0.0
      %3179 = vst [vmem:[#allocation2 + $0x38] sm:$0x1] 0.0
      %3180 = vst.msk [vmem:[%s295] ss:$8 sm:$0x3] %vm294, %v290
      %3181 = vst.msk [vmem:[%s295] ss:$8 sm:$0x0] %vm294, %v290
      %v3184 = vrot.slane %v3170, 7
      %v3185 = vrot.slane %v3171, 7
      %3188 = vst [vmem:[#allocation2 + $0x8] sm:$0xfe] %v3184
      %3189 = vst [vmem:[#allocation2 + $0x10] sm:$0xfe] %v3185
      %3190 = vst [vmem:[#allocation2 + $0x28] sm:$0x1] %v3184
      %3191 = vst [vmem:[#allocation2 + $0x30] sm:$0x1] %v3185
      %v3192 = vld [vmem:[#allocation2] sm:$0xff]
      %v3193 = vld [vmem:[#allocation2 + $0x8] sm:$0xff]
      %v3194 = vld [vmem:[#allocation2 + $0x10] sm:$0xff]
      %v3195 = vld [vmem:[#allocation2 + $0x20] sm:$0x1]
      %v3196 = vld [vmem:[#allocation2 + $0x28] sm:$0x1]
      %v3197 = vld [vmem:[#allocation2 + $0x30] sm:$0x1]
      %3204 = vrot.lane.b32.xlu0 %v3192, 17
      %v3205 = vpop.permute.xlu0 %3204
      %3206 = vrot.lane.b32.xlu0 %v3193, 17
      %v3207 = vpop.permute.xlu0 %3206
      %3208 = vrot.lane.b32.xlu0 %v3194, 17
      %v3209 = vpop.permute.xlu0 %3208
      %3210 = vrot.lane.b32.xlu0 %v3195, 17
      %v3211 = vpop.permute.xlu0 %3210
      %3212 = vrot.lane.b32.xlu0 %v3196, 17
      %v3213 = vpop.permute.xlu0 %3212
      %3214 = vrot.lane.b32.xlu0 %v3197, 17
      %v3215 = vpop.permute.xlu0 %3214
      %v3216 = vsel %vm326, %v3205, %v3207
      %v3217 = vsel %vm326, %v3207, %v3209
      %v3218 = vsel %vm326, %v3211, %v3213
      %v3219 = vsel %vm326, %v3213, %v3215
      %v3224 = vsel %vm315, %v3216, 0.0
      %v3225 = vsel %vm316, %v3217, 0.0
      %v3226 = vsel %vm315, %v3218, 0.0
      %v3227 = vsel %vm316, %v3219, 0.0
      %v3228 = vld [vmem:[%s4] sm:$0xf]
      %s3229 = scalar_lea.vmem %s4, 4
      %v3230 = vld [vmem:[%s3229] sm:$0xf]
      %3231 = vrot.lane.b32.xlu0 %v3192, 16
      %v3232 = vpop.permute.xlu0 %3231
      %3233 = vrot.lane.b32.xlu0 %v3193, 16
      %v3234 = vpop.permute.xlu0 %3233
      %3235 = vrot.lane.b32.xlu0 %v3194, 16
      %v3236 = vpop.permute.xlu0 %3235
      %3237 = vrot.lane.b32.xlu0 %v3195, 16
      %v3238 = vpop.permute.xlu0 %3237
      %3239 = vrot.lane.b32.xlu0 %v3196, 16
      %v3240 = vpop.permute.xlu0 %3239
      %3241 = vrot.lane.b32.xlu0 %v3197, 16
      %v3242 = vpop.permute.xlu0 %3241
      %v3243 = vsel %vm342, %v3232, %v3234
      %v3244 = vsel %vm342, %v3234, %v3236
      %v3245 = vsel %vm342, %v3238, %v3240
      %v3246 = vsel %vm342, %v3240, %v3242
      %vm3249 = vcmask 72704
      %v3251 = vsel %vm3249, %v3230, 0
      %vm3253 = vcmask 1040384
      %v3254 = vsel %vm3253, %v3245, 0
      %v3256 = vsel %vm3253, %v3246, 0
      %3258 = vmatpush.msra.mxu0 0.0
      %3259 = vmatpush.msra.mxu0 0.0
      %3260 = vmatpush.msra.mxu0 0.0
      %3261 = vmatpush.msra.mxu0 0.0
      %3262 = vmatpush.msra.mxu0 0.0
      %3263 = vmatpush.msra.mxu0 0.0
      %3264 = vmatpush.msra.mxu0 0.0
      %3265 = vmatpush.msra.mxu0 0.0
      %3266 = vmatpush.msra.mxu0 0.0
      %3267 = vmatpush.msra.mxu0 0.0
      %3268 = vmatpush.msra.mxu0 0.0
      %3269 = vmatpush.msra.mxu0 0.0
      %3270 = vmatpush.msra.mxu0 0.0
      %3271 = vmatpush.msra.mxu0 0.0
      %v3272 = vand.u32 %v3254, 4294901760
      %3273 = vmatpush.msra.mxu0 %v3272
      %v3274 = vand.u32 %v3243, 4294901760
      %3275 = vmatpush.msra.mxu0 %v3274
      %v3276 = vand.u32 %v3251, 4294901760
      %v3277 = vsub.f32 %v3251, %v3276
      %v3278 = vand.u32 %v3277, 4294901760
      %v3279 = vsub.f32 %v3277, %v3278
      %v3280 = vand.u32 %v3279, 4294901760
      %3281 = vmatmul.f32.gmra.mxu0 %v3280
      %v3282 = vpop.f32.mrf.mxu0
      %v3283 = vadd.f32 0.0, %v3282
      %3284 = vdwg.mxu0
      %3285 = vmatpush.msra.mxu0 0.0
      %3286 = vmatpush.msra.mxu0 0.0
      %3287 = vmatpush.msra.mxu0 0.0
      %3288 = vmatpush.msra.mxu0 0.0
      %3289 = vmatpush.msra.mxu0 0.0
      %3290 = vmatpush.msra.mxu0 0.0
      %3291 = vmatpush.msra.mxu0 0.0
      %3292 = vmatpush.msra.mxu0 0.0
      %3293 = vmatpush.msra.mxu0 0.0
      %3294 = vmatpush.msra.mxu0 0.0
      %3295 = vmatpush.msra.mxu0 0.0
      %3296 = vmatpush.msra.mxu0 0.0
      %3297 = vmatpush.msra.mxu0 0.0
      %3298 = vmatpush.msra.mxu0 0.0
      %v3299 = vand.u32 %v3254, 4294901760
      %v3300 = vsub.f32 %v3254, %v3299
      %v3301 = vand.u32 %v3300, 4294901760
      %v3302 = vsub.f32 %v3300, %v3301
      %v3303 = vand.u32 %v3302, 4294901760
      %3304 = vmatpush.msra.mxu0 %v3303
      %v3305 = vand.u32 %v3243, 4294901760
      %v3306 = vsub.f32 %v3243, %v3305
      %v3307 = vand.u32 %v3306, 4294901760
      %v3308 = vsub.f32 %v3306, %v3307
      %v3309 = vand.u32 %v3308, 4294901760
      %3310 = vmatpush.msra.mxu0 %v3309
      %v3311 = vand.u32 %v3251, 4294901760
      %3312 = vmatmul.f32.gmra.mxu0 %v3311
      %v3313 = vpop.f32.mrf.mxu0
      %v3314 = vadd.f32 %v3283, %v3313
      %3315 = vdwg.mxu0
      %3316 = vmatpush.msra.mxu0 0.0
      %3317 = vmatpush.msra.mxu0 0.0
      %3318 = vmatpush.msra.mxu0 0.0
      %3319 = vmatpush.msra.mxu0 0.0
      %3320 = vmatpush.msra.mxu0 0.0
      %3321 = vmatpush.msra.mxu0 0.0
      %3322 = vmatpush.msra.mxu0 0.0
      %3323 = vmatpush.msra.mxu0 0.0
      %3324 = vmatpush.msra.mxu0 0.0
      %3325 = vmatpush.msra.mxu0 0.0
      %3326 = vmatpush.msra.mxu0 0.0
      %3327 = vmatpush.msra.mxu0 0.0
      %3328 = vmatpush.msra.mxu0 0.0
      %3329 = vmatpush.msra.mxu0 0.0
      %v3330 = vand.u32 %v3254, 4294901760
      %v3331 = vsub.f32 %v3254, %v3330
      %3332 = vmatpush.msra.mxu0 %v3331
      %v3333 = vand.u32 %v3243, 4294901760
      %v3334 = vsub.f32 %v3243, %v3333
      %3335 = vmatpush.msra.mxu0 %v3334
      %v3336 = vand.u32 %v3251, 4294901760
      %v3337 = vsub.f32 %v3251, %v3336
      %3338 = vmatmul.f32.gmra.mxu0 %v3337
      %v3339 = vpop.f32.mrf.mxu0
      %v3340 = vadd.f32 %v3314, %v3339
      %3341 = vdwg.mxu0
      %3342 = vmatpush.msra.mxu0 0.0
      %3343 = vmatpush.msra.mxu0 0.0
      %3344 = vmatpush.msra.mxu0 0.0
      %3345 = vmatpush.msra.mxu0 0.0
      %3346 = vmatpush.msra.mxu0 0.0
      %3347 = vmatpush.msra.mxu0 0.0
      %3348 = vmatpush.msra.mxu0 0.0
      %3349 = vmatpush.msra.mxu0 0.0
      %3350 = vmatpush.msra.mxu0 0.0
      %3351 = vmatpush.msra.mxu0 0.0
      %3352 = vmatpush.msra.mxu0 0.0
      %3353 = vmatpush.msra.mxu0 0.0
      %3354 = vmatpush.msra.mxu0 0.0
      %3355 = vmatpush.msra.mxu0 0.0
      %v3356 = vand.u32 %v3254, 4294901760
      %3357 = vmatpush.msra.mxu0 %v3356
      %v3358 = vand.u32 %v3243, 4294901760
      %3359 = vmatpush.msra.mxu0 %v3358
      %v3360 = vand.u32 %v3251, 4294901760
      %v3361 = vsub.f32 %v3251, %v3360
      %v3362 = vand.u32 %v3361, 4294901760
      %3363 = vmatmul.f32.gmra.mxu0 %v3362
      %v3364 = vpop.f32.mrf.mxu0
      %v3365 = vadd.f32 %v3340, %v3364
      %3366 = vdwg.mxu0
      %3367 = vmatpush.msra.mxu0 0.0
      %3368 = vmatpush.msra.mxu0 0.0
      %3369 = vmatpush.msra.mxu0 0.0
      %3370 = vmatpush.msra.mxu0 0.0
      %3371 = vmatpush.msra.mxu0 0.0
      %3372 = vmatpush.msra.mxu0 0.0
      %3373 = vmatpush.msra.mxu0 0.0
      %3374 = vmatpush.msra.mxu0 0.0
      %3375 = vmatpush.msra.mxu0 0.0
      %3376 = vmatpush.msra.mxu0 0.0
      %3377 = vmatpush.msra.mxu0 0.0
      %3378 = vmatpush.msra.mxu0 0.0
      %3379 = vmatpush.msra.mxu0 0.0
      %3380 = vmatpush.msra.mxu0 0.0
      %v3381 = vand.u32 %v3254, 4294901760
      %v3382 = vsub.f32 %v3254, %v3381
      %v3383 = vand.u32 %v3382, 4294901760
      %3384 = vmatpush.msra.mxu0 %v3383
      %v3385 = vand.u32 %v3243, 4294901760
      %v3386 = vsub.f32 %v3243, %v3385
      %v3387 = vand.u32 %v3386, 4294901760
      %3388 = vmatpush.msra.mxu0 %v3387
      %v3389 = vand.u32 %v3251, 4294901760
      %3390 = vmatmul.f32.gmra.mxu0 %v3389
      %v3391 = vpop.f32.mrf.mxu0
      %v3392 = vadd.f32 %v3365, %v3391
      %3393 = vdwg.mxu0
      %3394 = vmatpush.msra.mxu0 0.0
      %3395 = vmatpush.msra.mxu0 0.0
      %3396 = vmatpush.msra.mxu0 0.0
      %3397 = vmatpush.msra.mxu0 0.0
      %3398 = vmatpush.msra.mxu0 0.0
      %3399 = vmatpush.msra.mxu0 0.0
      %3400 = vmatpush.msra.mxu0 0.0
      %3401 = vmatpush.msra.mxu0 0.0
      %3402 = vmatpush.msra.mxu0 0.0
      %3403 = vmatpush.msra.mxu0 0.0
      %3404 = vmatpush.msra.mxu0 0.0
      %3405 = vmatpush.msra.mxu0 0.0
      %3406 = vmatpush.msra.mxu0 0.0
      %3407 = vmatpush.msra.mxu0 0.0
      %v3408 = vand.u32 %v3254, 4294901760
      %3409 = vmatpush.msra.mxu0 %v3408
      %v3410 = vand.u32 %v3243, 4294901760
      %3411 = vmatpush.msra.mxu0 %v3410
      %v3412 = vand.u32 %v3251, 4294901760
      %3413 = vmatmul.f32.gmra.mxu0 %v3412
      %v3414 = vpop.f32.mrf.mxu0
      %v3415 = vadd.f32 %v3392, %v3414
      %3416 = vdwg.mxu0
      %3417 = vmatpush.msra.mxu0 0.0
      %3418 = vmatpush.msra.mxu0 0.0
      %3419 = vmatpush.msra.mxu0 0.0
      %3420 = vmatpush.msra.mxu0 0.0
      %3421 = vmatpush.msra.mxu0 0.0
      %3422 = vmatpush.msra.mxu0 0.0
      %3423 = vmatpush.msra.mxu0 0.0
      %3424 = vmatpush.msra.mxu0 0.0
      %3425 = vmatpush.msra.mxu0 0.0
      %3426 = vmatpush.msra.mxu0 0.0
      %3427 = vmatpush.msra.mxu0 0.0
      %3428 = vmatpush.msra.mxu0 0.0
      %3429 = vmatpush.msra.mxu0 0.0
      %3430 = vmatpush.msra.mxu0 0.0
      %v3431 = vand.u32 %v3256, 4294901760
      %3432 = vmatpush.msra.mxu0 %v3431
      %v3433 = vand.u32 %v3244, 4294901760
      %3434 = vmatpush.msra.mxu0 %v3433
      %v3435 = vand.u32 %v3251, 4294901760
      %v3436 = vsub.f32 %v3251, %v3435
      %v3437 = vand.u32 %v3436, 4294901760
      %v3438 = vsub.f32 %v3436, %v3437
      %v3439 = vand.u32 %v3438, 4294901760
      %3440 = vmatmul.f32.gmra.mxu0 %v3439
      %v3441 = vpop.f32.mrf.mxu0
      %v3442 = vadd.f32 0.0, %v3441
      %3443 = vdwg.mxu0
      %3444 = vmatpush.msra.mxu0 0.0
      %3445 = vmatpush.msra.mxu0 0.0
      %3446 = vmatpush.msra.mxu0 0.0
      %3447 = vmatpush.msra.mxu0 0.0
      %3448 = vmatpush.msra.mxu0 0.0
      %3449 = vmatpush.msra.mxu0 0.0
      %3450 = vmatpush.msra.mxu0 0.0
      %3451 = vmatpush.msra.mxu0 0.0
      %3452 = vmatpush.msra.mxu0 0.0
      %3453 = vmatpush.msra.mxu0 0.0
      %3454 = vmatpush.msra.mxu0 0.0
      %3455 = vmatpush.msra.mxu0 0.0
      %3456 = vmatpush.msra.mxu0 0.0
      %3457 = vmatpush.msra.mxu0 0.0
      %v3458 = vand.u32 %v3256, 4294901760
      %v3459 = vsub.f32 %v3256, %v3458
      %v3460 = vand.u32 %v3459, 4294901760
      %v3461 = vsub.f32 %v3459, %v3460
      %v3462 = vand.u32 %v3461, 4294901760
      %3463 = vmatpush.msra.mxu0 %v3462
      %v3464 = vand.u32 %v3244, 4294901760
      %v3465 = vsub.f32 %v3244, %v3464
      %v3466 = vand.u32 %v3465, 4294901760
      %v3467 = vsub.f32 %v3465, %v3466
      %v3468 = vand.u32 %v3467, 4294901760
      %3469 = vmatpush.msra.mxu0 %v3468
      %v3470 = vand.u32 %v3251, 4294901760
      %3471 = vmatmul.f32.gmra.mxu0 %v3470
      %v3472 = vpop.f32.mrf.mxu0
      %v3473 = vadd.f32 %v3442, %v3472
      %3474 = vdwg.mxu0
      %3475 = vmatpush.msra.mxu0 0.0
      %3476 = vmatpush.msra.mxu0 0.0
      %3477 = vmatpush.msra.mxu0 0.0
      %3478 = vmatpush.msra.mxu0 0.0
      %3479 = vmatpush.msra.mxu0 0.0
      %3480 = vmatpush.msra.mxu0 0.0
      %3481 = vmatpush.msra.mxu0 0.0
      %3482 = vmatpush.msra.mxu0 0.0
      %3483 = vmatpush.msra.mxu0 0.0
      %3484 = vmatpush.msra.mxu0 0.0
      %3485 = vmatpush.msra.mxu0 0.0
      %3486 = vmatpush.msra.mxu0 0.0
      %3487 = vmatpush.msra.mxu0 0.0
      %3488 = vmatpush.msra.mxu0 0.0
      %v3489 = vand.u32 %v3256, 4294901760
      %v3490 = vsub.f32 %v3256, %v3489
      %3491 = vmatpush.msra.mxu0 %v3490
      %v3492 = vand.u32 %v3244, 4294901760
      %v3493 = vsub.f32 %v3244, %v3492
      %3494 = vmatpush.msra.mxu0 %v3493
      %v3495 = vand.u32 %v3251, 4294901760
      %v3496 = vsub.f32 %v3251, %v3495
      %3497 = vmatmul.f32.gmra.mxu0 %v3496
      %v3498 = vpop.f32.mrf.mxu0
      %v3499 = vadd.f32 %v3473, %v3498
      %3500 = vdwg.mxu0
      %3501 = vmatpush.msra.mxu0 0.0
      %3502 = vmatpush.msra.mxu0 0.0
      %3503 = vmatpush.msra.mxu0 0.0
      %3504 = vmatpush.msra.mxu0 0.0
      %3505 = vmatpush.msra.mxu0 0.0
      %3506 = vmatpush.msra.mxu0 0.0
      %3507 = vmatpush.msra.mxu0 0.0
      %3508 = vmatpush.msra.mxu0 0.0
      %3509 = vmatpush.msra.mxu0 0.0
      %3510 = vmatpush.msra.mxu0 0.0
      %3511 = vmatpush.msra.mxu0 0.0
      %3512 = vmatpush.msra.mxu0 0.0
      %3513 = vmatpush.msra.mxu0 0.0
      %3514 = vmatpush.msra.mxu0 0.0
      %v3515 = vand.u32 %v3256, 4294901760
      %3516 = vmatpush.msra.mxu0 %v3515
      %v3517 = vand.u32 %v3244, 4294901760
      %3518 = vmatpush.msra.mxu0 %v3517
      %v3519 = vand.u32 %v3251, 4294901760
      %v3520 = vsub.f32 %v3251, %v3519
      %v3521 = vand.u32 %v3520, 4294901760
      %3522 = vmatmul.f32.gmra.mxu0 %v3521
      %v3523 = vpop.f32.mrf.mxu0
      %v3524 = vadd.f32 %v3499, %v3523
      %3525 = vdwg.mxu0
      %3526 = vmatpush.msra.mxu0 0.0
      %3527 = vmatpush.msra.mxu0 0.0
      %3528 = vmatpush.msra.mxu0 0.0
      %3529 = vmatpush.msra.mxu0 0.0
      %3530 = vmatpush.msra.mxu0 0.0
      %3531 = vmatpush.msra.mxu0 0.0
      %3532 = vmatpush.msra.mxu0 0.0
      %3533 = vmatpush.msra.mxu0 0.0
      %3534 = vmatpush.msra.mxu0 0.0
      %3535 = vmatpush.msra.mxu0 0.0
      %3536 = vmatpush.msra.mxu0 0.0
      %3537 = vmatpush.msra.mxu0 0.0
      %3538 = vmatpush.msra.mxu0 0.0
      %3539 = vmatpush.msra.mxu0 0.0
      %v3540 = vand.u32 %v3256, 4294901760
      %v3541 = vsub.f32 %v3256, %v3540
      %v3542 = vand.u32 %v3541, 4294901760
      %3543 = vmatpush.msra.mxu0 %v3542
      %v3544 = vand.u32 %v3244, 4294901760
      %v3545 = vsub.f32 %v3244, %v3544
      %v3546 = vand.u32 %v3545, 4294901760
      %3547 = vmatpush.msra.mxu0 %v3546
      %v3548 = vand.u32 %v3251, 4294901760
      %3549 = vmatmul.f32.gmra.mxu0 %v3548
      %v3550 = vpop.f32.mrf.mxu0
      %v3551 = vadd.f32 %v3524, %v3550
      %3552 = vdwg.mxu0
      %3553 = vmatpush.msra.mxu0 0.0
      %3554 = vmatpush.msra.mxu0 0.0
      %3555 = vmatpush.msra.mxu0 0.0
      %3556 = vmatpush.msra.mxu0 0.0
      %3557 = vmatpush.msra.mxu0 0.0
      %3558 = vmatpush.msra.mxu0 0.0
      %3559 = vmatpush.msra.mxu0 0.0
      %3560 = vmatpush.msra.mxu0 0.0
      %3561 = vmatpush.msra.mxu0 0.0
      %3562 = vmatpush.msra.mxu0 0.0
      %3563 = vmatpush.msra.mxu0 0.0
      %3564 = vmatpush.msra.mxu0 0.0
      %3565 = vmatpush.msra.mxu0 0.0
      %3566 = vmatpush.msra.mxu0 0.0
      %v3567 = vand.u32 %v3256, 4294901760
      %3568 = vmatpush.msra.mxu0 %v3567
      %v3569 = vand.u32 %v3244, 4294901760
      %3570 = vmatpush.msra.mxu0 %v3569
      %v3571 = vand.u32 %v3251, 4294901760
      %3572 = vmatmul.f32.gmra.mxu0 %v3571
      %v3573 = vpop.f32.mrf.mxu0
      %v3574 = vadd.f32 %v3551, %v3573
      %3575 = vdwg.mxu0
      %v3577 = vsel %vm3249, %v3228, 0
      %v3580 = vsel %vm3253, %v3226, 0
      %v3583 = vsel %vm3253, %v3227, 0
      %3585 = vmatpush.msra.mxu0 0.0
      %3586 = vmatpush.msra.mxu0 0.0
      %3587 = vmatpush.msra.mxu0 0.0
      %3588 = vmatpush.msra.mxu0 0.0
      %3589 = vmatpush.msra.mxu0 0.0
      %3590 = vmatpush.msra.mxu0 0.0
      %3591 = vmatpush.msra.mxu0 0.0
      %3592 = vmatpush.msra.mxu0 0.0
      %3593 = vmatpush.msra.mxu0 0.0
      %3594 = vmatpush.msra.mxu0 0.0
      %3595 = vmatpush.msra.mxu0 0.0
      %3596 = vmatpush.msra.mxu0 0.0
      %3597 = vmatpush.msra.mxu0 0.0
      %3598 = vmatpush.msra.mxu0 0.0
      %v3599 = vand.u32 %v3580, 4294901760
      %3600 = vmatpush.msra.mxu0 %v3599
      %v3601 = vand.u32 %v3224, 4294901760
      %3602 = vmatpush.msra.mxu0 %v3601
      %v3603 = vand.u32 %v3577, 4294901760
      %v3604 = vsub.f32 %v3577, %v3603
      %v3605 = vand.u32 %v3604, 4294901760
      %v3606 = vsub.f32 %v3604, %v3605
      %v3607 = vand.u32 %v3606, 4294901760
      %3608 = vmatmul.f32.gmra.mxu0 %v3607
      %v3609 = vpop.f32.mrf.mxu0
      %v3610 = vadd.f32 %v3415, %v3609
      %3611 = vdwg.mxu0
      %3612 = vmatpush.msra.mxu0 0.0
      %3613 = vmatpush.msra.mxu0 0.0
      %3614 = vmatpush.msra.mxu0 0.0
      %3615 = vmatpush.msra.mxu0 0.0
      %3616 = vmatpush.msra.mxu0 0.0
      %3617 = vmatpush.msra.mxu0 0.0
      %3618 = vmatpush.msra.mxu0 0.0
      %3619 = vmatpush.msra.mxu0 0.0
      %3620 = vmatpush.msra.mxu0 0.0
      %3621 = vmatpush.msra.mxu0 0.0
      %3622 = vmatpush.msra.mxu0 0.0
      %3623 = vmatpush.msra.mxu0 0.0
      %3624 = vmatpush.msra.mxu0 0.0
      %3625 = vmatpush.msra.mxu0 0.0
      %v3626 = vand.u32 %v3580, 4294901760
      %v3627 = vsub.f32 %v3580, %v3626
      %v3628 = vand.u32 %v3627, 4294901760
      %v3629 = vsub.f32 %v3627, %v3628
      %v3630 = vand.u32 %v3629, 4294901760
      %3631 = vmatpush.msra.mxu0 %v3630
      %v3632 = vand.u32 %v3224, 4294901760
      %v3633 = vsub.f32 %v3224, %v3632
      %v3634 = vand.u32 %v3633, 4294901760
      %v3635 = vsub.f32 %v3633, %v3634
      %v3636 = vand.u32 %v3635, 4294901760
      %3637 = vmatpush.msra.mxu0 %v3636
      %v3638 = vand.u32 %v3577, 4294901760
      %3639 = vmatmul.f32.gmra.mxu0 %v3638
      %v3640 = vpop.f32.mrf.mxu0
      %v3641 = vadd.f32 %v3610, %v3640
      %3642 = vdwg.mxu0
      %3643 = vmatpush.msra.mxu0 0.0
      %3644 = vmatpush.msra.mxu0 0.0
      %3645 = vmatpush.msra.mxu0 0.0
      %3646 = vmatpush.msra.mxu0 0.0
      %3647 = vmatpush.msra.mxu0 0.0
      %3648 = vmatpush.msra.mxu0 0.0
      %3649 = vmatpush.msra.mxu0 0.0
      %3650 = vmatpush.msra.mxu0 0.0
      %3651 = vmatpush.msra.mxu0 0.0
      %3652 = vmatpush.msra.mxu0 0.0
      %3653 = vmatpush.msra.mxu0 0.0
      %3654 = vmatpush.msra.mxu0 0.0
      %3655 = vmatpush.msra.mxu0 0.0
      %3656 = vmatpush.msra.mxu0 0.0
      %v3657 = vand.u32 %v3580, 4294901760
      %v3658 = vsub.f32 %v3580, %v3657
      %3659 = vmatpush.msra.mxu0 %v3658
      %v3660 = vand.u32 %v3224, 4294901760
      %v3661 = vsub.f32 %v3224, %v3660
      %3662 = vmatpush.msra.mxu0 %v3661
      %v3663 = vand.u32 %v3577, 4294901760
      %v3664 = vsub.f32 %v3577, %v3663
      %3665 = vmatmul.f32.gmra.mxu0 %v3664
      %v3666 = vpop.f32.mrf.mxu0
      %v3667 = vadd.f32 %v3641, %v3666
      %3668 = vdwg.mxu0
      %3669 = vmatpush.msra.mxu0 0.0
      %3670 = vmatpush.msra.mxu0 0.0
      %3671 = vmatpush.msra.mxu0 0.0
      %3672 = vmatpush.msra.mxu0 0.0
      %3673 = vmatpush.msra.mxu0 0.0
      %3674 = vmatpush.msra.mxu0 0.0
      %3675 = vmatpush.msra.mxu0 0.0
      %3676 = vmatpush.msra.mxu0 0.0
      %3677 = vmatpush.msra.mxu0 0.0
      %3678 = vmatpush.msra.mxu0 0.0
      %3679 = vmatpush.msra.mxu0 0.0
      %3680 = vmatpush.msra.mxu0 0.0
      %3681 = vmatpush.msra.mxu0 0.0
      %3682 = vmatpush.msra.mxu0 0.0
      %v3683 = vand.u32 %v3580, 4294901760
      %3684 = vmatpush.msra.mxu0 %v3683
      %v3685 = vand.u32 %v3224, 4294901760
      %3686 = vmatpush.msra.mxu0 %v3685
      %v3687 = vand.u32 %v3577, 4294901760
      %v3688 = vsub.f32 %v3577, %v3687
      %v3689 = vand.u32 %v3688, 4294901760
      %3690 = vmatmul.f32.gmra.mxu0 %v3689
      %v3691 = vpop.f32.mrf.mxu0
      %v3692 = vadd.f32 %v3667, %v3691
      %3693 = vdwg.mxu0
      %3694 = vmatpush.msra.mxu0 0.0
      %3695 = vmatpush.msra.mxu0 0.0
      %3696 = vmatpush.msra.mxu0 0.0
      %3697 = vmatpush.msra.mxu0 0.0
      %3698 = vmatpush.msra.mxu0 0.0
      %3699 = vmatpush.msra.mxu0 0.0
      %3700 = vmatpush.msra.mxu0 0.0
      %3701 = vmatpush.msra.mxu0 0.0
      %3702 = vmatpush.msra.mxu0 0.0
      %3703 = vmatpush.msra.mxu0 0.0
      %3704 = vmatpush.msra.mxu0 0.0
      %3705 = vmatpush.msra.mxu0 0.0
      %3706 = vmatpush.msra.mxu0 0.0
      %3707 = vmatpush.msra.mxu0 0.0
      %v3708 = vand.u32 %v3580, 4294901760
      %v3709 = vsub.f32 %v3580, %v3708
      %v3710 = vand.u32 %v3709, 4294901760
      %3711 = vmatpush.msra.mxu0 %v3710
      %v3712 = vand.u32 %v3224, 4294901760
      %v3713 = vsub.f32 %v3224, %v3712
      %v3714 = vand.u32 %v3713, 4294901760
      %3715 = vmatpush.msra.mxu0 %v3714
      %v3716 = vand.u32 %v3577, 4294901760
      %3717 = vmatmul.f32.gmra.mxu0 %v3716
      %v3718 = vpop.f32.mrf.mxu0
      %v3719 = vadd.f32 %v3692, %v3718
      %3720 = vdwg.mxu0
      %3721 = vmatpush.msra.mxu0 0.0
      %3722 = vmatpush.msra.mxu0 0.0
      %3723 = vmatpush.msra.mxu0 0.0
      %3724 = vmatpush.msra.mxu0 0.0
      %3725 = vmatpush.msra.mxu0 0.0
      %3726 = vmatpush.msra.mxu0 0.0
      %3727 = vmatpush.msra.mxu0 0.0
      %3728 = vmatpush.msra.mxu0 0.0
      %3729 = vmatpush.msra.mxu0 0.0
      %3730 = vmatpush.msra.mxu0 0.0
      %3731 = vmatpush.msra.mxu0 0.0
      %3732 = vmatpush.msra.mxu0 0.0
      %3733 = vmatpush.msra.mxu0 0.0
      %3734 = vmatpush.msra.mxu0 0.0
      %v3735 = vand.u32 %v3580, 4294901760
      %3736 = vmatpush.msra.mxu0 %v3735
      %v3737 = vand.u32 %v3224, 4294901760
      %3738 = vmatpush.msra.mxu0 %v3737
      %v3739 = vand.u32 %v3577, 4294901760
      %3740 = vmatmul.f32.gmra.mxu0 %v3739
      %v3741 = vpop.f32.mrf.mxu0
      %v3742 = vadd.f32 %v3719, %v3741
      %3743 = vdwg.mxu0
      %3744 = vmatpush.msra.mxu0 0.0
      %3745 = vmatpush.msra.mxu0 0.0
      %3746 = vmatpush.msra.mxu0 0.0
      %3747 = vmatpush.msra.mxu0 0.0
      %3748 = vmatpush.msra.mxu0 0.0
      %3749 = vmatpush.msra.mxu0 0.0
      %3750 = vmatpush.msra.mxu0 0.0
      %3751 = vmatpush.msra.mxu0 0.0
      %3752 = vmatpush.msra.mxu0 0.0
      %3753 = vmatpush.msra.mxu0 0.0
      %3754 = vmatpush.msra.mxu0 0.0
      %3755 = vmatpush.msra.mxu0 0.0
      %3756 = vmatpush.msra.mxu0 0.0
      %3757 = vmatpush.msra.mxu0 0.0
      %v3758 = vand.u32 %v3583, 4294901760
      %3759 = vmatpush.msra.mxu0 %v3758
      %v3760 = vand.u32 %v3225, 4294901760
      %3761 = vmatpush.msra.mxu0 %v3760
      %v3762 = vand.u32 %v3577, 4294901760
      %v3763 = vsub.f32 %v3577, %v3762
      %v3764 = vand.u32 %v3763, 4294901760
      %v3765 = vsub.f32 %v3763, %v3764
      %v3766 = vand.u32 %v3765, 4294901760
      %3767 = vmatmul.f32.gmra.mxu0 %v3766
      %v3768 = vpop.f32.mrf.mxu0
      %v3769 = vadd.f32 %v3574, %v3768
      %3770 = vdwg.mxu0
      %3771 = vmatpush.msra.mxu0 0.0
      %3772 = vmatpush.msra.mxu0 0.0
      %3773 = vmatpush.msra.mxu0 0.0
      %3774 = vmatpush.msra.mxu0 0.0
      %3775 = vmatpush.msra.mxu0 0.0
      %3776 = vmatpush.msra.mxu0 0.0
      %3777 = vmatpush.msra.mxu0 0.0
      %3778 = vmatpush.msra.mxu0 0.0
      %3779 = vmatpush.msra.mxu0 0.0
      %3780 = vmatpush.msra.mxu0 0.0
      %3781 = vmatpush.msra.mxu0 0.0
      %3782 = vmatpush.msra.mxu0 0.0
      %3783 = vmatpush.msra.mxu0 0.0
      %3784 = vmatpush.msra.mxu0 0.0
      %v3785 = vand.u32 %v3583, 4294901760
      %v3786 = vsub.f32 %v3583, %v3785
      %v3787 = vand.u32 %v3786, 4294901760
      %v3788 = vsub.f32 %v3786, %v3787
      %v3789 = vand.u32 %v3788, 4294901760
      %3790 = vmatpush.msra.mxu0 %v3789
      %v3791 = vand.u32 %v3225, 4294901760
      %v3792 = vsub.f32 %v3225, %v3791
      %v3793 = vand.u32 %v3792, 4294901760
      %v3794 = vsub.f32 %v3792, %v3793
      %v3795 = vand.u32 %v3794, 4294901760
      %3796 = vmatpush.msra.mxu0 %v3795
      %v3797 = vand.u32 %v3577, 4294901760
      %3798 = vmatmul.f32.gmra.mxu0 %v3797
      %v3799 = vpop.f32.mrf.mxu0
      %v3800 = vadd.f32 %v3769, %v3799
      %3801 = vdwg.mxu0
      %3802 = vmatpush.msra.mxu0 0.0
      %3803 = vmatpush.msra.mxu0 0.0
      %3804 = vmatpush.msra.mxu0 0.0
      %3805 = vmatpush.msra.mxu0 0.0
      %3806 = vmatpush.msra.mxu0 0.0
      %3807 = vmatpush.msra.mxu0 0.0
      %3808 = vmatpush.msra.mxu0 0.0
      %3809 = vmatpush.msra.mxu0 0.0
      %3810 = vmatpush.msra.mxu0 0.0
      %3811 = vmatpush.msra.mxu0 0.0
      %3812 = vmatpush.msra.mxu0 0.0
      %3813 = vmatpush.msra.mxu0 0.0
      %3814 = vmatpush.msra.mxu0 0.0
      %3815 = vmatpush.msra.mxu0 0.0
      %v3816 = vand.u32 %v3583, 4294901760
      %v3817 = vsub.f32 %v3583, %v3816
      %3818 = vmatpush.msra.mxu0 %v3817
      %v3819 = vand.u32 %v3225, 4294901760
      %v3820 = vsub.f32 %v3225, %v3819
      %3821 = vmatpush.msra.mxu0 %v3820
      %v3822 = vand.u32 %v3577, 4294901760
      %v3823 = vsub.f32 %v3577, %v3822
      %3824 = vmatmul.f32.gmra.mxu0 %v3823
      %v3825 = vpop.f32.mrf.mxu0
      %v3826 = vadd.f32 %v3800, %v3825
      %3827 = vdwg.mxu0
      %3828 = vmatpush.msra.mxu0 0.0
      %3829 = vmatpush.msra.mxu0 0.0
      %3830 = vmatpush.msra.mxu0 0.0
      %3831 = vmatpush.msra.mxu0 0.0
      %3832 = vmatpush.msra.mxu0 0.0
      %3833 = vmatpush.msra.mxu0 0.0
      %3834 = vmatpush.msra.mxu0 0.0
      %3835 = vmatpush.msra.mxu0 0.0
      %3836 = vmatpush.msra.mxu0 0.0
      %3837 = vmatpush.msra.mxu0 0.0
      %3838 = vmatpush.msra.mxu0 0.0
      %3839 = vmatpush.msra.mxu0 0.0
      %3840 = vmatpush.msra.mxu0 0.0
      %3841 = vmatpush.msra.mxu0 0.0
      %v3842 = vand.u32 %v3583, 4294901760
      %3843 = vmatpush.msra.mxu0 %v3842
      %v3844 = vand.u32 %v3225, 4294901760
      %3845 = vmatpush.msra.mxu0 %v3844
      %v3846 = vand.u32 %v3577, 4294901760
      %v3847 = vsub.f32 %v3577, %v3846
      %v3848 = vand.u32 %v3847, 4294901760
      %3849 = vmatmul.f32.gmra.mxu0 %v3848
      %v3850 = vpop.f32.mrf.mxu0
      %v3851 = vadd.f32 %v3826, %v3850
      %3852 = vdwg.mxu0
      %3853 = vmatpush.msra.mxu0 0.0
      %3854 = vmatpush.msra.mxu0 0.0
      %3855 = vmatpush.msra.mxu0 0.0
      %3856 = vmatpush.msra.mxu0 0.0
      %3857 = vmatpush.msra.mxu0 0.0
      %3858 = vmatpush.msra.mxu0 0.0
      %3859 = vmatpush.msra.mxu0 0.0
      %3860 = vmatpush.msra.mxu0 0.0
      %3861 = vmatpush.msra.mxu0 0.0
      %3862 = vmatpush.msra.mxu0 0.0
      %3863 = vmatpush.msra.mxu0 0.0
      %3864 = vmatpush.msra.mxu0 0.0
      %3865 = vmatpush.msra.mxu0 0.0
      %3866 = vmatpush.msra.mxu0 0.0
      %v3867 = vand.u32 %v3583, 4294901760
      %v3868 = vsub.f32 %v3583, %v3867
      %v3869 = vand.u32 %v3868, 4294901760
      %3870 = vmatpush.msra.mxu0 %v3869
      %v3871 = vand.u32 %v3225, 4294901760
      %v3872 = vsub.f32 %v3225, %v3871
      %v3873 = vand.u32 %v3872, 4294901760
      %3874 = vmatpush.msra.mxu0 %v3873
      %v3875 = vand.u32 %v3577, 4294901760
      %3876 = vmatmul.f32.gmra.mxu0 %v3875
      %v3877 = vpop.f32.mrf.mxu0
      %v3878 = vadd.f32 %v3851, %v3877
      %3879 = vdwg.mxu0
      %3880 = vmatpush.msra.mxu0 0.0
      %3881 = vmatpush.msra.mxu0 0.0
      %3882 = vmatpush.msra.mxu0 0.0
      %3883 = vmatpush.msra.mxu0 0.0
      %3884 = vmatpush.msra.mxu0 0.0
      %3885 = vmatpush.msra.mxu0 0.0
      %3886 = vmatpush.msra.mxu0 0.0
      %3887 = vmatpush.msra.mxu0 0.0
      %3888 = vmatpush.msra.mxu0 0.0
      %3889 = vmatpush.msra.mxu0 0.0
      %3890 = vmatpush.msra.mxu0 0.0
      %3891 = vmatpush.msra.mxu0 0.0
      %3892 = vmatpush.msra.mxu0 0.0
      %3893 = vmatpush.msra.mxu0 0.0
      %v3894 = vand.u32 %v3583, 4294901760
      %3895 = vmatpush.msra.mxu0 %v3894
      %v3896 = vand.u32 %v3225, 4294901760
      %3897 = vmatpush.msra.mxu0 %v3896
      %v3898 = vand.u32 %v3577, 4294901760
      %3899 = vmatmul.f32.gmra.mxu0 %v3898
      %v3900 = vpop.f32.mrf.mxu0
      %v3901 = vadd.f32 %v3878, %v3900
      %3902 = vdwg.mxu0
      %3903 = vrot.lane.b32.xlu0 %v3192, 15
      %v3904 = vpop.permute.xlu0 %3903
      %3905 = vrot.lane.b32.xlu0 %v3193, 15
      %v3906 = vpop.permute.xlu0 %3905
      %3907 = vrot.lane.b32.xlu0 %v3194, 15
      %v3908 = vpop.permute.xlu0 %3907
      %3909 = vrot.lane.b32.xlu0 %v3195, 15
      %v3910 = vpop.permute.xlu0 %3909
      %3911 = vrot.lane.b32.xlu0 %v3196, 15
      %v3912 = vpop.permute.xlu0 %3911
      %3913 = vrot.lane.b32.xlu0 %v3197, 15
      %v3914 = vpop.permute.xlu0 %3913
      %v3915 = vsel %vm959, %v3904, %v3906
      %v3916 = vsel %vm959, %v3906, %v3908
      %v3917 = vsel %vm959, %v3910, %v3912
      %v3918 = vsel %vm959, %v3912, %v3914
      %v3923 = vsel %vm951, %v3915, 0.0
      %v3924 = vsel %vm952, %v3916, 0.0
      %v3925 = vsel %vm951, %v3917, 0.0
      %v3926 = vsel %vm952, %v3918, 0.0
      %s3927 = scalar_lea.vmem %s4, 8
      %v3928 = vld [vmem:[%s3927] sm:$0xf]
      %v3930 = vsel %vm3249, %v3928, 0
      %v3933 = vsel %vm3253, %v3925, 0
      %v3936 = vsel %vm3253, %v3926, 0
      %3938 = vmatpush.msra.mxu0 0.0
      %3939 = vmatpush.msra.mxu0 0.0
      %3940 = vmatpush.msra.mxu0 0.0
      %3941 = vmatpush.msra.mxu0 0.0
      %3942 = vmatpush.msra.mxu0 0.0
      %3943 = vmatpush.msra.mxu0 0.0
      %3944 = vmatpush.msra.mxu0 0.0
      %3945 = vmatpush.msra.mxu0 0.0
      %3946 = vmatpush.msra.mxu0 0.0
      %3947 = vmatpush.msra.mxu0 0.0
      %3948 = vmatpush.msra.mxu0 0.0
      %3949 = vmatpush.msra.mxu0 0.0
      %3950 = vmatpush.msra.mxu0 0.0
      %3951 = vmatpush.msra.mxu0 0.0
      %v3952 = vand.u32 %v3933, 4294901760
      %3953 = vmatpush.msra.mxu0 %v3952
      %v3954 = vand.u32 %v3923, 4294901760
      %3955 = vmatpush.msra.mxu0 %v3954
      %v3956 = vand.u32 %v3930, 4294901760
      %v3957 = vsub.f32 %v3930, %v3956
      %v3958 = vand.u32 %v3957, 4294901760
      %v3959 = vsub.f32 %v3957, %v3958
      %v3960 = vand.u32 %v3959, 4294901760
      %3961 = vmatmul.f32.gmra.mxu0 %v3960
      %v3962 = vpop.f32.mrf.mxu0
      %v3963 = vadd.f32 0.0, %v3962
      %3964 = vdwg.mxu0
      %3965 = vmatpush.msra.mxu0 0.0
      %3966 = vmatpush.msra.mxu0 0.0
      %3967 = vmatpush.msra.mxu0 0.0
      %3968 = vmatpush.msra.mxu0 0.0
      %3969 = vmatpush.msra.mxu0 0.0
      %3970 = vmatpush.msra.mxu0 0.0
      %3971 = vmatpush.msra.mxu0 0.0
      %3972 = vmatpush.msra.mxu0 0.0
      %3973 = vmatpush.msra.mxu0 0.0
      %3974 = vmatpush.msra.mxu0 0.0
      %3975 = vmatpush.msra.mxu0 0.0
      %3976 = vmatpush.msra.mxu0 0.0
      %3977 = vmatpush.msra.mxu0 0.0
      %3978 = vmatpush.msra.mxu0 0.0
      %v3979 = vand.u32 %v3933, 4294901760
      %v3980 = vsub.f32 %v3933, %v3979
      %v3981 = vand.u32 %v3980, 4294901760
      %v3982 = vsub.f32 %v3980, %v3981
      %v3983 = vand.u32 %v3982, 4294901760
      %3984 = vmatpush.msra.mxu0 %v3983
      %v3985 = vand.u32 %v3923, 4294901760
      %v3986 = vsub.f32 %v3923, %v3985
      %v3987 = vand.u32 %v3986, 4294901760
      %v3988 = vsub.f32 %v3986, %v3987
      %v3989 = vand.u32 %v3988, 4294901760
      %3990 = vmatpush.msra.mxu0 %v3989
      %v3991 = vand.u32 %v3930, 4294901760
      %3992 = vmatmul.f32.gmra.mxu0 %v3991
      %v3993 = vpop.f32.mrf.mxu0
      %v3994 = vadd.f32 %v3963, %v3993
      %3995 = vdwg.mxu0
      %3996 = vmatpush.msra.mxu0 0.0
      %3997 = vmatpush.msra.mxu0 0.0
      %3998 = vmatpush.msra.mxu0 0.0
      %3999 = vmatpush.msra.mxu0 0.0
      %4000 = vmatpush.msra.mxu0 0.0
      %4001 = vmatpush.msra.mxu0 0.0
      %4002 = vmatpush.msra.mxu0 0.0
      %4003 = vmatpush.msra.mxu0 0.0
      %4004 = vmatpush.msra.mxu0 0.0
      %4005 = vmatpush.msra.mxu0 0.0
      %4006 = vmatpush.msra.mxu0 0.0
      %4007 = vmatpush.msra.mxu0 0.0
      %4008 = vmatpush.msra.mxu0 0.0
      %4009 = vmatpush.msra.mxu0 0.0
      %v4010 = vand.u32 %v3933, 4294901760
      %v4011 = vsub.f32 %v3933, %v4010
      %4012 = vmatpush.msra.mxu0 %v4011
      %v4013 = vand.u32 %v3923, 4294901760
      %v4014 = vsub.f32 %v3923, %v4013
      %4015 = vmatpush.msra.mxu0 %v4014
      %v4016 = vand.u32 %v3930, 4294901760
      %v4017 = vsub.f32 %v3930, %v4016
      %4018 = vmatmul.f32.gmra.mxu0 %v4017
      %v4019 = vpop.f32.mrf.mxu0
      %v4020 = vadd.f32 %v3994, %v4019
      %4021 = vdwg.mxu0
      %4022 = vmatpush.msra.mxu0 0.0
      %4023 = vmatpush.msra.mxu0 0.0
      %4024 = vmatpush.msra.mxu0 0.0
      %4025 = vmatpush.msra.mxu0 0.0
      %4026 = vmatpush.msra.mxu0 0.0
      %4027 = vmatpush.msra.mxu0 0.0
      %4028 = vmatpush.msra.mxu0 0.0
      %4029 = vmatpush.msra.mxu0 0.0
      %4030 = vmatpush.msra.mxu0 0.0
      %4031 = vmatpush.msra.mxu0 0.0
      %4032 = vmatpush.msra.mxu0 0.0
      %4033 = vmatpush.msra.mxu0 0.0
      %4034 = vmatpush.msra.mxu0 0.0
      %4035 = vmatpush.msra.mxu0 0.0
      %v4036 = vand.u32 %v3933, 4294901760
      %4037 = vmatpush.msra.mxu0 %v4036
      %v4038 = vand.u32 %v3923, 4294901760
      %4039 = vmatpush.msra.mxu0 %v4038
      %v4040 = vand.u32 %v3930, 4294901760
      %v4041 = vsub.f32 %v3930, %v4040
      %v4042 = vand.u32 %v4041, 4294901760
      %4043 = vmatmul.f32.gmra.mxu0 %v4042
      %v4044 = vpop.f32.mrf.mxu0
      %v4045 = vadd.f32 %v4020, %v4044
      %4046 = vdwg.mxu0
      %4047 = vmatpush.msra.mxu0 0.0
      %4048 = vmatpush.msra.mxu0 0.0
      %4049 = vmatpush.msra.mxu0 0.0
      %4050 = vmatpush.msra.mxu0 0.0
      %4051 = vmatpush.msra.mxu0 0.0
      %4052 = vmatpush.msra.mxu0 0.0
      %4053 = vmatpush.msra.mxu0 0.0
      %4054 = vmatpush.msra.mxu0 0.0
      %4055 = vmatpush.msra.mxu0 0.0
      %4056 = vmatpush.msra.mxu0 0.0
      %4057 = vmatpush.msra.mxu0 0.0
      %4058 = vmatpush.msra.mxu0 0.0
      %4059 = vmatpush.msra.mxu0 0.0
      %4060 = vmatpush.msra.mxu0 0.0
      %v4061 = vand.u32 %v3933, 4294901760
      %v4062 = vsub.f32 %v3933, %v4061
      %v4063 = vand.u32 %v4062, 4294901760
      %4064 = vmatpush.msra.mxu0 %v4063
      %v4065 = vand.u32 %v3923, 4294901760
      %v4066 = vsub.f32 %v3923, %v4065
      %v4067 = vand.u32 %v4066, 4294901760
      %4068 = vmatpush.msra.mxu0 %v4067
      %v4069 = vand.u32 %v3930, 4294901760
      %4070 = vmatmul.f32.gmra.mxu0 %v4069
      %v4071 = vpop.f32.mrf.mxu0
      %v4072 = vadd.f32 %v4045, %v4071
      %4073 = vdwg.mxu0
      %4074 = vmatpush.msra.mxu0 0.0
      %4075 = vmatpush.msra.mxu0 0.0
      %4076 = vmatpush.msra.mxu0 0.0
      %4077 = vmatpush.msra.mxu0 0.0
      %4078 = vmatpush.msra.mxu0 0.0
      %4079 = vmatpush.msra.mxu0 0.0
      %4080 = vmatpush.msra.mxu0 0.0
      %4081 = vmatpush.msra.mxu0 0.0
      %4082 = vmatpush.msra.mxu0 0.0
      %4083 = vmatpush.msra.mxu0 0.0
      %4084 = vmatpush.msra.mxu0 0.0
      %4085 = vmatpush.msra.mxu0 0.0
      %4086 = vmatpush.msra.mxu0 0.0
      %4087 = vmatpush.msra.mxu0 0.0
      %v4088 = vand.u32 %v3933, 4294901760
      %4089 = vmatpush.msra.mxu0 %v4088
      %v4090 = vand.u32 %v3923, 4294901760
      %4091 = vmatpush.msra.mxu0 %v4090
      %v4092 = vand.u32 %v3930, 4294901760
      %4093 = vmatmul.f32.gmra.mxu0 %v4092
      %v4094 = vpop.f32.mrf.mxu0
      %v4095 = vadd.f32 %v4072, %v4094
      %4096 = vdwg.mxu0
      %4097 = vmatpush.msra.mxu0 0.0
      %4098 = vmatpush.msra.mxu0 0.0
      %4099 = vmatpush.msra.mxu0 0.0
      %4100 = vmatpush.msra.mxu0 0.0
      %4101 = vmatpush.msra.mxu0 0.0
      %4102 = vmatpush.msra.mxu0 0.0
      %4103 = vmatpush.msra.mxu0 0.0
      %4104 = vmatpush.msra.mxu0 0.0
      %4105 = vmatpush.msra.mxu0 0.0
      %4106 = vmatpush.msra.mxu0 0.0
      %4107 = vmatpush.msra.mxu0 0.0
      %4108 = vmatpush.msra.mxu0 0.0
      %4109 = vmatpush.msra.mxu0 0.0
      %4110 = vmatpush.msra.mxu0 0.0
      %v4111 = vand.u32 %v3936, 4294901760
      %4112 = vmatpush.msra.mxu0 %v4111
      %v4113 = vand.u32 %v3924, 4294901760
      %4114 = vmatpush.msra.mxu0 %v4113
      %v4115 = vand.u32 %v3930, 4294901760
      %v4116 = vsub.f32 %v3930, %v4115
      %v4117 = vand.u32 %v4116, 4294901760
      %v4118 = vsub.f32 %v4116, %v4117
      %v4119 = vand.u32 %v4118, 4294901760
      %4120 = vmatmul.f32.gmra.mxu0 %v4119
      %v4121 = vpop.f32.mrf.mxu0
      %v4122 = vadd.f32 0.0, %v4121
      %4123 = vdwg.mxu0
      %4124 = vmatpush.msra.mxu0 0.0
      %4125 = vmatpush.msra.mxu0 0.0
      %4126 = vmatpush.msra.mxu0 0.0
      %4127 = vmatpush.msra.mxu0 0.0
      %4128 = vmatpush.msra.mxu0 0.0
      %4129 = vmatpush.msra.mxu0 0.0
      %4130 = vmatpush.msra.mxu0 0.0
      %4131 = vmatpush.msra.mxu0 0.0
      %4132 = vmatpush.msra.mxu0 0.0
      %4133 = vmatpush.msra.mxu0 0.0
      %4134 = vmatpush.msra.mxu0 0.0
      %4135 = vmatpush.msra.mxu0 0.0
      %4136 = vmatpush.msra.mxu0 0.0
      %4137 = vmatpush.msra.mxu0 0.0
      %v4138 = vand.u32 %v3936, 4294901760
      %v4139 = vsub.f32 %v3936, %v4138
      %v4140 = vand.u32 %v4139, 4294901760
      %v4141 = vsub.f32 %v4139, %v4140
      %v4142 = vand.u32 %v4141, 4294901760
      %4143 = vmatpush.msra.mxu0 %v4142
      %v4144 = vand.u32 %v3924, 4294901760
      %v4145 = vsub.f32 %v3924, %v4144
      %v4146 = vand.u32 %v4145, 4294901760
      %v4147 = vsub.f32 %v4145, %v4146
      %v4148 = vand.u32 %v4147, 4294901760
      %4149 = vmatpush.msra.mxu0 %v4148
      %v4150 = vand.u32 %v3930, 4294901760
      %4151 = vmatmul.f32.gmra.mxu0 %v4150
      %v4152 = vpop.f32.mrf.mxu0
      %v4153 = vadd.f32 %v4122, %v4152
      %4154 = vdwg.mxu0
      %4155 = vmatpush.msra.mxu0 0.0
      %4156 = vmatpush.msra.mxu0 0.0
      %4157 = vmatpush.msra.mxu0 0.0
      %4158 = vmatpush.msra.mxu0 0.0
      %4159 = vmatpush.msra.mxu0 0.0
      %4160 = vmatpush.msra.mxu0 0.0
      %4161 = vmatpush.msra.mxu0 0.0
      %4162 = vmatpush.msra.mxu0 0.0
      %4163 = vmatpush.msra.mxu0 0.0
      %4164 = vmatpush.msra.mxu0 0.0
      %4165 = vmatpush.msra.mxu0 0.0
      %4166 = vmatpush.msra.mxu0 0.0
      %4167 = vmatpush.msra.mxu0 0.0
      %4168 = vmatpush.msra.mxu0 0.0
      %v4169 = vand.u32 %v3936, 4294901760
      %v4170 = vsub.f32 %v3936, %v4169
      %4171 = vmatpush.msra.mxu0 %v4170
      %v4172 = vand.u32 %v3924, 4294901760
      %v4173 = vsub.f32 %v3924, %v4172
      %4174 = vmatpush.msra.mxu0 %v4173
      %v4175 = vand.u32 %v3930, 4294901760
      %v4176 = vsub.f32 %v3930, %v4175
      %4177 = vmatmul.f32.gmra.mxu0 %v4176
      %v4178 = vpop.f32.mrf.mxu0
      %v4179 = vadd.f32 %v4153, %v4178
      %4180 = vdwg.mxu0
      %4181 = vmatpush.msra.mxu0 0.0
      %4182 = vmatpush.msra.mxu0 0.0
      %4183 = vmatpush.msra.mxu0 0.0
      %4184 = vmatpush.msra.mxu0 0.0
      %4185 = vmatpush.msra.mxu0 0.0
      %4186 = vmatpush.msra.mxu0 0.0
      %4187 = vmatpush.msra.mxu0 0.0
      %4188 = vmatpush.msra.mxu0 0.0
      %4189 = vmatpush.msra.mxu0 0.0
      %4190 = vmatpush.msra.mxu0 0.0
      %4191 = vmatpush.msra.mxu0 0.0
      %4192 = vmatpush.msra.mxu0 0.0
      %4193 = vmatpush.msra.mxu0 0.0
      %4194 = vmatpush.msra.mxu0 0.0
      %v4195 = vand.u32 %v3936, 4294901760
      %4196 = vmatpush.msra.mxu0 %v4195
      %v4197 = vand.u32 %v3924, 4294901760
      %4198 = vmatpush.msra.mxu0 %v4197
      %v4199 = vand.u32 %v3930, 4294901760
      %v4200 = vsub.f32 %v3930, %v4199
      %v4201 = vand.u32 %v4200, 4294901760
      %4202 = vmatmul.f32.gmra.mxu0 %v4201
      %v4203 = vpop.f32.mrf.mxu0
      %v4204 = vadd.f32 %v4179, %v4203
      %4205 = vdwg.mxu0
      %4206 = vmatpush.msra.mxu0 0.0
      %4207 = vmatpush.msra.mxu0 0.0
      %4208 = vmatpush.msra.mxu0 0.0
      %4209 = vmatpush.msra.mxu0 0.0
      %4210 = vmatpush.msra.mxu0 0.0
      %4211 = vmatpush.msra.mxu0 0.0
      %4212 = vmatpush.msra.mxu0 0.0
      %4213 = vmatpush.msra.mxu0 0.0
      %4214 = vmatpush.msra.mxu0 0.0
      %4215 = vmatpush.msra.mxu0 0.0
      %4216 = vmatpush.msra.mxu0 0.0
      %4217 = vmatpush.msra.mxu0 0.0
      %4218 = vmatpush.msra.mxu0 0.0
      %4219 = vmatpush.msra.mxu0 0.0
      %v4220 = vand.u32 %v3936, 4294901760
      %v4221 = vsub.f32 %v3936, %v4220
      %v4222 = vand.u32 %v4221, 4294901760
      %4223 = vmatpush.msra.mxu0 %v4222
      %v4224 = vand.u32 %v3924, 4294901760
      %v4225 = vsub.f32 %v3924, %v4224
      %v4226 = vand.u32 %v4225, 4294901760
      %4227 = vmatpush.msra.mxu0 %v4226
      %v4228 = vand.u32 %v3930, 4294901760
      %4229 = vmatmul.f32.gmra.mxu0 %v4228
      %v4230 = vpop.f32.mrf.mxu0
      %v4231 = vadd.f32 %v4204, %v4230
      %4232 = vdwg.mxu0
      %4233 = vmatpush.msra.mxu0 0.0
      %4234 = vmatpush.msra.mxu0 0.0
      %4235 = vmatpush.msra.mxu0 0.0
      %4236 = vmatpush.msra.mxu0 0.0
      %4237 = vmatpush.msra.mxu0 0.0
      %4238 = vmatpush.msra.mxu0 0.0
      %4239 = vmatpush.msra.mxu0 0.0
      %4240 = vmatpush.msra.mxu0 0.0
      %4241 = vmatpush.msra.mxu0 0.0
      %4242 = vmatpush.msra.mxu0 0.0
      %4243 = vmatpush.msra.mxu0 0.0
      %4244 = vmatpush.msra.mxu0 0.0
      %4245 = vmatpush.msra.mxu0 0.0
      %4246 = vmatpush.msra.mxu0 0.0
      %v4247 = vand.u32 %v3936, 4294901760
      %4248 = vmatpush.msra.mxu0 %v4247
      %v4249 = vand.u32 %v3924, 4294901760
      %4250 = vmatpush.msra.mxu0 %v4249
      %v4251 = vand.u32 %v3930, 4294901760
      %4252 = vmatmul.f32.gmra.mxu0 %v4251
      %v4253 = vpop.f32.mrf.mxu0
      %v4254 = vadd.f32 %v4231, %v4253
      %4255 = vdwg.mxu0
      %v4256 = vadd.f32 %v3742, %v4095
      %v4257 = vadd.f32 %v3901, %v4254
      %4258 = vrot.lane.b32.xlu0 %v3192, 1
      %v4259 = vpop.permute.xlu0 %4258
      %4260 = vrot.lane.b32.xlu0 %v3193, 1
      %v4261 = vpop.permute.xlu0 %4260
      %4262 = vrot.lane.b32.xlu0 %v3194, 1
      %v4263 = vpop.permute.xlu0 %4262
      %4264 = vrot.lane.b32.xlu0 %v3195, 1
      %v4265 = vpop.permute.xlu0 %4264
      %4266 = vrot.lane.b32.xlu0 %v3196, 1
      %v4267 = vpop.permute.xlu0 %4266
      %4268 = vrot.lane.b32.xlu0 %v3197, 1
      %v4269 = vpop.permute.xlu0 %4268
      %v4270 = vsel %vm1277, %v4259, %v4261
      %v4271 = vsel %vm1277, %v4261, %v4263
      %v4272 = vsel %vm1277, %v4265, %v4267
      %v4273 = vsel %vm1277, %v4267, %v4269
      %v4278 = vsel %vm315, %v4270, 0.0
      %v4279 = vsel %vm316, %v4271, 0.0
      %v4280 = vsel %vm315, %v4272, 0.0
      %v4281 = vsel %vm316, %v4273, 0.0
      %s4282 = scalar_lea.vmem %s4, 12
      %v4283 = vld [vmem:[%s4282] sm:$0xf]
      %v4285 = vsel %vm3249, %v4283, 0
      %v4288 = vsel %vm3253, %v4280, 0
      %v4291 = vsel %vm3253, %v4281, 0
      %4293 = vmatpush.msra.mxu0 0.0
      %4294 = vmatpush.msra.mxu0 0.0
      %4295 = vmatpush.msra.mxu0 0.0
      %4296 = vmatpush.msra.mxu0 0.0
      %4297 = vmatpush.msra.mxu0 0.0
      %4298 = vmatpush.msra.mxu0 0.0
      %4299 = vmatpush.msra.mxu0 0.0
      %4300 = vmatpush.msra.mxu0 0.0
      %4301 = vmatpush.msra.mxu0 0.0
      %4302 = vmatpush.msra.mxu0 0.0
      %4303 = vmatpush.msra.mxu0 0.0
      %4304 = vmatpush.msra.mxu0 0.0
      %4305 = vmatpush.msra.mxu0 0.0
      %4306 = vmatpush.msra.mxu0 0.0
      %v4307 = vand.u32 %v4288, 4294901760
      %4308 = vmatpush.msra.mxu0 %v4307
      %v4309 = vand.u32 %v4278, 4294901760
      %4310 = vmatpush.msra.mxu0 %v4309
      %v4311 = vand.u32 %v4285, 4294901760
      %v4312 = vsub.f32 %v4285, %v4311
      %v4313 = vand.u32 %v4312, 4294901760
      %v4314 = vsub.f32 %v4312, %v4313
      %v4315 = vand.u32 %v4314, 4294901760
      %4316 = vmatmul.f32.gmra.mxu0 %v4315
      %v4317 = vpop.f32.mrf.mxu0
      %v4318 = vadd.f32 0.0, %v4317
      %4319 = vdwg.mxu0
      %4320 = vmatpush.msra.mxu0 0.0
      %4321 = vmatpush.msra.mxu0 0.0
      %4322 = vmatpush.msra.mxu0 0.0
      %4323 = vmatpush.msra.mxu0 0.0
      %4324 = vmatpush.msra.mxu0 0.0
      %4325 = vmatpush.msra.mxu0 0.0
      %4326 = vmatpush.msra.mxu0 0.0
      %4327 = vmatpush.msra.mxu0 0.0
      %4328 = vmatpush.msra.mxu0 0.0
      %4329 = vmatpush.msra.mxu0 0.0
      %4330 = vmatpush.msra.mxu0 0.0
      %4331 = vmatpush.msra.mxu0 0.0
      %4332 = vmatpush.msra.mxu0 0.0
      %4333 = vmatpush.msra.mxu0 0.0
      %v4334 = vand.u32 %v4288, 4294901760
      %v4335 = vsub.f32 %v4288, %v4334
      %v4336 = vand.u32 %v4335, 4294901760
      %v4337 = vsub.f32 %v4335, %v4336
      %v4338 = vand.u32 %v4337, 4294901760
      %4339 = vmatpush.msra.mxu0 %v4338
      %v4340 = vand.u32 %v4278, 4294901760
      %v4341 = vsub.f32 %v4278, %v4340
      %v4342 = vand.u32 %v4341, 4294901760
      %v4343 = vsub.f32 %v4341, %v4342
      %v4344 = vand.u32 %v4343, 4294901760
      %4345 = vmatpush.msra.mxu0 %v4344
      %v4346 = vand.u32 %v4285, 4294901760
      %4347 = vmatmul.f32.gmra.mxu0 %v4346
      %v4348 = vpop.f32.mrf.mxu0
      %v4349 = vadd.f32 %v4318, %v4348
      %4350 = vdwg.mxu0
      %4351 = vmatpush.msra.mxu0 0.0
      %4352 = vmatpush.msra.mxu0 0.0
      %4353 = vmatpush.msra.mxu0 0.0
      %4354 = vmatpush.msra.mxu0 0.0
      %4355 = vmatpush.msra.mxu0 0.0
      %4356 = vmatpush.msra.mxu0 0.0
      %4357 = vmatpush.msra.mxu0 0.0
      %4358 = vmatpush.msra.mxu0 0.0
      %4359 = vmatpush.msra.mxu0 0.0
      %4360 = vmatpush.msra.mxu0 0.0
      %4361 = vmatpush.msra.mxu0 0.0
      %4362 = vmatpush.msra.mxu0 0.0
      %4363 = vmatpush.msra.mxu0 0.0
      %4364 = vmatpush.msra.mxu0 0.0
      %v4365 = vand.u32 %v4288, 4294901760
      %v4366 = vsub.f32 %v4288, %v4365
      %4367 = vmatpush.msra.mxu0 %v4366
      %v4368 = vand.u32 %v4278, 4294901760
      %v4369 = vsub.f32 %v4278, %v4368
      %4370 = vmatpush.msra.mxu0 %v4369
      %v4371 = vand.u32 %v4285, 4294901760
      %v4372 = vsub.f32 %v4285, %v4371
      %4373 = vmatmul.f32.gmra.mxu0 %v4372
      %v4374 = vpop.f32.mrf.mxu0
      %v4375 = vadd.f32 %v4349, %v4374
      %4376 = vdwg.mxu0
      %4377 = vmatpush.msra.mxu0 0.0
      %4378 = vmatpush.msra.mxu0 0.0
      %4379 = vmatpush.msra.mxu0 0.0
      %4380 = vmatpush.msra.mxu0 0.0
      %4381 = vmatpush.msra.mxu0 0.0
      %4382 = vmatpush.msra.mxu0 0.0
      %4383 = vmatpush.msra.mxu0 0.0
      %4384 = vmatpush.msra.mxu0 0.0
      %4385 = vmatpush.msra.mxu0 0.0
      %4386 = vmatpush.msra.mxu0 0.0
      %4387 = vmatpush.msra.mxu0 0.0
      %4388 = vmatpush.msra.mxu0 0.0
      %4389 = vmatpush.msra.mxu0 0.0
      %4390 = vmatpush.msra.mxu0 0.0
      %v4391 = vand.u32 %v4288, 4294901760
      %4392 = vmatpush.msra.mxu0 %v4391
      %v4393 = vand.u32 %v4278, 4294901760
      %4394 = vmatpush.msra.mxu0 %v4393
      %v4395 = vand.u32 %v4285, 4294901760
      %v4396 = vsub.f32 %v4285, %v4395
      %v4397 = vand.u32 %v4396, 4294901760
      %4398 = vmatmul.f32.gmra.mxu0 %v4397
      %v4399 = vpop.f32.mrf.mxu0
      %v4400 = vadd.f32 %v4375, %v4399
      %4401 = vdwg.mxu0
      %4402 = vmatpush.msra.mxu0 0.0
      %4403 = vmatpush.msra.mxu0 0.0
      %4404 = vmatpush.msra.mxu0 0.0
      %4405 = vmatpush.msra.mxu0 0.0
      %4406 = vmatpush.msra.mxu0 0.0
      %4407 = vmatpush.msra.mxu0 0.0
      %4408 = vmatpush.msra.mxu0 0.0
      %4409 = vmatpush.msra.mxu0 0.0
      %4410 = vmatpush.msra.mxu0 0.0
      %4411 = vmatpush.msra.mxu0 0.0
      %4412 = vmatpush.msra.mxu0 0.0
      %4413 = vmatpush.msra.mxu0 0.0
      %4414 = vmatpush.msra.mxu0 0.0
      %4415 = vmatpush.msra.mxu0 0.0
      %v4416 = vand.u32 %v4288, 4294901760
      %v4417 = vsub.f32 %v4288, %v4416
      %v4418 = vand.u32 %v4417, 4294901760
      %4419 = vmatpush.msra.mxu0 %v4418
      %v4420 = vand.u32 %v4278, 4294901760
      %v4421 = vsub.f32 %v4278, %v4420
      %v4422 = vand.u32 %v4421, 4294901760
      %4423 = vmatpush.msra.mxu0 %v4422
      %v4424 = vand.u32 %v4285, 4294901760
      %4425 = vmatmul.f32.gmra.mxu0 %v4424
      %v4426 = vpop.f32.mrf.mxu0
      %v4427 = vadd.f32 %v4400, %v4426
      %4428 = vdwg.mxu0
      %4429 = vmatpush.msra.mxu0 0.0
      %4430 = vmatpush.msra.mxu0 0.0
      %4431 = vmatpush.msra.mxu0 0.0
      %4432 = vmatpush.msra.mxu0 0.0
      %4433 = vmatpush.msra.mxu0 0.0
      %4434 = vmatpush.msra.mxu0 0.0
      %4435 = vmatpush.msra.mxu0 0.0
      %4436 = vmatpush.msra.mxu0 0.0
      %4437 = vmatpush.msra.mxu0 0.0
      %4438 = vmatpush.msra.mxu0 0.0
      %4439 = vmatpush.msra.mxu0 0.0
      %4440 = vmatpush.msra.mxu0 0.0
      %4441 = vmatpush.msra.mxu0 0.0
      %4442 = vmatpush.msra.mxu0 0.0
      %v4443 = vand.u32 %v4288, 4294901760
      %4444 = vmatpush.msra.mxu0 %v4443
      %v4445 = vand.u32 %v4278, 4294901760
      %4446 = vmatpush.msra.mxu0 %v4445
      %v4447 = vand.u32 %v4285, 4294901760
      %4448 = vmatmul.f32.gmra.mxu0 %v4447
      %v4449 = vpop.f32.mrf.mxu0
      %v4450 = vadd.f32 %v4427, %v4449
      %4451 = vdwg.mxu0
      %4452 = vmatpush.msra.mxu0 0.0
      %4453 = vmatpush.msra.mxu0 0.0
      %4454 = vmatpush.msra.mxu0 0.0
      %4455 = vmatpush.msra.mxu0 0.0
      %4456 = vmatpush.msra.mxu0 0.0
      %4457 = vmatpush.msra.mxu0 0.0
      %4458 = vmatpush.msra.mxu0 0.0
      %4459 = vmatpush.msra.mxu0 0.0
      %4460 = vmatpush.msra.mxu0 0.0
      %4461 = vmatpush.msra.mxu0 0.0
      %4462 = vmatpush.msra.mxu0 0.0
      %4463 = vmatpush.msra.mxu0 0.0
      %4464 = vmatpush.msra.mxu0 0.0
      %4465 = vmatpush.msra.mxu0 0.0
      %v4466 = vand.u32 %v4291, 4294901760
      %4467 = vmatpush.msra.mxu0 %v4466
      %v4468 = vand.u32 %v4279, 4294901760
      %4469 = vmatpush.msra.mxu0 %v4468
      %v4470 = vand.u32 %v4285, 4294901760
      %v4471 = vsub.f32 %v4285, %v4470
      %v4472 = vand.u32 %v4471, 4294901760
      %v4473 = vsub.f32 %v4471, %v4472
      %v4474 = vand.u32 %v4473, 4294901760
      %4475 = vmatmul.f32.gmra.mxu0 %v4474
      %v4476 = vpop.f32.mrf.mxu0
      %v4477 = vadd.f32 0.0, %v4476
      %4478 = vdwg.mxu0
      %4479 = vmatpush.msra.mxu0 0.0
      %4480 = vmatpush.msra.mxu0 0.0
      %4481 = vmatpush.msra.mxu0 0.0
      %4482 = vmatpush.msra.mxu0 0.0
      %4483 = vmatpush.msra.mxu0 0.0
      %4484 = vmatpush.msra.mxu0 0.0
      %4485 = vmatpush.msra.mxu0 0.0
      %4486 = vmatpush.msra.mxu0 0.0
      %4487 = vmatpush.msra.mxu0 0.0
      %4488 = vmatpush.msra.mxu0 0.0
      %4489 = vmatpush.msra.mxu0 0.0
      %4490 = vmatpush.msra.mxu0 0.0
      %4491 = vmatpush.msra.mxu0 0.0
      %4492 = vmatpush.msra.mxu0 0.0
      %v4493 = vand.u32 %v4291, 4294901760
      %v4494 = vsub.f32 %v4291, %v4493
      %v4495 = vand.u32 %v4494, 4294901760
      %v4496 = vsub.f32 %v4494, %v4495
      %v4497 = vand.u32 %v4496, 4294901760
      %4498 = vmatpush.msra.mxu0 %v4497
      %v4499 = vand.u32 %v4279, 4294901760
      %v4500 = vsub.f32 %v4279, %v4499
      %v4501 = vand.u32 %v4500, 4294901760
      %v4502 = vsub.f32 %v4500, %v4501
      %v4503 = vand.u32 %v4502, 4294901760
      %4504 = vmatpush.msra.mxu0 %v4503
      %v4505 = vand.u32 %v4285, 4294901760
      %4506 = vmatmul.f32.gmra.mxu0 %v4505
      %v4507 = vpop.f32.mrf.mxu0
      %v4508 = vadd.f32 %v4477, %v4507
      %4509 = vdwg.mxu0
      %4510 = vmatpush.msra.mxu0 0.0
      %4511 = vmatpush.msra.mxu0 0.0
      %4512 = vmatpush.msra.mxu0 0.0
      %4513 = vmatpush.msra.mxu0 0.0
      %4514 = vmatpush.msra.mxu0 0.0
      %4515 = vmatpush.msra.mxu0 0.0
      %4516 = vmatpush.msra.mxu0 0.0
      %4517 = vmatpush.msra.mxu0 0.0
      %4518 = vmatpush.msra.mxu0 0.0
      %4519 = vmatpush.msra.mxu0 0.0
      %4520 = vmatpush.msra.mxu0 0.0
      %4521 = vmatpush.msra.mxu0 0.0
      %4522 = vmatpush.msra.mxu0 0.0
      %4523 = vmatpush.msra.mxu0 0.0
      %v4524 = vand.u32 %v4291, 4294901760
      %v4525 = vsub.f32 %v4291, %v4524
      %4526 = vmatpush.msra.mxu0 %v4525
      %v4527 = vand.u32 %v4279, 4294901760
      %v4528 = vsub.f32 %v4279, %v4527
      %4529 = vmatpush.msra.mxu0 %v4528
      %v4530 = vand.u32 %v4285, 4294901760
      %v4531 = vsub.f32 %v4285, %v4530
      %4532 = vmatmul.f32.gmra.mxu0 %v4531
      %v4533 = vpop.f32.mrf.mxu0
      %v4534 = vadd.f32 %v4508, %v4533
      %4535 = vdwg.mxu0
      %4536 = vmatpush.msra.mxu0 0.0
      %4537 = vmatpush.msra.mxu0 0.0
      %4538 = vmatpush.msra.mxu0 0.0
      %4539 = vmatpush.msra.mxu0 0.0
      %4540 = vmatpush.msra.mxu0 0.0
      %4541 = vmatpush.msra.mxu0 0.0
      %4542 = vmatpush.msra.mxu0 0.0
      %4543 = vmatpush.msra.mxu0 0.0
      %4544 = vmatpush.msra.mxu0 0.0
      %4545 = vmatpush.msra.mxu0 0.0
      %4546 = vmatpush.msra.mxu0 0.0
      %4547 = vmatpush.msra.mxu0 0.0
      %4548 = vmatpush.msra.mxu0 0.0
      %4549 = vmatpush.msra.mxu0 0.0
      %v4550 = vand.u32 %v4291, 4294901760
      %4551 = vmatpush.msra.mxu0 %v4550
      %v4552 = vand.u32 %v4279, 4294901760
      %4553 = vmatpush.msra.mxu0 %v4552
      %v4554 = vand.u32 %v4285, 4294901760
      %v4555 = vsub.f32 %v4285, %v4554
      %v4556 = vand.u32 %v4555, 4294901760
      %4557 = vmatmul.f32.gmra.mxu0 %v4556
      %v4558 = vpop.f32.mrf.mxu0
      %v4559 = vadd.f32 %v4534, %v4558
      %4560 = vdwg.mxu0
      %4561 = vmatpush.msra.mxu0 0.0
      %4562 = vmatpush.msra.mxu0 0.0
      %4563 = vmatpush.msra.mxu0 0.0
      %4564 = vmatpush.msra.mxu0 0.0
      %4565 = vmatpush.msra.mxu0 0.0
      %4566 = vmatpush.msra.mxu0 0.0
      %4567 = vmatpush.msra.mxu0 0.0
      %4568 = vmatpush.msra.mxu0 0.0
      %4569 = vmatpush.msra.mxu0 0.0
      %4570 = vmatpush.msra.mxu0 0.0
      %4571 = vmatpush.msra.mxu0 0.0
      %4572 = vmatpush.msra.mxu0 0.0
      %4573 = vmatpush.msra.mxu0 0.0
      %4574 = vmatpush.msra.mxu0 0.0
      %v4575 = vand.u32 %v4291, 4294901760
      %v4576 = vsub.f32 %v4291, %v4575
      %v4577 = vand.u32 %v4576, 4294901760
      %4578 = vmatpush.msra.mxu0 %v4577
      %v4579 = vand.u32 %v4279, 4294901760
      %v4580 = vsub.f32 %v4279, %v4579
      %v4581 = vand.u32 %v4580, 4294901760
      %4582 = vmatpush.msra.mxu0 %v4581
      %v4583 = vand.u32 %v4285, 4294901760
      %4584 = vmatmul.f32.gmra.mxu0 %v4583
      %v4585 = vpop.f32.mrf.mxu0
      %v4586 = vadd.f32 %v4559, %v4585
      %4587 = vdwg.mxu0
      %4588 = vmatpush.msra.mxu0 0.0
      %4589 = vmatpush.msra.mxu0 0.0
      %4590 = vmatpush.msra.mxu0 0.0
      %4591 = vmatpush.msra.mxu0 0.0
      %4592 = vmatpush.msra.mxu0 0.0
      %4593 = vmatpush.msra.mxu0 0.0
      %4594 = vmatpush.msra.mxu0 0.0
      %4595 = vmatpush.msra.mxu0 0.0
      %4596 = vmatpush.msra.mxu0 0.0
      %4597 = vmatpush.msra.mxu0 0.0
      %4598 = vmatpush.msra.mxu0 0.0
      %4599 = vmatpush.msra.mxu0 0.0
      %4600 = vmatpush.msra.mxu0 0.0
      %4601 = vmatpush.msra.mxu0 0.0
      %v4602 = vand.u32 %v4291, 4294901760
      %4603 = vmatpush.msra.mxu0 %v4602
      %v4604 = vand.u32 %v4279, 4294901760
      %4605 = vmatpush.msra.mxu0 %v4604
      %v4606 = vand.u32 %v4285, 4294901760
      %4607 = vmatmul.f32.gmra.mxu0 %v4606
      %v4608 = vpop.f32.mrf.mxu0
      %v4609 = vadd.f32 %v4586, %v4608
      %4610 = vdwg.mxu0
      %v4611 = vadd.f32 %v4256, %v4450
      %v4612 = vadd.f32 %v4257, %v4609
      %s4613 = scalar_lea.vmem %s4, 16
      %v4614 = vld [vmem:[%s4613] sm:$0xf]
      %v4616 = vsel %vm3249, %v4614, 0
      %v4618 = vsel %vm3253, %v3196, 0
      %v4620 = vsel %vm3253, %v3197, 0
      %4622 = vmatpush.msra.mxu0 0.0
      %4623 = vmatpush.msra.mxu0 0.0
      %4624 = vmatpush.msra.mxu0 0.0
      %4625 = vmatpush.msra.mxu0 0.0
      %4626 = vmatpush.msra.mxu0 0.0
      %4627 = vmatpush.msra.mxu0 0.0
      %4628 = vmatpush.msra.mxu0 0.0
      %4629 = vmatpush.msra.mxu0 0.0
      %4630 = vmatpush.msra.mxu0 0.0
      %4631 = vmatpush.msra.mxu0 0.0
      %4632 = vmatpush.msra.mxu0 0.0
      %4633 = vmatpush.msra.mxu0 0.0
      %4634 = vmatpush.msra.mxu0 0.0
      %4635 = vmatpush.msra.mxu0 0.0
      %v4636 = vand.u32 %v4618, 4294901760
      %4637 = vmatpush.msra.mxu0 %v4636
      %v4638 = vand.u32 %v3193, 4294901760
      %4639 = vmatpush.msra.mxu0 %v4638
      %v4640 = vand.u32 %v4616, 4294901760
      %v4641 = vsub.f32 %v4616, %v4640
      %v4642 = vand.u32 %v4641, 4294901760
      %v4643 = vsub.f32 %v4641, %v4642
      %v4644 = vand.u32 %v4643, 4294901760
      %4645 = vmatmul.f32.gmra.mxu0 %v4644
      %v4646 = vpop.f32.mrf.mxu0
      %v4647 = vadd.f32 0.0, %v4646
      %4648 = vdwg.mxu0
      %4649 = vmatpush.msra.mxu0 0.0
      %4650 = vmatpush.msra.mxu0 0.0
      %4651 = vmatpush.msra.mxu0 0.0
      %4652 = vmatpush.msra.mxu0 0.0
      %4653 = vmatpush.msra.mxu0 0.0
      %4654 = vmatpush.msra.mxu0 0.0
      %4655 = vmatpush.msra.mxu0 0.0
      %4656 = vmatpush.msra.mxu0 0.0
      %4657 = vmatpush.msra.mxu0 0.0
      %4658 = vmatpush.msra.mxu0 0.0
      %4659 = vmatpush.msra.mxu0 0.0
      %4660 = vmatpush.msra.mxu0 0.0
      %4661 = vmatpush.msra.mxu0 0.0
      %4662 = vmatpush.msra.mxu0 0.0
      %v4663 = vand.u32 %v4618, 4294901760
      %v4664 = vsub.f32 %v4618, %v4663
      %v4665 = vand.u32 %v4664, 4294901760
      %v4666 = vsub.f32 %v4664, %v4665
      %v4667 = vand.u32 %v4666, 4294901760
      %4668 = vmatpush.msra.mxu0 %v4667
      %v4669 = vand.u32 %v3193, 4294901760
      %v4670 = vsub.f32 %v3193, %v4669
      %v4671 = vand.u32 %v4670, 4294901760
      %v4672 = vsub.f32 %v4670, %v4671
      %v4673 = vand.u32 %v4672, 4294901760
      %4674 = vmatpush.msra.mxu0 %v4673
      %v4675 = vand.u32 %v4616, 4294901760
      %4676 = vmatmul.f32.gmra.mxu0 %v4675
      %v4677 = vpop.f32.mrf.mxu0
      %v4678 = vadd.f32 %v4647, %v4677
      %4679 = vdwg.mxu0
      %4680 = vmatpush.msra.mxu0 0.0
      %4681 = vmatpush.msra.mxu0 0.0
      %4682 = vmatpush.msra.mxu0 0.0
      %4683 = vmatpush.msra.mxu0 0.0
      %4684 = vmatpush.msra.mxu0 0.0
      %4685 = vmatpush.msra.mxu0 0.0
      %4686 = vmatpush.msra.mxu0 0.0
      %4687 = vmatpush.msra.mxu0 0.0
      %4688 = vmatpush.msra.mxu0 0.0
      %4689 = vmatpush.msra.mxu0 0.0
      %4690 = vmatpush.msra.mxu0 0.0
      %4691 = vmatpush.msra.mxu0 0.0
      %4692 = vmatpush.msra.mxu0 0.0
      %4693 = vmatpush.msra.mxu0 0.0
      %v4694 = vand.u32 %v4618, 4294901760
      %v4695 = vsub.f32 %v4618, %v4694
      %4696 = vmatpush.msra.mxu0 %v4695
      %v4697 = vand.u32 %v3193, 4294901760
      %v4698 = vsub.f32 %v3193, %v4697
      %4699 = vmatpush.msra.mxu0 %v4698
      %v4700 = vand.u32 %v4616, 4294901760
      %v4701 = vsub.f32 %v4616, %v4700
      %4702 = vmatmul.f32.gmra.mxu0 %v4701
      %v4703 = vpop.f32.mrf.mxu0
      %v4704 = vadd.f32 %v4678, %v4703
      %4705 = vdwg.mxu0
      %4706 = vmatpush.msra.mxu0 0.0
      %4707 = vmatpush.msra.mxu0 0.0
      %4708 = vmatpush.msra.mxu0 0.0
      %4709 = vmatpush.msra.mxu0 0.0
      %4710 = vmatpush.msra.mxu0 0.0
      %4711 = vmatpush.msra.mxu0 0.0
      %4712 = vmatpush.msra.mxu0 0.0
      %4713 = vmatpush.msra.mxu0 0.0
      %4714 = vmatpush.msra.mxu0 0.0
      %4715 = vmatpush.msra.mxu0 0.0
      %4716 = vmatpush.msra.mxu0 0.0
      %4717 = vmatpush.msra.mxu0 0.0
      %4718 = vmatpush.msra.mxu0 0.0
      %4719 = vmatpush.msra.mxu0 0.0
      %v4720 = vand.u32 %v4618, 4294901760
      %4721 = vmatpush.msra.mxu0 %v4720
      %v4722 = vand.u32 %v3193, 4294901760
      %4723 = vmatpush.msra.mxu0 %v4722
      %v4724 = vand.u32 %v4616, 4294901760
      %v4725 = vsub.f32 %v4616, %v4724
      %v4726 = vand.u32 %v4725, 4294901760
      %4727 = vmatmul.f32.gmra.mxu0 %v4726
      %v4728 = vpop.f32.mrf.mxu0
      %v4729 = vadd.f32 %v4704, %v4728
      %4730 = vdwg.mxu0
      %4731 = vmatpush.msra.mxu0 0.0
      %4732 = vmatpush.msra.mxu0 0.0
      %4733 = vmatpush.msra.mxu0 0.0
      %4734 = vmatpush.msra.mxu0 0.0
      %4735 = vmatpush.msra.mxu0 0.0
      %4736 = vmatpush.msra.mxu0 0.0
      %4737 = vmatpush.msra.mxu0 0.0
      %4738 = vmatpush.msra.mxu0 0.0
      %4739 = vmatpush.msra.mxu0 0.0
      %4740 = vmatpush.msra.mxu0 0.0
      %4741 = vmatpush.msra.mxu0 0.0
      %4742 = vmatpush.msra.mxu0 0.0
      %4743 = vmatpush.msra.mxu0 0.0
      %4744 = vmatpush.msra.mxu0 0.0
      %v4745 = vand.u32 %v4618, 4294901760
      %v4746 = vsub.f32 %v4618, %v4745
      %v4747 = vand.u32 %v4746, 4294901760
      %4748 = vmatpush.msra.mxu0 %v4747
      %v4749 = vand.u32 %v3193, 4294901760
      %v4750 = vsub.f32 %v3193, %v4749
      %v4751 = vand.u32 %v4750, 4294901760
      %4752 = vmatpush.msra.mxu0 %v4751
      %v4753 = vand.u32 %v4616, 4294901760
      %4754 = vmatmul.f32.gmra.mxu0 %v4753
      %v4755 = vpop.f32.mrf.mxu0
      %v4756 = vadd.f32 %v4729, %v4755
      %4757 = vdwg.mxu0
      %4758 = vmatpush.msra.mxu0 0.0
      %4759 = vmatpush.msra.mxu0 0.0
      %4760 = vmatpush.msra.mxu0 0.0
      %4761 = vmatpush.msra.mxu0 0.0
      %4762 = vmatpush.msra.mxu0 0.0
      %4763 = vmatpush.msra.mxu0 0.0
      %4764 = vmatpush.msra.mxu0 0.0
      %4765 = vmatpush.msra.mxu0 0.0
      %4766 = vmatpush.msra.mxu0 0.0
      %4767 = vmatpush.msra.mxu0 0.0
      %4768 = vmatpush.msra.mxu0 0.0
      %4769 = vmatpush.msra.mxu0 0.0
      %4770 = vmatpush.msra.mxu0 0.0
      %4771 = vmatpush.msra.mxu0 0.0
      %v4772 = vand.u32 %v4618, 4294901760
      %4773 = vmatpush.msra.mxu0 %v4772
      %v4774 = vand.u32 %v3193, 4294901760
      %4775 = vmatpush.msra.mxu0 %v4774
      %v4776 = vand.u32 %v4616, 4294901760
      %4777 = vmatmul.f32.gmra.mxu0 %v4776
      %v4778 = vpop.f32.mrf.mxu0
      %v4779 = vadd.f32 %v4756, %v4778
      %4780 = vdwg.mxu0
      %4781 = vmatpush.msra.mxu0 0.0
      %4782 = vmatpush.msra.mxu0 0.0
      %4783 = vmatpush.msra.mxu0 0.0
      %4784 = vmatpush.msra.mxu0 0.0
      %4785 = vmatpush.msra.mxu0 0.0
      %4786 = vmatpush.msra.mxu0 0.0
      %4787 = vmatpush.msra.mxu0 0.0
      %4788 = vmatpush.msra.mxu0 0.0
      %4789 = vmatpush.msra.mxu0 0.0
      %4790 = vmatpush.msra.mxu0 0.0
      %4791 = vmatpush.msra.mxu0 0.0
      %4792 = vmatpush.msra.mxu0 0.0
      %4793 = vmatpush.msra.mxu0 0.0
      %4794 = vmatpush.msra.mxu0 0.0
      %v4795 = vand.u32 %v4620, 4294901760
      %4796 = vmatpush.msra.mxu0 %v4795
      %v4797 = vand.u32 %v3194, 4294901760
      %4798 = vmatpush.msra.mxu0 %v4797
      %v4799 = vand.u32 %v4616, 4294901760
      %v4800 = vsub.f32 %v4616, %v4799
      %v4801 = vand.u32 %v4800, 4294901760
      %v4802 = vsub.f32 %v4800, %v4801
      %v4803 = vand.u32 %v4802, 4294901760
      %4804 = vmatmul.f32.gmra.mxu0 %v4803
      %v4805 = vpop.f32.mrf.mxu0
      %v4806 = vadd.f32 0.0, %v4805
      %4807 = vdwg.mxu0
      %4808 = vmatpush.msra.mxu0 0.0
      %4809 = vmatpush.msra.mxu0 0.0
      %4810 = vmatpush.msra.mxu0 0.0
      %4811 = vmatpush.msra.mxu0 0.0
      %4812 = vmatpush.msra.mxu0 0.0
      %4813 = vmatpush.msra.mxu0 0.0
      %4814 = vmatpush.msra.mxu0 0.0
      %4815 = vmatpush.msra.mxu0 0.0
      %4816 = vmatpush.msra.mxu0 0.0
      %4817 = vmatpush.msra.mxu0 0.0
      %4818 = vmatpush.msra.mxu0 0.0
      %4819 = vmatpush.msra.mxu0 0.0
      %4820 = vmatpush.msra.mxu0 0.0
      %4821 = vmatpush.msra.mxu0 0.0
      %v4822 = vand.u32 %v4620, 4294901760
      %v4823 = vsub.f32 %v4620, %v4822
      %v4824 = vand.u32 %v4823, 4294901760
      %v4825 = vsub.f32 %v4823, %v4824
      %v4826 = vand.u32 %v4825, 4294901760
      %4827 = vmatpush.msra.mxu0 %v4826
      %v4828 = vand.u32 %v3194, 4294901760
      %v4829 = vsub.f32 %v3194, %v4828
      %v4830 = vand.u32 %v4829, 4294901760
      %v4831 = vsub.f32 %v4829, %v4830
      %v4832 = vand.u32 %v4831, 4294901760
      %4833 = vmatpush.msra.mxu0 %v4832
      %v4834 = vand.u32 %v4616, 4294901760
      %4835 = vmatmul.f32.gmra.mxu0 %v4834
      %v4836 = vpop.f32.mrf.mxu0
      %v4837 = vadd.f32 %v4806, %v4836
      %4838 = vdwg.mxu0
      %4839 = vmatpush.msra.mxu0 0.0
      %4840 = vmatpush.msra.mxu0 0.0
      %4841 = vmatpush.msra.mxu0 0.0
      %4842 = vmatpush.msra.mxu0 0.0
      %4843 = vmatpush.msra.mxu0 0.0
      %4844 = vmatpush.msra.mxu0 0.0
      %4845 = vmatpush.msra.mxu0 0.0
      %4846 = vmatpush.msra.mxu0 0.0
      %4847 = vmatpush.msra.mxu0 0.0
      %4848 = vmatpush.msra.mxu0 0.0
      %4849 = vmatpush.msra.mxu0 0.0
      %4850 = vmatpush.msra.mxu0 0.0
      %4851 = vmatpush.msra.mxu0 0.0
      %4852 = vmatpush.msra.mxu0 0.0
      %v4853 = vand.u32 %v4620, 4294901760
      %v4854 = vsub.f32 %v4620, %v4853
      %4855 = vmatpush.msra.mxu0 %v4854
      %v4856 = vand.u32 %v3194, 4294901760
      %v4857 = vsub.f32 %v3194, %v4856
      %4858 = vmatpush.msra.mxu0 %v4857
      %v4859 = vand.u32 %v4616, 4294901760
      %v4860 = vsub.f32 %v4616, %v4859
      %4861 = vmatmul.f32.gmra.mxu0 %v4860
      %v4862 = vpop.f32.mrf.mxu0
      %v4863 = vadd.f32 %v4837, %v4862
      %4864 = vdwg.mxu0
      %4865 = vmatpush.msra.mxu0 0.0
      %4866 = vmatpush.msra.mxu0 0.0
      %4867 = vmatpush.msra.mxu0 0.0
      %4868 = vmatpush.msra.mxu0 0.0
      %4869 = vmatpush.msra.mxu0 0.0
      %4870 = vmatpush.msra.mxu0 0.0
      %4871 = vmatpush.msra.mxu0 0.0
      %4872 = vmatpush.msra.mxu0 0.0
      %4873 = vmatpush.msra.mxu0 0.0
      %4874 = vmatpush.msra.mxu0 0.0
      %4875 = vmatpush.msra.mxu0 0.0
      %4876 = vmatpush.msra.mxu0 0.0
      %4877 = vmatpush.msra.mxu0 0.0
      %4878 = vmatpush.msra.mxu0 0.0
      %v4879 = vand.u32 %v4620, 4294901760
      %4880 = vmatpush.msra.mxu0 %v4879
      %v4881 = vand.u32 %v3194, 4294901760
      %4882 = vmatpush.msra.mxu0 %v4881
      %v4883 = vand.u32 %v4616, 4294901760
      %v4884 = vsub.f32 %v4616, %v4883
      %v4885 = vand.u32 %v4884, 4294901760
      %4886 = vmatmul.f32.gmra.mxu0 %v4885
      %v4887 = vpop.f32.mrf.mxu0
      %v4888 = vadd.f32 %v4863, %v4887
      %4889 = vdwg.mxu0
      %4890 = vmatpush.msra.mxu0 0.0
      %4891 = vmatpush.msra.mxu0 0.0
      %4892 = vmatpush.msra.mxu0 0.0
      %4893 = vmatpush.msra.mxu0 0.0
      %4894 = vmatpush.msra.mxu0 0.0
      %4895 = vmatpush.msra.mxu0 0.0
      %4896 = vmatpush.msra.mxu0 0.0
      %4897 = vmatpush.msra.mxu0 0.0
      %4898 = vmatpush.msra.mxu0 0.0
      %4899 = vmatpush.msra.mxu0 0.0
      %4900 = vmatpush.msra.mxu0 0.0
      %4901 = vmatpush.msra.mxu0 0.0
      %4902 = vmatpush.msra.mxu0 0.0
      %4903 = vmatpush.msra.mxu0 0.0
      %v4904 = vand.u32 %v4620, 4294901760
      %v4905 = vsub.f32 %v4620, %v4904
      %v4906 = vand.u32 %v4905, 4294901760
      %4907 = vmatpush.msra.mxu0 %v4906
      %v4908 = vand.u32 %v3194, 4294901760
      %v4909 = vsub.f32 %v3194, %v4908
      %v4910 = vand.u32 %v4909, 4294901760
      %4911 = vmatpush.msra.mxu0 %v4910
      %v4912 = vand.u32 %v4616, 4294901760
      %4913 = vmatmul.f32.gmra.mxu0 %v4912
      %v4914 = vpop.f32.mrf.mxu0
      %v4915 = vadd.f32 %v4888, %v4914
      %4916 = vdwg.mxu0
      %4917 = vmatpush.msra.mxu0 0.0
      %4918 = vmatpush.msra.mxu0 0.0
      %4919 = vmatpush.msra.mxu0 0.0
      %4920 = vmatpush.msra.mxu0 0.0
      %4921 = vmatpush.msra.mxu0 0.0
      %4922 = vmatpush.msra.mxu0 0.0
      %4923 = vmatpush.msra.mxu0 0.0
      %4924 = vmatpush.msra.mxu0 0.0
      %4925 = vmatpush.msra.mxu0 0.0
      %4926 = vmatpush.msra.mxu0 0.0
      %4927 = vmatpush.msra.mxu0 0.0
      %4928 = vmatpush.msra.mxu0 0.0
      %4929 = vmatpush.msra.mxu0 0.0
      %4930 = vmatpush.msra.mxu0 0.0
      %v4931 = vand.u32 %v4620, 4294901760
      %4932 = vmatpush.msra.mxu0 %v4931
      %v4933 = vand.u32 %v3194, 4294901760
      %4934 = vmatpush.msra.mxu0 %v4933
      %v4935 = vand.u32 %v4616, 4294901760
      %4936 = vmatmul.f32.gmra.mxu0 %v4935
      %v4937 = vpop.f32.mrf.mxu0
      %v4938 = vadd.f32 %v4915, %v4937
      %4939 = vdwg.mxu0
      %v4940 = vadd.f32 %v4611, %v4779
      %v4941 = vadd.f32 %v4612, %v4938
      %v4942 = vld [vmem:[#allocation2 + $0x8] sm:$0xff]
      %v4943 = vld [vmem:[#allocation2 + $0x10] sm:$0xff]
      %v4944 = vld [vmem:[#allocation2 + $0x18] sm:$0xff]
      %v4945 = vld [vmem:[#allocation2 + $0x28] sm:$0x1]
      %v4946 = vld [vmem:[#allocation2 + $0x30] sm:$0x1]
      %v4947 = vld [vmem:[#allocation2 + $0x38] sm:$0x1]
      %4954 = vrot.lane.b32.xlu0 %v4942, 127
      %v4955 = vpop.permute.xlu0 %4954
      %4956 = vrot.lane.b32.xlu0 %v4943, 127
      %v4957 = vpop.permute.xlu0 %4956
      %4958 = vrot.lane.b32.xlu0 %v4944, 127
      %v4959 = vpop.permute.xlu0 %4958
      %4960 = vrot.lane.b32.xlu0 %v4945, 127
      %v4961 = vpop.permute.xlu0 %4960
      %4962 = vrot.lane.b32.xlu0 %v4946, 127
      %v4963 = vpop.permute.xlu0 %4962
      %4964 = vrot.lane.b32.xlu0 %v4947, 127
      %v4965 = vpop.permute.xlu0 %4964
      %v4966 = vsel %vm1904, %v4955, %v4957
      %v4967 = vsel %vm1904, %v4957, %v4959
      %v4968 = vsel %vm1904, %v4961, %v4963
      %v4969 = vsel %vm1904, %v4963, %v4965
      %v4974 = vsel %vm951, %v4966, 0.0
      %v4975 = vsel %vm952, %v4967, 0.0
      %v4976 = vsel %vm951, %v4968, 0.0
      %v4977 = vsel %vm952, %v4969, 0.0
      %s4978 = scalar_lea.vmem %s4, 20
      %v4979 = vld [vmem:[%s4978] sm:$0xf]
      %v4981 = vsel %vm3249, %v4979, 0
      %v4984 = vsel %vm3253, %v4976, 0
      %v4987 = vsel %vm3253, %v4977, 0
      %4989 = vmatpush.msra.mxu0 0.0
      %4990 = vmatpush.msra.mxu0 0.0
      %4991 = vmatpush.msra.mxu0 0.0
      %4992 = vmatpush.msra.mxu0 0.0
      %4993 = vmatpush.msra.mxu0 0.0
      %4994 = vmatpush.msra.mxu0 0.0
      %4995 = vmatpush.msra.mxu0 0.0
      %4996 = vmatpush.msra.mxu0 0.0
      %4997 = vmatpush.msra.mxu0 0.0
      %4998 = vmatpush.msra.mxu0 0.0
      %4999 = vmatpush.msra.mxu0 0.0
      %5000 = vmatpush.msra.mxu0 0.0
      %5001 = vmatpush.msra.mxu0 0.0
      %5002 = vmatpush.msra.mxu0 0.0
      %v5003 = vand.u32 %v4984, 4294901760
      %5004 = vmatpush.msra.mxu0 %v5003
      %v5005 = vand.u32 %v4974, 4294901760
      %5006 = vmatpush.msra.mxu0 %v5005
      %v5007 = vand.u32 %v4981, 4294901760
      %v5008 = vsub.f32 %v4981, %v5007
      %v5009 = vand.u32 %v5008, 4294901760
      %v5010 = vsub.f32 %v5008, %v5009
      %v5011 = vand.u32 %v5010, 4294901760
      %5012 = vmatmul.f32.gmra.mxu0 %v5011
      %v5013 = vpop.f32.mrf.mxu0
      %v5014 = vadd.f32 0.0, %v5013
      %5015 = vdwg.mxu0
      %5016 = vmatpush.msra.mxu0 0.0
      %5017 = vmatpush.msra.mxu0 0.0
      %5018 = vmatpush.msra.mxu0 0.0
      %5019 = vmatpush.msra.mxu0 0.0
      %5020 = vmatpush.msra.mxu0 0.0
      %5021 = vmatpush.msra.mxu0 0.0
      %5022 = vmatpush.msra.mxu0 0.0
      %5023 = vmatpush.msra.mxu0 0.0
      %5024 = vmatpush.msra.mxu0 0.0
      %5025 = vmatpush.msra.mxu0 0.0
      %5026 = vmatpush.msra.mxu0 0.0
      %5027 = vmatpush.msra.mxu0 0.0
      %5028 = vmatpush.msra.mxu0 0.0
      %5029 = vmatpush.msra.mxu0 0.0
      %v5030 = vand.u32 %v4984, 4294901760
      %v5031 = vsub.f32 %v4984, %v5030
      %v5032 = vand.u32 %v5031, 4294901760
      %v5033 = vsub.f32 %v5031, %v5032
      %v5034 = vand.u32 %v5033, 4294901760
      %5035 = vmatpush.msra.mxu0 %v5034
      %v5036 = vand.u32 %v4974, 4294901760
      %v5037 = vsub.f32 %v4974, %v5036
      %v5038 = vand.u32 %v5037, 4294901760
      %v5039 = vsub.f32 %v5037, %v5038
      %v5040 = vand.u32 %v5039, 4294901760
      %5041 = vmatpush.msra.mxu0 %v5040
      %v5042 = vand.u32 %v4981, 4294901760
      %5043 = vmatmul.f32.gmra.mxu0 %v5042
      %v5044 = vpop.f32.mrf.mxu0
      %v5045 = vadd.f32 %v5014, %v5044
      %5046 = vdwg.mxu0
      %5047 = vmatpush.msra.mxu0 0.0
      %5048 = vmatpush.msra.mxu0 0.0
      %5049 = vmatpush.msra.mxu0 0.0
      %5050 = vmatpush.msra.mxu0 0.0
      %5051 = vmatpush.msra.mxu0 0.0
      %5052 = vmatpush.msra.mxu0 0.0
      %5053 = vmatpush.msra.mxu0 0.0
      %5054 = vmatpush.msra.mxu0 0.0
      %5055 = vmatpush.msra.mxu0 0.0
      %5056 = vmatpush.msra.mxu0 0.0
      %5057 = vmatpush.msra.mxu0 0.0
      %5058 = vmatpush.msra.mxu0 0.0
      %5059 = vmatpush.msra.mxu0 0.0
      %5060 = vmatpush.msra.mxu0 0.0
      %v5061 = vand.u32 %v4984, 4294901760
      %v5062 = vsub.f32 %v4984, %v5061
      %5063 = vmatpush.msra.mxu0 %v5062
      %v5064 = vand.u32 %v4974, 4294901760
      %v5065 = vsub.f32 %v4974, %v5064
      %5066 = vmatpush.msra.mxu0 %v5065
      %v5067 = vand.u32 %v4981, 4294901760
      %v5068 = vsub.f32 %v4981, %v5067
      %5069 = vmatmul.f32.gmra.mxu0 %v5068
      %v5070 = vpop.f32.mrf.mxu0
      %v5071 = vadd.f32 %v5045, %v5070
      %5072 = vdwg.mxu0
      %5073 = vmatpush.msra.mxu0 0.0
      %5074 = vmatpush.msra.mxu0 0.0
      %5075 = vmatpush.msra.mxu0 0.0
      %5076 = vmatpush.msra.mxu0 0.0
      %5077 = vmatpush.msra.mxu0 0.0
      %5078 = vmatpush.msra.mxu0 0.0
      %5079 = vmatpush.msra.mxu0 0.0
      %5080 = vmatpush.msra.mxu0 0.0
      %5081 = vmatpush.msra.mxu0 0.0
      %5082 = vmatpush.msra.mxu0 0.0
      %5083 = vmatpush.msra.mxu0 0.0
      %5084 = vmatpush.msra.mxu0 0.0
      %5085 = vmatpush.msra.mxu0 0.0
      %5086 = vmatpush.msra.mxu0 0.0
      %v5087 = vand.u32 %v4984, 4294901760
      %5088 = vmatpush.msra.mxu0 %v5087
      %v5089 = vand.u32 %v4974, 4294901760
      %5090 = vmatpush.msra.mxu0 %v5089
      %v5091 = vand.u32 %v4981, 4294901760
      %v5092 = vsub.f32 %v4981, %v5091
      %v5093 = vand.u32 %v5092, 4294901760
      %5094 = vmatmul.f32.gmra.mxu0 %v5093
      %v5095 = vpop.f32.mrf.mxu0
      %v5096 = vadd.f32 %v5071, %v5095
      %5097 = vdwg.mxu0
      %5098 = vmatpush.msra.mxu0 0.0
      %5099 = vmatpush.msra.mxu0 0.0
      %5100 = vmatpush.msra.mxu0 0.0
      %5101 = vmatpush.msra.mxu0 0.0
      %5102 = vmatpush.msra.mxu0 0.0
      %5103 = vmatpush.msra.mxu0 0.0
      %5104 = vmatpush.msra.mxu0 0.0
      %5105 = vmatpush.msra.mxu0 0.0
      %5106 = vmatpush.msra.mxu0 0.0
      %5107 = vmatpush.msra.mxu0 0.0
      %5108 = vmatpush.msra.mxu0 0.0
      %5109 = vmatpush.msra.mxu0 0.0
      %5110 = vmatpush.msra.mxu0 0.0
      %5111 = vmatpush.msra.mxu0 0.0
      %v5112 = vand.u32 %v4984, 4294901760
      %v5113 = vsub.f32 %v4984, %v5112
      %v5114 = vand.u32 %v5113, 4294901760
      %5115 = vmatpush.msra.mxu0 %v5114
      %v5116 = vand.u32 %v4974, 4294901760
      %v5117 = vsub.f32 %v4974, %v5116
      %v5118 = vand.u32 %v5117, 4294901760
      %5119 = vmatpush.msra.mxu0 %v5118
      %v5120 = vand.u32 %v4981, 4294901760
      %5121 = vmatmul.f32.gmra.mxu0 %v5120
      %v5122 = vpop.f32.mrf.mxu0
      %v5123 = vadd.f32 %v5096, %v5122
      %5124 = vdwg.mxu0
      %5125 = vmatpush.msra.mxu0 0.0
      %5126 = vmatpush.msra.mxu0 0.0
      %5127 = vmatpush.msra.mxu0 0.0
      %5128 = vmatpush.msra.mxu0 0.0
      %5129 = vmatpush.msra.mxu0 0.0
      %5130 = vmatpush.msra.mxu0 0.0
      %5131 = vmatpush.msra.mxu0 0.0
      %5132 = vmatpush.msra.mxu0 0.0
      %5133 = vmatpush.msra.mxu0 0.0
      %5134 = vmatpush.msra.mxu0 0.0
      %5135 = vmatpush.msra.mxu0 0.0
      %5136 = vmatpush.msra.mxu0 0.0
      %5137 = vmatpush.msra.mxu0 0.0
      %5138 = vmatpush.msra.mxu0 0.0
      %v5139 = vand.u32 %v4984, 4294901760
      %5140 = vmatpush.msra.mxu0 %v5139
      %v5141 = vand.u32 %v4974, 4294901760
      %5142 = vmatpush.msra.mxu0 %v5141
      %v5143 = vand.u32 %v4981, 4294901760
      %5144 = vmatmul.f32.gmra.mxu0 %v5143
      %v5145 = vpop.f32.mrf.mxu0
      %v5146 = vadd.f32 %v5123, %v5145
      %5147 = vdwg.mxu0
      %5148 = vmatpush.msra.mxu0 0.0
      %5149 = vmatpush.msra.mxu0 0.0
      %5150 = vmatpush.msra.mxu0 0.0
      %5151 = vmatpush.msra.mxu0 0.0
      %5152 = vmatpush.msra.mxu0 0.0
      %5153 = vmatpush.msra.mxu0 0.0
      %5154 = vmatpush.msra.mxu0 0.0
      %5155 = vmatpush.msra.mxu0 0.0
      %5156 = vmatpush.msra.mxu0 0.0
      %5157 = vmatpush.msra.mxu0 0.0
      %5158 = vmatpush.msra.mxu0 0.0
      %5159 = vmatpush.msra.mxu0 0.0
      %5160 = vmatpush.msra.mxu0 0.0
      %5161 = vmatpush.msra.mxu0 0.0
      %v5162 = vand.u32 %v4987, 4294901760
      %5163 = vmatpush.msra.mxu0 %v5162
      %v5164 = vand.u32 %v4975, 4294901760
      %5165 = vmatpush.msra.mxu0 %v5164
      %v5166 = vand.u32 %v4981, 4294901760
      %v5167 = vsub.f32 %v4981, %v5166
      %v5168 = vand.u32 %v5167, 4294901760
      %v5169 = vsub.f32 %v5167, %v5168
      %v5170 = vand.u32 %v5169, 4294901760
      %5171 = vmatmul.f32.gmra.mxu0 %v5170
      %v5172 = vpop.f32.mrf.mxu0
      %v5173 = vadd.f32 0.0, %v5172
      %5174 = vdwg.mxu0
      %5175 = vmatpush.msra.mxu0 0.0
      %5176 = vmatpush.msra.mxu0 0.0
      %5177 = vmatpush.msra.mxu0 0.0
      %5178 = vmatpush.msra.mxu0 0.0
      %5179 = vmatpush.msra.mxu0 0.0
      %5180 = vmatpush.msra.mxu0 0.0
      %5181 = vmatpush.msra.mxu0 0.0
      %5182 = vmatpush.msra.mxu0 0.0
      %5183 = vmatpush.msra.mxu0 0.0
      %5184 = vmatpush.msra.mxu0 0.0
      %5185 = vmatpush.msra.mxu0 0.0
      %5186 = vmatpush.msra.mxu0 0.0
      %5187 = vmatpush.msra.mxu0 0.0
      %5188 = vmatpush.msra.mxu0 0.0
      %v5189 = vand.u32 %v4987, 4294901760
      %v5190 = vsub.f32 %v4987, %v5189
      %v5191 = vand.u32 %v5190, 4294901760
      %v5192 = vsub.f32 %v5190, %v5191
      %v5193 = vand.u32 %v5192, 4294901760
      %5194 = vmatpush.msra.mxu0 %v5193
      %v5195 = vand.u32 %v4975, 4294901760
      %v5196 = vsub.f32 %v4975, %v5195
      %v5197 = vand.u32 %v5196, 4294901760
      %v5198 = vsub.f32 %v5196, %v5197
      %v5199 = vand.u32 %v5198, 4294901760
      %5200 = vmatpush.msra.mxu0 %v5199
      %v5201 = vand.u32 %v4981, 4294901760
      %5202 = vmatmul.f32.gmra.mxu0 %v5201
      %v5203 = vpop.f32.mrf.mxu0
      %v5204 = vadd.f32 %v5173, %v5203
      %5205 = vdwg.mxu0
      %5206 = vmatpush.msra.mxu0 0.0
      %5207 = vmatpush.msra.mxu0 0.0
      %5208 = vmatpush.msra.mxu0 0.0
      %5209 = vmatpush.msra.mxu0 0.0
      %5210 = vmatpush.msra.mxu0 0.0
      %5211 = vmatpush.msra.mxu0 0.0
      %5212 = vmatpush.msra.mxu0 0.0
      %5213 = vmatpush.msra.mxu0 0.0
      %5214 = vmatpush.msra.mxu0 0.0
      %5215 = vmatpush.msra.mxu0 0.0
      %5216 = vmatpush.msra.mxu0 0.0
      %5217 = vmatpush.msra.mxu0 0.0
      %5218 = vmatpush.msra.mxu0 0.0
      %5219 = vmatpush.msra.mxu0 0.0
      %v5220 = vand.u32 %v4987, 4294901760
      %v5221 = vsub.f32 %v4987, %v5220
      %5222 = vmatpush.msra.mxu0 %v5221
      %v5223 = vand.u32 %v4975, 4294901760
      %v5224 = vsub.f32 %v4975, %v5223
      %5225 = vmatpush.msra.mxu0 %v5224
      %v5226 = vand.u32 %v4981, 4294901760
      %v5227 = vsub.f32 %v4981, %v5226
      %5228 = vmatmul.f32.gmra.mxu0 %v5227
      %v5229 = vpop.f32.mrf.mxu0
      %v5230 = vadd.f32 %v5204, %v5229
      %5231 = vdwg.mxu0
      %5232 = vmatpush.msra.mxu0 0.0
      %5233 = vmatpush.msra.mxu0 0.0
      %5234 = vmatpush.msra.mxu0 0.0
      %5235 = vmatpush.msra.mxu0 0.0
      %5236 = vmatpush.msra.mxu0 0.0
      %5237 = vmatpush.msra.mxu0 0.0
      %5238 = vmatpush.msra.mxu0 0.0
      %5239 = vmatpush.msra.mxu0 0.0
      %5240 = vmatpush.msra.mxu0 0.0
      %5241 = vmatpush.msra.mxu0 0.0
      %5242 = vmatpush.msra.mxu0 0.0
      %5243 = vmatpush.msra.mxu0 0.0
      %5244 = vmatpush.msra.mxu0 0.0
      %5245 = vmatpush.msra.mxu0 0.0
      %v5246 = vand.u32 %v4987, 4294901760
      %5247 = vmatpush.msra.mxu0 %v5246
      %v5248 = vand.u32 %v4975, 4294901760
      %5249 = vmatpush.msra.mxu0 %v5248
      %v5250 = vand.u32 %v4981, 4294901760
      %v5251 = vsub.f32 %v4981, %v5250
      %v5252 = vand.u32 %v5251, 4294901760
      %5253 = vmatmul.f32.gmra.mxu0 %v5252
      %v5254 = vpop.f32.mrf.mxu0
      %v5255 = vadd.f32 %v5230, %v5254
      %5256 = vdwg.mxu0
      %5257 = vmatpush.msra.mxu0 0.0
      %5258 = vmatpush.msra.mxu0 0.0
      %5259 = vmatpush.msra.mxu0 0.0
      %5260 = vmatpush.msra.mxu0 0.0
      %5261 = vmatpush.msra.mxu0 0.0
      %5262 = vmatpush.msra.mxu0 0.0
      %5263 = vmatpush.msra.mxu0 0.0
      %5264 = vmatpush.msra.mxu0 0.0
      %5265 = vmatpush.msra.mxu0 0.0
      %5266 = vmatpush.msra.mxu0 0.0
      %5267 = vmatpush.msra.mxu0 0.0
      %5268 = vmatpush.msra.mxu0 0.0
      %5269 = vmatpush.msra.mxu0 0.0
      %5270 = vmatpush.msra.mxu0 0.0
      %v5271 = vand.u32 %v4987, 4294901760
      %v5272 = vsub.f32 %v4987, %v5271
      %v5273 = vand.u32 %v5272, 4294901760
      %5274 = vmatpush.msra.mxu0 %v5273
      %v5275 = vand.u32 %v4975, 4294901760
      %v5276 = vsub.f32 %v4975, %v5275
      %v5277 = vand.u32 %v5276, 4294901760
      %5278 = vmatpush.msra.mxu0 %v5277
      %v5279 = vand.u32 %v4981, 4294901760
      %5280 = vmatmul.f32.gmra.mxu0 %v5279
      %v5281 = vpop.f32.mrf.mxu0
      %v5282 = vadd.f32 %v5255, %v5281
      %5283 = vdwg.mxu0
      %5284 = vmatpush.msra.mxu0 0.0
      %5285 = vmatpush.msra.mxu0 0.0
      %5286 = vmatpush.msra.mxu0 0.0
      %5287 = vmatpush.msra.mxu0 0.0
      %5288 = vmatpush.msra.mxu0 0.0
      %5289 = vmatpush.msra.mxu0 0.0
      %5290 = vmatpush.msra.mxu0 0.0
      %5291 = vmatpush.msra.mxu0 0.0
      %5292 = vmatpush.msra.mxu0 0.0
      %5293 = vmatpush.msra.mxu0 0.0
      %5294 = vmatpush.msra.mxu0 0.0
      %5295 = vmatpush.msra.mxu0 0.0
      %5296 = vmatpush.msra.mxu0 0.0
      %5297 = vmatpush.msra.mxu0 0.0
      %v5298 = vand.u32 %v4987, 4294901760
      %5299 = vmatpush.msra.mxu0 %v5298
      %v5300 = vand.u32 %v4975, 4294901760
      %5301 = vmatpush.msra.mxu0 %v5300
      %v5302 = vand.u32 %v4981, 4294901760
      %5303 = vmatmul.f32.gmra.mxu0 %v5302
      %v5304 = vpop.f32.mrf.mxu0
      %v5305 = vadd.f32 %v5282, %v5304
      %5306 = vdwg.mxu0
      %v5307 = vadd.f32 %v4940, %v5146
      %v5308 = vadd.f32 %v4941, %v5305
      %5309 = vrot.lane.b32.xlu0 %v4942, 113
      %v5310 = vpop.permute.xlu0 %5309
      %5311 = vrot.lane.b32.xlu0 %v4943, 113
      %v5312 = vpop.permute.xlu0 %5311
      %5313 = vrot.lane.b32.xlu0 %v4944, 113
      %v5314 = vpop.permute.xlu0 %5313
      %5315 = vrot.lane.b32.xlu0 %v4945, 113
      %v5316 = vpop.permute.xlu0 %5315
      %5317 = vrot.lane.b32.xlu0 %v4946, 113
      %v5318 = vpop.permute.xlu0 %5317
      %5319 = vrot.lane.b32.xlu0 %v4947, 113
      %v5320 = vpop.permute.xlu0 %5319
      %v5321 = vsel %vm2222, %v5310, %v5312
      %v5322 = vsel %vm2222, %v5312, %v5314
      %v5323 = vsel %vm2222, %v5316, %v5318
      %v5324 = vsel %vm2222, %v5318, %v5320
      %v5329 = vsel %vm315, %v5321, 0.0
      %v5330 = vsel %vm316, %v5322, 0.0
      %v5331 = vsel %vm315, %v5323, 0.0
      %v5332 = vsel %vm316, %v5324, 0.0
      %s5333 = scalar_lea.vmem %s4, 24
      %v5334 = vld [vmem:[%s5333] sm:$0xf]
      %v5336 = vsel %vm3249, %v5334, 0
      %v5339 = vsel %vm3253, %v5331, 0
      %v5342 = vsel %vm3253, %v5332, 0
      %5344 = vmatpush.msra.mxu0 0.0
      %5345 = vmatpush.msra.mxu0 0.0
      %5346 = vmatpush.msra.mxu0 0.0
      %5347 = vmatpush.msra.mxu0 0.0
      %5348 = vmatpush.msra.mxu0 0.0
      %5349 = vmatpush.msra.mxu0 0.0
      %5350 = vmatpush.msra.mxu0 0.0
      %5351 = vmatpush.msra.mxu0 0.0
      %5352 = vmatpush.msra.mxu0 0.0
      %5353 = vmatpush.msra.mxu0 0.0
      %5354 = vmatpush.msra.mxu0 0.0
      %5355 = vmatpush.msra.mxu0 0.0
      %5356 = vmatpush.msra.mxu0 0.0
      %5357 = vmatpush.msra.mxu0 0.0
      %v5358 = vand.u32 %v5339, 4294901760
      %5359 = vmatpush.msra.mxu0 %v5358
      %v5360 = vand.u32 %v5329, 4294901760
      %5361 = vmatpush.msra.mxu0 %v5360
      %v5362 = vand.u32 %v5336, 4294901760
      %v5363 = vsub.f32 %v5336, %v5362
      %v5364 = vand.u32 %v5363, 4294901760
      %v5365 = vsub.f32 %v5363, %v5364
      %v5366 = vand.u32 %v5365, 4294901760
      %5367 = vmatmul.f32.gmra.mxu0 %v5366
      %v5368 = vpop.f32.mrf.mxu0
      %v5369 = vadd.f32 0.0, %v5368
      %5370 = vdwg.mxu0
      %5371 = vmatpush.msra.mxu0 0.0
      %5372 = vmatpush.msra.mxu0 0.0
      %5373 = vmatpush.msra.mxu0 0.0
      %5374 = vmatpush.msra.mxu0 0.0
      %5375 = vmatpush.msra.mxu0 0.0
      %5376 = vmatpush.msra.mxu0 0.0
      %5377 = vmatpush.msra.mxu0 0.0
      %5378 = vmatpush.msra.mxu0 0.0
      %5379 = vmatpush.msra.mxu0 0.0
      %5380 = vmatpush.msra.mxu0 0.0
      %5381 = vmatpush.msra.mxu0 0.0
      %5382 = vmatpush.msra.mxu0 0.0
      %5383 = vmatpush.msra.mxu0 0.0
      %5384 = vmatpush.msra.mxu0 0.0
      %v5385 = vand.u32 %v5339, 4294901760
      %v5386 = vsub.f32 %v5339, %v5385
      %v5387 = vand.u32 %v5386, 4294901760
      %v5388 = vsub.f32 %v5386, %v5387
      %v5389 = vand.u32 %v5388, 4294901760
      %5390 = vmatpush.msra.mxu0 %v5389
      %v5391 = vand.u32 %v5329, 4294901760
      %v5392 = vsub.f32 %v5329, %v5391
      %v5393 = vand.u32 %v5392, 4294901760
      %v5394 = vsub.f32 %v5392, %v5393
      %v5395 = vand.u32 %v5394, 4294901760
      %5396 = vmatpush.msra.mxu0 %v5395
      %v5397 = vand.u32 %v5336, 4294901760
      %5398 = vmatmul.f32.gmra.mxu0 %v5397
      %v5399 = vpop.f32.mrf.mxu0
      %v5400 = vadd.f32 %v5369, %v5399
      %5401 = vdwg.mxu0
      %5402 = vmatpush.msra.mxu0 0.0
      %5403 = vmatpush.msra.mxu0 0.0
      %5404 = vmatpush.msra.mxu0 0.0
      %5405 = vmatpush.msra.mxu0 0.0
      %5406 = vmatpush.msra.mxu0 0.0
      %5407 = vmatpush.msra.mxu0 0.0
      %5408 = vmatpush.msra.mxu0 0.0
      %5409 = vmatpush.msra.mxu0 0.0
      %5410 = vmatpush.msra.mxu0 0.0
      %5411 = vmatpush.msra.mxu0 0.0
      %5412 = vmatpush.msra.mxu0 0.0
      %5413 = vmatpush.msra.mxu0 0.0
      %5414 = vmatpush.msra.mxu0 0.0
      %5415 = vmatpush.msra.mxu0 0.0
      %v5416 = vand.u32 %v5339, 4294901760
      %v5417 = vsub.f32 %v5339, %v5416
      %5418 = vmatpush.msra.mxu0 %v5417
      %v5419 = vand.u32 %v5329, 4294901760
      %v5420 = vsub.f32 %v5329, %v5419
      %5421 = vmatpush.msra.mxu0 %v5420
      %v5422 = vand.u32 %v5336, 4294901760
      %v5423 = vsub.f32 %v5336, %v5422
      %5424 = vmatmul.f32.gmra.mxu0 %v5423
      %v5425 = vpop.f32.mrf.mxu0
      %v5426 = vadd.f32 %v5400, %v5425
      %5427 = vdwg.mxu0
      %5428 = vmatpush.msra.mxu0 0.0
      %5429 = vmatpush.msra.mxu0 0.0
      %5430 = vmatpush.msra.mxu0 0.0
      %5431 = vmatpush.msra.mxu0 0.0
      %5432 = vmatpush.msra.mxu0 0.0
      %5433 = vmatpush.msra.mxu0 0.0
      %5434 = vmatpush.msra.mxu0 0.0
      %5435 = vmatpush.msra.mxu0 0.0
      %5436 = vmatpush.msra.mxu0 0.0
      %5437 = vmatpush.msra.mxu0 0.0
      %5438 = vmatpush.msra.mxu0 0.0
      %5439 = vmatpush.msra.mxu0 0.0
      %5440 = vmatpush.msra.mxu0 0.0
      %5441 = vmatpush.msra.mxu0 0.0
      %v5442 = vand.u32 %v5339, 4294901760
      %5443 = vmatpush.msra.mxu0 %v5442
      %v5444 = vand.u32 %v5329, 4294901760
      %5445 = vmatpush.msra.mxu0 %v5444
      %v5446 = vand.u32 %v5336, 4294901760
      %v5447 = vsub.f32 %v5336, %v5446
      %v5448 = vand.u32 %v5447, 4294901760
      %5449 = vmatmul.f32.gmra.mxu0 %v5448
      %v5450 = vpop.f32.mrf.mxu0
      %v5451 = vadd.f32 %v5426, %v5450
      %5452 = vdwg.mxu0
      %5453 = vmatpush.msra.mxu0 0.0
      %5454 = vmatpush.msra.mxu0 0.0
      %5455 = vmatpush.msra.mxu0 0.0
      %5456 = vmatpush.msra.mxu0 0.0
      %5457 = vmatpush.msra.mxu0 0.0
      %5458 = vmatpush.msra.mxu0 0.0
      %5459 = vmatpush.msra.mxu0 0.0
      %5460 = vmatpush.msra.mxu0 0.0
      %5461 = vmatpush.msra.mxu0 0.0
      %5462 = vmatpush.msra.mxu0 0.0
      %5463 = vmatpush.msra.mxu0 0.0
      %5464 = vmatpush.msra.mxu0 0.0
      %5465 = vmatpush.msra.mxu0 0.0
      %5466 = vmatpush.msra.mxu0 0.0
      %v5467 = vand.u32 %v5339, 4294901760
      %v5468 = vsub.f32 %v5339, %v5467
      %v5469 = vand.u32 %v5468, 4294901760
      %5470 = vmatpush.msra.mxu0 %v5469
      %v5471 = vand.u32 %v5329, 4294901760
      %v5472 = vsub.f32 %v5329, %v5471
      %v5473 = vand.u32 %v5472, 4294901760
      %5474 = vmatpush.msra.mxu0 %v5473
      %v5475 = vand.u32 %v5336, 4294901760
      %5476 = vmatmul.f32.gmra.mxu0 %v5475
      %v5477 = vpop.f32.mrf.mxu0
      %v5478 = vadd.f32 %v5451, %v5477
      %5479 = vdwg.mxu0
      %5480 = vmatpush.msra.mxu0 0.0
      %5481 = vmatpush.msra.mxu0 0.0
      %5482 = vmatpush.msra.mxu0 0.0
      %5483 = vmatpush.msra.mxu0 0.0
      %5484 = vmatpush.msra.mxu0 0.0
      %5485 = vmatpush.msra.mxu0 0.0
      %5486 = vmatpush.msra.mxu0 0.0
      %5487 = vmatpush.msra.mxu0 0.0
      %5488 = vmatpush.msra.mxu0 0.0
      %5489 = vmatpush.msra.mxu0 0.0
      %5490 = vmatpush.msra.mxu0 0.0
      %5491 = vmatpush.msra.mxu0 0.0
      %5492 = vmatpush.msra.mxu0 0.0
      %5493 = vmatpush.msra.mxu0 0.0
      %v5494 = vand.u32 %v5339, 4294901760
      %5495 = vmatpush.msra.mxu0 %v5494
      %v5496 = vand.u32 %v5329, 4294901760
      %5497 = vmatpush.msra.mxu0 %v5496
      %v5498 = vand.u32 %v5336, 4294901760
      %5499 = vmatmul.f32.gmra.mxu0 %v5498
      %v5500 = vpop.f32.mrf.mxu0
      %v5501 = vadd.f32 %v5478, %v5500
      %5502 = vdwg.mxu0
      %5503 = vmatpush.msra.mxu0 0.0
      %5504 = vmatpush.msra.mxu0 0.0
      %5505 = vmatpush.msra.mxu0 0.0
      %5506 = vmatpush.msra.mxu0 0.0
      %5507 = vmatpush.msra.mxu0 0.0
      %5508 = vmatpush.msra.mxu0 0.0
      %5509 = vmatpush.msra.mxu0 0.0
      %5510 = vmatpush.msra.mxu0 0.0
      %5511 = vmatpush.msra.mxu0 0.0
      %5512 = vmatpush.msra.mxu0 0.0
      %5513 = vmatpush.msra.mxu0 0.0
      %5514 = vmatpush.msra.mxu0 0.0
      %5515 = vmatpush.msra.mxu0 0.0
      %5516 = vmatpush.msra.mxu0 0.0
      %v5517 = vand.u32 %v5342, 4294901760
      %5518 = vmatpush.msra.mxu0 %v5517
      %v5519 = vand.u32 %v5330, 4294901760
      %5520 = vmatpush.msra.mxu0 %v5519
      %v5521 = vand.u32 %v5336, 4294901760
      %v5522 = vsub.f32 %v5336, %v5521
      %v5523 = vand.u32 %v5522, 4294901760
      %v5524 = vsub.f32 %v5522, %v5523
      %v5525 = vand.u32 %v5524, 4294901760
      %5526 = vmatmul.f32.gmra.mxu0 %v5525
      %v5527 = vpop.f32.mrf.mxu0
      %v5528 = vadd.f32 0.0, %v5527
      %5529 = vdwg.mxu0
      %5530 = vmatpush.msra.mxu0 0.0
      %5531 = vmatpush.msra.mxu0 0.0
      %5532 = vmatpush.msra.mxu0 0.0
      %5533 = vmatpush.msra.mxu0 0.0
      %5534 = vmatpush.msra.mxu0 0.0
      %5535 = vmatpush.msra.mxu0 0.0
      %5536 = vmatpush.msra.mxu0 0.0
      %5537 = vmatpush.msra.mxu0 0.0
      %5538 = vmatpush.msra.mxu0 0.0
      %5539 = vmatpush.msra.mxu0 0.0
      %5540 = vmatpush.msra.mxu0 0.0
      %5541 = vmatpush.msra.mxu0 0.0
      %5542 = vmatpush.msra.mxu0 0.0
      %5543 = vmatpush.msra.mxu0 0.0
      %v5544 = vand.u32 %v5342, 4294901760
      %v5545 = vsub.f32 %v5342, %v5544
      %v5546 = vand.u32 %v5545, 4294901760
      %v5547 = vsub.f32 %v5545, %v5546
      %v5548 = vand.u32 %v5547, 4294901760
      %5549 = vmatpush.msra.mxu0 %v5548
      %v5550 = vand.u32 %v5330, 4294901760
      %v5551 = vsub.f32 %v5330, %v5550
      %v5552 = vand.u32 %v5551, 4294901760
      %v5553 = vsub.f32 %v5551, %v5552
      %v5554 = vand.u32 %v5553, 4294901760
      %5555 = vmatpush.msra.mxu0 %v5554
      %v5556 = vand.u32 %v5336, 4294901760
      %5557 = vmatmul.f32.gmra.mxu0 %v5556
      %v5558 = vpop.f32.mrf.mxu0
      %v5559 = vadd.f32 %v5528, %v5558
      %5560 = vdwg.mxu0
      %5561 = vmatpush.msra.mxu0 0.0
      %5562 = vmatpush.msra.mxu0 0.0
      %5563 = vmatpush.msra.mxu0 0.0
      %5564 = vmatpush.msra.mxu0 0.0
      %5565 = vmatpush.msra.mxu0 0.0
      %5566 = vmatpush.msra.mxu0 0.0
      %5567 = vmatpush.msra.mxu0 0.0
      %5568 = vmatpush.msra.mxu0 0.0
      %5569 = vmatpush.msra.mxu0 0.0
      %5570 = vmatpush.msra.mxu0 0.0
      %5571 = vmatpush.msra.mxu0 0.0
      %5572 = vmatpush.msra.mxu0 0.0
      %5573 = vmatpush.msra.mxu0 0.0
      %5574 = vmatpush.msra.mxu0 0.0
      %v5575 = vand.u32 %v5342, 4294901760
      %v5576 = vsub.f32 %v5342, %v5575
      %5577 = vmatpush.msra.mxu0 %v5576
      %v5578 = vand.u32 %v5330, 4294901760
      %v5579 = vsub.f32 %v5330, %v5578
      %5580 = vmatpush.msra.mxu0 %v5579
      %v5581 = vand.u32 %v5336, 4294901760
      %v5582 = vsub.f32 %v5336, %v5581
      %5583 = vmatmul.f32.gmra.mxu0 %v5582
      %v5584 = vpop.f32.mrf.mxu0
      %v5585 = vadd.f32 %v5559, %v5584
      %5586 = vdwg.mxu0
      %5587 = vmatpush.msra.mxu0 0.0
      %5588 = vmatpush.msra.mxu0 0.0
      %5589 = vmatpush.msra.mxu0 0.0
      %5590 = vmatpush.msra.mxu0 0.0
      %5591 = vmatpush.msra.mxu0 0.0
      %5592 = vmatpush.msra.mxu0 0.0
      %5593 = vmatpush.msra.mxu0 0.0
      %5594 = vmatpush.msra.mxu0 0.0
      %5595 = vmatpush.msra.mxu0 0.0
      %5596 = vmatpush.msra.mxu0 0.0
      %5597 = vmatpush.msra.mxu0 0.0
      %5598 = vmatpush.msra.mxu0 0.0
      %5599 = vmatpush.msra.mxu0 0.0
      %5600 = vmatpush.msra.mxu0 0.0
      %v5601 = vand.u32 %v5342, 4294901760
      %5602 = vmatpush.msra.mxu0 %v5601
      %v5603 = vand.u32 %v5330, 4294901760
      %5604 = vmatpush.msra.mxu0 %v5603
      %v5605 = vand.u32 %v5336, 4294901760
      %v5606 = vsub.f32 %v5336, %v5605
      %v5607 = vand.u32 %v5606, 4294901760
      %5608 = vmatmul.f32.gmra.mxu0 %v5607
      %v5609 = vpop.f32.mrf.mxu0
      %v5610 = vadd.f32 %v5585, %v5609
      %5611 = vdwg.mxu0
      %5612 = vmatpush.msra.mxu0 0.0
      %5613 = vmatpush.msra.mxu0 0.0
      %5614 = vmatpush.msra.mxu0 0.0
      %5615 = vmatpush.msra.mxu0 0.0
      %5616 = vmatpush.msra.mxu0 0.0
      %5617 = vmatpush.msra.mxu0 0.0
      %5618 = vmatpush.msra.mxu0 0.0
      %5619 = vmatpush.msra.mxu0 0.0
      %5620 = vmatpush.msra.mxu0 0.0
      %5621 = vmatpush.msra.mxu0 0.0
      %5622 = vmatpush.msra.mxu0 0.0
      %5623 = vmatpush.msra.mxu0 0.0
      %5624 = vmatpush.msra.mxu0 0.0
      %5625 = vmatpush.msra.mxu0 0.0
      %v5626 = vand.u32 %v5342, 4294901760
      %v5627 = vsub.f32 %v5342, %v5626
      %v5628 = vand.u32 %v5627, 4294901760
      %5629 = vmatpush.msra.mxu0 %v5628
      %v5630 = vand.u32 %v5330, 4294901760
      %v5631 = vsub.f32 %v5330, %v5630
      %v5632 = vand.u32 %v5631, 4294901760
      %5633 = vmatpush.msra.mxu0 %v5632
      %v5634 = vand.u32 %v5336, 4294901760
      %5635 = vmatmul.f32.gmra.mxu0 %v5634
      %v5636 = vpop.f32.mrf.mxu0
      %v5637 = vadd.f32 %v5610, %v5636
      %5638 = vdwg.mxu0
      %5639 = vmatpush.msra.mxu0 0.0
      %5640 = vmatpush.msra.mxu0 0.0
      %5641 = vmatpush.msra.mxu0 0.0
      %5642 = vmatpush.msra.mxu0 0.0
      %5643 = vmatpush.msra.mxu0 0.0
      %5644 = vmatpush.msra.mxu0 0.0
      %5645 = vmatpush.msra.mxu0 0.0
      %5646 = vmatpush.msra.mxu0 0.0
      %5647 = vmatpush.msra.mxu0 0.0
      %5648 = vmatpush.msra.mxu0 0.0
      %5649 = vmatpush.msra.mxu0 0.0
      %5650 = vmatpush.msra.mxu0 0.0
      %5651 = vmatpush.msra.mxu0 0.0
      %5652 = vmatpush.msra.mxu0 0.0
      %v5653 = vand.u32 %v5342, 4294901760
      %5654 = vmatpush.msra.mxu0 %v5653
      %v5655 = vand.u32 %v5330, 4294901760
      %5656 = vmatpush.msra.mxu0 %v5655
      %v5657 = vand.u32 %v5336, 4294901760
      %5658 = vmatmul.f32.gmra.mxu0 %v5657
      %v5659 = vpop.f32.mrf.mxu0
      %v5660 = vadd.f32 %v5637, %v5659
      %5661 = vdwg.mxu0
      %v5662 = vadd.f32 %v5307, %v5501
      %v5663 = vadd.f32 %v5308, %v5660
      %s5664 = scalar_lea.vmem %s4, 28
      %v5665 = vld [vmem:[%s5664] sm:$0xf]
      %5666 = vrot.lane.b32.xlu0 %v4942, 112
      %v5667 = vpop.permute.xlu0 %5666
      %5668 = vrot.lane.b32.xlu0 %v4943, 112
      %v5669 = vpop.permute.xlu0 %5668
      %5670 = vrot.lane.b32.xlu0 %v4944, 112
      %v5671 = vpop.permute.xlu0 %5670
      %5672 = vrot.lane.b32.xlu0 %v4945, 112
      %v5673 = vpop.permute.xlu0 %5672
      %5674 = vrot.lane.b32.xlu0 %v4946, 112
      %v5675 = vpop.permute.xlu0 %5674
      %5676 = vrot.lane.b32.xlu0 %v4947, 112
      %v5677 = vpop.permute.xlu0 %5676
      %v5678 = vsel %vm2542, %v5667, %v5669
      %v5679 = vsel %vm2542, %v5669, %v5671
      %v5680 = vsel %vm2542, %v5673, %v5675
      %v5681 = vsel %vm2542, %v5675, %v5677
      %v5685 = vsel %vm3249, %v5665, 0
      %v5687 = vsel %vm3253, %v5680, 0
      %v5689 = vsel %vm3253, %v5681, 0
      %5691 = vmatpush.msra.mxu0 0.0
      %5692 = vmatpush.msra.mxu0 0.0
      %5693 = vmatpush.msra.mxu0 0.0
      %5694 = vmatpush.msra.mxu0 0.0
      %5695 = vmatpush.msra.mxu0 0.0
      %5696 = vmatpush.msra.mxu0 0.0
      %5697 = vmatpush.msra.mxu0 0.0
      %5698 = vmatpush.msra.mxu0 0.0
      %5699 = vmatpush.msra.mxu0 0.0
      %5700 = vmatpush.msra.mxu0 0.0
      %5701 = vmatpush.msra.mxu0 0.0
      %5702 = vmatpush.msra.mxu0 0.0
      %5703 = vmatpush.msra.mxu0 0.0
      %5704 = vmatpush.msra.mxu0 0.0
      %v5705 = vand.u32 %v5687, 4294901760
      %5706 = vmatpush.msra.mxu0 %v5705
      %v5707 = vand.u32 %v5678, 4294901760
      %5708 = vmatpush.msra.mxu0 %v5707
      %v5709 = vand.u32 %v5685, 4294901760
      %v5710 = vsub.f32 %v5685, %v5709
      %v5711 = vand.u32 %v5710, 4294901760
      %v5712 = vsub.f32 %v5710, %v5711
      %v5713 = vand.u32 %v5712, 4294901760
      %5714 = vmatmul.f32.gmra.mxu0 %v5713
      %v5715 = vpop.f32.mrf.mxu0
      %v5716 = vadd.f32 0.0, %v5715
      %5717 = vdwg.mxu0
      %5718 = vmatpush.msra.mxu0 0.0
      %5719 = vmatpush.msra.mxu0 0.0
      %5720 = vmatpush.msra.mxu0 0.0
      %5721 = vmatpush.msra.mxu0 0.0
      %5722 = vmatpush.msra.mxu0 0.0
      %5723 = vmatpush.msra.mxu0 0.0
      %5724 = vmatpush.msra.mxu0 0.0
      %5725 = vmatpush.msra.mxu0 0.0
      %5726 = vmatpush.msra.mxu0 0.0
      %5727 = vmatpush.msra.mxu0 0.0
      %5728 = vmatpush.msra.mxu0 0.0
      %5729 = vmatpush.msra.mxu0 0.0
      %5730 = vmatpush.msra.mxu0 0.0
      %5731 = vmatpush.msra.mxu0 0.0
      %v5732 = vand.u32 %v5687, 4294901760
      %v5733 = vsub.f32 %v5687, %v5732
      %v5734 = vand.u32 %v5733, 4294901760
      %v5735 = vsub.f32 %v5733, %v5734
      %v5736 = vand.u32 %v5735, 4294901760
      %5737 = vmatpush.msra.mxu0 %v5736
      %v5738 = vand.u32 %v5678, 4294901760
      %v5739 = vsub.f32 %v5678, %v5738
      %v5740 = vand.u32 %v5739, 4294901760
      %v5741 = vsub.f32 %v5739, %v5740
      %v5742 = vand.u32 %v5741, 4294901760
      %5743 = vmatpush.msra.mxu0 %v5742
      %v5744 = vand.u32 %v5685, 4294901760
      %5745 = vmatmul.f32.gmra.mxu0 %v5744
      %v5746 = vpop.f32.mrf.mxu0
      %v5747 = vadd.f32 %v5716, %v5746
      %5748 = vdwg.mxu0
      %5749 = vmatpush.msra.mxu0 0.0
      %5750 = vmatpush.msra.mxu0 0.0
      %5751 = vmatpush.msra.mxu0 0.0
      %5752 = vmatpush.msra.mxu0 0.0
      %5753 = vmatpush.msra.mxu0 0.0
      %5754 = vmatpush.msra.mxu0 0.0
      %5755 = vmatpush.msra.mxu0 0.0
      %5756 = vmatpush.msra.mxu0 0.0
      %5757 = vmatpush.msra.mxu0 0.0
      %5758 = vmatpush.msra.mxu0 0.0
      %5759 = vmatpush.msra.mxu0 0.0
      %5760 = vmatpush.msra.mxu0 0.0
      %5761 = vmatpush.msra.mxu0 0.0
      %5762 = vmatpush.msra.mxu0 0.0
      %v5763 = vand.u32 %v5687, 4294901760
      %v5764 = vsub.f32 %v5687, %v5763
      %5765 = vmatpush.msra.mxu0 %v5764
      %v5766 = vand.u32 %v5678, 4294901760
      %v5767 = vsub.f32 %v5678, %v5766
      %5768 = vmatpush.msra.mxu0 %v5767
      %v5769 = vand.u32 %v5685, 4294901760
      %v5770 = vsub.f32 %v5685, %v5769
      %5771 = vmatmul.f32.gmra.mxu0 %v5770
      %v5772 = vpop.f32.mrf.mxu0
      %v5773 = vadd.f32 %v5747, %v5772
      %5774 = vdwg.mxu0
      %5775 = vmatpush.msra.mxu0 0.0
      %5776 = vmatpush.msra.mxu0 0.0
      %5777 = vmatpush.msra.mxu0 0.0
      %5778 = vmatpush.msra.mxu0 0.0
      %5779 = vmatpush.msra.mxu0 0.0
      %5780 = vmatpush.msra.mxu0 0.0
      %5781 = vmatpush.msra.mxu0 0.0
      %5782 = vmatpush.msra.mxu0 0.0
      %5783 = vmatpush.msra.mxu0 0.0
      %5784 = vmatpush.msra.mxu0 0.0
      %5785 = vmatpush.msra.mxu0 0.0
      %5786 = vmatpush.msra.mxu0 0.0
      %5787 = vmatpush.msra.mxu0 0.0
      %5788 = vmatpush.msra.mxu0 0.0
      %v5789 = vand.u32 %v5687, 4294901760
      %5790 = vmatpush.msra.mxu0 %v5789
      %v5791 = vand.u32 %v5678, 4294901760
      %5792 = vmatpush.msra.mxu0 %v5791
      %v5793 = vand.u32 %v5685, 4294901760
      %v5794 = vsub.f32 %v5685, %v5793
      %v5795 = vand.u32 %v5794, 4294901760
      %5796 = vmatmul.f32.gmra.mxu0 %v5795
      %v5797 = vpop.f32.mrf.mxu0
      %v5798 = vadd.f32 %v5773, %v5797
      %5799 = vdwg.mxu0
      %5800 = vmatpush.msra.mxu0 0.0
      %5801 = vmatpush.msra.mxu0 0.0
      %5802 = vmatpush.msra.mxu0 0.0
      %5803 = vmatpush.msra.mxu0 0.0
      %5804 = vmatpush.msra.mxu0 0.0
      %5805 = vmatpush.msra.mxu0 0.0
      %5806 = vmatpush.msra.mxu0 0.0
      %5807 = vmatpush.msra.mxu0 0.0
      %5808 = vmatpush.msra.mxu0 0.0
      %5809 = vmatpush.msra.mxu0 0.0
      %5810 = vmatpush.msra.mxu0 0.0
      %5811 = vmatpush.msra.mxu0 0.0
      %5812 = vmatpush.msra.mxu0 0.0
      %5813 = vmatpush.msra.mxu0 0.0
      %v5814 = vand.u32 %v5687, 4294901760
      %v5815 = vsub.f32 %v5687, %v5814
      %v5816 = vand.u32 %v5815, 4294901760
      %5817 = vmatpush.msra.mxu0 %v5816
      %v5818 = vand.u32 %v5678, 4294901760
      %v5819 = vsub.f32 %v5678, %v5818
      %v5820 = vand.u32 %v5819, 4294901760
      %5821 = vmatpush.msra.mxu0 %v5820
      %v5822 = vand.u32 %v5685, 4294901760
      %5823 = vmatmul.f32.gmra.mxu0 %v5822
      %v5824 = vpop.f32.mrf.mxu0
      %v5825 = vadd.f32 %v5798, %v5824
      %5826 = vdwg.mxu0
      %5827 = vmatpush.msra.mxu0 0.0
      %5828 = vmatpush.msra.mxu0 0.0
      %5829 = vmatpush.msra.mxu0 0.0
      %5830 = vmatpush.msra.mxu0 0.0
      %5831 = vmatpush.msra.mxu0 0.0
      %5832 = vmatpush.msra.mxu0 0.0
      %5833 = vmatpush.msra.mxu0 0.0
      %5834 = vmatpush.msra.mxu0 0.0
      %5835 = vmatpush.msra.mxu0 0.0
      %5836 = vmatpush.msra.mxu0 0.0
      %5837 = vmatpush.msra.mxu0 0.0
      %5838 = vmatpush.msra.mxu0 0.0
      %5839 = vmatpush.msra.mxu0 0.0
      %5840 = vmatpush.msra.mxu0 0.0
      %v5841 = vand.u32 %v5687, 4294901760
      %5842 = vmatpush.msra.mxu0 %v5841
      %v5843 = vand.u32 %v5678, 4294901760
      %5844 = vmatpush.msra.mxu0 %v5843
      %v5845 = vand.u32 %v5685, 4294901760
      %5846 = vmatmul.f32.gmra.mxu0 %v5845
      %v5847 = vpop.f32.mrf.mxu0
      %v5848 = vadd.f32 %v5825, %v5847
      %5849 = vdwg.mxu0
      %5850 = vmatpush.msra.mxu0 0.0
      %5851 = vmatpush.msra.mxu0 0.0
      %5852 = vmatpush.msra.mxu0 0.0
      %5853 = vmatpush.msra.mxu0 0.0
      %5854 = vmatpush.msra.mxu0 0.0
      %5855 = vmatpush.msra.mxu0 0.0
      %5856 = vmatpush.msra.mxu0 0.0
      %5857 = vmatpush.msra.mxu0 0.0
      %5858 = vmatpush.msra.mxu0 0.0
      %5859 = vmatpush.msra.mxu0 0.0
      %5860 = vmatpush.msra.mxu0 0.0
      %5861 = vmatpush.msra.mxu0 0.0
      %5862 = vmatpush.msra.mxu0 0.0
      %5863 = vmatpush.msra.mxu0 0.0
      %v5864 = vand.u32 %v5689, 4294901760
      %5865 = vmatpush.msra.mxu0 %v5864
      %v5866 = vand.u32 %v5679, 4294901760
      %5867 = vmatpush.msra.mxu0 %v5866
      %v5868 = vand.u32 %v5685, 4294901760
      %v5869 = vsub.f32 %v5685, %v5868
      %v5870 = vand.u32 %v5869, 4294901760
      %v5871 = vsub.f32 %v5869, %v5870
      %v5872 = vand.u32 %v5871, 4294901760
      %5873 = vmatmul.f32.gmra.mxu0 %v5872
      %v5874 = vpop.f32.mrf.mxu0
      %v5875 = vadd.f32 0.0, %v5874
      %5876 = vdwg.mxu0
      %5877 = vmatpush.msra.mxu0 0.0
      %5878 = vmatpush.msra.mxu0 0.0
      %5879 = vmatpush.msra.mxu0 0.0
      %5880 = vmatpush.msra.mxu0 0.0
      %5881 = vmatpush.msra.mxu0 0.0
      %5882 = vmatpush.msra.mxu0 0.0
      %5883 = vmatpush.msra.mxu0 0.0
      %5884 = vmatpush.msra.mxu0 0.0
      %5885 = vmatpush.msra.mxu0 0.0
      %5886 = vmatpush.msra.mxu0 0.0
      %5887 = vmatpush.msra.mxu0 0.0
      %5888 = vmatpush.msra.mxu0 0.0
      %5889 = vmatpush.msra.mxu0 0.0
      %5890 = vmatpush.msra.mxu0 0.0
      %v5891 = vand.u32 %v5689, 4294901760
      %v5892 = vsub.f32 %v5689, %v5891
      %v5893 = vand.u32 %v5892, 4294901760
      %v5894 = vsub.f32 %v5892, %v5893
      %v5895 = vand.u32 %v5894, 4294901760
      %5896 = vmatpush.msra.mxu0 %v5895
      %v5897 = vand.u32 %v5679, 4294901760
      %v5898 = vsub.f32 %v5679, %v5897
      %v5899 = vand.u32 %v5898, 4294901760
      %v5900 = vsub.f32 %v5898, %v5899
      %v5901 = vand.u32 %v5900, 4294901760
      %5902 = vmatpush.msra.mxu0 %v5901
      %v5903 = vand.u32 %v5685, 4294901760
      %5904 = vmatmul.f32.gmra.mxu0 %v5903
      %v5905 = vpop.f32.mrf.mxu0
      %v5906 = vadd.f32 %v5875, %v5905
      %5907 = vdwg.mxu0
      %5908 = vmatpush.msra.mxu0 0.0
      %5909 = vmatpush.msra.mxu0 0.0
      %5910 = vmatpush.msra.mxu0 0.0
      %5911 = vmatpush.msra.mxu0 0.0
      %5912 = vmatpush.msra.mxu0 0.0
      %5913 = vmatpush.msra.mxu0 0.0
      %5914 = vmatpush.msra.mxu0 0.0
      %5915 = vmatpush.msra.mxu0 0.0
      %5916 = vmatpush.msra.mxu0 0.0
      %5917 = vmatpush.msra.mxu0 0.0
      %5918 = vmatpush.msra.mxu0 0.0
      %5919 = vmatpush.msra.mxu0 0.0
      %5920 = vmatpush.msra.mxu0 0.0
      %5921 = vmatpush.msra.mxu0 0.0
      %v5922 = vand.u32 %v5689, 4294901760
      %v5923 = vsub.f32 %v5689, %v5922
      %5924 = vmatpush.msra.mxu0 %v5923
      %v5925 = vand.u32 %v5679, 4294901760
      %v5926 = vsub.f32 %v5679, %v5925
      %5927 = vmatpush.msra.mxu0 %v5926
      %v5928 = vand.u32 %v5685, 4294901760
      %v5929 = vsub.f32 %v5685, %v5928
      %5930 = vmatmul.f32.gmra.mxu0 %v5929
      %v5931 = vpop.f32.mrf.mxu0
      %v5932 = vadd.f32 %v5906, %v5931
      %5933 = vdwg.mxu0
      %5934 = vmatpush.msra.mxu0 0.0
      %5935 = vmatpush.msra.mxu0 0.0
      %5936 = vmatpush.msra.mxu0 0.0
      %5937 = vmatpush.msra.mxu0 0.0
      %5938 = vmatpush.msra.mxu0 0.0
      %5939 = vmatpush.msra.mxu0 0.0
      %5940 = vmatpush.msra.mxu0 0.0
      %5941 = vmatpush.msra.mxu0 0.0
      %5942 = vmatpush.msra.mxu0 0.0
      %5943 = vmatpush.msra.mxu0 0.0
      %5944 = vmatpush.msra.mxu0 0.0
      %5945 = vmatpush.msra.mxu0 0.0
      %5946 = vmatpush.msra.mxu0 0.0
      %5947 = vmatpush.msra.mxu0 0.0
      %v5948 = vand.u32 %v5689, 4294901760
      %5949 = vmatpush.msra.mxu0 %v5948
      %v5950 = vand.u32 %v5679, 4294901760
      %5951 = vmatpush.msra.mxu0 %v5950
      %v5952 = vand.u32 %v5685, 4294901760
      %v5953 = vsub.f32 %v5685, %v5952
      %v5954 = vand.u32 %v5953, 4294901760
      %5955 = vmatmul.f32.gmra.mxu0 %v5954
      %v5956 = vpop.f32.mrf.mxu0
      %v5957 = vadd.f32 %v5932, %v5956
      %5958 = vdwg.mxu0
      %5959 = vmatpush.msra.mxu0 0.0
      %5960 = vmatpush.msra.mxu0 0.0
      %5961 = vmatpush.msra.mxu0 0.0
      %5962 = vmatpush.msra.mxu0 0.0
      %5963 = vmatpush.msra.mxu0 0.0
      %5964 = vmatpush.msra.mxu0 0.0
      %5965 = vmatpush.msra.mxu0 0.0
      %5966 = vmatpush.msra.mxu0 0.0
      %5967 = vmatpush.msra.mxu0 0.0
      %5968 = vmatpush.msra.mxu0 0.0
      %5969 = vmatpush.msra.mxu0 0.0
      %5970 = vmatpush.msra.mxu0 0.0
      %5971 = vmatpush.msra.mxu0 0.0
      %5972 = vmatpush.msra.mxu0 0.0
      %v5973 = vand.u32 %v5689, 4294901760
      %v5974 = vsub.f32 %v5689, %v5973
      %v5975 = vand.u32 %v5974, 4294901760
      %5976 = vmatpush.msra.mxu0 %v5975
      %v5977 = vand.u32 %v5679, 4294901760
      %v5978 = vsub.f32 %v5679, %v5977
      %v5979 = vand.u32 %v5978, 4294901760
      %5980 = vmatpush.msra.mxu0 %v5979
      %v5981 = vand.u32 %v5685, 4294901760
      %5982 = vmatmul.f32.gmra.mxu0 %v5981
      %v5983 = vpop.f32.mrf.mxu0
      %v5984 = vadd.f32 %v5957, %v5983
      %5985 = vdwg.mxu0
      %5986 = vmatpush.msra.mxu0 0.0
      %5987 = vmatpush.msra.mxu0 0.0
      %5988 = vmatpush.msra.mxu0 0.0
      %5989 = vmatpush.msra.mxu0 0.0
      %5990 = vmatpush.msra.mxu0 0.0
      %5991 = vmatpush.msra.mxu0 0.0
      %5992 = vmatpush.msra.mxu0 0.0
      %5993 = vmatpush.msra.mxu0 0.0
      %5994 = vmatpush.msra.mxu0 0.0
      %5995 = vmatpush.msra.mxu0 0.0
      %5996 = vmatpush.msra.mxu0 0.0
      %5997 = vmatpush.msra.mxu0 0.0
      %5998 = vmatpush.msra.mxu0 0.0
      %5999 = vmatpush.msra.mxu0 0.0
      %v6000 = vand.u32 %v5689, 4294901760
      %6001 = vmatpush.msra.mxu0 %v6000
      %v6002 = vand.u32 %v5679, 4294901760
      %6003 = vmatpush.msra.mxu0 %v6002
      %v6004 = vand.u32 %v5685, 4294901760
      %6005 = vmatmul.f32.gmra.mxu0 %v6004
      %v6006 = vpop.f32.mrf.mxu0
      %v6007 = vadd.f32 %v5984, %v6006
      %6008 = vdwg.mxu0
      %v6009 = vadd.f32 %v5662, %v5848
      %v6010 = vadd.f32 %v5663, %v6007
      %6011 = vrot.lane.b32.xlu0 %v4942, 111
      %v6012 = vpop.permute.xlu0 %6011
      %6013 = vrot.lane.b32.xlu0 %v4943, 111
      %v6014 = vpop.permute.xlu0 %6013
      %6015 = vrot.lane.b32.xlu0 %v4944, 111
      %v6016 = vpop.permute.xlu0 %6015
      %6017 = vrot.lane.b32.xlu0 %v4945, 111
      %v6018 = vpop.permute.xlu0 %6017
      %6019 = vrot.lane.b32.xlu0 %v4946, 111
      %v6020 = vpop.permute.xlu0 %6019
      %6021 = vrot.lane.b32.xlu0 %v4947, 111
      %v6022 = vpop.permute.xlu0 %6021
      %v6023 = vsel %vm2852, %v6012, %v6014
      %v6024 = vsel %vm2852, %v6014, %v6016
      %v6025 = vsel %vm2852, %v6018, %v6020
      %v6026 = vsel %vm2852, %v6020, %v6022
      %v6031 = vsel %vm951, %v6023, 0.0
      %v6032 = vsel %vm952, %v6024, 0.0
      %v6033 = vsel %vm951, %v6025, 0.0
      %v6034 = vsel %vm952, %v6026, 0.0
      %s6035 = scalar_lea.vmem %s4, 32
      %v6036 = vld [vmem:[%s6035] sm:$0xf]
      %v6038 = vsel %vm3249, %v6036, 0
      %v6041 = vsel %vm3253, %v6033, 0
      %v6044 = vsel %vm3253, %v6034, 0
      %6046 = vmatpush.msra.mxu0 0.0
      %6047 = vmatpush.msra.mxu0 0.0
      %6048 = vmatpush.msra.mxu0 0.0
      %6049 = vmatpush.msra.mxu0 0.0
      %6050 = vmatpush.msra.mxu0 0.0
      %6051 = vmatpush.msra.mxu0 0.0
      %6052 = vmatpush.msra.mxu0 0.0
      %6053 = vmatpush.msra.mxu0 0.0
      %6054 = vmatpush.msra.mxu0 0.0
      %6055 = vmatpush.msra.mxu0 0.0
      %6056 = vmatpush.msra.mxu0 0.0
      %6057 = vmatpush.msra.mxu0 0.0
      %6058 = vmatpush.msra.mxu0 0.0
      %6059 = vmatpush.msra.mxu0 0.0
      %v6060 = vand.u32 %v6041, 4294901760
      %6061 = vmatpush.msra.mxu0 %v6060
      %v6062 = vand.u32 %v6031, 4294901760
      %6063 = vmatpush.msra.mxu0 %v6062
      %v6064 = vand.u32 %v6038, 4294901760
      %v6065 = vsub.f32 %v6038, %v6064
      %v6066 = vand.u32 %v6065, 4294901760
      %v6067 = vsub.f32 %v6065, %v6066
      %v6068 = vand.u32 %v6067, 4294901760
      %6069 = vmatmul.f32.gmra.mxu0 %v6068
      %v6070 = vpop.f32.mrf.mxu0
      %v6071 = vadd.f32 0.0, %v6070
      %6072 = vdwg.mxu0
      %6073 = vmatpush.msra.mxu0 0.0
      %6074 = vmatpush.msra.mxu0 0.0
      %6075 = vmatpush.msra.mxu0 0.0
      %6076 = vmatpush.msra.mxu0 0.0
      %6077 = vmatpush.msra.mxu0 0.0
      %6078 = vmatpush.msra.mxu0 0.0
      %6079 = vmatpush.msra.mxu0 0.0
      %6080 = vmatpush.msra.mxu0 0.0
      %6081 = vmatpush.msra.mxu0 0.0
      %6082 = vmatpush.msra.mxu0 0.0
      %6083 = vmatpush.msra.mxu0 0.0
      %6084 = vmatpush.msra.mxu0 0.0
      %6085 = vmatpush.msra.mxu0 0.0
      %6086 = vmatpush.msra.mxu0 0.0
      %v6087 = vand.u32 %v6041, 4294901760
      %v6088 = vsub.f32 %v6041, %v6087
      %v6089 = vand.u32 %v6088, 4294901760
      %v6090 = vsub.f32 %v6088, %v6089
      %v6091 = vand.u32 %v6090, 4294901760
      %6092 = vmatpush.msra.mxu0 %v6091
      %v6093 = vand.u32 %v6031, 4294901760
      %v6094 = vsub.f32 %v6031, %v6093
      %v6095 = vand.u32 %v6094, 4294901760
      %v6096 = vsub.f32 %v6094, %v6095
      %v6097 = vand.u32 %v6096, 4294901760
      %6098 = vmatpush.msra.mxu0 %v6097
      %v6099 = vand.u32 %v6038, 4294901760
      %6100 = vmatmul.f32.gmra.mxu0 %v6099
      %v6101 = vpop.f32.mrf.mxu0
      %v6102 = vadd.f32 %v6071, %v6101
      %6103 = vdwg.mxu0
      %6104 = vmatpush.msra.mxu0 0.0
      %6105 = vmatpush.msra.mxu0 0.0
      %6106 = vmatpush.msra.mxu0 0.0
      %6107 = vmatpush.msra.mxu0 0.0
      %6108 = vmatpush.msra.mxu0 0.0
      %6109 = vmatpush.msra.mxu0 0.0
      %6110 = vmatpush.msra.mxu0 0.0
      %6111 = vmatpush.msra.mxu0 0.0
      %6112 = vmatpush.msra.mxu0 0.0
      %6113 = vmatpush.msra.mxu0 0.0
      %6114 = vmatpush.msra.mxu0 0.0
      %6115 = vmatpush.msra.mxu0 0.0
      %6116 = vmatpush.msra.mxu0 0.0
      %6117 = vmatpush.msra.mxu0 0.0
      %v6118 = vand.u32 %v6041, 4294901760
      %v6119 = vsub.f32 %v6041, %v6118
      %6120 = vmatpush.msra.mxu0 %v6119
      %v6121 = vand.u32 %v6031, 4294901760
      %v6122 = vsub.f32 %v6031, %v6121
      %6123 = vmatpush.msra.mxu0 %v6122
      %v6124 = vand.u32 %v6038, 4294901760
      %v6125 = vsub.f32 %v6038, %v6124
      %6126 = vmatmul.f32.gmra.mxu0 %v6125
      %v6127 = vpop.f32.mrf.mxu0
      %v6128 = vadd.f32 %v6102, %v6127
      %6129 = vdwg.mxu0
      %6130 = vmatpush.msra.mxu0 0.0
      %6131 = vmatpush.msra.mxu0 0.0
      %6132 = vmatpush.msra.mxu0 0.0
      %6133 = vmatpush.msra.mxu0 0.0
      %6134 = vmatpush.msra.mxu0 0.0
      %6135 = vmatpush.msra.mxu0 0.0
      %6136 = vmatpush.msra.mxu0 0.0
      %6137 = vmatpush.msra.mxu0 0.0
      %6138 = vmatpush.msra.mxu0 0.0
      %6139 = vmatpush.msra.mxu0 0.0
      %6140 = vmatpush.msra.mxu0 0.0
      %6141 = vmatpush.msra.mxu0 0.0
      %6142 = vmatpush.msra.mxu0 0.0
      %6143 = vmatpush.msra.mxu0 0.0
      %v6144 = vand.u32 %v6041, 4294901760
      %6145 = vmatpush.msra.mxu0 %v6144
      %v6146 = vand.u32 %v6031, 4294901760
      %6147 = vmatpush.msra.mxu0 %v6146
      %v6148 = vand.u32 %v6038, 4294901760
      %v6149 = vsub.f32 %v6038, %v6148
      %v6150 = vand.u32 %v6149, 4294901760
      %6151 = vmatmul.f32.gmra.mxu0 %v6150
      %v6152 = vpop.f32.mrf.mxu0
      %v6153 = vadd.f32 %v6128, %v6152
      %6154 = vdwg.mxu0
      %6155 = vmatpush.msra.mxu0 0.0
      %6156 = vmatpush.msra.mxu0 0.0
      %6157 = vmatpush.msra.mxu0 0.0
      %6158 = vmatpush.msra.mxu0 0.0
      %6159 = vmatpush.msra.mxu0 0.0
      %6160 = vmatpush.msra.mxu0 0.0
      %6161 = vmatpush.msra.mxu0 0.0
      %6162 = vmatpush.msra.mxu0 0.0
      %6163 = vmatpush.msra.mxu0 0.0
      %6164 = vmatpush.msra.mxu0 0.0
      %6165 = vmatpush.msra.mxu0 0.0
      %6166 = vmatpush.msra.mxu0 0.0
      %6167 = vmatpush.msra.mxu0 0.0
      %6168 = vmatpush.msra.mxu0 0.0
      %v6169 = vand.u32 %v6041, 4294901760
      %v6170 = vsub.f32 %v6041, %v6169
      %v6171 = vand.u32 %v6170, 4294901760
      %6172 = vmatpush.msra.mxu0 %v6171
      %v6173 = vand.u32 %v6031, 4294901760
      %v6174 = vsub.f32 %v6031, %v6173
      %v6175 = vand.u32 %v6174, 4294901760
      %6176 = vmatpush.msra.mxu0 %v6175
      %v6177 = vand.u32 %v6038, 4294901760
      %6178 = vmatmul.f32.gmra.mxu0 %v6177
      %v6179 = vpop.f32.mrf.mxu0
      %v6180 = vadd.f32 %v6153, %v6179
      %6181 = vdwg.mxu0
      %6182 = vmatpush.msra.mxu0 0.0
      %6183 = vmatpush.msra.mxu0 0.0
      %6184 = vmatpush.msra.mxu0 0.0
      %6185 = vmatpush.msra.mxu0 0.0
      %6186 = vmatpush.msra.mxu0 0.0
      %6187 = vmatpush.msra.mxu0 0.0
      %6188 = vmatpush.msra.mxu0 0.0
      %6189 = vmatpush.msra.mxu0 0.0
      %6190 = vmatpush.msra.mxu0 0.0
      %6191 = vmatpush.msra.mxu0 0.0
      %6192 = vmatpush.msra.mxu0 0.0
      %6193 = vmatpush.msra.mxu0 0.0
      %6194 = vmatpush.msra.mxu0 0.0
      %6195 = vmatpush.msra.mxu0 0.0
      %v6196 = vand.u32 %v6041, 4294901760
      %6197 = vmatpush.msra.mxu0 %v6196
      %v6198 = vand.u32 %v6031, 4294901760
      %6199 = vmatpush.msra.mxu0 %v6198
      %v6200 = vand.u32 %v6038, 4294901760
      %6201 = vmatmul.f32.gmra.mxu0 %v6200
      %v6202 = vpop.f32.mrf.mxu0
      %v6203 = vadd.f32 %v6180, %v6202
      %6204 = vdwg.mxu0
      %6205 = vmatpush.msra.mxu0 0.0
      %6206 = vmatpush.msra.mxu0 0.0
      %6207 = vmatpush.msra.mxu0 0.0
      %6208 = vmatpush.msra.mxu0 0.0
      %6209 = vmatpush.msra.mxu0 0.0
      %6210 = vmatpush.msra.mxu0 0.0
      %6211 = vmatpush.msra.mxu0 0.0
      %6212 = vmatpush.msra.mxu0 0.0
      %6213 = vmatpush.msra.mxu0 0.0
      %6214 = vmatpush.msra.mxu0 0.0
      %6215 = vmatpush.msra.mxu0 0.0
      %6216 = vmatpush.msra.mxu0 0.0
      %6217 = vmatpush.msra.mxu0 0.0
      %6218 = vmatpush.msra.mxu0 0.0
      %v6219 = vand.u32 %v6044, 4294901760
      %6220 = vmatpush.msra.mxu0 %v6219
      %v6221 = vand.u32 %v6032, 4294901760
      %6222 = vmatpush.msra.mxu0 %v6221
      %v6223 = vand.u32 %v6038, 4294901760
      %v6224 = vsub.f32 %v6038, %v6223
      %v6225 = vand.u32 %v6224, 4294901760
      %v6226 = vsub.f32 %v6224, %v6225
      %v6227 = vand.u32 %v6226, 4294901760
      %6228 = vmatmul.f32.gmra.mxu0 %v6227
      %v6229 = vpop.f32.mrf.mxu0
      %v6230 = vadd.f32 0.0, %v6229
      %6231 = vdwg.mxu0
      %6232 = vmatpush.msra.mxu0 0.0
      %6233 = vmatpush.msra.mxu0 0.0
      %6234 = vmatpush.msra.mxu0 0.0
      %6235 = vmatpush.msra.mxu0 0.0
      %6236 = vmatpush.msra.mxu0 0.0
      %6237 = vmatpush.msra.mxu0 0.0
      %6238 = vmatpush.msra.mxu0 0.0
      %6239 = vmatpush.msra.mxu0 0.0
      %6240 = vmatpush.msra.mxu0 0.0
      %6241 = vmatpush.msra.mxu0 0.0
      %6242 = vmatpush.msra.mxu0 0.0
      %6243 = vmatpush.msra.mxu0 0.0
      %6244 = vmatpush.msra.mxu0 0.0
      %6245 = vmatpush.msra.mxu0 0.0
      %v6246 = vand.u32 %v6044, 4294901760
      %v6247 = vsub.f32 %v6044, %v6246
      %v6248 = vand.u32 %v6247, 4294901760
      %v6249 = vsub.f32 %v6247, %v6248
      %v6250 = vand.u32 %v6249, 4294901760
      %6251 = vmatpush.msra.mxu0 %v6250
      %v6252 = vand.u32 %v6032, 4294901760
      %v6253 = vsub.f32 %v6032, %v6252
      %v6254 = vand.u32 %v6253, 4294901760
      %v6255 = vsub.f32 %v6253, %v6254
      %v6256 = vand.u32 %v6255, 4294901760
      %6257 = vmatpush.msra.mxu0 %v6256
      %v6258 = vand.u32 %v6038, 4294901760
      %6259 = vmatmul.f32.gmra.mxu0 %v6258
      %v6260 = vpop.f32.mrf.mxu0
      %v6261 = vadd.f32 %v6230, %v6260
      %6262 = vdwg.mxu0
      %6263 = vmatpush.msra.mxu0 0.0
      %6264 = vmatpush.msra.mxu0 0.0
      %6265 = vmatpush.msra.mxu0 0.0
      %6266 = vmatpush.msra.mxu0 0.0
      %6267 = vmatpush.msra.mxu0 0.0
      %6268 = vmatpush.msra.mxu0 0.0
      %6269 = vmatpush.msra.mxu0 0.0
      %6270 = vmatpush.msra.mxu0 0.0
      %6271 = vmatpush.msra.mxu0 0.0
      %6272 = vmatpush.msra.mxu0 0.0
      %6273 = vmatpush.msra.mxu0 0.0
      %6274 = vmatpush.msra.mxu0 0.0
      %6275 = vmatpush.msra.mxu0 0.0
      %6276 = vmatpush.msra.mxu0 0.0
      %v6277 = vand.u32 %v6044, 4294901760
      %v6278 = vsub.f32 %v6044, %v6277
      %6279 = vmatpush.msra.mxu0 %v6278
      %v6280 = vand.u32 %v6032, 4294901760
      %v6281 = vsub.f32 %v6032, %v6280
      %6282 = vmatpush.msra.mxu0 %v6281
      %v6283 = vand.u32 %v6038, 4294901760
      %v6284 = vsub.f32 %v6038, %v6283
      %6285 = vmatmul.f32.gmra.mxu0 %v6284
      %v6286 = vpop.f32.mrf.mxu0
      %v6287 = vadd.f32 %v6261, %v6286
      %6288 = vdwg.mxu0
      %6289 = vmatpush.msra.mxu0 0.0
      %6290 = vmatpush.msra.mxu0 0.0
      %6291 = vmatpush.msra.mxu0 0.0
      %6292 = vmatpush.msra.mxu0 0.0
      %6293 = vmatpush.msra.mxu0 0.0
      %6294 = vmatpush.msra.mxu0 0.0
      %6295 = vmatpush.msra.mxu0 0.0
      %6296 = vmatpush.msra.mxu0 0.0
      %6297 = vmatpush.msra.mxu0 0.0
      %6298 = vmatpush.msra.mxu0 0.0
      %6299 = vmatpush.msra.mxu0 0.0
      %6300 = vmatpush.msra.mxu0 0.0
      %6301 = vmatpush.msra.mxu0 0.0
      %6302 = vmatpush.msra.mxu0 0.0
      %v6303 = vand.u32 %v6044, 4294901760
      %6304 = vmatpush.msra.mxu0 %v6303
      %v6305 = vand.u32 %v6032, 4294901760
      %6306 = vmatpush.msra.mxu0 %v6305
      %v6307 = vand.u32 %v6038, 4294901760
      %v6308 = vsub.f32 %v6038, %v6307
      %v6309 = vand.u32 %v6308, 4294901760
      %6310 = vmatmul.f32.gmra.mxu0 %v6309
      %v6311 = vpop.f32.mrf.mxu0
      %v6312 = vadd.f32 %v6287, %v6311
      %6313 = vdwg.mxu0
      %6314 = vmatpush.msra.mxu0 0.0
      %6315 = vmatpush.msra.mxu0 0.0
      %6316 = vmatpush.msra.mxu0 0.0
      %6317 = vmatpush.msra.mxu0 0.0
      %6318 = vmatpush.msra.mxu0 0.0
      %6319 = vmatpush.msra.mxu0 0.0
      %6320 = vmatpush.msra.mxu0 0.0
      %6321 = vmatpush.msra.mxu0 0.0
      %6322 = vmatpush.msra.mxu0 0.0
      %6323 = vmatpush.msra.mxu0 0.0
      %6324 = vmatpush.msra.mxu0 0.0
      %6325 = vmatpush.msra.mxu0 0.0
      %6326 = vmatpush.msra.mxu0 0.0
      %6327 = vmatpush.msra.mxu0 0.0
      %v6328 = vand.u32 %v6044, 4294901760
      %v6329 = vsub.f32 %v6044, %v6328
      %v6330 = vand.u32 %v6329, 4294901760
      %6331 = vmatpush.msra.mxu0 %v6330
      %v6332 = vand.u32 %v6032, 4294901760
      %v6333 = vsub.f32 %v6032, %v6332
      %v6334 = vand.u32 %v6333, 4294901760
      %6335 = vmatpush.msra.mxu0 %v6334
      %v6336 = vand.u32 %v6038, 4294901760
      %6337 = vmatmul.f32.gmra.mxu0 %v6336
      %v6338 = vpop.f32.mrf.mxu0
      %v6339 = vadd.f32 %v6312, %v6338
      %6340 = vdwg.mxu0
      %6341 = vmatpush.msra.mxu0 0.0
      %6342 = vmatpush.msra.mxu0 0.0
      %6343 = vmatpush.msra.mxu0 0.0
      %6344 = vmatpush.msra.mxu0 0.0
      %6345 = vmatpush.msra.mxu0 0.0
      %6346 = vmatpush.msra.mxu0 0.0
      %6347 = vmatpush.msra.mxu0 0.0
      %6348 = vmatpush.msra.mxu0 0.0
      %6349 = vmatpush.msra.mxu0 0.0
      %6350 = vmatpush.msra.mxu0 0.0
      %6351 = vmatpush.msra.mxu0 0.0
      %6352 = vmatpush.msra.mxu0 0.0
      %6353 = vmatpush.msra.mxu0 0.0
      %6354 = vmatpush.msra.mxu0 0.0
      %v6355 = vand.u32 %v6044, 4294901760
      %6356 = vmatpush.msra.mxu0 %v6355
      %v6357 = vand.u32 %v6032, 4294901760
      %6358 = vmatpush.msra.mxu0 %v6357
      %v6359 = vand.u32 %v6038, 4294901760
      %6360 = vmatmul.f32.gmra.mxu0 %v6359
      %v6361 = vpop.f32.mrf.mxu0
      %v6362 = vadd.f32 %v6339, %v6361
      %6363 = vdwg.mxu0
      %v6364 = vadd.f32 %v6009, %v6203
      %v6365 = vadd.f32 %v6010, %v6362
      %v6366 = vld [vmem:[%s5] sm:$0xf]
      %6368 = vset.pattern.permute.xlu0 0
      %6369 = vperm.xlu0 %6368, %v6366
      %v6370 = vpop.permute.xlu0 %6369
      %v6372 = vadd.f32 %v6364, %v6370
      %v6373 = vadd.f32 %v6365, %v6370
      %v6376 = vrot.slane %v6373, 4
      %vm6377 = vcmask 1043456
      %v6378 = vsel %vm6377, %v6372, %v6376
      %6380 = vst [vmem:[%s252] sm:$0xff] %v6378
      %p6381 = scmp.lt.s32.totalorder %s18, 1
      %s6382 = scalar_select %p6381, %s18, 1
      %s6383 = smul.addr %s6382, 2
      %s6384 = smul.addr %s6383, 4
      %s6385 = scalar_lea.vmem %s6, %s6384
      // Predicated region
      $region45: #{diffeq_sequential.1} parent=43 // pred_check
        %p6386 = pneg %p167
      $region46: #{diffeq_sequential.1} parent=43 // pred_check_branch
        %6388 = sbr.rel (%p6386) target = $region48
      $region47: #{diffeq_sequential.1} parent=43 // pred_region
        _
      $region48: #{diffeq_sequential.1} parent=43 // pred_fallthru
        _
    $region44: #{diffeq_sequential.1} parent=5 // pred_fallthru
      _
    %p6389 = scmp.le.s32.totalorder 2, %s13
    // Predicated region
    $region49: #{diffeq_sequential.1} parent=5 // pred_check
      %p6390 = pneg %p6389
    $region50: #{diffeq_sequential.1} parent=5 // pred_check_branch
      %6392 = sbr.rel (%p6390) target = $region52
    $region51: #{diffeq_sequential.1} parent=5 // pred_region
      %s6393 = ssub.s32 %s13, 2
      // Predicated region
      $region53: #{diffeq_sequential.1} parent=51 // pred_check
        %p6394 = pneg %p173
      $region54: #{diffeq_sequential.1} parent=51 // pred_check_branch
        %6396 = sbr.rel (%p6394) target = $region56
      $region55: #{diffeq_sequential.1} parent=51 // pred_region
        %p6397 = scmp.lt.s32.totalorder %s19, 1
        %s6398 = scalar_select %p6397, %s19, 1
        %s6399 = smul.addr %s6398, 2
        %s6400 = smul.addr %s6399, 4
        %s6401 = scalar_lea.vmem %s6, %s6400
      $region56: #{diffeq_sequential.1} parent=51 // pred_fallthru
        _
    $region52: #{diffeq_sequential.1} parent=5 // pred_fallthru
      _
  $region6: #{diffeq_sequential.1} parent=0 // loop_footer
    %s17 = sadd.s32 1, %s13
  $region7: #{diffeq_sequential.1} parent=0 // loop_footer_branch
    %12 = sbr.rel target = $region3
  $region8: #{diffeq_sequential.1} parent=0 // loop_exit
    _

</llo_original>
